<compile_context>
chip_gen: v7x
topology: tpu7x:2x2x1
jax: 0.10.0
libtpu: 0.0.40
codegen_flags: <defaults>
</compile_context>

<pallas_src>
import functools
import math

import jax
import jax.numpy as jnp
from jax.experimental import pallas as pl
from jax.experimental.pallas import tpu as pltpu


# ----------------------------------------------------------------------------
# Kernel 1: ConvTranspose2d(3, stride=2, pad=1, output_padding=1) + BN + ReLU
#           via subpixel / parity decomposition, one MXU matmul.
# ----------------------------------------------------------------------------
def _transconv_kernel(x_ref, w_ref, b_ref, o_ref, *, Wl, Qt):
    """x_ref: (1, Qt + Wl + 1, Cin) flattened (H, W+1)-padded input (bf16)
       w_ref: (4*Cin, 4*Cout)  rows: [x(m,n), x(m,n+1), x(m+1,n), x(m+1,n+1)]
                               cols: parity groups g = 2*py + px
       b_ref: (1, 4*Cout)      folded BN shift (+ bias), tiled per parity
       o_ref: (1, Qt, 4*Cout)  parity-packed upsampled activation (bf16)"""
    x00 = x_ref[0, pl.ds(0, Qt), :]
    x01 = x_ref[0, pl.ds(1, Qt), :]
    x10 = x_ref[0, pl.ds(Wl, Qt), :]
    x11 = x_ref[0, pl.ds(Wl + 1, Qt), :]
    patch = jnp.concatenate([x00, x01, x10, x11], axis=-1)       # (Qt, 4*Cin)
    y = jnp.dot(patch, w_ref[...], preferred_element_type=jnp.float32)
    y = jnp.maximum(y + b_ref[...], 0.0)                         # BN shift + ReLU
    o_ref[0] = y.astype(o_ref.dtype)


# ----------------------------------------------------------------------------
# Kernel 2: fused [concat(up, skip) -> conv3x3+BN+ReLU -> conv3x3+BN+ReLU]
#           intermediate kept in VMEM scratch; im2col lane-fused matmuls.
# ----------------------------------------------------------------------------
def _double_conv_kernel(u_ref, s_ref, w1_ref, b1_ref, w2_ref, b2_ref, m_ref,
                        o_ref, h_ref, *, Wq, Q):
    """u_ref/s_ref: (1, F, C) flattened+padded upsampled / skip activations
       w1_ref: (18*C, C)  conv1 taps, rows = [u taps 0..8 | skip taps 0..8]
       w2_ref: (9*C, C)   conv2 taps
       b1/b2:  (1, C)     folded BN shifts
       m_ref:  (Q, 1)     interior mask on the padded output grid
       o_ref:  (1, Q, C)  conv2 output on the padded grid (wrapper crops halo)
       h_ref:  (F, C)     VMEM scratch holding the padded conv1 output"""
    cm = o_ref.shape[-1]

    def im2col(load):
        cols = []
        for dy in range(3):
            v = load(dy * Wq, Q + 2)          # one aligned wide load per dy
            for dx in range(3):
                cols.append(v[dx:dx + Q, :])  # dx shifts as value slices
        return cols

    # ---- conv1 over the (virtual) channel concat of [upsampled, skip] ----
    cols = im2col(lambda s, n: u_ref[0, pl.ds(s, n), :])
    cols += im2col(lambda s, n: s_ref[0, pl.ds(s, n), :])
    patch = jnp.concatenate(cols, axis=-1)                       # (Q, 18*C) bf16
    y1 = jnp.dot(patch, w1_ref[...], preferred_element_type=jnp.float32)
    y1 = jnp.maximum(y1 + b1_ref[...], 0.0) * m_ref[...]         # shift+ReLU, zero halo

    # ---- stage conv1 output into the padded flat layout conv2 expects ----
    h_ref[pl.ds(0, Wq + 1), :] = jnp.zeros((Wq + 1, cm), h_ref.dtype)
    h_ref[pl.ds(Wq + 1, Q), :] = y1.astype(h_ref.dtype)
    h_ref[pl.ds(Wq + 1 + Q, Wq + 2), :] = jnp.zeros((Wq + 2, cm), h_ref.dtype)

    # ---- conv2 ----
    cols2 = im2col(lambda s, n: h_ref[pl.ds(s, n), :])
    patch2 = jnp.concatenate(cols2, axis=-1)                     # (Q, 9*C)
    y2 = jnp.dot(patch2, w2_ref[...], preferred_element_type=jnp.float32)
    o_ref[0] = jnp.maximum(y2 + b2_ref[...], 0.0)


# ----------------------------------------------------------------------------
# Wrapper (public API: NCHW in, NCHW out, like the PyTorch module)
# ----------------------------------------------------------------------------
def upsam_forward(params, x_nchw, feat_nchw):
    x = jnp.transpose(x_nchw, (0, 2, 3, 1)).astype(jnp.bfloat16)     # NCHW->NHWC
    skip = jnp.transpose(feat_nchw, (0, 2, 3, 1)).astype(jnp.bfloat16)
    N, H, W, Cin = x.shape
    Cm = params["shift1"].shape[-1]
    Ho, Wo = 2 * H, 2 * W
    assert skip.shape == (N, Ho, Wo, Cm)

    # ---------------- stage 1: subpixel transposed conv ----------------
    Wl = W + 1                       # one zero column on the right
    Qt = H * Wl
    Ft = Qt + Wl + 1
    xf = jnp.pad(x, ((0, 0), (0, 0), (0, 1), (0, 0))).reshape(N, Qt, Cin)
    xf = jnp.pad(xf, ((0, 0), (0, Wl + 1), (0, 0)))                  # (N, Ft, Cin)

    up4 = pl.pallas_call(
        functools.partial(_transconv_kernel, Wl=Wl, Qt=Qt),
        out_shape=jax.ShapeDtypeStruct((N, Qt, 4 * Cm), jnp.bfloat16),
        grid=(N,),
        in_specs=[
            pl.BlockSpec((1, Ft, Cin), lambda n: (n, 0, 0)),
            pl.BlockSpec((4 * Cin, 4 * Cm), lambda n: (0, 0)),
            pl.BlockSpec((1, 4 * Cm), lambda n: (0, 0)),
        ],
        out_specs=pl.BlockSpec((1, Qt, 4 * Cm), lambda n: (n, 0, 0)),
        compiler_params=pltpu.CompilerParams(dimension_semantics=("parallel",)),
    )(xf, params["w_up"].astype(jnp.bfloat16), params["shift_t4"])

    # parity un-pack (pure layout glue): (N,Qt,4Cm) -> (N, 2H, 2W, Cm)
    up = up4.reshape(N, H, Wl, 2, 2, Cm)[:, :, :W]
    up = jnp.transpose(up, (0, 1, 3, 2, 4, 5)).reshape(N, Ho, Wo, Cm)

    # ------------- stage 2: fused concat + conv1 + conv2 ----------------
    Wq = -(-(Wo + 2) // 8) * 8       # padded row width, multiple of 8 (aligned loads)
    Q = (Ho + 2) * Wq
    F = (Ho + 4) * Wq + 3

    def to_flat(a):
        a = jnp.pad(a, ((0, 0), (2, 2), (1, Wq - Wo - 1), (0, 0)))   # (N, Ho+4, Wq, Cm)
        a = a.reshape(N, (Ho + 4) * Wq, Cm)
        return jnp.pad(a, ((0, 0), (1, 2), (0, 0)))                  # (N, F, Cm)

    uf = to_flat(up)
    sf = to_flat(skip)

    idx = jnp.arange(Q)
    yo, xo = idx // Wq, idx % Wq
    mask = ((yo >= 1) & (yo <= Ho) & (xo >= 1) & (xo <= Wo)
            ).astype(jnp.float32)[:, None]                           # (Q, 1)

    out = pl.pallas_call(
        functools.partial(_double_conv_kernel, Wq=Wq, Q=Q),
        out_shape=jax.ShapeDtypeStruct((N, Q, Cm), jnp.float32),
        grid=(N,),
        in_specs=[
            pl.BlockSpec((1, F, Cm), lambda n: (n, 0, 0)),
            pl.BlockSpec((1, F, Cm), lambda n: (n, 0, 0)),
            pl.BlockSpec((18 * Cm, Cm), lambda n: (0, 0)),
            pl.BlockSpec((1, Cm), lambda n: (0, 0)),
            pl.BlockSpec((9 * Cm, Cm), lambda n: (0, 0)),
            pl.BlockSpec((1, Cm), lambda n: (0, 0)),
            pl.BlockSpec((Q, 1), lambda n: (0, 0)),
        ],
        out_specs=pl.BlockSpec((1, Q, Cm), lambda n: (n, 0, 0)),
        scratch_shapes=[pltpu.VMEM((F, Cm), jnp.bfloat16)],
        compiler_params=pltpu.CompilerParams(dimension_semantics=("parallel",)),
    )(uf, sf, params["w1_pack"].astype(jnp.bfloat16), params["shift1"],
      params["w2_pack"].astype(jnp.bfloat16), params["shift2"], mask)

    y = out.reshape(N, Ho + 2, Wq, Cm)[:, 1:Ho + 1, 1:Wo + 1, :]     # crop halo
    return jnp.transpose(y, (0, 3, 1, 2))                            # NHWC -> NCHW


# ----------------------------------------------------------------------------
# Parameters (deterministic, synthetic) + packing for the kernels
# ----------------------------------------------------------------------------
def init_upsam_params(key, in_ch, out_ch, eps=1e-5):
    cm = out_ch
    ks = jax.random.split(key, 9)

    def bn(k, c):
        k1, k2, k3, k4 = jax.random.split(k, 4)
        gamma = 1.0 + 0.1 * jax.random.normal(k1, (c,), jnp.float32)
        beta = 0.1 * jax.random.normal(k2, (c,), jnp.float32)
        mean = 0.1 * jax.random.normal(k3, (c,), jnp.float32)
        var = 1.0 + 0.1 * jnp.abs(jax.random.normal(k4, (c,), jnp.float32))
        return gamma, beta, mean, var

    def fold(w, b, bnp):
        gamma, beta, mean, var = bnp
        scale = gamma / jnp.sqrt(var + eps)
        return w * scale, beta + (b - mean) * scale

    # Transposed conv weights in (kh, kw, Cin, Cout) layout.  (A PyTorch
    # ConvTranspose2d state dict (Cin, Cout, kh, kw) maps via transpose(2,3,0,1).)
    wt = jax.random.normal(ks[0], (3, 3, in_ch, cm), jnp.float32) / math.sqrt(9 * in_ch)
    bt = 0.02 * jax.random.normal(ks[1], (cm,), jnp.float32)
    wt_f, shift_t = fold(wt, bt, bn(ks[2], cm))

    w1 = jax.random.normal(ks[3], (3, 3, 2 * cm, cm), jnp.float32) / math.sqrt(18 * cm)
    b1 = 0.02 * jax.random.normal(ks[4], (cm,), jnp.float32)
    w1_f, shift1 = fold(w1, b1, bn(ks[5], cm))

    w2 = jax.random.normal(ks[6], (3, 3, cm, cm), jnp.float32) / math.sqrt(9 * cm)
    b2 = 0.02 * jax.random.normal(ks[7], (cm,), jnp.float32)
    w2_f, shift2 = fold(w2, b2, bn(ks[8], cm))

    # --- pack for the Pallas kernels ---
    z = jnp.zeros((in_ch, cm), jnp.float32)
    col = lambda a, b_, c, d: jnp.concatenate([a, b_, c, d], axis=0)
    w_up = jnp.concatenate([
        col(wt_f[1, 1], z,           z,           z),              # (even, even)
        col(wt_f[1, 2], wt_f[1, 0],  z,           z),              # (even, odd)
        col(wt_f[2, 1], z,           wt_f[0, 1],  z),              # (odd,  even)
        col(wt_f[2, 2], wt_f[2, 0],  wt_f[0, 2],  wt_f[0, 0]),     # (odd,  odd)
    ], axis=1)                                                     # (4*Cin, 4*Cm)
    shift_t4 = jnp.tile(shift_t, 4)[None, :]                       # (1, 4*Cm)

    w1_pack = jnp.concatenate(
        [w1_f[ky, kx, :cm, :] for ky in range(3) for kx in range(3)]
        + [w1_f[ky, kx, cm:, :] for ky in range(3) for kx in range(3)],
        axis=0)                                                    # (18*Cm, Cm)
    w2_pack = jnp.concatenate(
        [w2_f[ky, kx] for ky in range(3) for kx in range(3)], axis=0)  # (9*Cm, Cm)

    return dict(
        wt_f=wt_f, shift_t=shift_t, w1_f=w1_f, w2_f=w2_f,
        w_up=w_up, shift_t4=shift_t4,
        w1_pack=w1_pack, shift1=shift1[None, :],
        w2_pack=w2_pack, shift2=shift2[None, :],
    )


# ----------------------------------------------------------------------------
# Pure-XLA reference (same bf16 rounding points) for numerical validation
# ----------------------------------------------------------------------------
def upsam_reference(params, x_nchw, feat_nchw):
    rb = lambda a: a.astype(jnp.bfloat16).astype(jnp.float32)
    dn = ("NHWC", "HWIO", "NHWC")
    hp = jax.lax.Precision.HIGHEST
    x = rb(jnp.transpose(x_nchw, (0, 2, 3, 1)))
    skip = rb(jnp.transpose(feat_nchw, (0, 2, 3, 1)))

    # ConvTranspose2d(k=3,s=2,p=1,op=1) == lhs-dilated conv with spatially
    # flipped taps and padding (k-1-p, k-1-p+op) = (1, 2).
    up = jax.lax.conv_general_dilated(
        x, rb(params["wt_f"])[::-1, ::-1], window_strides=(1, 1),
        padding=((1, 2), (1, 2)), lhs_dilation=(2, 2),
        dimension_numbers=dn, precision=hp)
    up = rb(jnp.maximum(up + params["shift_t"], 0.0))

    cat = jnp.concatenate([up, skip], axis=-1)
    h = jax.lax.conv_general_dilated(cat, rb(params["w1_f"]), (1, 1),
                                     ((1, 1), (1, 1)), dimension_numbers=dn,
                                     precision=hp)
    h = rb(jnp.maximum(h + params["shift1"], 0.0))
    y = jax.lax.conv_general_dilated(h, rb(params["w2_f"]), (1, 1),
                                     ((1, 1), (1, 1)), dimension_numbers=dn,
                                     precision=hp)
    y = jnp.maximum(y + params["shift2"], 0.0)
    return jnp.transpose(y, (0, 3, 1, 2))


if __name__ == "__main__":
    key = jax.random.PRNGKey(0)
    kp, kx, ks = jax.random.split(key, 3)

    N, in_ch, out_ch, H, W = 2, 16, 8, 8, 8
    params = init_upsam_params(kp, in_ch, out_ch)
    x = jax.random.normal(kx, (N, in_ch, H, W), jnp.float32)          # NCHW
    feats = jax.random.normal(ks, (N, out_ch, 2 * H, 2 * W), jnp.float32)

    fwd = jax.jit(upsam_forward)
    y = jax.block_until_ready(fwd(params, x, feats))
    assert y.shape == (N, out_ch, 2 * H, 2 * W), y.shape
    assert bool(jnp.all(jnp.isfinite(y)))

    y_ref = jax.block_until_ready(jax.jit(upsam_reference)(params, x, feats))
    max_err = float(jnp.max(jnp.abs(y - y_ref)))
    assert max_err < 2e-2, max_err

    print("KERNEL_OK")
</pallas_src>

<mosaic_0001>
module attributes {stable_mosaic.version = 11 : i64} {
  func.func @_transconv_kernel(%arg0: i32, %arg1: memref<1x82x16xbf16, #tpu.memory_space<vmem>>, %arg2: memref<64x32xbf16, #tpu.memory_space<vmem>>, %arg3: memref<1x32xf32, #tpu.memory_space<vmem>>, %arg4: memref<1x72x32xbf16, #tpu.memory_space<vmem>>) attributes {dimension_semantics = [#tpu.dimension_semantics<parallel>], iteration_bounds = array<i64: 2>, scalar_prefetch = 0 : i64, scratch_operands = 0 : i64, tpu.core_type = #tpu.core_type<tc>, window_params = [{transform_indices = @transform_0, window_bounds = array<i64: 1, 82, 16>}, {pipeline_mode = #tpu.pipeline_mode<synchronous>, transform_indices = @transform_1, window_bounds = array<i64: 64, 32>}, {pipeline_mode = #tpu.pipeline_mode<synchronous>, transform_indices = @transform_2, window_bounds = array<i64: 1, 32>}, {transform_indices = @transform_3, window_bounds = array<i64: 1, 72, 32>}]} {
    %c0 = arith.constant 0 : index
    %c0_0 = arith.constant 0 : index
    %c0_1 = arith.constant 0 : index
    %0 = vector.load %arg1[%c0, %c0_0, %c0_1] : memref<1x82x16xbf16, #tpu.memory_space<vmem>>, vector<1x72x16xbf16>
    %1 = vector.shape_cast %0 : vector<1x72x16xbf16> to vector<72x16xbf16>
    %c0_2 = arith.constant 0 : index
    %c1 = arith.constant 1 : index
    %c0_3 = arith.constant 0 : index
    %2 = vector.load %arg1[%c0_2, %c1, %c0_3] : memref<1x82x16xbf16, #tpu.memory_space<vmem>>, vector<1x72x16xbf16>
    %3 = vector.shape_cast %2 : vector<1x72x16xbf16> to vector<72x16xbf16>
    %c0_4 = arith.constant 0 : index
    %c9 = arith.constant 9 : index
    %c0_5 = arith.constant 0 : index
    %4 = vector.load %arg1[%c0_4, %c9, %c0_5] : memref<1x82x16xbf16, #tpu.memory_space<vmem>>, vector<1x72x16xbf16>
    %5 = vector.shape_cast %4 : vector<1x72x16xbf16> to vector<72x16xbf16>
    %c0_6 = arith.constant 0 : index
    %c10 = arith.constant 10 : index
    %c0_7 = arith.constant 0 : index
    %6 = vector.load %arg1[%c0_6, %c10, %c0_7] : memref<1x82x16xbf16, #tpu.memory_space<vmem>>, vector<1x72x16xbf16>
    %7 = vector.shape_cast %6 : vector<1x72x16xbf16> to vector<72x16xbf16>
    %8 = tpu.concatenate %1, %3, %5, %7 in 1 : vector<72x16xbf16>, vector<72x16xbf16>, vector<72x16xbf16>, vector<72x16xbf16> -> vector<72x64xbf16>
    %c0_8 = arith.constant 0 : index
    %c0_9 = arith.constant 0 : index
    %9 = vector.load %arg2[%c0_8, %c0_9] : memref<64x32xbf16, #tpu.memory_space<vmem>>, vector<64x32xbf16>
    %cst = arith.constant dense<0.000000e+00> : vector<72x32xf32>
    %10 = tpu.matmul %8, %9, %cst {dimension_numbers = #tpu.dot_dimension_numbers<[1], [0], [0], [1], [0, 0, 1, 1], [], []>} : vector<72x64xbf16>, vector<64x32xbf16>, vector<72x32xf32> -> vector<72x32xf32>
    %c0_10 = arith.constant 0 : index
    %c0_11 = arith.constant 0 : index
    %11 = vector.load %arg3[%c0_10, %c0_11] : memref<1x32xf32, #tpu.memory_space<vmem>>, vector<1x32xf32>
    %12 = vector.broadcast %11 : vector<1x32xf32> to vector<72x32xf32>
    %13 = arith.addf %10, %12 : vector<72x32xf32>
    %cst_12 = arith.constant 0.000000e+00 : f32
    %14 = vector.broadcast %cst_12 : f32 to vector<72x32xf32>
    %15 = arith.maximumf %13, %14 : vector<72x32xf32>
    %16 = arith.truncf %15 : vector<72x32xf32> to vector<72x32xbf16>
    %c0_13 = arith.constant 0 : index
    %c0_14 = arith.constant 0 : index
    %c0_15 = arith.constant 0 : index
    %17 = vector.load %arg4[%c0_13, %c0_14, %c0_15] : memref<1x72x32xbf16, #tpu.memory_space<vmem>>, vector<1x72x32xbf16>
    %18 = vector.shape_cast %17 : vector<1x72x32xbf16> to vector<72x32xbf16>
    %19 = vector.shape_cast %16 : vector<72x32xbf16> to vector<1x72x32xbf16>
    tpu.vector_store %arg4[%c0_13, %c0_14, %c0_15], %19 {strides = array<i32>} : memref<1x72x32xbf16, #tpu.memory_space<vmem>>, vector<1x72x32xbf16>,
    return
  }
  func.func @transform_0(%arg0: i32) -> (i32, i32, i32) {
    %c0_i32 = arith.constant 0 : i32
    %c0_i32_0 = arith.constant 0 : i32
    %c0_i32_1 = arith.constant 0 : i32
    return %arg0, %c0_i32, %c0_i32_0 : i32, i32, i32
  }
  func.func @transform_1(%arg0: i32) -> (i32, i32) {
    %c0_i32 = arith.constant 0 : i32
    %c0_i32_0 = arith.constant 0 : i32
    %c0_i32_1 = arith.constant 0 : i32
    return %c0_i32, %c0_i32_0 : i32, i32
  }
  func.func @transform_2(%arg0: i32) -> (i32, i32) {
    %c0_i32 = arith.constant 0 : i32
    %c0_i32_0 = arith.constant 0 : i32
    %c0_i32_1 = arith.constant 0 : i32
    return %c0_i32, %c0_i32_0 : i32, i32
  }
  func.func @transform_3(%arg0: i32) -> (i32, i32, i32) {
    %c0_i32 = arith.constant 0 : i32
    %c0_i32_0 = arith.constant 0 : i32
    %c0_i32_1 = arith.constant 0 : i32
    return %arg0, %c0_i32, %c0_i32_0 : i32, i32, i32
  }
}

module attributes {stable_mosaic.version = 11 : i64} {
  func.func @_double_conv_kernel(%arg0: i32, %arg1: memref<1x483x8xbf16, #tpu.memory_space<vmem>>, %arg2: memref<1x483x8xbf16, #tpu.memory_space<vmem>>, %arg3: memref<144x8xbf16, #tpu.memory_space<vmem>>, %arg4: memref<1x8xf32, #tpu.memory_space<vmem>>, %arg5: memref<72x8xbf16, #tpu.memory_space<vmem>>, %arg6: memref<1x8xf32, #tpu.memory_space<vmem>>, %arg7: memref<432x1xf32, #tpu.memory_space<vmem>>, %arg8: memref<1x432x8xf32, #tpu.memory_space<vmem>>, %arg9: memref<483x8xbf16, #tpu.memory_space<vmem>>) attributes {dimension_semantics = [#tpu.dimension_semantics<parallel>], iteration_bounds = array<i64: 2>, scalar_prefetch = 0 : i64, scratch_operands = 1 : i64, tpu.core_type = #tpu.core_type<tc>, window_params = [{transform_indices = @transform_0, window_bounds = array<i64: 1, 483, 8>}, {transform_indices = @transform_1, window_bounds = array<i64: 1, 483, 8>}, {pipeline_mode = #tpu.pipeline_mode<synchronous>, transform_indices = @transform_2, window_bounds = array<i64: 144, 8>}, {pipeline_mode = #tpu.pipeline_mode<synchronous>, transform_indices = @transform_3, window_bounds = array<i64: 1, 8>}, {pipeline_mode = #tpu.pipeline_mode<synchronous>, transform_indices = @transform_4, window_bounds = array<i64: 72, 8>}, {pipeline_mode = #tpu.pipeline_mode<synchronous>, transform_indices = @transform_5, window_bounds = array<i64: 1, 8>}, {pipeline_mode = #tpu.pipeline_mode<synchronous>, transform_indices = @transform_6, window_bounds = array<i64: 432, 1>}, {transform_indices = @transform_7, window_bounds = array<i64: 1, 432, 8>}]} {
    %c0 = arith.constant 0 : index
    %c0_0 = arith.constant 0 : index
    %c0_1 = arith.constant 0 : index
    %0 = vector.load %arg1[%c0, %c0_0, %c0_1] : memref<1x483x8xbf16, #tpu.memory_space<vmem>>, vector<1x434x8xbf16>
    %1 = vector.shape_cast %0 : vector<1x434x8xbf16> to vector<434x8xbf16>
    %2 = vector.extract_strided_slice %1 {offsets = [0, 0], sizes = [432, 8], strides = [1, 1]} : vector<434x8xbf16> to vector<432x8xbf16>
    %3 = vector.extract_strided_slice %1 {offsets = [1, 0], sizes = [432, 8], strides = [1, 1]} : vector<434x8xbf16> to vector<432x8xbf16>
    %4 = vector.extract_strided_slice %1 {offsets = [2, 0], sizes = [432, 8], strides = [1, 1]} : vector<434x8xbf16> to vector<432x8xbf16>
    %c0_2 = arith.constant 0 : index
    %c24 = arith.constant 24 : index
    %c0_3 = arith.constant 0 : index
    %5 = vector.load %arg1[%c0_2, %c24, %c0_3] : memref<1x483x8xbf16, #tpu.memory_space<vmem>>, vector<1x434x8xbf16>
    %6 = vector.shape_cast %5 : vector<1x434x8xbf16> to vector<434x8xbf16>
    %7 = vector.extract_strided_slice %6 {offsets = [0, 0], sizes = [432, 8], strides = [1, 1]} : vector<434x8xbf16> to vector<432x8xbf16>
    %8 = vector.extract_strided_slice %6 {offsets = [1, 0], sizes = [432, 8], strides = [1, 1]} : vector<434x8xbf16> to vector<432x8xbf16>
    %9 = vector.extract_strided_slice %6 {offsets = [2, 0], sizes = [432, 8], strides = [1, 1]} : vector<434x8xbf16> to vector<432x8xbf16>
    %c0_4 = arith.constant 0 : index
    %c48 = arith.constant 48 : index
    %c0_5 = arith.constant 0 : index
    %10 = vector.load %arg1[%c0_4, %c48, %c0_5] : memref<1x483x8xbf16, #tpu.memory_space<vmem>>, vector<1x434x8xbf16>
    %11 = vector.shape_cast %10 : vector<1x434x8xbf16> to vector<434x8xbf16>
    %12 = vector.extract_strided_slice %11 {offsets = [0, 0], sizes = [432, 8], strides = [1, 1]} : vector<434x8xbf16> to vector<432x8xbf16>
    %13 = vector.extract_strided_slice %11 {offsets = [1, 0], sizes = [432, 8], strides = [1, 1]} : vector<434x8xbf16> to vector<432x8xbf16>
    %14 = vector.extract_strided_slice %11 {offsets = [2, 0], sizes = [432, 8], strides = [1, 1]} : vector<434x8xbf16> to vector<432x8xbf16>
    %c0_6 = arith.constant 0 : index
    %c0_7 = arith.constant 0 : index
    %c0_8 = arith.constant 0 : index
    %15 = vector.load %arg2[%c0_6, %c0_7, %c0_8] : memref<1x483x8xbf16, #tpu.memory_space<vmem>>, vector<1x434x8xbf16>
    %16 = vector.shape_cast %15 : vector<1x434x8xbf16> to vector<434x8xbf16>
    %17 = vector.extract_strided_slice %16 {offsets = [0, 0], sizes = [432, 8], strides = [1, 1]} : vector<434x8xbf16> to vector<432x8xbf16>
    %18 = vector.extract_strided_slice %16 {offsets = [1, 0], sizes = [432, 8], strides = [1, 1]} : vector<434x8xbf16> to vector<432x8xbf16>
    %19 = vector.extract_strided_slice %16 {offsets = [2, 0], sizes = [432, 8], strides = [1, 1]} : vector<434x8xbf16> to vector<432x8xbf16>
    %c0_9 = arith.constant 0 : index
    %c24_10 = arith.constant 24 : index
    %c0_11 = arith.constant 0 : index
    %20 = vector.load %arg2[%c0_9, %c24_10, %c0_11] : memref<1x483x8xbf16, #tpu.memory_space<vmem>>, vector<1x434x8xbf16>
    %21 = vector.shape_cast %20 : vector<1x434x8xbf16> to vector<434x8xbf16>
    %22 = vector.extract_strided_slice %21 {offsets = [0, 0], sizes = [432, 8], strides = [1, 1]} : vector<434x8xbf16> to vector<432x8xbf16>
    %23 = vector.extract_strided_slice %21 {offsets = [1, 0], sizes = [432, 8], strides = [1, 1]} : vector<434x8xbf16> to vector<432x8xbf16>
    %24 = vector.extract_strided_slice %21 {offsets = [2, 0], sizes = [432, 8], strides = [1, 1]} : vector<434x8xbf16> to vector<432x8xbf16>
    %c0_12 = arith.constant 0 : index
    %c48_13 = arith.constant 48 : index
    %c0_14 = arith.constant 0 : index
    %25 = vector.load %arg2[%c0_12, %c48_13, %c0_14] : memref<1x483x8xbf16, #tpu.memory_space<vmem>>, vector<1x434x8xbf16>
    %26 = vector.shape_cast %25 : vector<1x434x8xbf16> to vector<434x8xbf16>
    %27 = vector.extract_strided_slice %26 {offsets = [0, 0], sizes = [432, 8], strides = [1, 1]} : vector<434x8xbf16> to vector<432x8xbf16>
    %28 = vector.extract_strided_slice %26 {offsets = [1, 0], sizes = [432, 8], strides = [1, 1]} : vector<434x8xbf16> to vector<432x8xbf16>
    %29 = vector.extract_strided_slice %26 {offsets = [2, 0], sizes = [432, 8], strides = [1, 1]} : vector<434x8xbf16> to vector<432x8xbf16>
    %30 = tpu.concatenate %2, %3, %4, %7, %8, %9, %12, %13, %14, %17, %18, %19, %22, %23, %24, %27 in 1 : vector<432x8xbf16>, vector<432x8xbf16>, vector<432x8xbf16>, vector<432x8xbf16>, vector<432x8xbf16>, vector<432x8xbf16>, vector<432x8xbf16>, vector<432x8xbf16>, vector<432x8xbf16>, vector<432x8xbf16>, vector<432x8xbf16>, vector<432x8xbf16>, vector<432x8xbf16>, vector<432x8xbf16>, vector<432x8xbf16>, vector<432x8xbf16> -> vector<432x128xbf16>
    %31 = tpu.concatenate %28, %29 in 1 : vector<432x8xbf16>, vector<432x8xbf16> -> vector<432x16xbf16>
    %32 = tpu.concatenate %30, %31 in 1 : vector<432x128xbf16>, vector<432x16xbf16> -> vector<432x144xbf16>
    %c0_15 = arith.constant 0 : index
    %c0_16 = arith.constant 0 : index
    %33 = vector.load %arg3[%c0_15, %c0_16] : memref<144x8xbf16, #tpu.memory_space<vmem>>, vector<144x8xbf16>
    %cst = arith.constant dense<0.000000e+00> : vector<432x8xf32>
    %34 = tpu.matmul %32, %33, %cst {dimension_numbers = #tpu.dot_dimension_numbers<[1], [0], [0], [1], [0, 0, 1, 1], [], []>} : vector<432x144xbf16>, vector<144x8xbf16>, vector<432x8xf32> -> vector<432x8xf32>
    %c0_17 = arith.constant 0 : index
    %c0_18 = arith.constant 0 : index
    %35 = vector.load %arg4[%c0_17, %c0_18] : memref<1x8xf32, #tpu.memory_space<vmem>>, vector<1x8xf32>
    %36 = vector.broadcast %35 : vector<1x8xf32> to vector<432x8xf32>
    %37 = arith.addf %34, %36 : vector<432x8xf32>
    %cst_19 = arith.constant 0.000000e+00 : f32
    %38 = vector.broadcast %cst_19 : f32 to vector<432x8xf32>
    %39 = arith.maximumf %37, %38 : vector<432x8xf32>
    %c0_20 = arith.constant 0 : index
    %c0_21 = arith.constant 0 : index
    %40 = vector.load %arg7[%c0_20, %c0_21] : memref<432x1xf32, #tpu.memory_space<vmem>>, vector<432x1xf32>
    %41 = vector.broadcast %40 : vector<432x1xf32> to vector<432x8xf32>
    %42 = arith.mulf %39, %41 : vector<432x8xf32>
    %cst_22 = arith.constant 0.000000e+00 : bf16
    %43 = vector.broadcast %cst_22 : bf16 to vector<25x8xbf16>
    %c0_23 = arith.constant 0 : index
    %c0_24 = arith.constant 0 : index
    %44 = vector.load %arg9[%c0_23, %c0_24] : memref<483x8xbf16, #tpu.memory_space<vmem>>, vector<25x8xbf16>
    tpu.vector_store %arg9[%c0_23, %c0_24], %43 {strides = array<i32>} : memref<483x8xbf16, #tpu.memory_space<vmem>>, vector<25x8xbf16>,
    %45 = arith.truncf %42 : vector<432x8xf32> to vector<432x8xbf16>
    %c25 = arith.constant 25 : index
    %c0_25 = arith.constant 0 : index
    %46 = vector.load %arg9[%c25, %c0_25] : memref<483x8xbf16, #tpu.memory_space<vmem>>, vector<432x8xbf16>
    tpu.vector_store %arg9[%c25, %c0_25], %45 {strides = array<i32>} : memref<483x8xbf16, #tpu.memory_space<vmem>>, vector<432x8xbf16>,
    %cst_26 = arith.constant 0.000000e+00 : bf16
    %47 = vector.broadcast %cst_26 : bf16 to vector<26x8xbf16>
    %c457 = arith.constant 457 : index
    %c0_27 = arith.constant 0 : index
    %48 = vector.load %arg9[%c457, %c0_27] : memref<483x8xbf16, #tpu.memory_space<vmem>>, vector<26x8xbf16>
    tpu.vector_store %arg9[%c457, %c0_27], %47 {strides = array<i32>} : memref<483x8xbf16, #tpu.memory_space<vmem>>, vector<26x8xbf16>,
    %c0_28 = arith.constant 0 : index
    %c0_29 = arith.constant 0 : index
    %49 = vector.load %arg9[%c0_28, %c0_29] : memref<483x8xbf16, #tpu.memory_space<vmem>>, vector<434x8xbf16>
    %50 = vector.extract_strided_slice %49 {offsets = [0, 0], sizes = [432, 8], strides = [1, 1]} : vector<434x8xbf16> to vector<432x8xbf16>
    %51 = vector.extract_strided_slice %49 {offsets = [1, 0], sizes = [432, 8], strides = [1, 1]} : vector<434x8xbf16> to vector<432x8xbf16>
    %52 = vector.extract_strided_slice %49 {offsets = [2, 0], sizes = [432, 8], strides = [1, 1]} : vector<434x8xbf16> to vector<432x8xbf16>
    %c24_30 = arith.constant 24 : index
    %c0_31 = arith.constant 0 : index
    %53 = vector.load %arg9[%c24_30, %c0_31] : memref<483x8xbf16, #tpu.memory_space<vmem>>, vector<434x8xbf16>
    %54 = vector.extract_strided_slice %53 {offsets = [0, 0], sizes = [432, 8], strides = [1, 1]} : vector<434x8xbf16> to vector<432x8xbf16>
    %55 = vector.extract_strided_slice %53 {offsets = [1, 0], sizes = [432, 8], strides = [1, 1]} : vector<434x8xbf16> to vector<432x8xbf16>
    %56 = vector.extract_strided_slice %53 {offsets = [2, 0], sizes = [432, 8], strides = [1, 1]} : vector<434x8xbf16> to vector<432x8xbf16>
    %c48_32 = arith.constant 48 : index
    %c0_33 = arith.constant 0 : index
    %57 = vector.load %arg9[%c48_32, %c0_33] : memref<483x8xbf16, #tpu.memory_space<vmem>>, vector<434x8xbf16>
    %58 = vector.extract_strided_slice %57 {offsets = [0, 0], sizes = [432, 8], strides = [1, 1]} : vector<434x8xbf16> to vector<432x8xbf16>
    %59 = vector.extract_strided_slice %57 {offsets = [1, 0], sizes = [432, 8], strides = [1, 1]} : vector<434x8xbf16> to vector<432x8xbf16>
    %60 = vector.extract_strided_slice %57 {offsets = [2, 0], sizes = [432, 8], strides = [1, 1]} : vector<434x8xbf16> to vector<432x8xbf16>
    %61 = tpu.concatenate %50, %51, %52, %54, %55, %56, %58, %59, %60 in 1 : vector<432x8xbf16>, vector<432x8xbf16>, vector<432x8xbf16>, vector<432x8xbf16>, vector<432x8xbf16>, vector<432x8xbf16>, vector<432x8xbf16>, vector<432x8xbf16>, vector<432x8xbf16> -> vector<432x72xbf16>
    %c0_34 = arith.constant 0 : index
    %c0_35 = arith.constant 0 : index
    %62 = vector.load %arg5[%c0_34, %c0_35] : memref<72x8xbf16, #tpu.memory_space<vmem>>, vector<72x8xbf16>
    %cst_36 = arith.constant dense<0.000000e+00> : vector<432x8xf32>
    %63 = tpu.matmul %61, %62, %cst_36 {dimension_numbers = #tpu.dot_dimension_numbers<[1], [0], [0], [1], [0, 0, 1, 1], [], []>} : vector<432x72xbf16>, vector<72x8xbf16>, vector<432x8xf32> -> vector<432x8xf32>
    %c0_37 = arith.constant 0 : index
    %c0_38 = arith.constant 0 : index
    %64 = vector.load %arg6[%c0_37, %c0_38] : memref<1x8xf32, #tpu.memory_space<vmem>>, vector<1x8xf32>
    %65 = vector.broadcast %64 : vector<1x8xf32> to vector<432x8xf32>
    %66 = arith.addf %63, %65 : vector<432x8xf32>
    %cst_39 = arith.constant 0.000000e+00 : f32
    %67 = vector.broadcast %cst_39 : f32 to vector<432x8xf32>
    %68 = arith.maximumf %66, %67 : vector<432x8xf32>
    %c0_40 = arith.constant 0 : index
    %c0_41 = arith.constant 0 : index
    %c0_42 = arith.constant 0 : index
    %69 = vector.load %arg8[%c0_40, %c0_41, %c0_42] : memref<1x432x8xf32, #tpu.memory_space<vmem>>, vector<1x432x8xf32>
    %70 = vector.shape_cast %69 : vector<1x432x8xf32> to vector<432x8xf32>
    %71 = vector.shape_cast %68 : vector<432x8xf32> to vector<1x432x8xf32>
    tpu.vector_store %arg8[%c0_40, %c0_41, %c0_42], %71 {strides = array<i32>} : memref<1x432x8xf32, #tpu.memory_space<vmem>>, vector<1x432x8xf32>,
    return
  }
  func.func @transform_0(%arg0: i32) -> (i32, i32, i32) {
    %c0_i32 = arith.constant 0 : i32
    %c0_i32_0 = arith.constant 0 : i32
    %c0_i32_1 = arith.constant 0 : i32
    return %arg0, %c0_i32, %c0_i32_0 : i32, i32, i32
  }
  func.func @transform_1(%arg0: i32) -> (i32, i32, i32) {
    %c0_i32 = arith.constant 0 : i32
    %c0_i32_0 = arith.constant 0 : i32
    %c0_i32_1 = arith.constant 0 : i32
    return %arg0, %c0_i32, %c0_i32_0 : i32, i32, i32
  }
  func.func @transform_2(%arg0: i32) -> (i32, i32) {
    %c0_i32 = arith.constant 0 : i32
    %c0_i32_0 = arith.constant 0 : i32
    %c0_i32_1 = arith.constant 0 : i32
    return %c0_i32, %c0_i32_0 : i32, i32
  }
  func.func @transform_3(%arg0: i32) -> (i32, i32) {
    %c0_i32 = arith.constant 0 : i32
    %c0_i32_0 = arith.constant 0 : i32
    %c0_i32_1 = arith.constant 0 : i32
    return %c0_i32, %c0_i32_0 : i32, i32
  }
  func.func @transform_4(%arg0: i32) -> (i32, i32) {
    %c0_i32 = arith.constant 0 : i32
    %c0_i32_0 = arith.constant 0 : i32
    %c0_i32_1 = arith.constant 0 : i32
    return %c0_i32, %c0_i32_0 : i32, i32
  }
  func.func @transform_5(%arg0: i32) -> (i32, i32) {
    %c0_i32 = arith.constant 0 : i32
    %c0_i32_0 = arith.constant 0 : i32
    %c0_i32_1 = arith.constant 0 : i32
    return %c0_i32, %c0_i32_0 : i32, i32
  }
  func.func @transform_6(%arg0: i32) -> (i32, i32) {
    %c0_i32 = arith.constant 0 : i32
    %c0_i32_0 = arith.constant 0 : i32
    %c0_i32_1 = arith.constant 0 : i32
    return %c0_i32, %c0_i32_0 : i32, i32
  }
  func.func @transform_7(%arg0: i32) -> (i32, i32, i32) {
    %c0_i32 = arith.constant 0 : i32
    %c0_i32_0 = arith.constant 0 : i32
    %c0_i32_1 = arith.constant 0 : i32
    return %arg0, %c0_i32, %c0_i32_0 : i32, i32, i32
  }
}

</mosaic_0001>

<llo_original>
// kernel: upsam_forward.2
$region0: #{upsam_forward.2}
  #allocation0 [shape = 'u32[]', space=smem, size = 0x4, offset = 0x4, fixed_abs, tag = 'smem constant byte address 0x4 - core index']
  #allocation1 [shape = 'u32[144,128]{1,0:T(1,128)}', space=vmem, size = 0x12000, scoped, tag = 'internal scratch']
  %s0 = inlined_call_operand.vmem [shape: bf16[2,82,16], index: 0, kind: input, shape index: {}]
  %s1 = inlined_call_operand.vmem [shape: bf16[64,32], index: 1, kind: input, shape index: {}]
  %s2 = inlined_call_operand.vmem [shape: f32[1,32], index: 2, kind: input, shape index: {}]
  %s3 = inlined_call_operand.vmem [shape: bf16[2,72,32], index: 3, kind: output, shape index: {}]
  %s4 = sld [smem:[#allocation0]]
  $region45: #{upsam_forward.2} parent=0
    _
  %s6 = ssub.s32 1, %s4
  %s7 = scalar_select 0, %s6, %s4
  loop: start=0, step=1, limit=4
  $region2: #{upsam_forward.2} parent=0 // loop_pre_header
    _
  $region3: #{upsam_forward.2} parent=0 // loop_header
    %s9 = sphi 0, %s13
    %p10 = scmp.ge.s32.totalorder %s9, 4
    %s19 = sphi 0, %s21
    %s22 = sphi 0, %s19
    %s23 = sphi 0, %s22
    %s39 = sphi 0, %s23
    %s43 = sphi 0, %s43
    %s45 = sphi 0, %s43
    %s46 = sphi 0, %s45
    %s60 = sphi 0, %s46
    %s64 = sphi 0, %s64
    %s66 = sphi 0, %s64
    %s67 = sphi 0, %s66
    %s81 = sphi 0, %s67
    %s87 = sphi 0, %s89
    %s90 = sphi 0, %s87
    %s91 = sphi 0, %s90
    %s107 = sphi 0, %s91
  $region4: #{upsam_forward.2} parent=0 // loop_header_branch
    %12 = sbr.rel (%p10) target = $region8
  $region5: #{upsam_forward.2} parent=0 // loop_body
    %s14 = ssub.s32 %s9, 1
    %s15 = ssub.s32 %s9, 2
    %s16 = sadd.s32 %s9, 1
    %s17 = ssub.s32 %s9, %s16
    %p18 = scmp.eq.s32.totalorder %s17, 0
    %s20 = sadd.s32 %s19, 1
    %s21 = scalar_select %p18, %s19, %s20
    %p24 = pneg %p18
    %p25 = scmp.eq.s32.totalorder %s9, 1
    %p26 = por %p24, %p25
    %p27 = scmp.ne.s32.totalorder %s19, %s22
    %p28 = scmp.eq.s32.totalorder %s9, 0
    %p29 = por %p27, %p28
    %p30 = scmp.ne.s32.totalorder %s19, %s22
    %p31 = scmp.eq.s32.totalorder %s14, 1
    %p32 = por %p30, %p31
    %p33 = scmp.ne.s32.totalorder %s22, %s23
    %p34 = scmp.eq.s32.totalorder %s14, 0
    %p35 = por %p33, %p34
    %p36 = scmp.ne.s32.totalorder %s22, %s23
    %p37 = scmp.eq.s32.totalorder %s15, 1
    %p38 = por %p36, %p37
    %p40 = scmp.ne.s32.totalorder %s23, %s39
    %p41 = scmp.eq.s32.totalorder %s15, 0
    %p42 = por %p40, %p41
    %s44 = sadd.s32 %s43, 1
    %p47 = scmp.eq.s32.totalorder %s9, 1
    %p48 = scmp.ne.s32.totalorder %s43, %s45
    %p49 = scmp.eq.s32.totalorder %s9, 0
    %p50 = por %p48, %p49
    %p51 = scmp.ne.s32.totalorder %s43, %s45
    %p52 = scmp.eq.s32.totalorder %s14, 1
    %p53 = por %p51, %p52
    %p54 = scmp.ne.s32.totalorder %s45, %s46
    %p55 = scmp.eq.s32.totalorder %s14, 0
    %p56 = por %p54, %p55
    %p57 = scmp.ne.s32.totalorder %s45, %s46
    %p58 = scmp.eq.s32.totalorder %s15, 1
    %p59 = por %p57, %p58
    %p61 = scmp.ne.s32.totalorder %s46, %s60
    %p62 = scmp.eq.s32.totalorder %s15, 0
    %p63 = por %p61, %p62
    %s65 = sadd.s32 %s64, 1
    %p68 = scmp.eq.s32.totalorder %s9, 1
    %p69 = scmp.ne.s32.totalorder %s64, %s66
    %p70 = scmp.eq.s32.totalorder %s9, 0
    %p71 = por %p69, %p70
    %p72 = scmp.ne.s32.totalorder %s64, %s66
    %p73 = scmp.eq.s32.totalorder %s14, 1
    %p74 = por %p72, %p73
    %p75 = scmp.ne.s32.totalorder %s66, %s67
    %p76 = scmp.eq.s32.totalorder %s14, 0
    %p77 = por %p75, %p76
    %p78 = scmp.ne.s32.totalorder %s66, %s67
    %p79 = scmp.eq.s32.totalorder %s15, 1
    %p80 = por %p78, %p79
    %p82 = scmp.ne.s32.totalorder %s67, %s81
    %p83 = scmp.eq.s32.totalorder %s15, 0
    %p84 = por %p82, %p83
    %s85 = ssub.s32 %s9, %s16
    %p86 = scmp.eq.s32.totalorder %s85, 0
    %s88 = sadd.s32 %s87, 1
    %s89 = scalar_select %p86, %s87, %s88
    %p92 = pneg %p86
    %p93 = scmp.eq.s32.totalorder %s9, 1
    %p94 = por %p92, %p93
    %p95 = scmp.ne.s32.totalorder %s87, %s90
    %p96 = scmp.eq.s32.totalorder %s9, 0
    %p97 = por %p95, %p96
    %p98 = scmp.ne.s32.totalorder %s87, %s90
    %p99 = scmp.eq.s32.totalorder %s14, 1
    %p100 = por %p98, %p99
    %p101 = scmp.ne.s32.totalorder %s90, %s91
    %p102 = scmp.eq.s32.totalorder %s14, 0
    %p103 = por %p101, %p102
    %p104 = scmp.ne.s32.totalorder %s90, %s91
    %p105 = scmp.eq.s32.totalorder %s15, 1
    %p106 = por %p104, %p105
    %p108 = scmp.ne.s32.totalorder %s91, %s107
    %p109 = scmp.eq.s32.totalorder %s15, 0
    %p110 = por %p108, %p109
    %p111 = scmp.le.s32.totalorder 1, %s9
    %p112 = scmp.lt.s32.totalorder %s9, 3
    %p113 = pnand %p111, %p112
    %p114 = pneg %p113
    // Predicated region
    $region9: #{upsam_forward.2} parent=5 // pred_check
      _
    $region10: #{upsam_forward.2} parent=5 // pred_check_branch
      %116 = sbr.rel (%p113) target = $region12
    $region11: #{upsam_forward.2} parent=5 // pred_region
      %s117 = ssub.s32 %s9, 1
      // Predicated region
      $region13: #{upsam_forward.2} parent=11 // pred_check
        %p118 = pneg %p56
      $region14: #{upsam_forward.2} parent=11 // pred_check_branch
        %120 = sbr.rel (%p118) target = $region16
      $region15: #{upsam_forward.2} parent=11 // pred_region
        _
      $region16: #{upsam_forward.2} parent=11 // pred_fallthru
        _
      // Predicated region
      $region17: #{upsam_forward.2} parent=11 // pred_check
        %p121 = pneg %p77
      $region18: #{upsam_forward.2} parent=11 // pred_check_branch
        %123 = sbr.rel (%p121) target = $region20
      $region19: #{upsam_forward.2} parent=11 // pred_region
        _
      $region20: #{upsam_forward.2} parent=11 // pred_fallthru
        _
    $region12: #{upsam_forward.2} parent=5 // pred_fallthru
      _
    %p124 = scmp.lt.s32.totalorder %s9, 2
    // Predicated region
    $region21: #{upsam_forward.2} parent=5 // pred_check
      %p125 = pneg %p124
    $region22: #{upsam_forward.2} parent=5 // pred_check_branch
      %127 = sbr.rel (%p125) target = $region24
    $region23: #{upsam_forward.2} parent=5 // pred_region
      // Predicated region
      $region25: #{upsam_forward.2} parent=23 // pred_check
        %p128 = pneg %p29
      $region26: #{upsam_forward.2} parent=23 // pred_check_branch
        %130 = sbr.rel (%p128) target = $region28
      $region27: #{upsam_forward.2} parent=23 // pred_region
        %p131 = scmp.lt.s32.totalorder %s9, 1
        %s132 = scalar_select %p131, %s9, 1
        %s133 = smul.addr %s132, 11
        %s134 = smul.addr %s133, 4
        %s135 = scalar_lea.vmem %s0, %s134
      $region28: #{upsam_forward.2} parent=23 // pred_fallthru
        _
    $region24: #{upsam_forward.2} parent=5 // pred_fallthru
      _
    %p136 = scmp.le.s32.totalorder 1, %s9
    %p137 = scmp.lt.s32.totalorder %s9, 3
    %p138 = pnand %p136, %p137
    %p139 = pneg %p138
    // Predicated region
    $region29: #{upsam_forward.2} parent=5 // pred_check
      _
    $region30: #{upsam_forward.2} parent=5 // pred_check_branch
      %141 = sbr.rel (%p138) target = $region32
    $region31: #{upsam_forward.2} parent=5 // pred_region
      %s142 = ssub.s32 %s9, 1
      %p143 = scmp.lt.s32.totalorder %s14, 1
      %s144 = scalar_select %p143, %s14, 1
      %s145 = smul.addr %s144, 11
      %s146 = smul.addr %s145, 4
      %s147 = scalar_lea.vmem %s0, %s146
      %p148 = pneg %p35
      %p149 = pneg %p32
      %p150 = pneg %p56
      %p151 = pneg %p53
      %p152 = pneg %p77
      %p153 = pneg %p74
      %p154 = pneg %p103
      %p155 = pneg %p100
      %p156 = scmp.lt.s32.totalorder %s14, 1
      %s157 = scalar_select %p156, %s14, 1
      %s158 = smul.addr %s157, 9
      %s159 = smul.addr %s158, 4
      %s160 = scalar_lea.vmem %s3, %s159
      %p161 = scmp.lt.s32.totalorder %s14, 1
      %s162 = scalar_select %p161, %s14, 1
      %s163 = smul.addr %s162, 11
      %s164 = smul.addr %s163, 4
      %s165 = scalar_lea.vmem %s0, %s164
      %p166 = scmp.lt.s32.totalorder %s14, 1
      %s167 = scalar_select %p166, %s14, 1
      %s168 = smul.addr %s167, 9
      %s169 = smul.addr %s168, 4
      %s170 = scalar_lea.vmem %s3, %s169
      %v172 = vld [vmem:[%s165] sm:$0xf]
      %v173 = vld [vmem:[%s165 + $0x4] sm:$0xf]
      %v174 = vld [vmem:[%s165 + $0x8] sm:$0xf]
      %v175 = vld [vmem:[%s165 + $0xc] sm:$0xf]
      %v176 = vld [vmem:[%s165 + $0x10] sm:$0xf]
      %v177 = vld [vmem:[%s165 + $0x14] sm:$0xf]
      %v178 = vld [vmem:[%s165 + $0x18] sm:$0xf]
      %v179 = vld [vmem:[%s165 + $0x1c] sm:$0xf]
      %v180 = vld [vmem:[%s165 + $0x20] sm:$0xf]
      %v181 = vld [vmem:[%s165 + $0x24] sm:$0x1]
      %v182 = vld [vmem:[%s165 + $0x24] sm:$0xf]
      %v183 = vld [vmem:[%s165 + $0x28] sm:$0x1]
      %v184 = vld [vmem:[%s165 + $0x4] sm:$0xe]
      %v194 = vunpack.c.l.b16 %v172
      %v195 = vunpack.c.l.b16 %v173
      %v196 = vunpack.c.l.b16 %v174
      %v197 = vunpack.c.l.b16 %v175
      %v198 = vunpack.c.l.b16 %v176
      %v199 = vunpack.c.l.b16 %v177
      %v200 = vunpack.c.l.b16 %v178
      %v201 = vunpack.c.l.b16 %v179
      %v202 = vunpack.c.l.b16 %v180
      %v203 = vpack.c.b16 %v195, %v194
      %v204 = vpack.c.b16 %v197, %v196
      %v205 = vpack.c.b16 %v199, %v198
      %v206 = vpack.c.b16 %v201, %v200
      %v207 = vpack.c.b16 %v202, %v202
      %v209 = vunpack.c.l.b16 %v181
      %v210 = vpack.c.b16 %v209, %v202
      %vm211 = vsmask.f32 7424
      %v213 = vshrl.u32 %v203, 16
      %v215 = vshll.u32 %v203, 16
      %v217 = vrot.slane %v215, 1
      %v218 = vor.u32 %v213, %v217
      %v220 = vshll.u32 %v204, 16
      %v222 = vrot.slane %v220, 1
      %v223 = vsel %vm211, %v218, %v222
      %v224 = vshrl.u32 %v204, 16
      %v226 = vor.u32 %v224, %v222
      %v228 = vshll.u32 %v205, 16
      %v230 = vrot.slane %v228, 1
      %v231 = vsel %vm211, %v226, %v230
      %v232 = vshrl.u32 %v205, 16
      %v234 = vor.u32 %v232, %v230
      %v236 = vshll.u32 %v206, 16
      %v238 = vrot.slane %v236, 1
      %v239 = vsel %vm211, %v234, %v238
      %v240 = vshrl.u32 %v206, 16
      %v242 = vor.u32 %v240, %v238
      %v244 = vshll.u32 %v210, 16
      %v246 = vrot.slane %v244, 1
      %v247 = vsel %vm211, %v242, %v246
      %v248 = vshrl.u32 %v210, 16
      %v250 = vor.u32 %v248, %v246
      %251 = vrot.lane.b32.xlu0 %v223, 16
      %v252 = vpop.permute.xlu0 %251
      %253 = vrot.lane.b32.xlu0 %v231, 16
      %v254 = vpop.permute.xlu0 %253
      %255 = vrot.lane.b32.xlu0 %v239, 16
      %v256 = vpop.permute.xlu0 %255
      %257 = vrot.lane.b32.xlu0 %v247, 16
      %v258 = vpop.permute.xlu0 %257
      %259 = vrot.lane.b32.xlu0 %v250, 16
      %v260 = vpop.permute.xlu0 %259
      %v263 = vunpack.c.l.b16 %v182
      %v264 = vunpack.c.l.b16 %v183
      %v265 = vpack.c.b16 %v196, %v195
      %v266 = vpack.c.b16 %v198, %v197
      %v267 = vpack.c.b16 %v200, %v199
      %v268 = vpack.c.b16 %v202, %v201
      %v269 = vpack.c.b16 %v264, %v263
      %v271 = vshrl.u32 %v265, 16
      %v273 = vshll.u32 %v265, 16
      %v275 = vrot.slane %v273, 1
      %v276 = vor.u32 %v271, %v275
      %v278 = vshll.u32 %v266, 16
      %v280 = vrot.slane %v278, 1
      %v281 = vsel %vm211, %v276, %v280
      %v282 = vshrl.u32 %v266, 16
      %v284 = vor.u32 %v282, %v280
      %v286 = vshll.u32 %v267, 16
      %v288 = vrot.slane %v286, 1
      %v289 = vsel %vm211, %v284, %v288
      %v290 = vshrl.u32 %v267, 16
      %v292 = vor.u32 %v290, %v288
      %v294 = vshll.u32 %v268, 16
      %v296 = vrot.slane %v294, 1
      %v297 = vsel %vm211, %v292, %v296
      %v298 = vshrl.u32 %v268, 16
      %v300 = vor.u32 %v298, %v296
      %v302 = vshll.u32 %v269, 16
      %v304 = vrot.slane %v302, 1
      %v305 = vsel %vm211, %v300, %v304
      %v306 = vshrl.u32 %v269, 16
      %v308 = vor.u32 %v306, %v304
      %309 = vrot.lane.b32.xlu0 %v281, 32
      %v310 = vpop.permute.xlu0 %309
      %311 = vrot.lane.b32.xlu0 %v289, 32
      %v312 = vpop.permute.xlu0 %311
      %313 = vrot.lane.b32.xlu0 %v297, 32
      %v314 = vpop.permute.xlu0 %313
      %315 = vrot.lane.b32.xlu0 %v305, 32
      %v316 = vpop.permute.xlu0 %315
      %317 = vrot.lane.b32.xlu0 %v308, 32
      %v318 = vpop.permute.xlu0 %317
      %v320 = vunpack.c.l.b16 %v184
      %v321 = vpack.c.b16 %v196, %v320
      %vm322 = vcmask 1046528
      %v323 = vrot.slane %v321, 1
      %v324 = vrot.slane %v266, 1
      %v325 = vsel %vm322, %v323, %v324
      %v326 = vrot.slane %v267, 1
      %v327 = vsel %vm322, %v324, %v326
      %v328 = vrot.slane %v268, 1
      %v329 = vsel %vm322, %v326, %v328
      %v330 = vrot.slane %v269, 1
      %v331 = vsel %vm322, %v328, %v330
      %332 = vrot.lane.b32.xlu0 %v325, 48
      %v333 = vpop.permute.xlu0 %332
      %334 = vrot.lane.b32.xlu0 %v327, 48
      %v335 = vpop.permute.xlu0 %334
      %336 = vrot.lane.b32.xlu0 %v329, 48
      %v337 = vpop.permute.xlu0 %336
      %338 = vrot.lane.b32.xlu0 %v331, 48
      %v339 = vpop.permute.xlu0 %338
      %340 = vrot.lane.b32.xlu0 %v330, 48
      %v341 = vpop.permute.xlu0 %340
      %vm342 = vcmask 130048
      %v344 = vsel %vm342, %v203, %v252
      %v346 = vsel %vm342, %v204, %v254
      %v348 = vsel %vm342, %v205, %v256
      %v350 = vsel %vm342, %v206, %v258
      %v353 = vsel %vm342, %v207, %v260
      %vm354 = vcmask 261120
      %v356 = vsel %vm354, %v344, %v310
      %v358 = vsel %vm354, %v346, %v312
      %v360 = vsel %vm354, %v348, %v314
      %v362 = vsel %vm354, %v350, %v316
      %v364 = vsel %vm354, %v353, %v318
      %vm365 = vcmask 392192
      %v367 = vsel %vm365, %v356, %v333
      %v369 = vsel %vm365, %v358, %v335
      %v371 = vsel %vm365, %v360, %v337
      %v373 = vsel %vm365, %v362, %v339
      %v375 = vsel %vm365, %v364, %v341
      %v376 = vld [vmem:[%s1] sm:$0xf]
      %v377 = vld [vmem:[%s1 + $0x4] sm:$0xf]
      %v378 = vld [vmem:[%s1 + $0x8] sm:$0xf]
      %v379 = vld [vmem:[%s1 + $0xc] sm:$0xf]
      %v380 = vld [vmem:[%s1 + $0x10] sm:$0xf]
      %v381 = vld [vmem:[%s1 + $0x14] sm:$0xf]
      %v382 = vld [vmem:[%s1 + $0x18] sm:$0xf]
      %v383 = vld [vmem:[%s1 + $0x1c] sm:$0xf]
      %v384 = vld [vmem:[%s2] sm:$0x1]
      %v386 = vlaneseq
      %v387 = vshrl.u32 %v386, 7
      %v388 = vsub.s32 0, %v387
      %v389 = vrot.slane %v384, %v388
      %v399 = vunpack.c.l.b16 %v376
      %v400 = vunpack.c.l.b16 %v377
      %v401 = vunpack.c.l.b16 %v378
      %v402 = vunpack.c.l.b16 %v379
      %v403 = vunpack.c.l.b16 %v380
      %v404 = vunpack.c.l.b16 %v381
      %v405 = vunpack.c.l.b16 %v382
      %v406 = vunpack.c.l.b16 %v383
      %v407 = vpack.c.b16 %v400, %v399
      %v408 = vpack.c.b16 %v402, %v401
      %v409 = vpack.c.b16 %v404, %v403
      %v410 = vpack.c.b16 %v406, %v405
      %vm415 = vcmask 523264
      %v416 = vsel %vm415, %v367, 0
      %v418 = vsel %vm415, %v369, 0
      %v420 = vsel %vm415, %v371, 0
      %v422 = vsel %vm415, %v373, 0
      %v424 = vsel %vm415, %v375, 0
      %426 = vmatprep.subr.bf16.mxu0 0
      %427 = vmatpush1.bf16.msra.mxu0 %v407
      %428 = vmatprep.subr.bf16.mxu0 0
      %429 = vmatpush1.bf16.msra.mxu0 %v408
      %430 = vmatprep.subr.bf16.mxu0 0
      %431 = vmatpush1.bf16.msra.mxu0 %v409
      %432 = vmatprep.subr.bf16.mxu0 0
      %433 = vmatpush1.bf16.msra.mxu0 %v410
      %434 = vmatprep.subr.bf16.mxu0 0
      %435 = vmatpush1.bf16.msra.mxu0 0
      %436 = vmatprep.subr.bf16.mxu0 0
      %437 = vmatpush1.bf16.msra.mxu0 0
      %438 = vmatprep.subr.bf16.mxu0 0
      %439 = vmatpush1.bf16.msra.mxu0 0
      %440 = vmatprep.subr.bf16.mxu0 0
      %441 = vmatpush1.bf16.msra.mxu0 0
      %442 = vmatprep.subr.bf16.mxu0 0
      %443 = vmatpush1.bf16.msra.mxu0 0
      %444 = vmatprep.subr.bf16.mxu0 0
      %445 = vmatpush1.bf16.msra.mxu0 0
      %446 = vmatprep.subr.bf16.mxu0 0
      %447 = vmatpush1.bf16.msra.mxu0 0
      %448 = vmatprep.subr.bf16.mxu0 0
      %449 = vmatpush1.bf16.msra.mxu0 0
      %450 = vmatprep.subr.bf16.mxu0 0
      %451 = vmatpush1.bf16.msra.mxu0 0
      %452 = vmatprep.subr.bf16.mxu0 0
      %453 = vmatpush1.bf16.msra.mxu0 0
      %454 = vmatprep.subr.bf16.mxu0 0
      %455 = vmatpush1.bf16.msra.mxu0 0
      %456 = vmatprep.subr.bf16.mxu0 0
      %457 = vmatpush1.bf16.msra.mxu0 0
      %458 = vmatprep.mubr.bf16.mxu0 0
      %459 = vmatmul.mubr.bf16.gmra.mrb[0].mxu0 %v416
      %v460 = vpop.f32.mrb[0].mxu0
      %v461 = vadd.f32 %v389, %v460
      %v462 = vpop.f32.mrb[0].mxu0
      %v463 = vpop.f32.mrb[0].mxu0
      %v464 = vadd.f32 %v389, %v463
      %v465 = vpop.f32.mrb[0].mxu0
      %466 = vmatprep.mubr.bf16.mxu0 0
      %467 = vmatmul.mubr.bf16.gmra.mrb[0].mxu0 %v418
      %v468 = vpop.f32.mrb[0].mxu0
      %v469 = vadd.f32 %v389, %v468
      %v470 = vpop.f32.mrb[0].mxu0
      %v471 = vpop.f32.mrb[0].mxu0
      %v472 = vadd.f32 %v389, %v471
      %v473 = vpop.f32.mrb[0].mxu0
      %474 = vmatprep.mubr.bf16.mxu0 0
      %475 = vmatmul.mubr.bf16.gmra.mrb[0].mxu0 %v420
      %v476 = vpop.f32.mrb[0].mxu0
      %v477 = vadd.f32 %v389, %v476
      %v478 = vpop.f32.mrb[0].mxu0
      %v479 = vpop.f32.mrb[0].mxu0
      %v480 = vadd.f32 %v389, %v479
      %v481 = vpop.f32.mrb[0].mxu0
      %482 = vmatprep.mubr.bf16.mxu0 0
      %483 = vmatmul.mubr.bf16.gmra.mrb[0].mxu0 %v422
      %v484 = vpop.f32.mrb[0].mxu0
      %v485 = vadd.f32 %v389, %v484
      %v486 = vpop.f32.mrb[0].mxu0
      %v487 = vpop.f32.mrb[0].mxu0
      %v488 = vadd.f32 %v389, %v487
      %v489 = vpop.f32.mrb[0].mxu0
      %490 = vmatprep.mubr.bf16.mxu0 0
      %491 = vmatmul.mubr.bf16.gmra.mrb[0].mxu0 %v424
      %v492 = vpop.f32.mrb[0].mxu0
      %v493 = vadd.f32 %v389, %v492
      %v494 = vpop.f32.mrb[0].mxu0
      %v495 = vpop.f32.mrb[0].mxu0
      %v496 = vpop.f32.mrb[0].mxu0
      %497 = vdwg.mxu0
      %v498 = vmax.f32 %v461, 0.0
      %v499 = vmax.f32 %v464, 0.0
      %v500 = vmax.f32 %v469, 0.0
      %v501 = vmax.f32 %v472, 0.0
      %v502 = vmax.f32 %v477, 0.0
      %v503 = vmax.f32 %v480, 0.0
      %v504 = vmax.f32 %v485, 0.0
      %v505 = vmax.f32 %v488, 0.0
      %v506 = vmax.f32 %v493, 0.0
      %v507 = vpack.c.bf16 %v499, %v498
      %v508 = vpack.c.bf16 %v501, %v500
      %v509 = vpack.c.bf16 %v503, %v502
      %v510 = vpack.c.bf16 %v505, %v504
      %v511 = vpack.c.bf16 %v506, %v506
      %v517 = vunpack.c.l.b16 %v507
      %v518 = vunpack.c.h.b16 %v507
      %v519 = vunpack.c.l.b16 %v508
      %v520 = vunpack.c.h.b16 %v508
      %v521 = vunpack.c.l.b16 %v509
      %v522 = vunpack.c.h.b16 %v509
      %v523 = vunpack.c.l.b16 %v510
      %v524 = vunpack.c.h.b16 %v510
      %v525 = vunpack.c.l.b16 %v511
      %v526 = vpack.c.b16 %v517, %v517
      %v527 = vpack.c.b16 %v518, %v518
      %v528 = vpack.c.b16 %v519, %v519
      %v529 = vpack.c.b16 %v520, %v520
      %v530 = vpack.c.b16 %v521, %v521
      %v531 = vpack.c.b16 %v522, %v522
      %v532 = vpack.c.b16 %v523, %v523
      %v533 = vpack.c.b16 %v524, %v524
      %v534 = vpack.c.b16 %v525, %v525
      %vm544 = vcmask 257024
      %545 = vst.msk [vmem:[%s170] sm:$0xf] %vm544, %v526
      %546 = vst.msk [vmem:[%s170 + $0x4] sm:$0xf] %vm544, %v527
      %547 = vst.msk [vmem:[%s170 + $0x8] sm:$0xf] %vm544, %v528
      %548 = vst.msk [vmem:[%s170 + $0xc] sm:$0xf] %vm544, %v529
      %549 = vst.msk [vmem:[%s170 + $0x10] sm:$0xf] %vm544, %v530
      %550 = vst.msk [vmem:[%s170 + $0x14] sm:$0xf] %vm544, %v531
      %551 = vst.msk [vmem:[%s170 + $0x18] sm:$0xf] %vm544, %v532
      %552 = vst.msk [vmem:[%s170 + $0x1c] sm:$0xf] %vm544, %v533
      %553 = vst.msk [vmem:[%s170 + $0x20] sm:$0xf] %vm544, %v534
      %p554 = scmp.lt.s32.totalorder %s14, 1
      %s555 = scalar_select %p554, %s14, 1
      %s556 = smul.addr %s555, 9
      %s557 = smul.addr %s556, 4
      %s558 = scalar_lea.vmem %s3, %s557
      // Predicated region
      $region33: #{upsam_forward.2} parent=31 // pred_check
        %p559 = pneg %p100
      $region34: #{upsam_forward.2} parent=31 // pred_check_branch
        %561 = sbr.rel (%p559) target = $region36
      $region35: #{upsam_forward.2} parent=31 // pred_region
        _
      $region36: #{upsam_forward.2} parent=31 // pred_fallthru
        _
    $region32: #{upsam_forward.2} parent=5 // pred_fallthru
      _
    %p562 = scmp.le.s32.totalorder 2, %s9
    // Predicated region
    $region37: #{upsam_forward.2} parent=5 // pred_check
      %p563 = pneg %p562
    $region38: #{upsam_forward.2} parent=5 // pred_check_branch
      %565 = sbr.rel (%p563) target = $region40
    $region39: #{upsam_forward.2} parent=5 // pred_region
      %s566 = ssub.s32 %s9, 2
      // Predicated region
      $region41: #{upsam_forward.2} parent=39 // pred_check
        %p567 = pneg %p106
      $region42: #{upsam_forward.2} parent=39 // pred_check_branch
        %569 = sbr.rel (%p567) target = $region44
      $region43: #{upsam_forward.2} parent=39 // pred_region
        %p570 = scmp.lt.s32.totalorder %s15, 1
        %s571 = scalar_select %p570, %s15, 1
        %s572 = smul.addr %s571, 9
        %s573 = smul.addr %s572, 4
        %s574 = scalar_lea.vmem %s3, %s573
      $region44: #{upsam_forward.2} parent=39 // pred_fallthru
        _
    $region40: #{upsam_forward.2} parent=5 // pred_fallthru
      _
  $region6: #{upsam_forward.2} parent=0 // loop_footer
    %s13 = sadd.s32 1, %s9
  $region7: #{upsam_forward.2} parent=0 // loop_footer_branch
    %8 = sbr.rel target = $region3
  $region8: #{upsam_forward.2} parent=0 // loop_exit
    _

// kernel: upsam_forward.3
$region0: #{upsam_forward.3}
  #allocation0 [shape = 'u32[]', space=smem, size = 0x4, offset = 0x4, fixed_abs, tag = 'smem constant byte address 0x4 - core index']
  #allocation1 [shape = 'u32[144,128]{1,0:T(1,128)}', space=vmem, size = 0x12000, scoped, tag = 'internal scratch']
  #allocation2 [shape = 'bf16[483,8]{1,0:T(8,128)(2,1)}', space=vmem, size = 0x1e800, scoped, tag = 'scratch operand']
  %s0 = inlined_call_operand.vmem [shape: bf16[2,483,8], index: 0, kind: input, shape index: {}]
  %s1 = inlined_call_operand.vmem [shape: bf16[2,483,8], index: 1, kind: input, shape index: {}]
  %s2 = inlined_call_operand.vmem [shape: bf16[144,8], index: 2, kind: input, shape index: {}]
  %s3 = inlined_call_operand.vmem [shape: f32[1,8], index: 3, kind: input, shape index: {}]
  %s4 = inlined_call_operand.vmem [shape: bf16[72,8], index: 4, kind: input, shape index: {}]
  %s5 = inlined_call_operand.vmem [shape: f32[1,8], index: 5, kind: input, shape index: {}]
  %s6 = inlined_call_operand.vmem [shape: f32[432,1], index: 6, kind: input, shape index: {}]
  %s7 = inlined_call_operand.vmem [shape: f32[2,432,8], index: 7, kind: output, shape index: {}]
  %s8 = sld [smem:[#allocation0]]
  $region61: #{upsam_forward.3} parent=0
    _
  %s10 = ssub.s32 1, %s8
  %s11 = scalar_select 0, %s10, %s8
  loop: start=0, step=1, limit=4
  $region2: #{upsam_forward.3} parent=0 // loop_pre_header
    _
  $region3: #{upsam_forward.3} parent=0 // loop_header
    %s13 = sphi 0, %s17
    %p14 = scmp.ge.s32.totalorder %s13, 4
    %s23 = sphi 0, %s25
    %s26 = sphi 0, %s23
    %s27 = sphi 0, %s26
    %s43 = sphi 0, %s27
    %s49 = sphi 0, %s51
    %s52 = sphi 0, %s49
    %s53 = sphi 0, %s52
    %s69 = sphi 0, %s53
    %s73 = sphi 0, %s73
    %s75 = sphi 0, %s73
    %s76 = sphi 0, %s75
    %s90 = sphi 0, %s76
    %s94 = sphi 0, %s94
    %s96 = sphi 0, %s94
    %s97 = sphi 0, %s96
    %s111 = sphi 0, %s97
    %s115 = sphi 0, %s115
    %s117 = sphi 0, %s115
    %s118 = sphi 0, %s117
    %s132 = sphi 0, %s118
    %s136 = sphi 0, %s136
    %s138 = sphi 0, %s136
    %s139 = sphi 0, %s138
    %s153 = sphi 0, %s139
    %s157 = sphi 0, %s157
    %s159 = sphi 0, %s157
    %s160 = sphi 0, %s159
    %s174 = sphi 0, %s160
    %s180 = sphi 0, %s182
    %s183 = sphi 0, %s180
    %s184 = sphi 0, %s183
    %s200 = sphi 0, %s184
  $region4: #{upsam_forward.3} parent=0 // loop_header_branch
    %16 = sbr.rel (%p14) target = $region8
  $region5: #{upsam_forward.3} parent=0 // loop_body
    %s18 = ssub.s32 %s13, 1
    %s19 = ssub.s32 %s13, 2
    %s20 = sadd.s32 %s13, 1
    %s21 = ssub.s32 %s13, %s20
    %p22 = scmp.eq.s32.totalorder %s21, 0
    %s24 = sadd.s32 %s23, 1
    %s25 = scalar_select %p22, %s23, %s24
    %p28 = pneg %p22
    %p29 = scmp.eq.s32.totalorder %s13, 1
    %p30 = por %p28, %p29
    %p31 = scmp.ne.s32.totalorder %s23, %s26
    %p32 = scmp.eq.s32.totalorder %s13, 0
    %p33 = por %p31, %p32
    %p34 = scmp.ne.s32.totalorder %s23, %s26
    %p35 = scmp.eq.s32.totalorder %s18, 1
    %p36 = por %p34, %p35
    %p37 = scmp.ne.s32.totalorder %s26, %s27
    %p38 = scmp.eq.s32.totalorder %s18, 0
    %p39 = por %p37, %p38
    %p40 = scmp.ne.s32.totalorder %s26, %s27
    %p41 = scmp.eq.s32.totalorder %s19, 1
    %p42 = por %p40, %p41
    %p44 = scmp.ne.s32.totalorder %s27, %s43
    %p45 = scmp.eq.s32.totalorder %s19, 0
    %p46 = por %p44, %p45
    %s47 = ssub.s32 %s13, %s20
    %p48 = scmp.eq.s32.totalorder %s47, 0
    %s50 = sadd.s32 %s49, 1
    %s51 = scalar_select %p48, %s49, %s50
    %p54 = pneg %p48
    %p55 = scmp.eq.s32.totalorder %s13, 1
    %p56 = por %p54, %p55
    %p57 = scmp.ne.s32.totalorder %s49, %s52
    %p58 = scmp.eq.s32.totalorder %s13, 0
    %p59 = por %p57, %p58
    %p60 = scmp.ne.s32.totalorder %s49, %s52
    %p61 = scmp.eq.s32.totalorder %s18, 1
    %p62 = por %p60, %p61
    %p63 = scmp.ne.s32.totalorder %s52, %s53
    %p64 = scmp.eq.s32.totalorder %s18, 0
    %p65 = por %p63, %p64
    %p66 = scmp.ne.s32.totalorder %s52, %s53
    %p67 = scmp.eq.s32.totalorder %s19, 1
    %p68 = por %p66, %p67
    %p70 = scmp.ne.s32.totalorder %s53, %s69
    %p71 = scmp.eq.s32.totalorder %s19, 0
    %p72 = por %p70, %p71
    %s74 = sadd.s32 %s73, 1
    %p77 = scmp.eq.s32.totalorder %s13, 1
    %p78 = scmp.ne.s32.totalorder %s73, %s75
    %p79 = scmp.eq.s32.totalorder %s13, 0
    %p80 = por %p78, %p79
    %p81 = scmp.ne.s32.totalorder %s73, %s75
    %p82 = scmp.eq.s32.totalorder %s18, 1
    %p83 = por %p81, %p82
    %p84 = scmp.ne.s32.totalorder %s75, %s76
    %p85 = scmp.eq.s32.totalorder %s18, 0
    %p86 = por %p84, %p85
    %p87 = scmp.ne.s32.totalorder %s75, %s76
    %p88 = scmp.eq.s32.totalorder %s19, 1
    %p89 = por %p87, %p88
    %p91 = scmp.ne.s32.totalorder %s76, %s90
    %p92 = scmp.eq.s32.totalorder %s19, 0
    %p93 = por %p91, %p92
    %s95 = sadd.s32 %s94, 1
    %p98 = scmp.eq.s32.totalorder %s13, 1
    %p99 = scmp.ne.s32.totalorder %s94, %s96
    %p100 = scmp.eq.s32.totalorder %s13, 0
    %p101 = por %p99, %p100
    %p102 = scmp.ne.s32.totalorder %s94, %s96
    %p103 = scmp.eq.s32.totalorder %s18, 1
    %p104 = por %p102, %p103
    %p105 = scmp.ne.s32.totalorder %s96, %s97
    %p106 = scmp.eq.s32.totalorder %s18, 0
    %p107 = por %p105, %p106
    %p108 = scmp.ne.s32.totalorder %s96, %s97
    %p109 = scmp.eq.s32.totalorder %s19, 1
    %p110 = por %p108, %p109
    %p112 = scmp.ne.s32.totalorder %s97, %s111
    %p113 = scmp.eq.s32.totalorder %s19, 0
    %p114 = por %p112, %p113
    %s116 = sadd.s32 %s115, 1
    %p119 = scmp.eq.s32.totalorder %s13, 1
    %p120 = scmp.ne.s32.totalorder %s115, %s117
    %p121 = scmp.eq.s32.totalorder %s13, 0
    %p122 = por %p120, %p121
    %p123 = scmp.ne.s32.totalorder %s115, %s117
    %p124 = scmp.eq.s32.totalorder %s18, 1
    %p125 = por %p123, %p124
    %p126 = scmp.ne.s32.totalorder %s117, %s118
    %p127 = scmp.eq.s32.totalorder %s18, 0
    %p128 = por %p126, %p127
    %p129 = scmp.ne.s32.totalorder %s117, %s118
    %p130 = scmp.eq.s32.totalorder %s19, 1
    %p131 = por %p129, %p130
    %p133 = scmp.ne.s32.totalorder %s118, %s132
    %p134 = scmp.eq.s32.totalorder %s19, 0
    %p135 = por %p133, %p134
    %s137 = sadd.s32 %s136, 1
    %p140 = scmp.eq.s32.totalorder %s13, 1
    %p141 = scmp.ne.s32.totalorder %s136, %s138
    %p142 = scmp.eq.s32.totalorder %s13, 0
    %p143 = por %p141, %p142
    %p144 = scmp.ne.s32.totalorder %s136, %s138
    %p145 = scmp.eq.s32.totalorder %s18, 1
    %p146 = por %p144, %p145
    %p147 = scmp.ne.s32.totalorder %s138, %s139
    %p148 = scmp.eq.s32.totalorder %s18, 0
    %p149 = por %p147, %p148
    %p150 = scmp.ne.s32.totalorder %s138, %s139
    %p151 = scmp.eq.s32.totalorder %s19, 1
    %p152 = por %p150, %p151
    %p154 = scmp.ne.s32.totalorder %s139, %s153
    %p155 = scmp.eq.s32.totalorder %s19, 0
    %p156 = por %p154, %p155
    %s158 = sadd.s32 %s157, 1
    %p161 = scmp.eq.s32.totalorder %s13, 1
    %p162 = scmp.ne.s32.totalorder %s157, %s159
    %p163 = scmp.eq.s32.totalorder %s13, 0
    %p164 = por %p162, %p163
    %p165 = scmp.ne.s32.totalorder %s157, %s159
    %p166 = scmp.eq.s32.totalorder %s18, 1
    %p167 = por %p165, %p166
    %p168 = scmp.ne.s32.totalorder %s159, %s160
    %p169 = scmp.eq.s32.totalorder %s18, 0
    %p170 = por %p168, %p169
    %p171 = scmp.ne.s32.totalorder %s159, %s160
    %p172 = scmp.eq.s32.totalorder %s19, 1
    %p173 = por %p171, %p172
    %p175 = scmp.ne.s32.totalorder %s160, %s174
    %p176 = scmp.eq.s32.totalorder %s19, 0
    %p177 = por %p175, %p176
    %s178 = ssub.s32 %s13, %s20
    %p179 = scmp.eq.s32.totalorder %s178, 0
    %s181 = sadd.s32 %s180, 1
    %s182 = scalar_select %p179, %s180, %s181
    %p185 = pneg %p179
    %p186 = scmp.eq.s32.totalorder %s13, 1
    %p187 = por %p185, %p186
    %p188 = scmp.ne.s32.totalorder %s180, %s183
    %p189 = scmp.eq.s32.totalorder %s13, 0
    %p190 = por %p188, %p189
    %p191 = scmp.ne.s32.totalorder %s180, %s183
    %p192 = scmp.eq.s32.totalorder %s18, 1
    %p193 = por %p191, %p192
    %p194 = scmp.ne.s32.totalorder %s183, %s184
    %p195 = scmp.eq.s32.totalorder %s18, 0
    %p196 = por %p194, %p195
    %p197 = scmp.ne.s32.totalorder %s183, %s184
    %p198 = scmp.eq.s32.totalorder %s19, 1
    %p199 = por %p197, %p198
    %p201 = scmp.ne.s32.totalorder %s184, %s200
    %p202 = scmp.eq.s32.totalorder %s19, 0
    %p203 = por %p201, %p202
    %p204 = scmp.le.s32.totalorder 1, %s13
    %p205 = scmp.lt.s32.totalorder %s13, 3
    %p206 = pnand %p204, %p205
    %p207 = pneg %p206
    // Predicated region
    $region9: #{upsam_forward.3} parent=5 // pred_check
      _
    $region10: #{upsam_forward.3} parent=5 // pred_check_branch
      %209 = sbr.rel (%p206) target = $region12
    $region11: #{upsam_forward.3} parent=5 // pred_region
      %s210 = ssub.s32 %s13, 1
      // Predicated region
      $region13: #{upsam_forward.3} parent=11 // pred_check
        %p211 = pneg %p86
      $region14: #{upsam_forward.3} parent=11 // pred_check_branch
        %213 = sbr.rel (%p211) target = $region16
      $region15: #{upsam_forward.3} parent=11 // pred_region
        _
      $region16: #{upsam_forward.3} parent=11 // pred_fallthru
        _
      // Predicated region
      $region17: #{upsam_forward.3} parent=11 // pred_check
        %p214 = pneg %p107
      $region18: #{upsam_forward.3} parent=11 // pred_check_branch
        %216 = sbr.rel (%p214) target = $region20
      $region19: #{upsam_forward.3} parent=11 // pred_region
        _
      $region20: #{upsam_forward.3} parent=11 // pred_fallthru
        _
      // Predicated region
      $region21: #{upsam_forward.3} parent=11 // pred_check
        %p217 = pneg %p128
      $region22: #{upsam_forward.3} parent=11 // pred_check_branch
        %219 = sbr.rel (%p217) target = $region24
      $region23: #{upsam_forward.3} parent=11 // pred_region
        _
      $region24: #{upsam_forward.3} parent=11 // pred_fallthru
        _
      // Predicated region
      $region25: #{upsam_forward.3} parent=11 // pred_check
        %p220 = pneg %p149
      $region26: #{upsam_forward.3} parent=11 // pred_check_branch
        %222 = sbr.rel (%p220) target = $region28
      $region27: #{upsam_forward.3} parent=11 // pred_region
        _
      $region28: #{upsam_forward.3} parent=11 // pred_fallthru
        _
      // Predicated region
      $region29: #{upsam_forward.3} parent=11 // pred_check
        %p223 = pneg %p170
      $region30: #{upsam_forward.3} parent=11 // pred_check_branch
        %225 = sbr.rel (%p223) target = $region32
      $region31: #{upsam_forward.3} parent=11 // pred_region
        _
      $region32: #{upsam_forward.3} parent=11 // pred_fallthru
        _
    $region12: #{upsam_forward.3} parent=5 // pred_fallthru
      _
    %p226 = scmp.lt.s32.totalorder %s13, 2
    // Predicated region
    $region33: #{upsam_forward.3} parent=5 // pred_check
      %p227 = pneg %p226
    $region34: #{upsam_forward.3} parent=5 // pred_check_branch
      %229 = sbr.rel (%p227) target = $region36
    $region35: #{upsam_forward.3} parent=5 // pred_region
      // Predicated region
      $region37: #{upsam_forward.3} parent=35 // pred_check
        %p230 = pneg %p33
      $region38: #{upsam_forward.3} parent=35 // pred_check_branch
        %232 = sbr.rel (%p230) target = $region40
      $region39: #{upsam_forward.3} parent=35 // pred_region
        %p233 = scmp.lt.s32.totalorder %s13, 1
        %s234 = scalar_select %p233, %s13, 1
        %s235 = smul.addr %s234, 61
        %s236 = smul.addr %s235, 4
        %s237 = scalar_lea.vmem %s0, %s236
      $region40: #{upsam_forward.3} parent=35 // pred_fallthru
        _
      // Predicated region
      $region41: #{upsam_forward.3} parent=35 // pred_check
        %p238 = pneg %p59
      $region42: #{upsam_forward.3} parent=35 // pred_check_branch
        %240 = sbr.rel (%p238) target = $region44
      $region43: #{upsam_forward.3} parent=35 // pred_region
        %p241 = scmp.lt.s32.totalorder %s13, 1
        %s242 = scalar_select %p241, %s13, 1
        %s243 = smul.addr %s242, 61
        %s244 = smul.addr %s243, 4
        %s245 = scalar_lea.vmem %s1, %s244
      $region44: #{upsam_forward.3} parent=35 // pred_fallthru
        _
    $region36: #{upsam_forward.3} parent=5 // pred_fallthru
      _
    %p246 = scmp.le.s32.totalorder 1, %s13
    %p247 = scmp.lt.s32.totalorder %s13, 3
    %p248 = pnand %p246, %p247
    %p249 = pneg %p248
    // Predicated region
    $region45: #{upsam_forward.3} parent=5 // pred_check
      _
    $region46: #{upsam_forward.3} parent=5 // pred_check_branch
      %251 = sbr.rel (%p248) target = $region48
    $region47: #{upsam_forward.3} parent=5 // pred_region
      %s252 = ssub.s32 %s13, 1
      %p253 = scmp.lt.s32.totalorder %s18, 1
      %s254 = scalar_select %p253, %s18, 1
      %s255 = smul.addr %s254, 61
      %s256 = smul.addr %s255, 4
      %s257 = scalar_lea.vmem %s0, %s256
      %p258 = pneg %p39
      %p259 = pneg %p36
      %p260 = scmp.lt.s32.totalorder %s18, 1
      %s261 = scalar_select %p260, %s18, 1
      %s262 = smul.addr %s261, 61
      %s263 = smul.addr %s262, 4
      %s264 = scalar_lea.vmem %s1, %s263
      %p265 = pneg %p65
      %p266 = pneg %p62
      %p267 = pneg %p86
      %p268 = pneg %p83
      %p269 = pneg %p107
      %p270 = pneg %p104
      %p271 = pneg %p128
      %p272 = pneg %p125
      %p273 = pneg %p149
      %p274 = pneg %p146
      %p275 = pneg %p170
      %p276 = pneg %p167
      %p277 = pneg %p196
      %p278 = pneg %p193
      %p279 = scmp.lt.s32.totalorder %s18, 1
      %s280 = scalar_select %p279, %s18, 1
      %s281 = smul.addr %s280, 54
      %s282 = smul.addr %s281, 8
      %s283 = scalar_lea.vmem %s7, %s282
      %p284 = scmp.lt.s32.totalorder %s18, 1
      %s285 = scalar_select %p284, %s18, 1
      %s286 = smul.addr %s285, 61
      %s287 = smul.addr %s286, 4
      %s288 = scalar_lea.vmem %s0, %s287
      %p289 = scmp.lt.s32.totalorder %s18, 1
      %s290 = scalar_select %p289, %s18, 1
      %s291 = smul.addr %s290, 61
      %s292 = smul.addr %s291, 4
      %s293 = scalar_lea.vmem %s1, %s292
      %p294 = scmp.lt.s32.totalorder %s18, 1
      %s295 = scalar_select %p294, %s18, 1
      %s296 = smul.addr %s295, 54
      %s297 = smul.addr %s296, 8
      %s298 = scalar_lea.vmem %s7, %s297
      %v300 = vld [vmem:[%s288] sm:$0xf]
      %v301 = vld [vmem:[%s288 + $0x4] sm:$0xf]
      %v302 = vld [vmem:[%s288 + $0x8] sm:$0xf]
      %v303 = vld [vmem:[%s288 + $0xc] sm:$0xf]
      %v304 = vld [vmem:[%s288 + $0x10] sm:$0xf]
      %v305 = vld [vmem:[%s288 + $0x14] sm:$0xf]
      %v306 = vld [vmem:[%s288 + $0x18] sm:$0xf]
      %v307 = vld [vmem:[%s288 + $0x1c] sm:$0xf]
      %v308 = vld [vmem:[%s288 + $0x20] sm:$0xf]
      %v309 = vld [vmem:[%s288 + $0x24] sm:$0xf]
      %v310 = vld [vmem:[%s288 + $0x28] sm:$0xf]
      %v311 = vld [vmem:[%s288 + $0x2c] sm:$0xf]
      %v312 = vld [vmem:[%s288 + $0x30] sm:$0xf]
      %v313 = vld [vmem:[%s288 + $0x34] sm:$0xf]
      %v314 = vld [vmem:[%s288 + $0x38] sm:$0xf]
      %v315 = vld [vmem:[%s288 + $0x3c] sm:$0xf]
      %v316 = vld [vmem:[%s288 + $0x40] sm:$0xf]
      %v317 = vld [vmem:[%s288 + $0x44] sm:$0xf]
      %v318 = vld [vmem:[%s288 + $0x48] sm:$0xf]
      %v319 = vld [vmem:[%s288 + $0x4c] sm:$0xf]
      %v320 = vld [vmem:[%s288 + $0x50] sm:$0xf]
      %v321 = vld [vmem:[%s288 + $0x54] sm:$0xf]
      %v322 = vld [vmem:[%s288 + $0x58] sm:$0xf]
      %v323 = vld [vmem:[%s288 + $0x5c] sm:$0xf]
      %v324 = vld [vmem:[%s288 + $0x60] sm:$0xf]
      %v325 = vld [vmem:[%s288 + $0x64] sm:$0xf]
      %v326 = vld [vmem:[%s288 + $0x68] sm:$0xf]
      %v327 = vld [vmem:[%s288 + $0x6c] sm:$0xf]
      %v328 = vld [vmem:[%s288 + $0x70] sm:$0xf]
      %v329 = vld [vmem:[%s288 + $0x74] sm:$0xf]
      %v330 = vld [vmem:[%s288 + $0x78] sm:$0xf]
      %v331 = vld [vmem:[%s288 + $0x7c] sm:$0xf]
      %v332 = vld [vmem:[%s288 + $0x80] sm:$0xf]
      %v333 = vld [vmem:[%s288 + $0x84] sm:$0xf]
      %v334 = vld [vmem:[%s288 + $0x88] sm:$0xf]
      %v335 = vld [vmem:[%s288 + $0x8c] sm:$0xf]
      %v336 = vld [vmem:[%s288 + $0x90] sm:$0xf]
      %v337 = vld [vmem:[%s288 + $0x94] sm:$0xf]
      %v338 = vld [vmem:[%s288 + $0x98] sm:$0xf]
      %v339 = vld [vmem:[%s288 + $0x9c] sm:$0xf]
      %v340 = vld [vmem:[%s288 + $0xa0] sm:$0xf]
      %v341 = vld [vmem:[%s288 + $0xa4] sm:$0xf]
      %v342 = vld [vmem:[%s288 + $0xa8] sm:$0xf]
      %v343 = vld [vmem:[%s288 + $0xac] sm:$0xf]
      %v344 = vld [vmem:[%s288 + $0xb0] sm:$0xf]
      %v345 = vld [vmem:[%s288 + $0xb4] sm:$0xf]
      %v346 = vld [vmem:[%s288 + $0xb8] sm:$0xf]
      %v347 = vld [vmem:[%s288 + $0xbc] sm:$0xf]
      %v348 = vld [vmem:[%s288 + $0xc0] sm:$0xf]
      %v349 = vld [vmem:[%s288 + $0xc4] sm:$0xf]
      %v350 = vld [vmem:[%s288 + $0xc8] sm:$0xf]
      %v351 = vld [vmem:[%s288 + $0xcc] sm:$0xf]
      %v352 = vld [vmem:[%s288 + $0xd0] sm:$0xf]
      %v353 = vld [vmem:[%s288 + $0xd4] sm:$0xf]
      %v354 = vld [vmem:[%s288 + $0xd8] sm:$0x1]
      %v355 = vld [vmem:[%s288 + $0xd8] sm:$0xf]
      %v356 = vld [vmem:[%s288 + $0xdc] sm:$0xf]
      %v357 = vld [vmem:[%s288 + $0xe0] sm:$0xf]
      %v358 = vld [vmem:[%s288 + $0xe4] sm:$0x1]
      %v359 = vld [vmem:[%s288 + $0xe4] sm:$0xf]
      %v360 = vld [vmem:[%s288 + $0xe8] sm:$0xf]
      %v361 = vld [vmem:[%s288 + $0xec] sm:$0xf]
      %v362 = vld [vmem:[%s288 + $0xf0] sm:$0x1]
      %v363 = vld [vmem:[%s293] sm:$0xf]
      %v364 = vld [vmem:[%s293 + $0x4] sm:$0xf]
      %v365 = vld [vmem:[%s293 + $0x8] sm:$0xf]
      %v366 = vld [vmem:[%s293 + $0xc] sm:$0xf]
      %v367 = vld [vmem:[%s293 + $0x10] sm:$0xf]
      %v368 = vld [vmem:[%s293 + $0x14] sm:$0xf]
      %v369 = vld [vmem:[%s293 + $0x18] sm:$0xf]
      %v370 = vld [vmem:[%s293 + $0x1c] sm:$0xf]
      %v371 = vld [vmem:[%s293 + $0x20] sm:$0xf]
      %v372 = vld [vmem:[%s293 + $0x24] sm:$0xf]
      %v373 = vld [vmem:[%s293 + $0x28] sm:$0xf]
      %v374 = vld [vmem:[%s293 + $0x2c] sm:$0xf]
      %v375 = vld [vmem:[%s293 + $0x30] sm:$0xf]
      %v376 = vld [vmem:[%s293 + $0x34] sm:$0xf]
      %v377 = vld [vmem:[%s293 + $0x38] sm:$0xf]
      %v378 = vld [vmem:[%s293 + $0x3c] sm:$0xf]
      %v379 = vld [vmem:[%s293 + $0x40] sm:$0xf]
      %v380 = vld [vmem:[%s293 + $0x44] sm:$0xf]
      %v381 = vld [vmem:[%s293 + $0x48] sm:$0xf]
      %v382 = vld [vmem:[%s293 + $0x4c] sm:$0xf]
      %v383 = vld [vmem:[%s293 + $0x50] sm:$0xf]
      %v384 = vld [vmem:[%s293 + $0x54] sm:$0xf]
      %v385 = vld [vmem:[%s293 + $0x58] sm:$0xf]
      %v386 = vld [vmem:[%s293 + $0x5c] sm:$0xf]
      %v387 = vld [vmem:[%s293 + $0x60] sm:$0xf]
      %v388 = vld [vmem:[%s293 + $0x64] sm:$0xf]
      %v389 = vld [vmem:[%s293 + $0x68] sm:$0xf]
      %v390 = vld [vmem:[%s293 + $0x6c] sm:$0xf]
      %v391 = vld [vmem:[%s293 + $0x70] sm:$0xf]
      %v392 = vld [vmem:[%s293 + $0x74] sm:$0xf]
      %v393 = vld [vmem:[%s293 + $0x78] sm:$0xf]
      %v394 = vld [vmem:[%s293 + $0x7c] sm:$0xf]
      %v395 = vld [vmem:[%s293 + $0x80] sm:$0xf]
      %v396 = vld [vmem:[%s293 + $0x84] sm:$0xf]
      %v397 = vld [vmem:[%s293 + $0x88] sm:$0xf]
      %v398 = vld [vmem:[%s293 + $0x8c] sm:$0xf]
      %v399 = vld [vmem:[%s293 + $0x90] sm:$0xf]
      %v400 = vld [vmem:[%s293 + $0x94] sm:$0xf]
      %v401 = vld [vmem:[%s293 + $0x98] sm:$0xf]
      %v402 = vld [vmem:[%s293 + $0x9c] sm:$0xf]
      %v403 = vld [vmem:[%s293 + $0xa0] sm:$0xf]
      %v404 = vld [vmem:[%s293 + $0xa4] sm:$0xf]
      %v405 = vld [vmem:[%s293 + $0xa8] sm:$0xf]
      %v406 = vld [vmem:[%s293 + $0xac] sm:$0xf]
      %v407 = vld [vmem:[%s293 + $0xb0] sm:$0xf]
      %v408 = vld [vmem:[%s293 + $0xb4] sm:$0xf]
      %v409 = vld [vmem:[%s293 + $0xb8] sm:$0xf]
      %v410 = vld [vmem:[%s293 + $0xbc] sm:$0xf]
      %v411 = vld [vmem:[%s293 + $0xc0] sm:$0xf]
      %v412 = vld [vmem:[%s293 + $0xc4] sm:$0xf]
      %v413 = vld [vmem:[%s293 + $0xc8] sm:$0xf]
      %v414 = vld [vmem:[%s293 + $0xcc] sm:$0xf]
      %v415 = vld [vmem:[%s293 + $0xd0] sm:$0xf]
      %v416 = vld [vmem:[%s293 + $0xd4] sm:$0xf]
      %v417 = vld [vmem:[%s293 + $0xd8] sm:$0x1]
      %v418 = vld [vmem:[%s293 + $0xd8] sm:$0xf]
      %v419 = vld [vmem:[%s293 + $0xdc] sm:$0xf]
      %v420 = vld [vmem:[%s293 + $0xe0] sm:$0xf]
      %v421 = vld [vmem:[%s293 + $0xe4] sm:$0x1]
      %v422 = vld [vmem:[%s293 + $0xe4] sm:$0xf]
      %v423 = vld [vmem:[%s293 + $0xe8] sm:$0xf]
      %v424 = vld [vmem:[%s293 + $0xec] sm:$0xf]
      %v425 = vld [vmem:[%s293 + $0xf0] sm:$0x1]
      %v480 = vunpack.c.l.b16 %v300
      %v481 = vunpack.c.l.b16 %v301
      %v482 = vunpack.c.l.b16 %v302
      %v483 = vunpack.c.l.b16 %v303
      %v484 = vunpack.c.l.b16 %v304
      %v485 = vunpack.c.l.b16 %v305
      %v486 = vunpack.c.l.b16 %v306
      %v487 = vunpack.c.l.b16 %v307
      %v488 = vunpack.c.l.b16 %v308
      %v489 = vunpack.c.l.b16 %v309
      %v490 = vunpack.c.l.b16 %v310
      %v491 = vunpack.c.l.b16 %v311
      %v492 = vunpack.c.l.b16 %v312
      %v493 = vunpack.c.l.b16 %v313
      %v494 = vunpack.c.l.b16 %v314
      %v495 = vunpack.c.l.b16 %v315
      %v496 = vunpack.c.l.b16 %v316
      %v497 = vunpack.c.l.b16 %v317
      %v498 = vunpack.c.l.b16 %v318
      %v499 = vunpack.c.l.b16 %v319
      %v500 = vunpack.c.l.b16 %v320
      %v501 = vunpack.c.l.b16 %v321
      %v502 = vunpack.c.l.b16 %v322
      %v503 = vunpack.c.l.b16 %v323
      %v504 = vunpack.c.l.b16 %v324
      %v505 = vunpack.c.l.b16 %v325
      %v506 = vunpack.c.l.b16 %v326
      %v507 = vunpack.c.l.b16 %v327
      %v508 = vunpack.c.l.b16 %v328
      %v509 = vunpack.c.l.b16 %v329
      %v510 = vunpack.c.l.b16 %v330
      %v511 = vunpack.c.l.b16 %v331
      %v512 = vunpack.c.l.b16 %v332
      %v513 = vunpack.c.l.b16 %v333
      %v514 = vunpack.c.l.b16 %v334
      %v515 = vunpack.c.l.b16 %v335
      %v516 = vunpack.c.l.b16 %v336
      %v517 = vunpack.c.l.b16 %v337
      %v518 = vunpack.c.l.b16 %v338
      %v519 = vunpack.c.l.b16 %v339
      %v520 = vunpack.c.l.b16 %v340
      %v521 = vunpack.c.l.b16 %v341
      %v522 = vunpack.c.l.b16 %v342
      %v523 = vunpack.c.l.b16 %v343
      %v524 = vunpack.c.l.b16 %v344
      %v525 = vunpack.c.l.b16 %v345
      %v526 = vunpack.c.l.b16 %v346
      %v527 = vunpack.c.l.b16 %v347
      %v528 = vunpack.c.l.b16 %v348
      %v529 = vunpack.c.l.b16 %v349
      %v530 = vunpack.c.l.b16 %v350
      %v531 = vunpack.c.l.b16 %v351
      %v532 = vunpack.c.l.b16 %v352
      %v533 = vunpack.c.l.b16 %v353
      %v534 = vpack.c.b16 %v481, %v480
      %v535 = vpack.c.b16 %v483, %v482
      %v536 = vpack.c.b16 %v485, %v484
      %v537 = vpack.c.b16 %v487, %v486
      %v538 = vpack.c.b16 %v489, %v488
      %v539 = vpack.c.b16 %v491, %v490
      %v540 = vpack.c.b16 %v493, %v492
      %v541 = vpack.c.b16 %v495, %v494
      %v542 = vpack.c.b16 %v497, %v496
      %v543 = vpack.c.b16 %v499, %v498
      %v544 = vpack.c.b16 %v501, %v500
      %v545 = vpack.c.b16 %v503, %v502
      %v546 = vpack.c.b16 %v505, %v504
      %v547 = vpack.c.b16 %v507, %v506
      %v548 = vpack.c.b16 %v509, %v508
      %v549 = vpack.c.b16 %v511, %v510
      %v550 = vpack.c.b16 %v513, %v512
      %v551 = vpack.c.b16 %v515, %v514
      %v552 = vpack.c.b16 %v517, %v516
      %v553 = vpack.c.b16 %v519, %v518
      %v554 = vpack.c.b16 %v521, %v520
      %v555 = vpack.c.b16 %v523, %v522
      %v556 = vpack.c.b16 %v525, %v524
      %v557 = vpack.c.b16 %v527, %v526
      %v558 = vpack.c.b16 %v529, %v528
      %v559 = vpack.c.b16 %v531, %v530
      %v560 = vpack.c.b16 %v533, %v532
      %v562 = vunpack.c.l.b16 %v354
      %v563 = vpack.c.b16 %v562, %v562
      %vm564 = vsmask.f32 7424
      %v566 = vshrl.u32 %v534, 16
      %v568 = vshll.u32 %v534, 16
      %v570 = vrot.slane %v568, 1
      %v571 = vor.u32 %v566, %v570
      %v573 = vshll.u32 %v535, 16
      %v575 = vrot.slane %v573, 1
      %v576 = vsel %vm564, %v571, %v575
      %v577 = vshrl.u32 %v535, 16
      %v579 = vor.u32 %v577, %v575
      %v581 = vshll.u32 %v536, 16
      %v583 = vrot.slane %v581, 1
      %v584 = vsel %vm564, %v579, %v583
      %v585 = vshrl.u32 %v536, 16
      %v587 = vor.u32 %v585, %v583
      %v589 = vshll.u32 %v537, 16
      %v591 = vrot.slane %v589, 1
      %v592 = vsel %vm564, %v587, %v591
      %v593 = vshrl.u32 %v537, 16
      %v595 = vor.u32 %v593, %v591
      %v597 = vshll.u32 %v538, 16
      %v599 = vrot.slane %v597, 1
      %v600 = vsel %vm564, %v595, %v599
      %v601 = vshrl.u32 %v538, 16
      %v603 = vor.u32 %v601, %v599
      %v605 = vshll.u32 %v539, 16
      %v607 = vrot.slane %v605, 1
      %v608 = vsel %vm564, %v603, %v607
      %v609 = vshrl.u32 %v539, 16
      %v611 = vor.u32 %v609, %v607
      %v613 = vshll.u32 %v540, 16
      %v615 = vrot.slane %v613, 1
      %v616 = vsel %vm564, %v611, %v615
      %v617 = vshrl.u32 %v540, 16
      %v619 = vor.u32 %v617, %v615
      %v621 = vshll.u32 %v541, 16
      %v623 = vrot.slane %v621, 1
      %v624 = vsel %vm564, %v619, %v623
      %v625 = vshrl.u32 %v541, 16
      %v627 = vor.u32 %v625, %v623
      %v629 = vshll.u32 %v542, 16
      %v631 = vrot.slane %v629, 1
      %v632 = vsel %vm564, %v627, %v631
      %v633 = vshrl.u32 %v542, 16
      %v635 = vor.u32 %v633, %v631
      %v637 = vshll.u32 %v543, 16
      %v639 = vrot.slane %v637, 1
      %v640 = vsel %vm564, %v635, %v639
      %v641 = vshrl.u32 %v543, 16
      %v643 = vor.u32 %v641, %v639
      %v645 = vshll.u32 %v544, 16
      %v647 = vrot.slane %v645, 1
      %v648 = vsel %vm564, %v643, %v647
      %v649 = vshrl.u32 %v544, 16
      %v651 = vor.u32 %v649, %v647
      %v653 = vshll.u32 %v545, 16
      %v655 = vrot.slane %v653, 1
      %v656 = vsel %vm564, %v651, %v655
      %v657 = vshrl.u32 %v545, 16
      %v659 = vor.u32 %v657, %v655
      %v661 = vshll.u32 %v546, 16
      %v663 = vrot.slane %v661, 1
      %v664 = vsel %vm564, %v659, %v663
      %v665 = vshrl.u32 %v546, 16
      %v667 = vor.u32 %v665, %v663
      %v669 = vshll.u32 %v547, 16
      %v671 = vrot.slane %v669, 1
      %v672 = vsel %vm564, %v667, %v671
      %v673 = vshrl.u32 %v547, 16
      %v675 = vor.u32 %v673, %v671
      %v677 = vshll.u32 %v548, 16
      %v679 = vrot.slane %v677, 1
      %v680 = vsel %vm564, %v675, %v679
      %v681 = vshrl.u32 %v548, 16
      %v683 = vor.u32 %v681, %v679
      %v685 = vshll.u32 %v549, 16
      %v687 = vrot.slane %v685, 1
      %v688 = vsel %vm564, %v683, %v687
      %v689 = vshrl.u32 %v549, 16
      %v691 = vor.u32 %v689, %v687
      %v693 = vshll.u32 %v550, 16
      %v695 = vrot.slane %v693, 1
      %v696 = vsel %vm564, %v691, %v695
      %v697 = vshrl.u32 %v550, 16
      %v699 = vor.u32 %v697, %v695
      %v701 = vshll.u32 %v551, 16
      %v703 = vrot.slane %v701, 1
      %v704 = vsel %vm564, %v699, %v703
      %v705 = vshrl.u32 %v551, 16
      %v707 = vor.u32 %v705, %v703
      %v709 = vshll.u32 %v552, 16
      %v711 = vrot.slane %v709, 1
      %v712 = vsel %vm564, %v707, %v711
      %v713 = vshrl.u32 %v552, 16
      %v715 = vor.u32 %v713, %v711
      %v717 = vshll.u32 %v553, 16
      %v719 = vrot.slane %v717, 1
      %v720 = vsel %vm564, %v715, %v719
      %v721 = vshrl.u32 %v553, 16
      %v723 = vor.u32 %v721, %v719
      %v725 = vshll.u32 %v554, 16
      %v727 = vrot.slane %v725, 1
      %v728 = vsel %vm564, %v723, %v727
      %v729 = vshrl.u32 %v554, 16
      %v731 = vor.u32 %v729, %v727
      %v733 = vshll.u32 %v555, 16
      %v735 = vrot.slane %v733, 1
      %v736 = vsel %vm564, %v731, %v735
      %v737 = vshrl.u32 %v555, 16
      %v739 = vor.u32 %v737, %v735
      %v741 = vshll.u32 %v556, 16
      %v743 = vrot.slane %v741, 1
      %v744 = vsel %vm564, %v739, %v743
      %v745 = vshrl.u32 %v556, 16
      %v747 = vor.u32 %v745, %v743
      %v749 = vshll.u32 %v557, 16
      %v751 = vrot.slane %v749, 1
      %v752 = vsel %vm564, %v747, %v751
      %v753 = vshrl.u32 %v557, 16
      %v755 = vor.u32 %v753, %v751
      %v757 = vshll.u32 %v558, 16
      %v759 = vrot.slane %v757, 1
      %v760 = vsel %vm564, %v755, %v759
      %v761 = vshrl.u32 %v558, 16
      %v763 = vor.u32 %v761, %v759
      %v765 = vshll.u32 %v559, 16
      %v767 = vrot.slane %v765, 1
      %v768 = vsel %vm564, %v763, %v767
      %v769 = vshrl.u32 %v559, 16
      %v771 = vor.u32 %v769, %v767
      %v773 = vshll.u32 %v560, 16
      %v775 = vrot.slane %v773, 1
      %v776 = vsel %vm564, %v771, %v775
      %v777 = vshrl.u32 %v560, 16
      %v779 = vor.u32 %v777, %v775
      %v781 = vshll.u32 %v563, 16
      %v783 = vrot.slane %v781, 1
      %v784 = vsel %vm564, %v779, %v783
      %785 = vrot.lane.b32.xlu0 %v576, 8
      %v786 = vpop.permute.xlu0 %785
      %787 = vrot.lane.b32.xlu0 %v584, 8
      %v788 = vpop.permute.xlu0 %787
      %789 = vrot.lane.b32.xlu0 %v592, 8
      %v790 = vpop.permute.xlu0 %789
      %791 = vrot.lane.b32.xlu0 %v600, 8
      %v792 = vpop.permute.xlu0 %791
      %793 = vrot.lane.b32.xlu0 %v608, 8
      %v794 = vpop.permute.xlu0 %793
      %795 = vrot.lane.b32.xlu0 %v616, 8
      %v796 = vpop.permute.xlu0 %795
      %797 = vrot.lane.b32.xlu0 %v624, 8
      %v798 = vpop.permute.xlu0 %797
      %799 = vrot.lane.b32.xlu0 %v632, 8
      %v800 = vpop.permute.xlu0 %799
      %801 = vrot.lane.b32.xlu0 %v640, 8
      %v802 = vpop.permute.xlu0 %801
      %803 = vrot.lane.b32.xlu0 %v648, 8
      %v804 = vpop.permute.xlu0 %803
      %805 = vrot.lane.b32.xlu0 %v656, 8
      %v806 = vpop.permute.xlu0 %805
      %807 = vrot.lane.b32.xlu0 %v664, 8
      %v808 = vpop.permute.xlu0 %807
      %809 = vrot.lane.b32.xlu0 %v672, 8
      %v810 = vpop.permute.xlu0 %809
      %811 = vrot.lane.b32.xlu0 %v680, 8
      %v812 = vpop.permute.xlu0 %811
      %813 = vrot.lane.b32.xlu0 %v688, 8
      %v814 = vpop.permute.xlu0 %813
      %815 = vrot.lane.b32.xlu0 %v696, 8
      %v816 = vpop.permute.xlu0 %815
      %817 = vrot.lane.b32.xlu0 %v704, 8
      %v818 = vpop.permute.xlu0 %817
      %819 = vrot.lane.b32.xlu0 %v712, 8
      %v820 = vpop.permute.xlu0 %819
      %821 = vrot.lane.b32.xlu0 %v720, 8
      %v822 = vpop.permute.xlu0 %821
      %823 = vrot.lane.b32.xlu0 %v728, 8
      %v824 = vpop.permute.xlu0 %823
      %825 = vrot.lane.b32.xlu0 %v736, 8
      %v826 = vpop.permute.xlu0 %825
      %827 = vrot.lane.b32.xlu0 %v744, 8
      %v828 = vpop.permute.xlu0 %827
      %829 = vrot.lane.b32.xlu0 %v752, 8
      %v830 = vpop.permute.xlu0 %829
      %831 = vrot.lane.b32.xlu0 %v760, 8
      %v832 = vpop.permute.xlu0 %831
      %833 = vrot.lane.b32.xlu0 %v768, 8
      %v834 = vpop.permute.xlu0 %833
      %835 = vrot.lane.b32.xlu0 %v776, 8
      %v836 = vpop.permute.xlu0 %835
      %837 = vrot.lane.b32.xlu0 %v784, 8
      %v838 = vpop.permute.xlu0 %837
      %vm839 = vcmask 1046528
      %v840 = vrot.slane %v534, 1
      %v841 = vrot.slane %v535, 1
      %v842 = vsel %vm839, %v840, %v841
      %v843 = vrot.slane %v536, 1
      %v844 = vsel %vm839, %v841, %v843
      %v845 = vrot.slane %v537, 1
      %v846 = vsel %vm839, %v843, %v845
      %v847 = vrot.slane %v538, 1
      %v848 = vsel %vm839, %v845, %v847
      %v849 = vrot.slane %v539, 1
      %v850 = vsel %vm839, %v847, %v849
      %v851 = vrot.slane %v540, 1
      %v852 = vsel %vm839, %v849, %v851
      %v853 = vrot.slane %v541, 1
      %v854 = vsel %vm839, %v851, %v853
      %v855 = vrot.slane %v542, 1
      %v856 = vsel %vm839, %v853, %v855
      %v857 = vrot.slane %v543, 1
      %v858 = vsel %vm839, %v855, %v857
      %v859 = vrot.slane %v544, 1
      %v860 = vsel %vm839, %v857, %v859
      %v861 = vrot.slane %v545, 1
      %v862 = vsel %vm839, %v859, %v861
      %v863 = vrot.slane %v546, 1
      %v864 = vsel %vm839, %v861, %v863
      %v865 = vrot.slane %v547, 1
      %v866 = vsel %vm839, %v863, %v865
      %v867 = vrot.slane %v548, 1
      %v868 = vsel %vm839, %v865, %v867
      %v869 = vrot.slane %v549, 1
      %v870 = vsel %vm839, %v867, %v869
      %v871 = vrot.slane %v550, 1
      %v872 = vsel %vm839, %v869, %v871
      %v873 = vrot.slane %v551, 1
      %v874 = vsel %vm839, %v871, %v873
      %v875 = vrot.slane %v552, 1
      %v876 = vsel %vm839, %v873, %v875
      %v877 = vrot.slane %v553, 1
      %v878 = vsel %vm839, %v875, %v877
      %v879 = vrot.slane %v554, 1
      %v880 = vsel %vm839, %v877, %v879
      %v881 = vrot.slane %v555, 1
      %v882 = vsel %vm839, %v879, %v881
      %v883 = vrot.slane %v556, 1
      %v884 = vsel %vm839, %v881, %v883
      %v885 = vrot.slane %v557, 1
      %v886 = vsel %vm839, %v883, %v885
      %v887 = vrot.slane %v558, 1
      %v888 = vsel %vm839, %v885, %v887
      %v889 = vrot.slane %v559, 1
      %v890 = vsel %vm839, %v887, %v889
      %v891 = vrot.slane %v560, 1
      %v892 = vsel %vm839, %v889, %v891
      %v893 = vrot.slane %v563, 1
      %v894 = vsel %vm839, %v891, %v893
      %895 = vrot.lane.b32.xlu0 %v842, 16
      %v896 = vpop.permute.xlu0 %895
      %897 = vrot.lane.b32.xlu0 %v844, 16
      %v898 = vpop.permute.xlu0 %897
      %899 = vrot.lane.b32.xlu0 %v846, 16
      %v900 = vpop.permute.xlu0 %899
      %901 = vrot.lane.b32.xlu0 %v848, 16
      %v902 = vpop.permute.xlu0 %901
      %903 = vrot.lane.b32.xlu0 %v850, 16
      %v904 = vpop.permute.xlu0 %903
      %905 = vrot.lane.b32.xlu0 %v852, 16
      %v906 = vpop.permute.xlu0 %905
      %907 = vrot.lane.b32.xlu0 %v854, 16
      %v908 = vpop.permute.xlu0 %907
      %909 = vrot.lane.b32.xlu0 %v856, 16
      %v910 = vpop.permute.xlu0 %909
      %911 = vrot.lane.b32.xlu0 %v858, 16
      %v912 = vpop.permute.xlu0 %911
      %913 = vrot.lane.b32.xlu0 %v860, 16
      %v914 = vpop.permute.xlu0 %913
      %915 = vrot.lane.b32.xlu0 %v862, 16
      %v916 = vpop.permute.xlu0 %915
      %917 = vrot.lane.b32.xlu0 %v864, 16
      %v918 = vpop.permute.xlu0 %917
      %919 = vrot.lane.b32.xlu0 %v866, 16
      %v920 = vpop.permute.xlu0 %919
      %921 = vrot.lane.b32.xlu0 %v868, 16
      %v922 = vpop.permute.xlu0 %921
      %923 = vrot.lane.b32.xlu0 %v870, 16
      %v924 = vpop.permute.xlu0 %923
      %925 = vrot.lane.b32.xlu0 %v872, 16
      %v926 = vpop.permute.xlu0 %925
      %927 = vrot.lane.b32.xlu0 %v874, 16
      %v928 = vpop.permute.xlu0 %927
      %929 = vrot.lane.b32.xlu0 %v876, 16
      %v930 = vpop.permute.xlu0 %929
      %931 = vrot.lane.b32.xlu0 %v878, 16
      %v932 = vpop.permute.xlu0 %931
      %933 = vrot.lane.b32.xlu0 %v880, 16
      %v934 = vpop.permute.xlu0 %933
      %935 = vrot.lane.b32.xlu0 %v882, 16
      %v936 = vpop.permute.xlu0 %935
      %937 = vrot.lane.b32.xlu0 %v884, 16
      %v938 = vpop.permute.xlu0 %937
      %939 = vrot.lane.b32.xlu0 %v886, 16
      %v940 = vpop.permute.xlu0 %939
      %941 = vrot.lane.b32.xlu0 %v888, 16
      %v942 = vpop.permute.xlu0 %941
      %943 = vrot.lane.b32.xlu0 %v890, 16
      %v944 = vpop.permute.xlu0 %943
      %945 = vrot.lane.b32.xlu0 %v892, 16
      %v946 = vpop.permute.xlu0 %945
      %947 = vrot.lane.b32.xlu0 %v894, 16
      %v948 = vpop.permute.xlu0 %947
      %v952 = vunpack.c.l.b16 %v355
      %v953 = vunpack.c.l.b16 %v356
      %v954 = vunpack.c.l.b16 %v357
      %v955 = vpack.c.b16 %v484, %v483
      %v956 = vpack.c.b16 %v486, %v485
      %v957 = vpack.c.b16 %v488, %v487
      %v958 = vpack.c.b16 %v490, %v489
      %v959 = vpack.c.b16 %v492, %v491
      %v960 = vpack.c.b16 %v494, %v493
      %v961 = vpack.c.b16 %v496, %v495
      %v962 = vpack.c.b16 %v498, %v497
      %v963 = vpack.c.b16 %v500, %v499
      %v964 = vpack.c.b16 %v502, %v501
      %v965 = vpack.c.b16 %v504, %v503
      %v966 = vpack.c.b16 %v506, %v505
      %v967 = vpack.c.b16 %v508, %v507
      %v968 = vpack.c.b16 %v510, %v509
      %v969 = vpack.c.b16 %v512, %v511
      %v970 = vpack.c.b16 %v514, %v513
      %v971 = vpack.c.b16 %v516, %v515
      %v972 = vpack.c.b16 %v518, %v517
      %v973 = vpack.c.b16 %v520, %v519
      %v974 = vpack.c.b16 %v522, %v521
      %v975 = vpack.c.b16 %v524, %v523
      %v976 = vpack.c.b16 %v526, %v525
      %v977 = vpack.c.b16 %v528, %v527
      %v978 = vpack.c.b16 %v530, %v529
      %v979 = vpack.c.b16 %v532, %v531
      %v980 = vpack.c.b16 %v952, %v533
      %v981 = vpack.c.b16 %v954, %v953
      %982 = vrot.lane.b32.xlu0 %v955, 24
      %v983 = vpop.permute.xlu0 %982
      %984 = vrot.lane.b32.xlu0 %v956, 24
      %v985 = vpop.permute.xlu0 %984
      %986 = vrot.lane.b32.xlu0 %v957, 24
      %v987 = vpop.permute.xlu0 %986
      %988 = vrot.lane.b32.xlu0 %v958, 24
      %v989 = vpop.permute.xlu0 %988
      %990 = vrot.lane.b32.xlu0 %v959, 24
      %v991 = vpop.permute.xlu0 %990
      %992 = vrot.lane.b32.xlu0 %v960, 24
      %v993 = vpop.permute.xlu0 %992
      %994 = vrot.lane.b32.xlu0 %v961, 24
      %v995 = vpop.permute.xlu0 %994
      %996 = vrot.lane.b32.xlu0 %v962, 24
      %v997 = vpop.permute.xlu0 %996
      %998 = vrot.lane.b32.xlu0 %v963, 24
      %v999 = vpop.permute.xlu0 %998
      %1000 = vrot.lane.b32.xlu0 %v964, 24
      %v1001 = vpop.permute.xlu0 %1000
      %1002 = vrot.lane.b32.xlu0 %v965, 24
      %v1003 = vpop.permute.xlu0 %1002
      %1004 = vrot.lane.b32.xlu0 %v966, 24
      %v1005 = vpop.permute.xlu0 %1004
      %1006 = vrot.lane.b32.xlu0 %v967, 24
      %v1007 = vpop.permute.xlu0 %1006
      %1008 = vrot.lane.b32.xlu0 %v968, 24
      %v1009 = vpop.permute.xlu0 %1008
      %1010 = vrot.lane.b32.xlu0 %v969, 24
      %v1011 = vpop.permute.xlu0 %1010
      %1012 = vrot.lane.b32.xlu0 %v970, 24
      %v1013 = vpop.permute.xlu0 %1012
      %1014 = vrot.lane.b32.xlu0 %v971, 24
      %v1015 = vpop.permute.xlu0 %1014
      %1016 = vrot.lane.b32.xlu0 %v972, 24
      %v1017 = vpop.permute.xlu0 %1016
      %1018 = vrot.lane.b32.xlu0 %v973, 24
      %v1019 = vpop.permute.xlu0 %1018
      %1020 = vrot.lane.b32.xlu0 %v974, 24
      %v1021 = vpop.permute.xlu0 %1020
      %1022 = vrot.lane.b32.xlu0 %v975, 24
      %v1023 = vpop.permute.xlu0 %1022
      %1024 = vrot.lane.b32.xlu0 %v976, 24
      %v1025 = vpop.permute.xlu0 %1024
      %1026 = vrot.lane.b32.xlu0 %v977, 24
      %v1027 = vpop.permute.xlu0 %1026
      %1028 = vrot.lane.b32.xlu0 %v978, 24
      %v1029 = vpop.permute.xlu0 %1028
      %1030 = vrot.lane.b32.xlu0 %v979, 24
      %v1031 = vpop.permute.xlu0 %1030
      %1032 = vrot.lane.b32.xlu0 %v980, 24
      %v1033 = vpop.permute.xlu0 %1032
      %1034 = vrot.lane.b32.xlu0 %v981, 24
      %v1035 = vpop.permute.xlu0 %1034
      %v1037 = vunpack.c.l.b16 %v358
      %v1038 = vpack.c.b16 %v1037, %v1037
      %v1040 = vshrl.u32 %v955, 16
      %v1042 = vshll.u32 %v955, 16
      %v1044 = vrot.slane %v1042, 1
      %v1045 = vor.u32 %v1040, %v1044
      %v1047 = vshll.u32 %v956, 16
      %v1049 = vrot.slane %v1047, 1
      %v1050 = vsel %vm564, %v1045, %v1049
      %v1051 = vshrl.u32 %v956, 16
      %v1053 = vor.u32 %v1051, %v1049
      %v1055 = vshll.u32 %v957, 16
      %v1057 = vrot.slane %v1055, 1
      %v1058 = vsel %vm564, %v1053, %v1057
      %v1059 = vshrl.u32 %v957, 16
      %v1061 = vor.u32 %v1059, %v1057
      %v1063 = vshll.u32 %v958, 16
      %v1065 = vrot.slane %v1063, 1
      %v1066 = vsel %vm564, %v1061, %v1065
      %v1067 = vshrl.u32 %v958, 16
      %v1069 = vor.u32 %v1067, %v1065
      %v1071 = vshll.u32 %v959, 16
      %v1073 = vrot.slane %v1071, 1
      %v1074 = vsel %vm564, %v1069, %v1073
      %v1075 = vshrl.u32 %v959, 16
      %v1077 = vor.u32 %v1075, %v1073
      %v1079 = vshll.u32 %v960, 16
      %v1081 = vrot.slane %v1079, 1
      %v1082 = vsel %vm564, %v1077, %v1081
      %v1083 = vshrl.u32 %v960, 16
      %v1085 = vor.u32 %v1083, %v1081
      %v1087 = vshll.u32 %v961, 16
      %v1089 = vrot.slane %v1087, 1
      %v1090 = vsel %vm564, %v1085, %v1089
      %v1091 = vshrl.u32 %v961, 16
      %v1093 = vor.u32 %v1091, %v1089
      %v1095 = vshll.u32 %v962, 16
      %v1097 = vrot.slane %v1095, 1
      %v1098 = vsel %vm564, %v1093, %v1097
      %v1099 = vshrl.u32 %v962, 16
      %v1101 = vor.u32 %v1099, %v1097
      %v1103 = vshll.u32 %v963, 16
      %v1105 = vrot.slane %v1103, 1
      %v1106 = vsel %vm564, %v1101, %v1105
      %v1107 = vshrl.u32 %v963, 16
      %v1109 = vor.u32 %v1107, %v1105
      %v1111 = vshll.u32 %v964, 16
      %v1113 = vrot.slane %v1111, 1
      %v1114 = vsel %vm564, %v1109, %v1113
      %v1115 = vshrl.u32 %v964, 16
      %v1117 = vor.u32 %v1115, %v1113
      %v1119 = vshll.u32 %v965, 16
      %v1121 = vrot.slane %v1119, 1
      %v1122 = vsel %vm564, %v1117, %v1121
      %v1123 = vshrl.u32 %v965, 16
      %v1125 = vor.u32 %v1123, %v1121
      %v1127 = vshll.u32 %v966, 16
      %v1129 = vrot.slane %v1127, 1
      %v1130 = vsel %vm564, %v1125, %v1129
      %v1131 = vshrl.u32 %v966, 16
      %v1133 = vor.u32 %v1131, %v1129
      %v1135 = vshll.u32 %v967, 16
      %v1137 = vrot.slane %v1135, 1
      %v1138 = vsel %vm564, %v1133, %v1137
      %v1139 = vshrl.u32 %v967, 16
      %v1141 = vor.u32 %v1139, %v1137
      %v1143 = vshll.u32 %v968, 16
      %v1145 = vrot.slane %v1143, 1
      %v1146 = vsel %vm564, %v1141, %v1145
      %v1147 = vshrl.u32 %v968, 16
      %v1149 = vor.u32 %v1147, %v1145
      %v1151 = vshll.u32 %v969, 16
      %v1153 = vrot.slane %v1151, 1
      %v1154 = vsel %vm564, %v1149, %v1153
      %v1155 = vshrl.u32 %v969, 16
      %v1157 = vor.u32 %v1155, %v1153
      %v1159 = vshll.u32 %v970, 16
      %v1161 = vrot.slane %v1159, 1
      %v1162 = vsel %vm564, %v1157, %v1161
      %v1163 = vshrl.u32 %v970, 16
      %v1165 = vor.u32 %v1163, %v1161
      %v1167 = vshll.u32 %v971, 16
      %v1169 = vrot.slane %v1167, 1
      %v1170 = vsel %vm564, %v1165, %v1169
      %v1171 = vshrl.u32 %v971, 16
      %v1173 = vor.u32 %v1171, %v1169
      %v1175 = vshll.u32 %v972, 16
      %v1177 = vrot.slane %v1175, 1
      %v1178 = vsel %vm564, %v1173, %v1177
      %v1179 = vshrl.u32 %v972, 16
      %v1181 = vor.u32 %v1179, %v1177
      %v1183 = vshll.u32 %v973, 16
      %v1185 = vrot.slane %v1183, 1
      %v1186 = vsel %vm564, %v1181, %v1185
      %v1187 = vshrl.u32 %v973, 16
      %v1189 = vor.u32 %v1187, %v1185
      %v1191 = vshll.u32 %v974, 16
      %v1193 = vrot.slane %v1191, 1
      %v1194 = vsel %vm564, %v1189, %v1193
      %v1195 = vshrl.u32 %v974, 16
      %v1197 = vor.u32 %v1195, %v1193
      %v1199 = vshll.u32 %v975, 16
      %v1201 = vrot.slane %v1199, 1
      %v1202 = vsel %vm564, %v1197, %v1201
      %v1203 = vshrl.u32 %v975, 16
      %v1205 = vor.u32 %v1203, %v1201
      %v1207 = vshll.u32 %v976, 16
      %v1209 = vrot.slane %v1207, 1
      %v1210 = vsel %vm564, %v1205, %v1209
      %v1211 = vshrl.u32 %v976, 16
      %v1213 = vor.u32 %v1211, %v1209
      %v1215 = vshll.u32 %v977, 16
      %v1217 = vrot.slane %v1215, 1
      %v1218 = vsel %vm564, %v1213, %v1217
      %v1219 = vshrl.u32 %v977, 16
      %v1221 = vor.u32 %v1219, %v1217
      %v1223 = vshll.u32 %v978, 16
      %v1225 = vrot.slane %v1223, 1
      %v1226 = vsel %vm564, %v1221, %v1225
      %v1227 = vshrl.u32 %v978, 16
      %v1229 = vor.u32 %v1227, %v1225
      %v1231 = vshll.u32 %v979, 16
      %v1233 = vrot.slane %v1231, 1
      %v1234 = vsel %vm564, %v1229, %v1233
      %v1235 = vshrl.u32 %v979, 16
      %v1237 = vor.u32 %v1235, %v1233
      %v1239 = vshll.u32 %v980, 16
      %v1241 = vrot.slane %v1239, 1
      %v1242 = vsel %vm564, %v1237, %v1241
      %v1243 = vshrl.u32 %v980, 16
      %v1245 = vor.u32 %v1243, %v1241
      %v1247 = vshll.u32 %v981, 16
      %v1249 = vrot.slane %v1247, 1
      %v1250 = vsel %vm564, %v1245, %v1249
      %v1251 = vshrl.u32 %v981, 16
      %v1253 = vor.u32 %v1251, %v1249
      %v1255 = vshll.u32 %v1038, 16
      %v1257 = vrot.slane %v1255, 1
      %v1258 = vsel %vm564, %v1253, %v1257
      %1259 = vrot.lane.b32.xlu0 %v1050, 32
      %v1260 = vpop.permute.xlu0 %1259
      %1261 = vrot.lane.b32.xlu0 %v1058, 32
      %v1262 = vpop.permute.xlu0 %1261
      %1263 = vrot.lane.b32.xlu0 %v1066, 32
      %v1264 = vpop.permute.xlu0 %1263
      %1265 = vrot.lane.b32.xlu0 %v1074, 32
      %v1266 = vpop.permute.xlu0 %1265
      %1267 = vrot.lane.b32.xlu0 %v1082, 32
      %v1268 = vpop.permute.xlu0 %1267
      %1269 = vrot.lane.b32.xlu0 %v1090, 32
      %v1270 = vpop.permute.xlu0 %1269
      %1271 = vrot.lane.b32.xlu0 %v1098, 32
      %v1272 = vpop.permute.xlu0 %1271
      %1273 = vrot.lane.b32.xlu0 %v1106, 32
      %v1274 = vpop.permute.xlu0 %1273
      %1275 = vrot.lane.b32.xlu0 %v1114, 32
      %v1276 = vpop.permute.xlu0 %1275
      %1277 = vrot.lane.b32.xlu0 %v1122, 32
      %v1278 = vpop.permute.xlu0 %1277
      %1279 = vrot.lane.b32.xlu0 %v1130, 32
      %v1280 = vpop.permute.xlu0 %1279
      %1281 = vrot.lane.b32.xlu0 %v1138, 32
      %v1282 = vpop.permute.xlu0 %1281
      %1283 = vrot.lane.b32.xlu0 %v1146, 32
      %v1284 = vpop.permute.xlu0 %1283
      %1285 = vrot.lane.b32.xlu0 %v1154, 32
      %v1286 = vpop.permute.xlu0 %1285
      %1287 = vrot.lane.b32.xlu0 %v1162, 32
      %v1288 = vpop.permute.xlu0 %1287
      %1289 = vrot.lane.b32.xlu0 %v1170, 32
      %v1290 = vpop.permute.xlu0 %1289
      %1291 = vrot.lane.b32.xlu0 %v1178, 32
      %v1292 = vpop.permute.xlu0 %1291
      %1293 = vrot.lane.b32.xlu0 %v1186, 32
      %v1294 = vpop.permute.xlu0 %1293
      %1295 = vrot.lane.b32.xlu0 %v1194, 32
      %v1296 = vpop.permute.xlu0 %1295
      %1297 = vrot.lane.b32.xlu0 %v1202, 32
      %v1298 = vpop.permute.xlu0 %1297
      %1299 = vrot.lane.b32.xlu0 %v1210, 32
      %v1300 = vpop.permute.xlu0 %1299
      %1301 = vrot.lane.b32.xlu0 %v1218, 32
      %v1302 = vpop.permute.xlu0 %1301
      %1303 = vrot.lane.b32.xlu0 %v1226, 32
      %v1304 = vpop.permute.xlu0 %1303
      %1305 = vrot.lane.b32.xlu0 %v1234, 32
      %v1306 = vpop.permute.xlu0 %1305
      %1307 = vrot.lane.b32.xlu0 %v1242, 32
      %v1308 = vpop.permute.xlu0 %1307
      %1309 = vrot.lane.b32.xlu0 %v1250, 32
      %v1310 = vpop.permute.xlu0 %1309
      %1311 = vrot.lane.b32.xlu0 %v1258, 32
      %v1312 = vpop.permute.xlu0 %1311
      %v1313 = vrot.slane %v955, 1
      %v1314 = vrot.slane %v956, 1
      %v1315 = vsel %vm839, %v1313, %v1314
      %v1316 = vrot.slane %v957, 1
      %v1317 = vsel %vm839, %v1314, %v1316
      %v1318 = vrot.slane %v958, 1
      %v1319 = vsel %vm839, %v1316, %v1318
      %v1320 = vrot.slane %v959, 1
      %v1321 = vsel %vm839, %v1318, %v1320
      %v1322 = vrot.slane %v960, 1
      %v1323 = vsel %vm839, %v1320, %v1322
      %v1324 = vrot.slane %v961, 1
      %v1325 = vsel %vm839, %v1322, %v1324
      %v1326 = vrot.slane %v962, 1
      %v1327 = vsel %vm839, %v1324, %v1326
      %v1328 = vrot.slane %v963, 1
      %v1329 = vsel %vm839, %v1326, %v1328
      %v1330 = vrot.slane %v964, 1
      %v1331 = vsel %vm839, %v1328, %v1330
      %v1332 = vrot.slane %v965, 1
      %v1333 = vsel %vm839, %v1330, %v1332
      %v1334 = vrot.slane %v966, 1
      %v1335 = vsel %vm839, %v1332, %v1334
      %v1336 = vrot.slane %v967, 1
      %v1337 = vsel %vm839, %v1334, %v1336
      %v1338 = vrot.slane %v968, 1
      %v1339 = vsel %vm839, %v1336, %v1338
      %v1340 = vrot.slane %v969, 1
      %v1341 = vsel %vm839, %v1338, %v1340
      %v1342 = vrot.slane %v970, 1
      %v1343 = vsel %vm839, %v1340, %v1342
      %v1344 = vrot.slane %v971, 1
      %v1345 = vsel %vm839, %v1342, %v1344
      %v1346 = vrot.slane %v972, 1
      %v1347 = vsel %vm839, %v1344, %v1346
      %v1348 = vrot.slane %v973, 1
      %v1349 = vsel %vm839, %v1346, %v1348
      %v1350 = vrot.slane %v974, 1
      %v1351 = vsel %vm839, %v1348, %v1350
      %v1352 = vrot.slane %v975, 1
      %v1353 = vsel %vm839, %v1350, %v1352
      %v1354 = vrot.slane %v976, 1
      %v1355 = vsel %vm839, %v1352, %v1354
      %v1356 = vrot.slane %v977, 1
      %v1357 = vsel %vm839, %v1354, %v1356
      %v1358 = vrot.slane %v978, 1
      %v1359 = vsel %vm839, %v1356, %v1358
      %v1360 = vrot.slane %v979, 1
      %v1361 = vsel %vm839, %v1358, %v1360
      %v1362 = vrot.slane %v980, 1
      %v1363 = vsel %vm839, %v1360, %v1362
      %v1364 = vrot.slane %v981, 1
      %v1365 = vsel %vm839, %v1362, %v1364
      %v1366 = vrot.slane %v1038, 1
      %v1367 = vsel %vm839, %v1364, %v1366
      %1368 = vrot.lane.b32.xlu0 %v1315, 40
      %v1369 = vpop.permute.xlu0 %1368
      %1370 = vrot.lane.b32.xlu0 %v1317, 40
      %v1371 = vpop.permute.xlu0 %1370
      %1372 = vrot.lane.b32.xlu0 %v1319, 40
      %v1373 = vpop.permute.xlu0 %1372
      %1374 = vrot.lane.b32.xlu0 %v1321, 40
      %v1375 = vpop.permute.xlu0 %1374
      %1376 = vrot.lane.b32.xlu0 %v1323, 40
      %v1377 = vpop.permute.xlu0 %1376
      %1378 = vrot.lane.b32.xlu0 %v1325, 40
      %v1379 = vpop.permute.xlu0 %1378
      %1380 = vrot.lane.b32.xlu0 %v1327, 40
      %v1381 = vpop.permute.xlu0 %1380
      %1382 = vrot.lane.b32.xlu0 %v1329, 40
      %v1383 = vpop.permute.xlu0 %1382
      %1384 = vrot.lane.b32.xlu0 %v1331, 40
      %v1385 = vpop.permute.xlu0 %1384
      %1386 = vrot.lane.b32.xlu0 %v1333, 40
      %v1387 = vpop.permute.xlu0 %1386
      %1388 = vrot.lane.b32.xlu0 %v1335, 40
      %v1389 = vpop.permute.xlu0 %1388
      %1390 = vrot.lane.b32.xlu0 %v1337, 40
      %v1391 = vpop.permute.xlu0 %1390
      %1392 = vrot.lane.b32.xlu0 %v1339, 40
      %v1393 = vpop.permute.xlu0 %1392
      %1394 = vrot.lane.b32.xlu0 %v1341, 40
      %v1395 = vpop.permute.xlu0 %1394
      %1396 = vrot.lane.b32.xlu0 %v1343, 40
      %v1397 = vpop.permute.xlu0 %1396
      %1398 = vrot.lane.b32.xlu0 %v1345, 40
      %v1399 = vpop.permute.xlu0 %1398
      %1400 = vrot.lane.b32.xlu0 %v1347, 40
      %v1401 = vpop.permute.xlu0 %1400
      %1402 = vrot.lane.b32.xlu0 %v1349, 40
      %v1403 = vpop.permute.xlu0 %1402
      %1404 = vrot.lane.b32.xlu0 %v1351, 40
      %v1405 = vpop.permute.xlu0 %1404
      %1406 = vrot.lane.b32.xlu0 %v1353, 40
      %v1407 = vpop.permute.xlu0 %1406
      %1408 = vrot.lane.b32.xlu0 %v1355, 40
      %v1409 = vpop.permute.xlu0 %1408
      %1410 = vrot.lane.b32.xlu0 %v1357, 40
      %v1411 = vpop.permute.xlu0 %1410
      %1412 = vrot.lane.b32.xlu0 %v1359, 40
      %v1413 = vpop.permute.xlu0 %1412
      %1414 = vrot.lane.b32.xlu0 %v1361, 40
      %v1415 = vpop.permute.xlu0 %1414
      %1416 = vrot.lane.b32.xlu0 %v1363, 40
      %v1417 = vpop.permute.xlu0 %1416
      %1418 = vrot.lane.b32.xlu0 %v1365, 40
      %v1419 = vpop.permute.xlu0 %1418
      %1420 = vrot.lane.b32.xlu0 %v1367, 40
      %v1421 = vpop.permute.xlu0 %1420
      %v1425 = vunpack.c.l.b16 %v359
      %v1426 = vunpack.c.l.b16 %v360
      %v1427 = vunpack.c.l.b16 %v361
      %v1428 = vpack.c.b16 %v953, %v952
      %v1429 = vpack.c.b16 %v1425, %v954
      %v1430 = vpack.c.b16 %v1427, %v1426
      %1431 = vrot.lane.b32.xlu0 %v537, 48
      %v1432 = vpop.permute.xlu0 %1431
      %1433 = vrot.lane.b32.xlu0 %v538, 48
      %v1434 = vpop.permute.xlu0 %1433
      %1435 = vrot.lane.b32.xlu0 %v539, 48
      %v1436 = vpop.permute.xlu0 %1435
      %1437 = vrot.lane.b32.xlu0 %v540, 48
      %v1438 = vpop.permute.xlu0 %1437
      %1439 = vrot.lane.b32.xlu0 %v541, 48
      %v1440 = vpop.permute.xlu0 %1439
      %1441 = vrot.lane.b32.xlu0 %v542, 48
      %v1442 = vpop.permute.xlu0 %1441
      %1443 = vrot.lane.b32.xlu0 %v543, 48
      %v1444 = vpop.permute.xlu0 %1443
      %1445 = vrot.lane.b32.xlu0 %v544, 48
      %v1446 = vpop.permute.xlu0 %1445
      %1447 = vrot.lane.b32.xlu0 %v545, 48
      %v1448 = vpop.permute.xlu0 %1447
      %1449 = vrot.lane.b32.xlu0 %v546, 48
      %v1450 = vpop.permute.xlu0 %1449
      %1451 = vrot.lane.b32.xlu0 %v547, 48
      %v1452 = vpop.permute.xlu0 %1451
      %1453 = vrot.lane.b32.xlu0 %v548, 48
      %v1454 = vpop.permute.xlu0 %1453
      %1455 = vrot.lane.b32.xlu0 %v549, 48
      %v1456 = vpop.permute.xlu0 %1455
      %1457 = vrot.lane.b32.xlu0 %v550, 48
      %v1458 = vpop.permute.xlu0 %1457
      %1459 = vrot.lane.b32.xlu0 %v551, 48
      %v1460 = vpop.permute.xlu0 %1459
      %1461 = vrot.lane.b32.xlu0 %v552, 48
      %v1462 = vpop.permute.xlu0 %1461
      %1463 = vrot.lane.b32.xlu0 %v553, 48
      %v1464 = vpop.permute.xlu0 %1463
      %1465 = vrot.lane.b32.xlu0 %v554, 48
      %v1466 = vpop.permute.xlu0 %1465
      %1467 = vrot.lane.b32.xlu0 %v555, 48
      %v1468 = vpop.permute.xlu0 %1467
      %1469 = vrot.lane.b32.xlu0 %v556, 48
      %v1470 = vpop.permute.xlu0 %1469
      %1471 = vrot.lane.b32.xlu0 %v557, 48
      %v1472 = vpop.permute.xlu0 %1471
      %1473 = vrot.lane.b32.xlu0 %v558, 48
      %v1474 = vpop.permute.xlu0 %1473
      %1475 = vrot.lane.b32.xlu0 %v559, 48
      %v1476 = vpop.permute.xlu0 %1475
      %1477 = vrot.lane.b32.xlu0 %v560, 48
      %v1478 = vpop.permute.xlu0 %1477
      %1479 = vrot.lane.b32.xlu0 %v1428, 48
      %v1480 = vpop.permute.xlu0 %1479
      %1481 = vrot.lane.b32.xlu0 %v1429, 48
      %v1482 = vpop.permute.xlu0 %1481
      %1483 = vrot.lane.b32.xlu0 %v1430, 48
      %v1484 = vpop.permute.xlu0 %1483
      %v1486 = vunpack.c.l.b16 %v362
      %v1487 = vpack.c.b16 %v1486, %v1486
      %v1489 = vshll.u32 %v1428, 16
      %v1491 = vrot.slane %v1489, 1
      %v1492 = vsel %vm564, %v779, %v1491
      %v1493 = vshrl.u32 %v1428, 16
      %v1495 = vor.u32 %v1493, %v1491
      %v1497 = vshll.u32 %v1429, 16
      %v1499 = vrot.slane %v1497, 1
      %v1500 = vsel %vm564, %v1495, %v1499
      %v1501 = vshrl.u32 %v1429, 16
      %v1503 = vor.u32 %v1501, %v1499
      %v1505 = vshll.u32 %v1430, 16
      %v1507 = vrot.slane %v1505, 1
      %v1508 = vsel %vm564, %v1503, %v1507
      %v1509 = vshrl.u32 %v1430, 16
      %v1511 = vor.u32 %v1509, %v1507
      %v1513 = vshll.u32 %v1487, 16
      %v1515 = vrot.slane %v1513, 1
      %v1516 = vsel %vm564, %v1511, %v1515
      %1517 = vrot.lane.b32.xlu0 %v600, 56
      %v1518 = vpop.permute.xlu0 %1517
      %1519 = vrot.lane.b32.xlu0 %v608, 56
      %v1520 = vpop.permute.xlu0 %1519
      %1521 = vrot.lane.b32.xlu0 %v616, 56
      %v1522 = vpop.permute.xlu0 %1521
      %1523 = vrot.lane.b32.xlu0 %v624, 56
      %v1524 = vpop.permute.xlu0 %1523
      %1525 = vrot.lane.b32.xlu0 %v632, 56
      %v1526 = vpop.permute.xlu0 %1525
      %1527 = vrot.lane.b32.xlu0 %v640, 56
      %v1528 = vpop.permute.xlu0 %1527
      %1529 = vrot.lane.b32.xlu0 %v648, 56
      %v1530 = vpop.permute.xlu0 %1529
      %1531 = vrot.lane.b32.xlu0 %v656, 56
      %v1532 = vpop.permute.xlu0 %1531
      %1533 = vrot.lane.b32.xlu0 %v664, 56
      %v1534 = vpop.permute.xlu0 %1533
      %1535 = vrot.lane.b32.xlu0 %v672, 56
      %v1536 = vpop.permute.xlu0 %1535
      %1537 = vrot.lane.b32.xlu0 %v680, 56
      %v1538 = vpop.permute.xlu0 %1537
      %1539 = vrot.lane.b32.xlu0 %v688, 56
      %v1540 = vpop.permute.xlu0 %1539
      %1541 = vrot.lane.b32.xlu0 %v696, 56
      %v1542 = vpop.permute.xlu0 %1541
      %1543 = vrot.lane.b32.xlu0 %v704, 56
      %v1544 = vpop.permute.xlu0 %1543
      %1545 = vrot.lane.b32.xlu0 %v712, 56
      %v1546 = vpop.permute.xlu0 %1545
      %1547 = vrot.lane.b32.xlu0 %v720, 56
      %v1548 = vpop.permute.xlu0 %1547
      %1549 = vrot.lane.b32.xlu0 %v728, 56
      %v1550 = vpop.permute.xlu0 %1549
      %1551 = vrot.lane.b32.xlu0 %v736, 56
      %v1552 = vpop.permute.xlu0 %1551
      %1553 = vrot.lane.b32.xlu0 %v744, 56
      %v1554 = vpop.permute.xlu0 %1553
      %1555 = vrot.lane.b32.xlu0 %v752, 56
      %v1556 = vpop.permute.xlu0 %1555
      %1557 = vrot.lane.b32.xlu0 %v760, 56
      %v1558 = vpop.permute.xlu0 %1557
      %1559 = vrot.lane.b32.xlu0 %v768, 56
      %v1560 = vpop.permute.xlu0 %1559
      %1561 = vrot.lane.b32.xlu0 %v776, 56
      %v1562 = vpop.permute.xlu0 %1561
      %1563 = vrot.lane.b32.xlu0 %v1492, 56
      %v1564 = vpop.permute.xlu0 %1563
      %1565 = vrot.lane.b32.xlu0 %v1500, 56
      %v1566 = vpop.permute.xlu0 %1565
      %1567 = vrot.lane.b32.xlu0 %v1508, 56
      %v1568 = vpop.permute.xlu0 %1567
      %1569 = vrot.lane.b32.xlu0 %v1516, 56
      %v1570 = vpop.permute.xlu0 %1569
      %v1571 = vrot.slane %v1428, 1
      %v1572 = vsel %vm839, %v891, %v1571
      %v1573 = vrot.slane %v1429, 1
      %v1574 = vsel %vm839, %v1571, %v1573
      %v1575 = vrot.slane %v1430, 1
      %v1576 = vsel %vm839, %v1573, %v1575
      %v1577 = vrot.slane %v1487, 1
      %v1578 = vsel %vm839, %v1575, %v1577
      %1579 = vrot.lane.b32.xlu0 %v848, 64
      %v1580 = vpop.permute.xlu0 %1579
      %1581 = vrot.lane.b32.xlu0 %v850, 64
      %v1582 = vpop.permute.xlu0 %1581
      %1583 = vrot.lane.b32.xlu0 %v852, 64
      %v1584 = vpop.permute.xlu0 %1583
      %1585 = vrot.lane.b32.xlu0 %v854, 64
      %v1586 = vpop.permute.xlu0 %1585
      %1587 = vrot.lane.b32.xlu0 %v856, 64
      %v1588 = vpop.permute.xlu0 %1587
      %1589 = vrot.lane.b32.xlu0 %v858, 64
      %v1590 = vpop.permute.xlu0 %1589
      %1591 = vrot.lane.b32.xlu0 %v860, 64
      %v1592 = vpop.permute.xlu0 %1591
      %1593 = vrot.lane.b32.xlu0 %v862, 64
      %v1594 = vpop.permute.xlu0 %1593
      %1595 = vrot.lane.b32.xlu0 %v864, 64
      %v1596 = vpop.permute.xlu0 %1595
      %1597 = vrot.lane.b32.xlu0 %v866, 64
      %v1598 = vpop.permute.xlu0 %1597
      %1599 = vrot.lane.b32.xlu0 %v868, 64
      %v1600 = vpop.permute.xlu0 %1599
      %1601 = vrot.lane.b32.xlu0 %v870, 64
      %v1602 = vpop.permute.xlu0 %1601
      %1603 = vrot.lane.b32.xlu0 %v872, 64
      %v1604 = vpop.permute.xlu0 %1603
      %1605 = vrot.lane.b32.xlu0 %v874, 64
      %v1606 = vpop.permute.xlu0 %1605
      %1607 = vrot.lane.b32.xlu0 %v876, 64
      %v1608 = vpop.permute.xlu0 %1607
      %1609 = vrot.lane.b32.xlu0 %v878, 64
      %v1610 = vpop.permute.xlu0 %1609
      %1611 = vrot.lane.b32.xlu0 %v880, 64
      %v1612 = vpop.permute.xlu0 %1611
      %1613 = vrot.lane.b32.xlu0 %v882, 64
      %v1614 = vpop.permute.xlu0 %1613
      %1615 = vrot.lane.b32.xlu0 %v884, 64
      %v1616 = vpop.permute.xlu0 %1615
      %1617 = vrot.lane.b32.xlu0 %v886, 64
      %v1618 = vpop.permute.xlu0 %1617
      %1619 = vrot.lane.b32.xlu0 %v888, 64
      %v1620 = vpop.permute.xlu0 %1619
      %1621 = vrot.lane.b32.xlu0 %v890, 64
      %v1622 = vpop.permute.xlu0 %1621
      %1623 = vrot.lane.b32.xlu0 %v892, 64
      %v1624 = vpop.permute.xlu0 %1623
      %1625 = vrot.lane.b32.xlu0 %v1572, 64
      %v1626 = vpop.permute.xlu0 %1625
      %1627 = vrot.lane.b32.xlu0 %v1574, 64
      %v1628 = vpop.permute.xlu0 %1627
      %1629 = vrot.lane.b32.xlu0 %v1576, 64
      %v1630 = vpop.permute.xlu0 %1629
      %1631 = vrot.lane.b32.xlu0 %v1578, 64
      %v1632 = vpop.permute.xlu0 %1631
      %v1687 = vunpack.c.l.b16 %v363
      %v1688 = vunpack.c.l.b16 %v364
      %v1689 = vunpack.c.l.b16 %v365
      %v1690 = vunpack.c.l.b16 %v366
      %v1691 = vunpack.c.l.b16 %v367
      %v1692 = vunpack.c.l.b16 %v368
      %v1693 = vunpack.c.l.b16 %v369
      %v1694 = vunpack.c.l.b16 %v370
      %v1695 = vunpack.c.l.b16 %v371
      %v1696 = vunpack.c.l.b16 %v372
      %v1697 = vunpack.c.l.b16 %v373
      %v1698 = vunpack.c.l.b16 %v374
      %v1699 = vunpack.c.l.b16 %v375
      %v1700 = vunpack.c.l.b16 %v376
      %v1701 = vunpack.c.l.b16 %v377
      %v1702 = vunpack.c.l.b16 %v378
      %v1703 = vunpack.c.l.b16 %v379
      %v1704 = vunpack.c.l.b16 %v380
      %v1705 = vunpack.c.l.b16 %v381
      %v1706 = vunpack.c.l.b16 %v382
      %v1707 = vunpack.c.l.b16 %v383
      %v1708 = vunpack.c.l.b16 %v384
      %v1709 = vunpack.c.l.b16 %v385
      %v1710 = vunpack.c.l.b16 %v386
      %v1711 = vunpack.c.l.b16 %v387
      %v1712 = vunpack.c.l.b16 %v388
      %v1713 = vunpack.c.l.b16 %v389
      %v1714 = vunpack.c.l.b16 %v390
      %v1715 = vunpack.c.l.b16 %v391
      %v1716 = vunpack.c.l.b16 %v392
      %v1717 = vunpack.c.l.b16 %v393
      %v1718 = vunpack.c.l.b16 %v394
      %v1719 = vunpack.c.l.b16 %v395
      %v1720 = vunpack.c.l.b16 %v396
      %v1721 = vunpack.c.l.b16 %v397
      %v1722 = vunpack.c.l.b16 %v398
      %v1723 = vunpack.c.l.b16 %v399
      %v1724 = vunpack.c.l.b16 %v400
      %v1725 = vunpack.c.l.b16 %v401
      %v1726 = vunpack.c.l.b16 %v402
      %v1727 = vunpack.c.l.b16 %v403
      %v1728 = vunpack.c.l.b16 %v404
      %v1729 = vunpack.c.l.b16 %v405
      %v1730 = vunpack.c.l.b16 %v406
      %v1731 = vunpack.c.l.b16 %v407
      %v1732 = vunpack.c.l.b16 %v408
      %v1733 = vunpack.c.l.b16 %v409
      %v1734 = vunpack.c.l.b16 %v410
      %v1735 = vunpack.c.l.b16 %v411
      %v1736 = vunpack.c.l.b16 %v412
      %v1737 = vunpack.c.l.b16 %v413
      %v1738 = vunpack.c.l.b16 %v414
      %v1739 = vunpack.c.l.b16 %v415
      %v1740 = vunpack.c.l.b16 %v416
      %v1741 = vpack.c.b16 %v1688, %v1687
      %v1742 = vpack.c.b16 %v1690, %v1689
      %v1743 = vpack.c.b16 %v1692, %v1691
      %v1744 = vpack.c.b16 %v1694, %v1693
      %v1745 = vpack.c.b16 %v1696, %v1695
      %v1746 = vpack.c.b16 %v1698, %v1697
      %v1747 = vpack.c.b16 %v1700, %v1699
      %v1748 = vpack.c.b16 %v1702, %v1701
      %v1749 = vpack.c.b16 %v1704, %v1703
      %v1750 = vpack.c.b16 %v1706, %v1705
      %v1751 = vpack.c.b16 %v1708, %v1707
      %v1752 = vpack.c.b16 %v1710, %v1709
      %v1753 = vpack.c.b16 %v1712, %v1711
      %v1754 = vpack.c.b16 %v1714, %v1713
      %v1755 = vpack.c.b16 %v1716, %v1715
      %v1756 = vpack.c.b16 %v1718, %v1717
      %v1757 = vpack.c.b16 %v1720, %v1719
      %v1758 = vpack.c.b16 %v1722, %v1721
      %v1759 = vpack.c.b16 %v1724, %v1723
      %v1760 = vpack.c.b16 %v1726, %v1725
      %v1761 = vpack.c.b16 %v1728, %v1727
      %v1762 = vpack.c.b16 %v1730, %v1729
      %v1763 = vpack.c.b16 %v1732, %v1731
      %v1764 = vpack.c.b16 %v1734, %v1733
      %v1765 = vpack.c.b16 %v1736, %v1735
      %v1766 = vpack.c.b16 %v1738, %v1737
      %v1767 = vpack.c.b16 %v1740, %v1739
      %1768 = vrot.lane.b32.xlu0 %v1741, 72
      %v1769 = vpop.permute.xlu0 %1768
      %1770 = vrot.lane.b32.xlu0 %v1742, 72
      %v1771 = vpop.permute.xlu0 %1770
      %1772 = vrot.lane.b32.xlu0 %v1743, 72
      %v1773 = vpop.permute.xlu0 %1772
      %1774 = vrot.lane.b32.xlu0 %v1744, 72
      %v1775 = vpop.permute.xlu0 %1774
      %1776 = vrot.lane.b32.xlu0 %v1745, 72
      %v1777 = vpop.permute.xlu0 %1776
      %1778 = vrot.lane.b32.xlu0 %v1746, 72
      %v1779 = vpop.permute.xlu0 %1778
      %1780 = vrot.lane.b32.xlu0 %v1747, 72
      %v1781 = vpop.permute.xlu0 %1780
      %1782 = vrot.lane.b32.xlu0 %v1748, 72
      %v1783 = vpop.permute.xlu0 %1782
      %1784 = vrot.lane.b32.xlu0 %v1749, 72
      %v1785 = vpop.permute.xlu0 %1784
      %1786 = vrot.lane.b32.xlu0 %v1750, 72
      %v1787 = vpop.permute.xlu0 %1786
      %1788 = vrot.lane.b32.xlu0 %v1751, 72
      %v1789 = vpop.permute.xlu0 %1788
      %1790 = vrot.lane.b32.xlu0 %v1752, 72
      %v1791 = vpop.permute.xlu0 %1790
      %1792 = vrot.lane.b32.xlu0 %v1753, 72
      %v1793 = vpop.permute.xlu0 %1792
      %1794 = vrot.lane.b32.xlu0 %v1754, 72
      %v1795 = vpop.permute.xlu0 %1794
      %1796 = vrot.lane.b32.xlu0 %v1755, 72
      %v1797 = vpop.permute.xlu0 %1796
      %1798 = vrot.lane.b32.xlu0 %v1756, 72
      %v1799 = vpop.permute.xlu0 %1798
      %1800 = vrot.lane.b32.xlu0 %v1757, 72
      %v1801 = vpop.permute.xlu0 %1800
      %1802 = vrot.lane.b32.xlu0 %v1758, 72
      %v1803 = vpop.permute.xlu0 %1802
      %1804 = vrot.lane.b32.xlu0 %v1759, 72
      %v1805 = vpop.permute.xlu0 %1804
      %1806 = vrot.lane.b32.xlu0 %v1760, 72
      %v1807 = vpop.permute.xlu0 %1806
      %1808 = vrot.lane.b32.xlu0 %v1761, 72
      %v1809 = vpop.permute.xlu0 %1808
      %1810 = vrot.lane.b32.xlu0 %v1762, 72
      %v1811 = vpop.permute.xlu0 %1810
      %1812 = vrot.lane.b32.xlu0 %v1763, 72
      %v1813 = vpop.permute.xlu0 %1812
      %1814 = vrot.lane.b32.xlu0 %v1764, 72
      %v1815 = vpop.permute.xlu0 %1814
      %1816 = vrot.lane.b32.xlu0 %v1765, 72
      %v1817 = vpop.permute.xlu0 %1816
      %1818 = vrot.lane.b32.xlu0 %v1766, 72
      %v1819 = vpop.permute.xlu0 %1818
      %1820 = vrot.lane.b32.xlu0 %v1767, 72
      %v1821 = vpop.permute.xlu0 %1820
      %v1823 = vunpack.c.l.b16 %v417
      %v1824 = vpack.c.b16 %v1823, %v1823
      %v1826 = vshrl.u32 %v1741, 16
      %v1828 = vshll.u32 %v1741, 16
      %v1830 = vrot.slane %v1828, 1
      %v1831 = vor.u32 %v1826, %v1830
      %v1833 = vshll.u32 %v1742, 16
      %v1835 = vrot.slane %v1833, 1
      %v1836 = vsel %vm564, %v1831, %v1835
      %v1837 = vshrl.u32 %v1742, 16
      %v1839 = vor.u32 %v1837, %v1835
      %v1841 = vshll.u32 %v1743, 16
      %v1843 = vrot.slane %v1841, 1
      %v1844 = vsel %vm564, %v1839, %v1843
      %v1845 = vshrl.u32 %v1743, 16
      %v1847 = vor.u32 %v1845, %v1843
      %v1849 = vshll.u32 %v1744, 16
      %v1851 = vrot.slane %v1849, 1
      %v1852 = vsel %vm564, %v1847, %v1851
      %v1853 = vshrl.u32 %v1744, 16
      %v1855 = vor.u32 %v1853, %v1851
      %v1857 = vshll.u32 %v1745, 16
      %v1859 = vrot.slane %v1857, 1
      %v1860 = vsel %vm564, %v1855, %v1859
      %v1861 = vshrl.u32 %v1745, 16
      %v1863 = vor.u32 %v1861, %v1859
      %v1865 = vshll.u32 %v1746, 16
      %v1867 = vrot.slane %v1865, 1
      %v1868 = vsel %vm564, %v1863, %v1867
      %v1869 = vshrl.u32 %v1746, 16
      %v1871 = vor.u32 %v1869, %v1867
      %v1873 = vshll.u32 %v1747, 16
      %v1875 = vrot.slane %v1873, 1
      %v1876 = vsel %vm564, %v1871, %v1875
      %v1877 = vshrl.u32 %v1747, 16
      %v1879 = vor.u32 %v1877, %v1875
      %v1881 = vshll.u32 %v1748, 16
      %v1883 = vrot.slane %v1881, 1
      %v1884 = vsel %vm564, %v1879, %v1883
      %v1885 = vshrl.u32 %v1748, 16
      %v1887 = vor.u32 %v1885, %v1883
      %v1889 = vshll.u32 %v1749, 16
      %v1891 = vrot.slane %v1889, 1
      %v1892 = vsel %vm564, %v1887, %v1891
      %v1893 = vshrl.u32 %v1749, 16
      %v1895 = vor.u32 %v1893, %v1891
      %v1897 = vshll.u32 %v1750, 16
      %v1899 = vrot.slane %v1897, 1
      %v1900 = vsel %vm564, %v1895, %v1899
      %v1901 = vshrl.u32 %v1750, 16
      %v1903 = vor.u32 %v1901, %v1899
      %v1905 = vshll.u32 %v1751, 16
      %v1907 = vrot.slane %v1905, 1
      %v1908 = vsel %vm564, %v1903, %v1907
      %v1909 = vshrl.u32 %v1751, 16
      %v1911 = vor.u32 %v1909, %v1907
      %v1913 = vshll.u32 %v1752, 16
      %v1915 = vrot.slane %v1913, 1
      %v1916 = vsel %vm564, %v1911, %v1915
      %v1917 = vshrl.u32 %v1752, 16
      %v1919 = vor.u32 %v1917, %v1915
      %v1921 = vshll.u32 %v1753, 16
      %v1923 = vrot.slane %v1921, 1
      %v1924 = vsel %vm564, %v1919, %v1923
      %v1925 = vshrl.u32 %v1753, 16
      %v1927 = vor.u32 %v1925, %v1923
      %v1929 = vshll.u32 %v1754, 16
      %v1931 = vrot.slane %v1929, 1
      %v1932 = vsel %vm564, %v1927, %v1931
      %v1933 = vshrl.u32 %v1754, 16
      %v1935 = vor.u32 %v1933, %v1931
      %v1937 = vshll.u32 %v1755, 16
      %v1939 = vrot.slane %v1937, 1
      %v1940 = vsel %vm564, %v1935, %v1939
      %v1941 = vshrl.u32 %v1755, 16
      %v1943 = vor.u32 %v1941, %v1939
      %v1945 = vshll.u32 %v1756, 16
      %v1947 = vrot.slane %v1945, 1
      %v1948 = vsel %vm564, %v1943, %v1947
      %v1949 = vshrl.u32 %v1756, 16
      %v1951 = vor.u32 %v1949, %v1947
      %v1953 = vshll.u32 %v1757, 16
      %v1955 = vrot.slane %v1953, 1
      %v1956 = vsel %vm564, %v1951, %v1955
      %v1957 = vshrl.u32 %v1757, 16
      %v1959 = vor.u32 %v1957, %v1955
      %v1961 = vshll.u32 %v1758, 16
      %v1963 = vrot.slane %v1961, 1
      %v1964 = vsel %vm564, %v1959, %v1963
      %v1965 = vshrl.u32 %v1758, 16
      %v1967 = vor.u32 %v1965, %v1963
      %v1969 = vshll.u32 %v1759, 16
      %v1971 = vrot.slane %v1969, 1
      %v1972 = vsel %vm564, %v1967, %v1971
      %v1973 = vshrl.u32 %v1759, 16
      %v1975 = vor.u32 %v1973, %v1971
      %v1977 = vshll.u32 %v1760, 16
      %v1979 = vrot.slane %v1977, 1
      %v1980 = vsel %vm564, %v1975, %v1979
      %v1981 = vshrl.u32 %v1760, 16
      %v1983 = vor.u32 %v1981, %v1979
      %v1985 = vshll.u32 %v1761, 16
      %v1987 = vrot.slane %v1985, 1
      %v1988 = vsel %vm564, %v1983, %v1987
      %v1989 = vshrl.u32 %v1761, 16
      %v1991 = vor.u32 %v1989, %v1987
      %v1993 = vshll.u32 %v1762, 16
      %v1995 = vrot.slane %v1993, 1
      %v1996 = vsel %vm564, %v1991, %v1995
      %v1997 = vshrl.u32 %v1762, 16
      %v1999 = vor.u32 %v1997, %v1995
      %v2001 = vshll.u32 %v1763, 16
      %v2003 = vrot.slane %v2001, 1
      %v2004 = vsel %vm564, %v1999, %v2003
      %v2005 = vshrl.u32 %v1763, 16
      %v2007 = vor.u32 %v2005, %v2003
      %v2009 = vshll.u32 %v1764, 16
      %v2011 = vrot.slane %v2009, 1
      %v2012 = vsel %vm564, %v2007, %v2011
      %v2013 = vshrl.u32 %v1764, 16
      %v2015 = vor.u32 %v2013, %v2011
      %v2017 = vshll.u32 %v1765, 16
      %v2019 = vrot.slane %v2017, 1
      %v2020 = vsel %vm564, %v2015, %v2019
      %v2021 = vshrl.u32 %v1765, 16
      %v2023 = vor.u32 %v2021, %v2019
      %v2025 = vshll.u32 %v1766, 16
      %v2027 = vrot.slane %v2025, 1
      %v2028 = vsel %vm564, %v2023, %v2027
      %v2029 = vshrl.u32 %v1766, 16
      %v2031 = vor.u32 %v2029, %v2027
      %v2033 = vshll.u32 %v1767, 16
      %v2035 = vrot.slane %v2033, 1
      %v2036 = vsel %vm564, %v2031, %v2035
      %v2037 = vshrl.u32 %v1767, 16
      %v2039 = vor.u32 %v2037, %v2035
      %v2041 = vshll.u32 %v1824, 16
      %v2043 = vrot.slane %v2041, 1
      %v2044 = vsel %vm564, %v2039, %v2043
      %2045 = vrot.lane.b32.xlu0 %v1836, 80
      %v2046 = vpop.permute.xlu0 %2045
      %2047 = vrot.lane.b32.xlu0 %v1844, 80
      %v2048 = vpop.permute.xlu0 %2047
      %2049 = vrot.lane.b32.xlu0 %v1852, 80
      %v2050 = vpop.permute.xlu0 %2049
      %2051 = vrot.lane.b32.xlu0 %v1860, 80
      %v2052 = vpop.permute.xlu0 %2051
      %2053 = vrot.lane.b32.xlu0 %v1868, 80
      %v2054 = vpop.permute.xlu0 %2053
      %2055 = vrot.lane.b32.xlu0 %v1876, 80
      %v2056 = vpop.permute.xlu0 %2055
      %2057 = vrot.lane.b32.xlu0 %v1884, 80
      %v2058 = vpop.permute.xlu0 %2057
      %2059 = vrot.lane.b32.xlu0 %v1892, 80
      %v2060 = vpop.permute.xlu0 %2059
      %2061 = vrot.lane.b32.xlu0 %v1900, 80
      %v2062 = vpop.permute.xlu0 %2061
      %2063 = vrot.lane.b32.xlu0 %v1908, 80
      %v2064 = vpop.permute.xlu0 %2063
      %2065 = vrot.lane.b32.xlu0 %v1916, 80
      %v2066 = vpop.permute.xlu0 %2065
      %2067 = vrot.lane.b32.xlu0 %v1924, 80
      %v2068 = vpop.permute.xlu0 %2067
      %2069 = vrot.lane.b32.xlu0 %v1932, 80
      %v2070 = vpop.permute.xlu0 %2069
      %2071 = vrot.lane.b32.xlu0 %v1940, 80
      %v2072 = vpop.permute.xlu0 %2071
      %2073 = vrot.lane.b32.xlu0 %v1948, 80
      %v2074 = vpop.permute.xlu0 %2073
      %2075 = vrot.lane.b32.xlu0 %v1956, 80
      %v2076 = vpop.permute.xlu0 %2075
      %2077 = vrot.lane.b32.xlu0 %v1964, 80
      %v2078 = vpop.permute.xlu0 %2077
      %2079 = vrot.lane.b32.xlu0 %v1972, 80
      %v2080 = vpop.permute.xlu0 %2079
      %2081 = vrot.lane.b32.xlu0 %v1980, 80
      %v2082 = vpop.permute.xlu0 %2081
      %2083 = vrot.lane.b32.xlu0 %v1988, 80
      %v2084 = vpop.permute.xlu0 %2083
      %2085 = vrot.lane.b32.xlu0 %v1996, 80
      %v2086 = vpop.permute.xlu0 %2085
      %2087 = vrot.lane.b32.xlu0 %v2004, 80
      %v2088 = vpop.permute.xlu0 %2087
      %2089 = vrot.lane.b32.xlu0 %v2012, 80
      %v2090 = vpop.permute.xlu0 %2089
      %2091 = vrot.lane.b32.xlu0 %v2020, 80
      %v2092 = vpop.permute.xlu0 %2091
      %2093 = vrot.lane.b32.xlu0 %v2028, 80
      %v2094 = vpop.permute.xlu0 %2093
      %2095 = vrot.lane.b32.xlu0 %v2036, 80
      %v2096 = vpop.permute.xlu0 %2095
      %2097 = vrot.lane.b32.xlu0 %v2044, 80
      %v2098 = vpop.permute.xlu0 %2097
      %v2099 = vrot.slane %v1741, 1
      %v2100 = vrot.slane %v1742, 1
      %v2101 = vsel %vm839, %v2099, %v2100
      %v2102 = vrot.slane %v1743, 1
      %v2103 = vsel %vm839, %v2100, %v2102
      %v2104 = vrot.slane %v1744, 1
      %v2105 = vsel %vm839, %v2102, %v2104
      %v2106 = vrot.slane %v1745, 1
      %v2107 = vsel %vm839, %v2104, %v2106
      %v2108 = vrot.slane %v1746, 1
      %v2109 = vsel %vm839, %v2106, %v2108
      %v2110 = vrot.slane %v1747, 1
      %v2111 = vsel %vm839, %v2108, %v2110
      %v2112 = vrot.slane %v1748, 1
      %v2113 = vsel %vm839, %v2110, %v2112
      %v2114 = vrot.slane %v1749, 1
      %v2115 = vsel %vm839, %v2112, %v2114
      %v2116 = vrot.slane %v1750, 1
      %v2117 = vsel %vm839, %v2114, %v2116
      %v2118 = vrot.slane %v1751, 1
      %v2119 = vsel %vm839, %v2116, %v2118
      %v2120 = vrot.slane %v1752, 1
      %v2121 = vsel %vm839, %v2118, %v2120
      %v2122 = vrot.slane %v1753, 1
      %v2123 = vsel %vm839, %v2120, %v2122
      %v2124 = vrot.slane %v1754, 1
      %v2125 = vsel %vm839, %v2122, %v2124
      %v2126 = vrot.slane %v1755, 1
      %v2127 = vsel %vm839, %v2124, %v2126
      %v2128 = vrot.slane %v1756, 1
      %v2129 = vsel %vm839, %v2126, %v2128
      %v2130 = vrot.slane %v1757, 1
      %v2131 = vsel %vm839, %v2128, %v2130
      %v2132 = vrot.slane %v1758, 1
      %v2133 = vsel %vm839, %v2130, %v2132
      %v2134 = vrot.slane %v1759, 1
      %v2135 = vsel %vm839, %v2132, %v2134
      %v2136 = vrot.slane %v1760, 1
      %v2137 = vsel %vm839, %v2134, %v2136
      %v2138 = vrot.slane %v1761, 1
      %v2139 = vsel %vm839, %v2136, %v2138
      %v2140 = vrot.slane %v1762, 1
      %v2141 = vsel %vm839, %v2138, %v2140
      %v2142 = vrot.slane %v1763, 1
      %v2143 = vsel %vm839, %v2140, %v2142
      %v2144 = vrot.slane %v1764, 1
      %v2145 = vsel %vm839, %v2142, %v2144
      %v2146 = vrot.slane %v1765, 1
      %v2147 = vsel %vm839, %v2144, %v2146
      %v2148 = vrot.slane %v1766, 1
      %v2149 = vsel %vm839, %v2146, %v2148
      %v2150 = vrot.slane %v1767, 1
      %v2151 = vsel %vm839, %v2148, %v2150
      %v2152 = vrot.slane %v1824, 1
      %v2153 = vsel %vm839, %v2150, %v2152
      %2154 = vrot.lane.b32.xlu0 %v2101, 88
      %v2155 = vpop.permute.xlu0 %2154
      %2156 = vrot.lane.b32.xlu0 %v2103, 88
      %v2157 = vpop.permute.xlu0 %2156
      %2158 = vrot.lane.b32.xlu0 %v2105, 88
      %v2159 = vpop.permute.xlu0 %2158
      %2160 = vrot.lane.b32.xlu0 %v2107, 88
      %v2161 = vpop.permute.xlu0 %2160
      %2162 = vrot.lane.b32.xlu0 %v2109, 88
      %v2163 = vpop.permute.xlu0 %2162
      %2164 = vrot.lane.b32.xlu0 %v2111, 88
      %v2165 = vpop.permute.xlu0 %2164
      %2166 = vrot.lane.b32.xlu0 %v2113, 88
      %v2167 = vpop.permute.xlu0 %2166
      %2168 = vrot.lane.b32.xlu0 %v2115, 88
      %v2169 = vpop.permute.xlu0 %2168
      %2170 = vrot.lane.b32.xlu0 %v2117, 88
      %v2171 = vpop.permute.xlu0 %2170
      %2172 = vrot.lane.b32.xlu0 %v2119, 88
      %v2173 = vpop.permute.xlu0 %2172
      %2174 = vrot.lane.b32.xlu0 %v2121, 88
      %v2175 = vpop.permute.xlu0 %2174
      %2176 = vrot.lane.b32.xlu0 %v2123, 88
      %v2177 = vpop.permute.xlu0 %2176
      %2178 = vrot.lane.b32.xlu0 %v2125, 88
      %v2179 = vpop.permute.xlu0 %2178
      %2180 = vrot.lane.b32.xlu0 %v2127, 88
      %v2181 = vpop.permute.xlu0 %2180
      %2182 = vrot.lane.b32.xlu0 %v2129, 88
      %v2183 = vpop.permute.xlu0 %2182
      %2184 = vrot.lane.b32.xlu0 %v2131, 88
      %v2185 = vpop.permute.xlu0 %2184
      %2186 = vrot.lane.b32.xlu0 %v2133, 88
      %v2187 = vpop.permute.xlu0 %2186
      %2188 = vrot.lane.b32.xlu0 %v2135, 88
      %v2189 = vpop.permute.xlu0 %2188
      %2190 = vrot.lane.b32.xlu0 %v2137, 88
      %v2191 = vpop.permute.xlu0 %2190
      %2192 = vrot.lane.b32.xlu0 %v2139, 88
      %v2193 = vpop.permute.xlu0 %2192
      %2194 = vrot.lane.b32.xlu0 %v2141, 88
      %v2195 = vpop.permute.xlu0 %2194
      %2196 = vrot.lane.b32.xlu0 %v2143, 88
      %v2197 = vpop.permute.xlu0 %2196
      %2198 = vrot.lane.b32.xlu0 %v2145, 88
      %v2199 = vpop.permute.xlu0 %2198
      %2200 = vrot.lane.b32.xlu0 %v2147, 88
      %v2201 = vpop.permute.xlu0 %2200
      %2202 = vrot.lane.b32.xlu0 %v2149, 88
      %v2203 = vpop.permute.xlu0 %2202
      %2204 = vrot.lane.b32.xlu0 %v2151, 88
      %v2205 = vpop.permute.xlu0 %2204
      %2206 = vrot.lane.b32.xlu0 %v2153, 88
      %v2207 = vpop.permute.xlu0 %2206
      %v2211 = vunpack.c.l.b16 %v418
      %v2212 = vunpack.c.l.b16 %v419
      %v2213 = vunpack.c.l.b16 %v420
      %v2214 = vpack.c.b16 %v1691, %v1690
      %v2215 = vpack.c.b16 %v1693, %v1692
      %v2216 = vpack.c.b16 %v1695, %v1694
      %v2217 = vpack.c.b16 %v1697, %v1696
      %v2218 = vpack.c.b16 %v1699, %v1698
      %v2219 = vpack.c.b16 %v1701, %v1700
      %v2220 = vpack.c.b16 %v1703, %v1702
      %v2221 = vpack.c.b16 %v1705, %v1704
      %v2222 = vpack.c.b16 %v1707, %v1706
      %v2223 = vpack.c.b16 %v1709, %v1708
      %v2224 = vpack.c.b16 %v1711, %v1710
      %v2225 = vpack.c.b16 %v1713, %v1712
      %v2226 = vpack.c.b16 %v1715, %v1714
      %v2227 = vpack.c.b16 %v1717, %v1716
      %v2228 = vpack.c.b16 %v1719, %v1718
      %v2229 = vpack.c.b16 %v1721, %v1720
      %v2230 = vpack.c.b16 %v1723, %v1722
      %v2231 = vpack.c.b16 %v1725, %v1724
      %v2232 = vpack.c.b16 %v1727, %v1726
      %v2233 = vpack.c.b16 %v1729, %v1728
      %v2234 = vpack.c.b16 %v1731, %v1730
      %v2235 = vpack.c.b16 %v1733, %v1732
      %v2236 = vpack.c.b16 %v1735, %v1734
      %v2237 = vpack.c.b16 %v1737, %v1736
      %v2238 = vpack.c.b16 %v1739, %v1738
      %v2239 = vpack.c.b16 %v2211, %v1740
      %v2240 = vpack.c.b16 %v2213, %v2212
      %2241 = vrot.lane.b32.xlu0 %v2214, 96
      %v2242 = vpop.permute.xlu0 %2241
      %2243 = vrot.lane.b32.xlu0 %v2215, 96
      %v2244 = vpop.permute.xlu0 %2243
      %2245 = vrot.lane.b32.xlu0 %v2216, 96
      %v2246 = vpop.permute.xlu0 %2245
      %2247 = vrot.lane.b32.xlu0 %v2217, 96
      %v2248 = vpop.permute.xlu0 %2247
      %2249 = vrot.lane.b32.xlu0 %v2218, 96
      %v2250 = vpop.permute.xlu0 %2249
      %2251 = vrot.lane.b32.xlu0 %v2219, 96
      %v2252 = vpop.permute.xlu0 %2251
      %2253 = vrot.lane.b32.xlu0 %v2220, 96
      %v2254 = vpop.permute.xlu0 %2253
      %2255 = vrot.lane.b32.xlu0 %v2221, 96
      %v2256 = vpop.permute.xlu0 %2255
      %2257 = vrot.lane.b32.xlu0 %v2222, 96
      %v2258 = vpop.permute.xlu0 %2257
      %2259 = vrot.lane.b32.xlu0 %v2223, 96
      %v2260 = vpop.permute.xlu0 %2259
      %2261 = vrot.lane.b32.xlu0 %v2224, 96
      %v2262 = vpop.permute.xlu0 %2261
      %2263 = vrot.lane.b32.xlu0 %v2225, 96
      %v2264 = vpop.permute.xlu0 %2263
      %2265 = vrot.lane.b32.xlu0 %v2226, 96
      %v2266 = vpop.permute.xlu0 %2265
      %2267 = vrot.lane.b32.xlu0 %v2227, 96
      %v2268 = vpop.permute.xlu0 %2267
      %2269 = vrot.lane.b32.xlu0 %v2228, 96
      %v2270 = vpop.permute.xlu0 %2269
      %2271 = vrot.lane.b32.xlu0 %v2229, 96
      %v2272 = vpop.permute.xlu0 %2271
      %2273 = vrot.lane.b32.xlu0 %v2230, 96
      %v2274 = vpop.permute.xlu0 %2273
      %2275 = vrot.lane.b32.xlu0 %v2231, 96
      %v2276 = vpop.permute.xlu0 %2275
      %2277 = vrot.lane.b32.xlu0 %v2232, 96
      %v2278 = vpop.permute.xlu0 %2277
      %2279 = vrot.lane.b32.xlu0 %v2233, 96
      %v2280 = vpop.permute.xlu0 %2279
      %2281 = vrot.lane.b32.xlu0 %v2234, 96
      %v2282 = vpop.permute.xlu0 %2281
      %2283 = vrot.lane.b32.xlu0 %v2235, 96
      %v2284 = vpop.permute.xlu0 %2283
      %2285 = vrot.lane.b32.xlu0 %v2236, 96
      %v2286 = vpop.permute.xlu0 %2285
      %2287 = vrot.lane.b32.xlu0 %v2237, 96
      %v2288 = vpop.permute.xlu0 %2287
      %2289 = vrot.lane.b32.xlu0 %v2238, 96
      %v2290 = vpop.permute.xlu0 %2289
      %2291 = vrot.lane.b32.xlu0 %v2239, 96
      %v2292 = vpop.permute.xlu0 %2291
      %2293 = vrot.lane.b32.xlu0 %v2240, 96
      %v2294 = vpop.permute.xlu0 %2293
      %v2296 = vunpack.c.l.b16 %v421
      %v2297 = vpack.c.b16 %v2296, %v2296
      %v2299 = vshrl.u32 %v2214, 16
      %v2301 = vshll.u32 %v2214, 16
      %v2303 = vrot.slane %v2301, 1
      %v2304 = vor.u32 %v2299, %v2303
      %v2306 = vshll.u32 %v2215, 16
      %v2308 = vrot.slane %v2306, 1
      %v2309 = vsel %vm564, %v2304, %v2308
      %v2310 = vshrl.u32 %v2215, 16
      %v2312 = vor.u32 %v2310, %v2308
      %v2314 = vshll.u32 %v2216, 16
      %v2316 = vrot.slane %v2314, 1
      %v2317 = vsel %vm564, %v2312, %v2316
      %v2318 = vshrl.u32 %v2216, 16
      %v2320 = vor.u32 %v2318, %v2316
      %v2322 = vshll.u32 %v2217, 16
      %v2324 = vrot.slane %v2322, 1
      %v2325 = vsel %vm564, %v2320, %v2324
      %v2326 = vshrl.u32 %v2217, 16
      %v2328 = vor.u32 %v2326, %v2324
      %v2330 = vshll.u32 %v2218, 16
      %v2332 = vrot.slane %v2330, 1
      %v2333 = vsel %vm564, %v2328, %v2332
      %v2334 = vshrl.u32 %v2218, 16
      %v2336 = vor.u32 %v2334, %v2332
      %v2338 = vshll.u32 %v2219, 16
      %v2340 = vrot.slane %v2338, 1
      %v2341 = vsel %vm564, %v2336, %v2340
      %v2342 = vshrl.u32 %v2219, 16
      %v2344 = vor.u32 %v2342, %v2340
      %v2346 = vshll.u32 %v2220, 16
      %v2348 = vrot.slane %v2346, 1
      %v2349 = vsel %vm564, %v2344, %v2348
      %v2350 = vshrl.u32 %v2220, 16
      %v2352 = vor.u32 %v2350, %v2348
      %v2354 = vshll.u32 %v2221, 16
      %v2356 = vrot.slane %v2354, 1
      %v2357 = vsel %vm564, %v2352, %v2356
      %v2358 = vshrl.u32 %v2221, 16
      %v2360 = vor.u32 %v2358, %v2356
      %v2362 = vshll.u32 %v2222, 16
      %v2364 = vrot.slane %v2362, 1
      %v2365 = vsel %vm564, %v2360, %v2364
      %v2366 = vshrl.u32 %v2222, 16
      %v2368 = vor.u32 %v2366, %v2364
      %v2370 = vshll.u32 %v2223, 16
      %v2372 = vrot.slane %v2370, 1
      %v2373 = vsel %vm564, %v2368, %v2372
      %v2374 = vshrl.u32 %v2223, 16
      %v2376 = vor.u32 %v2374, %v2372
      %v2378 = vshll.u32 %v2224, 16
      %v2380 = vrot.slane %v2378, 1
      %v2381 = vsel %vm564, %v2376, %v2380
      %v2382 = vshrl.u32 %v2224, 16
      %v2384 = vor.u32 %v2382, %v2380
      %v2386 = vshll.u32 %v2225, 16
      %v2388 = vrot.slane %v2386, 1
      %v2389 = vsel %vm564, %v2384, %v2388
      %v2390 = vshrl.u32 %v2225, 16
      %v2392 = vor.u32 %v2390, %v2388
      %v2394 = vshll.u32 %v2226, 16
      %v2396 = vrot.slane %v2394, 1
      %v2397 = vsel %vm564, %v2392, %v2396
      %v2398 = vshrl.u32 %v2226, 16
      %v2400 = vor.u32 %v2398, %v2396
      %v2402 = vshll.u32 %v2227, 16
      %v2404 = vrot.slane %v2402, 1
      %v2405 = vsel %vm564, %v2400, %v2404
      %v2406 = vshrl.u32 %v2227, 16
      %v2408 = vor.u32 %v2406, %v2404
      %v2410 = vshll.u32 %v2228, 16
      %v2412 = vrot.slane %v2410, 1
      %v2413 = vsel %vm564, %v2408, %v2412
      %v2414 = vshrl.u32 %v2228, 16
      %v2416 = vor.u32 %v2414, %v2412
      %v2418 = vshll.u32 %v2229, 16
      %v2420 = vrot.slane %v2418, 1
      %v2421 = vsel %vm564, %v2416, %v2420
      %v2422 = vshrl.u32 %v2229, 16
      %v2424 = vor.u32 %v2422, %v2420
      %v2426 = vshll.u32 %v2230, 16
      %v2428 = vrot.slane %v2426, 1
      %v2429 = vsel %vm564, %v2424, %v2428
      %v2430 = vshrl.u32 %v2230, 16
      %v2432 = vor.u32 %v2430, %v2428
      %v2434 = vshll.u32 %v2231, 16
      %v2436 = vrot.slane %v2434, 1
      %v2437 = vsel %vm564, %v2432, %v2436
      %v2438 = vshrl.u32 %v2231, 16
      %v2440 = vor.u32 %v2438, %v2436
      %v2442 = vshll.u32 %v2232, 16
      %v2444 = vrot.slane %v2442, 1
      %v2445 = vsel %vm564, %v2440, %v2444
      %v2446 = vshrl.u32 %v2232, 16
      %v2448 = vor.u32 %v2446, %v2444
      %v2450 = vshll.u32 %v2233, 16
      %v2452 = vrot.slane %v2450, 1
      %v2453 = vsel %vm564, %v2448, %v2452
      %v2454 = vshrl.u32 %v2233, 16
      %v2456 = vor.u32 %v2454, %v2452
      %v2458 = vshll.u32 %v2234, 16
      %v2460 = vrot.slane %v2458, 1
      %v2461 = vsel %vm564, %v2456, %v2460
      %v2462 = vshrl.u32 %v2234, 16
      %v2464 = vor.u32 %v2462, %v2460
      %v2466 = vshll.u32 %v2235, 16
      %v2468 = vrot.slane %v2466, 1
      %v2469 = vsel %vm564, %v2464, %v2468
      %v2470 = vshrl.u32 %v2235, 16
      %v2472 = vor.u32 %v2470, %v2468
      %v2474 = vshll.u32 %v2236, 16
      %v2476 = vrot.slane %v2474, 1
      %v2477 = vsel %vm564, %v2472, %v2476
      %v2478 = vshrl.u32 %v2236, 16
      %v2480 = vor.u32 %v2478, %v2476
      %v2482 = vshll.u32 %v2237, 16
      %v2484 = vrot.slane %v2482, 1
      %v2485 = vsel %vm564, %v2480, %v2484
      %v2486 = vshrl.u32 %v2237, 16
      %v2488 = vor.u32 %v2486, %v2484
      %v2490 = vshll.u32 %v2238, 16
      %v2492 = vrot.slane %v2490, 1
      %v2493 = vsel %vm564, %v2488, %v2492
      %v2494 = vshrl.u32 %v2238, 16
      %v2496 = vor.u32 %v2494, %v2492
      %v2498 = vshll.u32 %v2239, 16
      %v2500 = vrot.slane %v2498, 1
      %v2501 = vsel %vm564, %v2496, %v2500
      %v2502 = vshrl.u32 %v2239, 16
      %v2504 = vor.u32 %v2502, %v2500
      %v2506 = vshll.u32 %v2240, 16
      %v2508 = vrot.slane %v2506, 1
      %v2509 = vsel %vm564, %v2504, %v2508
      %v2510 = vshrl.u32 %v2240, 16
      %v2512 = vor.u32 %v2510, %v2508
      %v2514 = vshll.u32 %v2297, 16
      %v2516 = vrot.slane %v2514, 1
      %v2517 = vsel %vm564, %v2512, %v2516
      %2518 = vrot.lane.b32.xlu0 %v2309, 104
      %v2519 = vpop.permute.xlu0 %2518
      %2520 = vrot.lane.b32.xlu0 %v2317, 104
      %v2521 = vpop.permute.xlu0 %2520
      %2522 = vrot.lane.b32.xlu0 %v2325, 104
      %v2523 = vpop.permute.xlu0 %2522
      %2524 = vrot.lane.b32.xlu0 %v2333, 104
      %v2525 = vpop.permute.xlu0 %2524
      %2526 = vrot.lane.b32.xlu0 %v2341, 104
      %v2527 = vpop.permute.xlu0 %2526
      %2528 = vrot.lane.b32.xlu0 %v2349, 104
      %v2529 = vpop.permute.xlu0 %2528
      %2530 = vrot.lane.b32.xlu0 %v2357, 104
      %v2531 = vpop.permute.xlu0 %2530
      %2532 = vrot.lane.b32.xlu0 %v2365, 104
      %v2533 = vpop.permute.xlu0 %2532
      %2534 = vrot.lane.b32.xlu0 %v2373, 104
      %v2535 = vpop.permute.xlu0 %2534
      %2536 = vrot.lane.b32.xlu0 %v2381, 104
      %v2537 = vpop.permute.xlu0 %2536
      %2538 = vrot.lane.b32.xlu0 %v2389, 104
      %v2539 = vpop.permute.xlu0 %2538
      %2540 = vrot.lane.b32.xlu0 %v2397, 104
      %v2541 = vpop.permute.xlu0 %2540
      %2542 = vrot.lane.b32.xlu0 %v2405, 104
      %v2543 = vpop.permute.xlu0 %2542
      %2544 = vrot.lane.b32.xlu0 %v2413, 104
      %v2545 = vpop.permute.xlu0 %2544
      %2546 = vrot.lane.b32.xlu0 %v2421, 104
      %v2547 = vpop.permute.xlu0 %2546
      %2548 = vrot.lane.b32.xlu0 %v2429, 104
      %v2549 = vpop.permute.xlu0 %2548
      %2550 = vrot.lane.b32.xlu0 %v2437, 104
      %v2551 = vpop.permute.xlu0 %2550
      %2552 = vrot.lane.b32.xlu0 %v2445, 104
      %v2553 = vpop.permute.xlu0 %2552
      %2554 = vrot.lane.b32.xlu0 %v2453, 104
      %v2555 = vpop.permute.xlu0 %2554
      %2556 = vrot.lane.b32.xlu0 %v2461, 104
      %v2557 = vpop.permute.xlu0 %2556
      %2558 = vrot.lane.b32.xlu0 %v2469, 104
      %v2559 = vpop.permute.xlu0 %2558
      %2560 = vrot.lane.b32.xlu0 %v2477, 104
      %v2561 = vpop.permute.xlu0 %2560
      %2562 = vrot.lane.b32.xlu0 %v2485, 104
      %v2563 = vpop.permute.xlu0 %2562
      %2564 = vrot.lane.b32.xlu0 %v2493, 104
      %v2565 = vpop.permute.xlu0 %2564
      %2566 = vrot.lane.b32.xlu0 %v2501, 104
      %v2567 = vpop.permute.xlu0 %2566
      %2568 = vrot.lane.b32.xlu0 %v2509, 104
      %v2569 = vpop.permute.xlu0 %2568
      %2570 = vrot.lane.b32.xlu0 %v2517, 104
      %v2571 = vpop.permute.xlu0 %2570
      %v2572 = vrot.slane %v2214, 1
      %v2573 = vrot.slane %v2215, 1
      %v2574 = vsel %vm839, %v2572, %v2573
      %v2575 = vrot.slane %v2216, 1
      %v2576 = vsel %vm839, %v2573, %v2575
      %v2577 = vrot.slane %v2217, 1
      %v2578 = vsel %vm839, %v2575, %v2577
      %v2579 = vrot.slane %v2218, 1
      %v2580 = vsel %vm839, %v2577, %v2579
      %v2581 = vrot.slane %v2219, 1
      %v2582 = vsel %vm839, %v2579, %v2581
      %v2583 = vrot.slane %v2220, 1
      %v2584 = vsel %vm839, %v2581, %v2583
      %v2585 = vrot.slane %v2221, 1
      %v2586 = vsel %vm839, %v2583, %v2585
      %v2587 = vrot.slane %v2222, 1
      %v2588 = vsel %vm839, %v2585, %v2587
      %v2589 = vrot.slane %v2223, 1
      %v2590 = vsel %vm839, %v2587, %v2589
      %v2591 = vrot.slane %v2224, 1
      %v2592 = vsel %vm839, %v2589, %v2591
      %v2593 = vrot.slane %v2225, 1
      %v2594 = vsel %vm839, %v2591, %v2593
      %v2595 = vrot.slane %v2226, 1
      %v2596 = vsel %vm839, %v2593, %v2595
      %v2597 = vrot.slane %v2227, 1
      %v2598 = vsel %vm839, %v2595, %v2597
      %v2599 = vrot.slane %v2228, 1
      %v2600 = vsel %vm839, %v2597, %v2599
      %v2601 = vrot.slane %v2229, 1
      %v2602 = vsel %vm839, %v2599, %v2601
      %v2603 = vrot.slane %v2230, 1
      %v2604 = vsel %vm839, %v2601, %v2603
      %v2605 = vrot.slane %v2231, 1
      %v2606 = vsel %vm839, %v2603, %v2605
      %v2607 = vrot.slane %v2232, 1
      %v2608 = vsel %vm839, %v2605, %v2607
      %v2609 = vrot.slane %v2233, 1
      %v2610 = vsel %vm839, %v2607, %v2609
      %v2611 = vrot.slane %v2234, 1
      %v2612 = vsel %vm839, %v2609, %v2611
      %v2613 = vrot.slane %v2235, 1
      %v2614 = vsel %vm839, %v2611, %v2613
      %v2615 = vrot.slane %v2236, 1
      %v2616 = vsel %vm839, %v2613, %v2615
      %v2617 = vrot.slane %v2237, 1
      %v2618 = vsel %vm839, %v2615, %v2617
      %v2619 = vrot.slane %v2238, 1
      %v2620 = vsel %vm839, %v2617, %v2619
      %v2621 = vrot.slane %v2239, 1
      %v2622 = vsel %vm839, %v2619, %v2621
      %v2623 = vrot.slane %v2240, 1
      %v2624 = vsel %vm839, %v2621, %v2623
      %v2625 = vrot.slane %v2297, 1
      %v2626 = vsel %vm839, %v2623, %v2625
      %2627 = vrot.lane.b32.xlu0 %v2574, 112
      %v2628 = vpop.permute.xlu0 %2627
      %2629 = vrot.lane.b32.xlu0 %v2576, 112
      %v2630 = vpop.permute.xlu0 %2629
      %2631 = vrot.lane.b32.xlu0 %v2578, 112
      %v2632 = vpop.permute.xlu0 %2631
      %2633 = vrot.lane.b32.xlu0 %v2580, 112
      %v2634 = vpop.permute.xlu0 %2633
      %2635 = vrot.lane.b32.xlu0 %v2582, 112
      %v2636 = vpop.permute.xlu0 %2635
      %2637 = vrot.lane.b32.xlu0 %v2584, 112
      %v2638 = vpop.permute.xlu0 %2637
      %2639 = vrot.lane.b32.xlu0 %v2586, 112
      %v2640 = vpop.permute.xlu0 %2639
      %2641 = vrot.lane.b32.xlu0 %v2588, 112
      %v2642 = vpop.permute.xlu0 %2641
      %2643 = vrot.lane.b32.xlu0 %v2590, 112
      %v2644 = vpop.permute.xlu0 %2643
      %2645 = vrot.lane.b32.xlu0 %v2592, 112
      %v2646 = vpop.permute.xlu0 %2645
      %2647 = vrot.lane.b32.xlu0 %v2594, 112
      %v2648 = vpop.permute.xlu0 %2647
      %2649 = vrot.lane.b32.xlu0 %v2596, 112
      %v2650 = vpop.permute.xlu0 %2649
      %2651 = vrot.lane.b32.xlu0 %v2598, 112
      %v2652 = vpop.permute.xlu0 %2651
      %2653 = vrot.lane.b32.xlu0 %v2600, 112
      %v2654 = vpop.permute.xlu0 %2653
      %2655 = vrot.lane.b32.xlu0 %v2602, 112
      %v2656 = vpop.permute.xlu0 %2655
      %2657 = vrot.lane.b32.xlu0 %v2604, 112
      %v2658 = vpop.permute.xlu0 %2657
      %2659 = vrot.lane.b32.xlu0 %v2606, 112
      %v2660 = vpop.permute.xlu0 %2659
      %2661 = vrot.lane.b32.xlu0 %v2608, 112
      %v2662 = vpop.permute.xlu0 %2661
      %2663 = vrot.lane.b32.xlu0 %v2610, 112
      %v2664 = vpop.permute.xlu0 %2663
      %2665 = vrot.lane.b32.xlu0 %v2612, 112
      %v2666 = vpop.permute.xlu0 %2665
      %2667 = vrot.lane.b32.xlu0 %v2614, 112
      %v2668 = vpop.permute.xlu0 %2667
      %2669 = vrot.lane.b32.xlu0 %v2616, 112
      %v2670 = vpop.permute.xlu0 %2669
      %2671 = vrot.lane.b32.xlu0 %v2618, 112
      %v2672 = vpop.permute.xlu0 %2671
      %2673 = vrot.lane.b32.xlu0 %v2620, 112
      %v2674 = vpop.permute.xlu0 %2673
      %2675 = vrot.lane.b32.xlu0 %v2622, 112
      %v2676 = vpop.permute.xlu0 %2675
      %2677 = vrot.lane.b32.xlu0 %v2624, 112
      %v2678 = vpop.permute.xlu0 %2677
      %2679 = vrot.lane.b32.xlu0 %v2626, 112
      %v2680 = vpop.permute.xlu0 %2679
      %v2684 = vunpack.c.l.b16 %v422
      %v2685 = vunpack.c.l.b16 %v423
      %v2686 = vunpack.c.l.b16 %v424
      %v2687 = vpack.c.b16 %v2212, %v2211
      %v2688 = vpack.c.b16 %v2684, %v2213
      %v2689 = vpack.c.b16 %v2686, %v2685
      %2690 = vrot.lane.b32.xlu0 %v1744, 120
      %v2691 = vpop.permute.xlu0 %2690
      %2692 = vrot.lane.b32.xlu0 %v1745, 120
      %v2693 = vpop.permute.xlu0 %2692
      %2694 = vrot.lane.b32.xlu0 %v1746, 120
      %v2695 = vpop.permute.xlu0 %2694
      %2696 = vrot.lane.b32.xlu0 %v1747, 120
      %v2697 = vpop.permute.xlu0 %2696
      %2698 = vrot.lane.b32.xlu0 %v1748, 120
      %v2699 = vpop.permute.xlu0 %2698
      %2700 = vrot.lane.b32.xlu0 %v1749, 120
      %v2701 = vpop.permute.xlu0 %2700
      %2702 = vrot.lane.b32.xlu0 %v1750, 120
      %v2703 = vpop.permute.xlu0 %2702
      %2704 = vrot.lane.b32.xlu0 %v1751, 120
      %v2705 = vpop.permute.xlu0 %2704
      %2706 = vrot.lane.b32.xlu0 %v1752, 120
      %v2707 = vpop.permute.xlu0 %2706
      %2708 = vrot.lane.b32.xlu0 %v1753, 120
      %v2709 = vpop.permute.xlu0 %2708
      %2710 = vrot.lane.b32.xlu0 %v1754, 120
      %v2711 = vpop.permute.xlu0 %2710
      %2712 = vrot.lane.b32.xlu0 %v1755, 120
      %v2713 = vpop.permute.xlu0 %2712
      %2714 = vrot.lane.b32.xlu0 %v1756, 120
      %v2715 = vpop.permute.xlu0 %2714
      %2716 = vrot.lane.b32.xlu0 %v1757, 120
      %v2717 = vpop.permute.xlu0 %2716
      %2718 = vrot.lane.b32.xlu0 %v1758, 120
      %v2719 = vpop.permute.xlu0 %2718
      %2720 = vrot.lane.b32.xlu0 %v1759, 120
      %v2721 = vpop.permute.xlu0 %2720
      %2722 = vrot.lane.b32.xlu0 %v1760, 120
      %v2723 = vpop.permute.xlu0 %2722
      %2724 = vrot.lane.b32.xlu0 %v1761, 120
      %v2725 = vpop.permute.xlu0 %2724
      %2726 = vrot.lane.b32.xlu0 %v1762, 120
      %v2727 = vpop.permute.xlu0 %2726
      %2728 = vrot.lane.b32.xlu0 %v1763, 120
      %v2729 = vpop.permute.xlu0 %2728
      %2730 = vrot.lane.b32.xlu0 %v1764, 120
      %v2731 = vpop.permute.xlu0 %2730
      %2732 = vrot.lane.b32.xlu0 %v1765, 120
      %v2733 = vpop.permute.xlu0 %2732
      %2734 = vrot.lane.b32.xlu0 %v1766, 120
      %v2735 = vpop.permute.xlu0 %2734
      %2736 = vrot.lane.b32.xlu0 %v1767, 120
      %v2737 = vpop.permute.xlu0 %2736
      %2738 = vrot.lane.b32.xlu0 %v2687, 120
      %v2739 = vpop.permute.xlu0 %2738
      %2740 = vrot.lane.b32.xlu0 %v2688, 120
      %v2741 = vpop.permute.xlu0 %2740
      %2742 = vrot.lane.b32.xlu0 %v2689, 120
      %v2743 = vpop.permute.xlu0 %2742
      %vm2744 = vcmask 64512
      %v2746 = vsel %vm2744, %v534, %v786
      %v2748 = vsel %vm2744, %v535, %v788
      %v2750 = vsel %vm2744, %v536, %v790
      %v2752 = vsel %vm2744, %v537, %v792
      %v2754 = vsel %vm2744, %v538, %v794
      %v2756 = vsel %vm2744, %v539, %v796
      %v2758 = vsel %vm2744, %v540, %v798
      %v2760 = vsel %vm2744, %v541, %v800
      %v2762 = vsel %vm2744, %v542, %v802
      %v2764 = vsel %vm2744, %v543, %v804
      %v2766 = vsel %vm2744, %v544, %v806
      %v2768 = vsel %vm2744, %v545, %v808
      %v2770 = vsel %vm2744, %v546, %v810
      %v2772 = vsel %vm2744, %v547, %v812
      %v2774 = vsel %vm2744, %v548, %v814
      %v2776 = vsel %vm2744, %v549, %v816
      %v2778 = vsel %vm2744, %v550, %v818
      %v2780 = vsel %vm2744, %v551, %v820
      %v2782 = vsel %vm2744, %v552, %v822
      %v2784 = vsel %vm2744, %v553, %v824
      %v2786 = vsel %vm2744, %v554, %v826
      %v2788 = vsel %vm2744, %v555, %v828
      %v2790 = vsel %vm2744, %v556, %v830
      %v2792 = vsel %vm2744, %v557, %v832
      %v2794 = vsel %vm2744, %v558, %v834
      %v2796 = vsel %vm2744, %v559, %v836
      %v2798 = vsel %vm2744, %v560, %v838
      %vm2799 = vcmask 130048
      %v2801 = vsel %vm2799, %v2746, %v896
      %v2803 = vsel %vm2799, %v2748, %v898
      %v2805 = vsel %vm2799, %v2750, %v900
      %v2807 = vsel %vm2799, %v2752, %v902
      %v2809 = vsel %vm2799, %v2754, %v904
      %v2811 = vsel %vm2799, %v2756, %v906
      %v2813 = vsel %vm2799, %v2758, %v908
      %v2815 = vsel %vm2799, %v2760, %v910
      %v2817 = vsel %vm2799, %v2762, %v912
      %v2819 = vsel %vm2799, %v2764, %v914
      %v2821 = vsel %vm2799, %v2766, %v916
      %v2823 = vsel %vm2799, %v2768, %v918
      %v2825 = vsel %vm2799, %v2770, %v920
      %v2827 = vsel %vm2799, %v2772, %v922
      %v2829 = vsel %vm2799, %v2774, %v924
      %v2831 = vsel %vm2799, %v2776, %v926
      %v2833 = vsel %vm2799, %v2778, %v928
      %v2835 = vsel %vm2799, %v2780, %v930
      %v2837 = vsel %vm2799, %v2782, %v932
      %v2839 = vsel %vm2799, %v2784, %v934
      %v2841 = vsel %vm2799, %v2786, %v936
      %v2843 = vsel %vm2799, %v2788, %v938
      %v2845 = vsel %vm2799, %v2790, %v940
      %v2847 = vsel %vm2799, %v2792, %v942
      %v2849 = vsel %vm2799, %v2794, %v944
      %v2851 = vsel %vm2799, %v2796, %v946
      %v2853 = vsel %vm2799, %v2798, %v948
      %vm2854 = vcmask 195584
      %v2856 = vsel %vm2854, %v2801, %v983
      %v2858 = vsel %vm2854, %v2803, %v985
      %v2860 = vsel %vm2854, %v2805, %v987
      %v2862 = vsel %vm2854, %v2807, %v989
      %v2864 = vsel %vm2854, %v2809, %v991
      %v2866 = vsel %vm2854, %v2811, %v993
      %v2868 = vsel %vm2854, %v2813, %v995
      %v2870 = vsel %vm2854, %v2815, %v997
      %v2872 = vsel %vm2854, %v2817, %v999
      %v2874 = vsel %vm2854, %v2819, %v1001
      %v2876 = vsel %vm2854, %v2821, %v1003
      %v2878 = vsel %vm2854, %v2823, %v1005
      %v2880 = vsel %vm2854, %v2825, %v1007
      %v2882 = vsel %vm2854, %v2827, %v1009
      %v2884 = vsel %vm2854, %v2829, %v1011
      %v2886 = vsel %vm2854, %v2831, %v1013
      %v2888 = vsel %vm2854, %v2833, %v1015
      %v2890 = vsel %vm2854, %v2835, %v1017
      %v2892 = vsel %vm2854, %v2837, %v1019
      %v2894 = vsel %vm2854, %v2839, %v1021
      %v2896 = vsel %vm2854, %v2841, %v1023
      %v2898 = vsel %vm2854, %v2843, %v1025
      %v2900 = vsel %vm2854, %v2845, %v1027
      %v2902 = vsel %vm2854, %v2847, %v1029
      %v2904 = vsel %vm2854, %v2849, %v1031
      %v2906 = vsel %vm2854, %v2851, %v1033
      %v2908 = vsel %vm2854, %v2853, %v1035
      %vm2909 = vcmask 261120
      %v2911 = vsel %vm2909, %v2856, %v1260
      %v2913 = vsel %vm2909, %v2858, %v1262
      %v2915 = vsel %vm2909, %v2860, %v1264
      %v2917 = vsel %vm2909, %v2862, %v1266
      %v2919 = vsel %vm2909, %v2864, %v1268
      %v2921 = vsel %vm2909, %v2866, %v1270
      %v2923 = vsel %vm2909, %v2868, %v1272
      %v2925 = vsel %vm2909, %v2870, %v1274
      %v2927 = vsel %vm2909, %v2872, %v1276
      %v2929 = vsel %vm2909, %v2874, %v1278
      %v2931 = vsel %vm2909, %v2876, %v1280
      %v2933 = vsel %vm2909, %v2878, %v1282
      %v2935 = vsel %vm2909, %v2880, %v1284
      %v2937 = vsel %vm2909, %v2882, %v1286
      %v2939 = vsel %vm2909, %v2884, %v1288
      %v2941 = vsel %vm2909, %v2886, %v1290
      %v2943 = vsel %vm2909, %v2888, %v1292
      %v2945 = vsel %vm2909, %v2890, %v1294
      %v2947 = vsel %vm2909, %v2892, %v1296
      %v2949 = vsel %vm2909, %v2894, %v1298
      %v2951 = vsel %vm2909, %v2896, %v1300
      %v2953 = vsel %vm2909, %v2898, %v1302
      %v2955 = vsel %vm2909, %v2900, %v1304
      %v2957 = vsel %vm2909, %v2902, %v1306
      %v2959 = vsel %vm2909, %v2904, %v1308
      %v2961 = vsel %vm2909, %v2906, %v1310
      %v2963 = vsel %vm2909, %v2908, %v1312
      %vm2964 = vcmask 326656
      %v2966 = vsel %vm2964, %v2911, %v1369
      %v2968 = vsel %vm2964, %v2913, %v1371
      %v2970 = vsel %vm2964, %v2915, %v1373
      %v2972 = vsel %vm2964, %v2917, %v1375
      %v2974 = vsel %vm2964, %v2919, %v1377
      %v2976 = vsel %vm2964, %v2921, %v1379
      %v2978 = vsel %vm2964, %v2923, %v1381
      %v2980 = vsel %vm2964, %v2925, %v1383
      %v2982 = vsel %vm2964, %v2927, %v1385
      %v2984 = vsel %vm2964, %v2929, %v1387
      %v2986 = vsel %vm2964, %v2931, %v1389
      %v2988 = vsel %vm2964, %v2933, %v1391
      %v2990 = vsel %vm2964, %v2935, %v1393
      %v2992 = vsel %vm2964, %v2937, %v1395
      %v2994 = vsel %vm2964, %v2939, %v1397
      %v2996 = vsel %vm2964, %v2941, %v1399
      %v2998 = vsel %vm2964, %v2943, %v1401
      %v3000 = vsel %vm2964, %v2945, %v1403
      %v3002 = vsel %vm2964, %v2947, %v1405
      %v3004 = vsel %vm2964, %v2949, %v1407
      %v3006 = vsel %vm2964, %v2951, %v1409
      %v3008 = vsel %vm2964, %v2953, %v1411
      %v3010 = vsel %vm2964, %v2955, %v1413
      %v3012 = vsel %vm2964, %v2957, %v1415
      %v3014 = vsel %vm2964, %v2959, %v1417
      %v3016 = vsel %vm2964, %v2961, %v1419
      %v3018 = vsel %vm2964, %v2963, %v1421
      %vm3019 = vcmask 392192
      %v3021 = vsel %vm3019, %v2966, %v1432
      %v3023 = vsel %vm3019, %v2968, %v1434
      %v3025 = vsel %vm3019, %v2970, %v1436
      %v3027 = vsel %vm3019, %v2972, %v1438
      %v3029 = vsel %vm3019, %v2974, %v1440
      %v3031 = vsel %vm3019, %v2976, %v1442
      %v3033 = vsel %vm3019, %v2978, %v1444
      %v3035 = vsel %vm3019, %v2980, %v1446
      %v3037 = vsel %vm3019, %v2982, %v1448
      %v3039 = vsel %vm3019, %v2984, %v1450
      %v3041 = vsel %vm3019, %v2986, %v1452
      %v3043 = vsel %vm3019, %v2988, %v1454
      %v3045 = vsel %vm3019, %v2990, %v1456
      %v3047 = vsel %vm3019, %v2992, %v1458
      %v3049 = vsel %vm3019, %v2994, %v1460
      %v3051 = vsel %vm3019, %v2996, %v1462
      %v3053 = vsel %vm3019, %v2998, %v1464
      %v3055 = vsel %vm3019, %v3000, %v1466
      %v3057 = vsel %vm3019, %v3002, %v1468
      %v3059 = vsel %vm3019, %v3004, %v1470
      %v3061 = vsel %vm3019, %v3006, %v1472
      %v3063 = vsel %vm3019, %v3008, %v1474
      %v3065 = vsel %vm3019, %v3010, %v1476
      %v3067 = vsel %vm3019, %v3012, %v1478
      %v3069 = vsel %vm3019, %v3014, %v1480
      %v3071 = vsel %vm3019, %v3016, %v1482
      %v3073 = vsel %vm3019, %v3018, %v1484
      %vm3074 = vcmask 457728
      %v3076 = vsel %vm3074, %v3021, %v1518
      %v3078 = vsel %vm3074, %v3023, %v1520
      %v3080 = vsel %vm3074, %v3025, %v1522
      %v3082 = vsel %vm3074, %v3027, %v1524
      %v3084 = vsel %vm3074, %v3029, %v1526
      %v3086 = vsel %vm3074, %v3031, %v1528
      %v3088 = vsel %vm3074, %v3033, %v1530
      %v3090 = vsel %vm3074, %v3035, %v1532
      %v3092 = vsel %vm3074, %v3037, %v1534
      %v3094 = vsel %vm3074, %v3039, %v1536
      %v3096 = vsel %vm3074, %v3041, %v1538
      %v3098 = vsel %vm3074, %v3043, %v1540
      %v3100 = vsel %vm3074, %v3045, %v1542
      %v3102 = vsel %vm3074, %v3047, %v1544
      %v3104 = vsel %vm3074, %v3049, %v1546
      %v3106 = vsel %vm3074, %v3051, %v1548
      %v3108 = vsel %vm3074, %v3053, %v1550
      %v3110 = vsel %vm3074, %v3055, %v1552
      %v3112 = vsel %vm3074, %v3057, %v1554
      %v3114 = vsel %vm3074, %v3059, %v1556
      %v3116 = vsel %vm3074, %v3061, %v1558
      %v3118 = vsel %vm3074, %v3063, %v1560
      %v3120 = vsel %vm3074, %v3065, %v1562
      %v3122 = vsel %vm3074, %v3067, %v1564
      %v3124 = vsel %vm3074, %v3069, %v1566
      %v3126 = vsel %vm3074, %v3071, %v1568
      %v3128 = vsel %vm3074, %v3073, %v1570
      %vm3129 = vcmask 523264
      %v3131 = vsel %vm3129, %v3076, %v1580
      %v3133 = vsel %vm3129, %v3078, %v1582
      %v3135 = vsel %vm3129, %v3080, %v1584
      %v3137 = vsel %vm3129, %v3082, %v1586
      %v3139 = vsel %vm3129, %v3084, %v1588
      %v3141 = vsel %vm3129, %v3086, %v1590
      %v3143 = vsel %vm3129, %v3088, %v1592
      %v3145 = vsel %vm3129, %v3090, %v1594
      %v3147 = vsel %vm3129, %v3092, %v1596
      %v3149 = vsel %vm3129, %v3094, %v1598
      %v3151 = vsel %vm3129, %v3096, %v1600
      %v3153 = vsel %vm3129, %v3098, %v1602
      %v3155 = vsel %vm3129, %v3100, %v1604
      %v3157 = vsel %vm3129, %v3102, %v1606
      %v3159 = vsel %vm3129, %v3104, %v1608
      %v3161 = vsel %vm3129, %v3106, %v1610
      %v3163 = vsel %vm3129, %v3108, %v1612
      %v3165 = vsel %vm3129, %v3110, %v1614
      %v3167 = vsel %vm3129, %v3112, %v1616
      %v3169 = vsel %vm3129, %v3114, %v1618
      %v3171 = vsel %vm3129, %v3116, %v1620
      %v3173 = vsel %vm3129, %v3118, %v1622
      %v3175 = vsel %vm3129, %v3120, %v1624
      %v3177 = vsel %vm3129, %v3122, %v1626
      %v3179 = vsel %vm3129, %v3124, %v1628
      %v3181 = vsel %vm3129, %v3126, %v1630
      %v3183 = vsel %vm3129, %v3128, %v1632
      %vm3184 = vcmask 588800
      %v3186 = vsel %vm3184, %v3131, %v1769
      %v3188 = vsel %vm3184, %v3133, %v1771
      %v3190 = vsel %vm3184, %v3135, %v1773
      %v3192 = vsel %vm3184, %v3137, %v1775
      %v3194 = vsel %vm3184, %v3139, %v1777
      %v3196 = vsel %vm3184, %v3141, %v1779
      %v3198 = vsel %vm3184, %v3143, %v1781
      %v3200 = vsel %vm3184, %v3145, %v1783
      %v3202 = vsel %vm3184, %v3147, %v1785
      %v3204 = vsel %vm3184, %v3149, %v1787
      %v3206 = vsel %vm3184, %v3151, %v1789
      %v3208 = vsel %vm3184, %v3153, %v1791
      %v3210 = vsel %vm3184, %v3155, %v1793
      %v3212 = vsel %vm3184, %v3157, %v1795
      %v3214 = vsel %vm3184, %v3159, %v1797
      %v3216 = vsel %vm3184, %v3161, %v1799
      %v3218 = vsel %vm3184, %v3163, %v1801
      %v3220 = vsel %vm3184, %v3165, %v1803
      %v3222 = vsel %vm3184, %v3167, %v1805
      %v3224 = vsel %vm3184, %v3169, %v1807
      %v3226 = vsel %vm3184, %v3171, %v1809
      %v3228 = vsel %vm3184, %v3173, %v1811
      %v3230 = vsel %vm3184, %v3175, %v1813
      %v3232 = vsel %vm3184, %v3177, %v1815
      %v3234 = vsel %vm3184, %v3179, %v1817
      %v3236 = vsel %vm3184, %v3181, %v1819
      %v3238 = vsel %vm3184, %v3183, %v1821
      %vm3239 = vcmask 654336
      %v3241 = vsel %vm3239, %v3186, %v2046
      %v3243 = vsel %vm3239, %v3188, %v2048
      %v3245 = vsel %vm3239, %v3190, %v2050
      %v3247 = vsel %vm3239, %v3192, %v2052
      %v3249 = vsel %vm3239, %v3194, %v2054
      %v3251 = vsel %vm3239, %v3196, %v2056
      %v3253 = vsel %vm3239, %v3198, %v2058
      %v3255 = vsel %vm3239, %v3200, %v2060
      %v3257 = vsel %vm3239, %v3202, %v2062
      %v3259 = vsel %vm3239, %v3204, %v2064
      %v3261 = vsel %vm3239, %v3206, %v2066
      %v3263 = vsel %vm3239, %v3208, %v2068
      %v3265 = vsel %vm3239, %v3210, %v2070
      %v3267 = vsel %vm3239, %v3212, %v2072
      %v3269 = vsel %vm3239, %v3214, %v2074
      %v3271 = vsel %vm3239, %v3216, %v2076
      %v3273 = vsel %vm3239, %v3218, %v2078
      %v3275 = vsel %vm3239, %v3220, %v2080
      %v3277 = vsel %vm3239, %v3222, %v2082
      %v3279 = vsel %vm3239, %v3224, %v2084
      %v3281 = vsel %vm3239, %v3226, %v2086
      %v3283 = vsel %vm3239, %v3228, %v2088
      %v3285 = vsel %vm3239, %v3230, %v2090
      %v3287 = vsel %vm3239, %v3232, %v2092
      %v3289 = vsel %vm3239, %v3234, %v2094
      %v3291 = vsel %vm3239, %v3236, %v2096
      %v3293 = vsel %vm3239, %v3238, %v2098
      %vm3294 = vcmask 719872
      %v3296 = vsel %vm3294, %v3241, %v2155
      %v3298 = vsel %vm3294, %v3243, %v2157
      %v3300 = vsel %vm3294, %v3245, %v2159
      %v3302 = vsel %vm3294, %v3247, %v2161
      %v3304 = vsel %vm3294, %v3249, %v2163
      %v3306 = vsel %vm3294, %v3251, %v2165
      %v3308 = vsel %vm3294, %v3253, %v2167
      %v3310 = vsel %vm3294, %v3255, %v2169
      %v3312 = vsel %vm3294, %v3257, %v2171
      %v3314 = vsel %vm3294, %v3259, %v2173
      %v3316 = vsel %vm3294, %v3261, %v2175
      %v3318 = vsel %vm3294, %v3263, %v2177
      %v3320 = vsel %vm3294, %v3265, %v2179
      %v3322 = vsel %vm3294, %v3267, %v2181
      %v3324 = vsel %vm3294, %v3269, %v2183
      %v3326 = vsel %vm3294, %v3271, %v2185
      %v3328 = vsel %vm3294, %v3273, %v2187
      %v3330 = vsel %vm3294, %v3275, %v2189
      %v3332 = vsel %vm3294, %v3277, %v2191
      %v3334 = vsel %vm3294, %v3279, %v2193
      %v3336 = vsel %vm3294, %v3281, %v2195
      %v3338 = vsel %vm3294, %v3283, %v2197
      %v3340 = vsel %vm3294, %v3285, %v2199
      %v3342 = vsel %vm3294, %v3287, %v2201
      %v3344 = vsel %vm3294, %v3289, %v2203
      %v3346 = vsel %vm3294, %v3291, %v2205
      %v3348 = vsel %vm3294, %v3293, %v2207
      %vm3349 = vcmask 785408
      %v3351 = vsel %vm3349, %v3296, %v2242
      %v3353 = vsel %vm3349, %v3298, %v2244
      %v3355 = vsel %vm3349, %v3300, %v2246
      %v3357 = vsel %vm3349, %v3302, %v2248
      %v3359 = vsel %vm3349, %v3304, %v2250
      %v3361 = vsel %vm3349, %v3306, %v2252
      %v3363 = vsel %vm3349, %v3308, %v2254
      %v3365 = vsel %vm3349, %v3310, %v2256
      %v3367 = vsel %vm3349, %v3312, %v2258
      %v3369 = vsel %vm3349, %v3314, %v2260
      %v3371 = vsel %vm3349, %v3316, %v2262
      %v3373 = vsel %vm3349, %v3318, %v2264
      %v3375 = vsel %vm3349, %v3320, %v2266
      %v3377 = vsel %vm3349, %v3322, %v2268
      %v3379 = vsel %vm3349, %v3324, %v2270
      %v3381 = vsel %vm3349, %v3326, %v2272
      %v3383 = vsel %vm3349, %v3328, %v2274
      %v3385 = vsel %vm3349, %v3330, %v2276
      %v3387 = vsel %vm3349, %v3332, %v2278
      %v3389 = vsel %vm3349, %v3334, %v2280
      %v3391 = vsel %vm3349, %v3336, %v2282
      %v3393 = vsel %vm3349, %v3338, %v2284
      %v3395 = vsel %vm3349, %v3340, %v2286
      %v3397 = vsel %vm3349, %v3342, %v2288
      %v3399 = vsel %vm3349, %v3344, %v2290
      %v3401 = vsel %vm3349, %v3346, %v2292
      %v3403 = vsel %vm3349, %v3348, %v2294
      %vm3404 = vcmask 850944
      %v3406 = vsel %vm3404, %v3351, %v2519
      %v3408 = vsel %vm3404, %v3353, %v2521
      %v3410 = vsel %vm3404, %v3355, %v2523
      %v3412 = vsel %vm3404, %v3357, %v2525
      %v3414 = vsel %vm3404, %v3359, %v2527
      %v3416 = vsel %vm3404, %v3361, %v2529
      %v3418 = vsel %vm3404, %v3363, %v2531
      %v3420 = vsel %vm3404, %v3365, %v2533
      %v3422 = vsel %vm3404, %v3367, %v2535
      %v3424 = vsel %vm3404, %v3369, %v2537
      %v3426 = vsel %vm3404, %v3371, %v2539
      %v3428 = vsel %vm3404, %v3373, %v2541
      %v3430 = vsel %vm3404, %v3375, %v2543
      %v3432 = vsel %vm3404, %v3377, %v2545
      %v3434 = vsel %vm3404, %v3379, %v2547
      %v3436 = vsel %vm3404, %v3381, %v2549
      %v3438 = vsel %vm3404, %v3383, %v2551
      %v3440 = vsel %vm3404, %v3385, %v2553
      %v3442 = vsel %vm3404, %v3387, %v2555
      %v3444 = vsel %vm3404, %v3389, %v2557
      %v3446 = vsel %vm3404, %v3391, %v2559
      %v3448 = vsel %vm3404, %v3393, %v2561
      %v3450 = vsel %vm3404, %v3395, %v2563
      %v3452 = vsel %vm3404, %v3397, %v2565
      %v3454 = vsel %vm3404, %v3399, %v2567
      %v3456 = vsel %vm3404, %v3401, %v2569
      %v3458 = vsel %vm3404, %v3403, %v2571
      %vm3459 = vcmask 916480
      %v3461 = vsel %vm3459, %v3406, %v2628
      %v3463 = vsel %vm3459, %v3408, %v2630
      %v3465 = vsel %vm3459, %v3410, %v2632
      %v3467 = vsel %vm3459, %v3412, %v2634
      %v3469 = vsel %vm3459, %v3414, %v2636
      %v3471 = vsel %vm3459, %v3416, %v2638
      %v3473 = vsel %vm3459, %v3418, %v2640
      %v3475 = vsel %vm3459, %v3420, %v2642
      %v3477 = vsel %vm3459, %v3422, %v2644
      %v3479 = vsel %vm3459, %v3424, %v2646
      %v3481 = vsel %vm3459, %v3426, %v2648
      %v3483 = vsel %vm3459, %v3428, %v2650
      %v3485 = vsel %vm3459, %v3430, %v2652
      %v3487 = vsel %vm3459, %v3432, %v2654
      %v3489 = vsel %vm3459, %v3434, %v2656
      %v3491 = vsel %vm3459, %v3436, %v2658
      %v3493 = vsel %vm3459, %v3438, %v2660
      %v3495 = vsel %vm3459, %v3440, %v2662
      %v3497 = vsel %vm3459, %v3442, %v2664
      %v3499 = vsel %vm3459, %v3444, %v2666
      %v3501 = vsel %vm3459, %v3446, %v2668
      %v3503 = vsel %vm3459, %v3448, %v2670
      %v3505 = vsel %vm3459, %v3450, %v2672
      %v3507 = vsel %vm3459, %v3452, %v2674
      %v3509 = vsel %vm3459, %v3454, %v2676
      %v3511 = vsel %vm3459, %v3456, %v2678
      %v3513 = vsel %vm3459, %v3458, %v2680
      %vm3514 = vcmask 982016
      %v3516 = vsel %vm3514, %v3461, %v2691
      %v3519 = vsel %vm3514, %v3463, %v2693
      %v3522 = vsel %vm3514, %v3465, %v2695
      %v3525 = vsel %vm3514, %v3467, %v2697
      %v3528 = vsel %vm3514, %v3469, %v2699
      %v3531 = vsel %vm3514, %v3471, %v2701
      %v3534 = vsel %vm3514, %v3473, %v2703
      %v3537 = vsel %vm3514, %v3475, %v2705
      %v3540 = vsel %vm3514, %v3477, %v2707
      %v3543 = vsel %vm3514, %v3479, %v2709
      %v3546 = vsel %vm3514, %v3481, %v2711
      %v3549 = vsel %vm3514, %v3483, %v2713
      %v3552 = vsel %vm3514, %v3485, %v2715
      %v3555 = vsel %vm3514, %v3487, %v2717
      %v3558 = vsel %vm3514, %v3489, %v2719
      %v3561 = vsel %vm3514, %v3491, %v2721
      %v3564 = vsel %vm3514, %v3493, %v2723
      %v3567 = vsel %vm3514, %v3495, %v2725
      %v3570 = vsel %vm3514, %v3497, %v2727
      %v3573 = vsel %vm3514, %v3499, %v2729
      %v3576 = vsel %vm3514, %v3501, %v2731
      %v3579 = vsel %vm3514, %v3503, %v2733
      %v3582 = vsel %vm3514, %v3505, %v2735
      %v3585 = vsel %vm3514, %v3507, %v2737
      %v3588 = vsel %vm3514, %v3509, %v2739
      %v3591 = vsel %vm3514, %v3511, %v2741
      %v3594 = vsel %vm3514, %v3513, %v2743
      %v3597 = vunpack.c.l.b16 %v425
      %v3598 = vpack.c.b16 %v3597, %v3597
      %v3600 = vshll.u32 %v2687, 16
      %v3602 = vrot.slane %v3600, 1
      %v3603 = vsel %vm564, %v2039, %v3602
      %v3604 = vshrl.u32 %v2687, 16
      %v3606 = vor.u32 %v3604, %v3602
      %v3608 = vshll.u32 %v2688, 16
      %v3610 = vrot.slane %v3608, 1
      %v3611 = vsel %vm564, %v3606, %v3610
      %v3612 = vshrl.u32 %v2688, 16
      %v3614 = vor.u32 %v3612, %v3610
      %v3616 = vshll.u32 %v2689, 16
      %v3618 = vrot.slane %v3616, 1
      %v3619 = vsel %vm564, %v3614, %v3618
      %v3620 = vshrl.u32 %v2689, 16
      %v3622 = vor.u32 %v3620, %v3618
      %v3624 = vshll.u32 %v3598, 16
      %v3626 = vrot.slane %v3624, 1
      %v3627 = vsel %vm564, %v3622, %v3626
      %v3628 = vshrl.u32 %v3598, 16
      %3630 = vrot.lane.b32.xlu0 %v1860, 8
      %v3631 = vpop.permute.xlu0 %3630
      %3632 = vrot.lane.b32.xlu0 %v1868, 8
      %v3633 = vpop.permute.xlu0 %3632
      %3634 = vrot.lane.b32.xlu0 %v1876, 8
      %v3635 = vpop.permute.xlu0 %3634
      %3636 = vrot.lane.b32.xlu0 %v1884, 8
      %v3637 = vpop.permute.xlu0 %3636
      %3638 = vrot.lane.b32.xlu0 %v1892, 8
      %v3639 = vpop.permute.xlu0 %3638
      %3640 = vrot.lane.b32.xlu0 %v1900, 8
      %v3641 = vpop.permute.xlu0 %3640
      %3642 = vrot.lane.b32.xlu0 %v1908, 8
      %v3643 = vpop.permute.xlu0 %3642
      %3644 = vrot.lane.b32.xlu0 %v1916, 8
      %v3645 = vpop.permute.xlu0 %3644
      %3646 = vrot.lane.b32.xlu0 %v1924, 8
      %v3647 = vpop.permute.xlu0 %3646
      %3648 = vrot.lane.b32.xlu0 %v1932, 8
      %v3649 = vpop.permute.xlu0 %3648
      %3650 = vrot.lane.b32.xlu0 %v1940, 8
      %v3651 = vpop.permute.xlu0 %3650
      %3652 = vrot.lane.b32.xlu0 %v1948, 8
      %v3653 = vpop.permute.xlu0 %3652
      %3654 = vrot.lane.b32.xlu0 %v1956, 8
      %v3655 = vpop.permute.xlu0 %3654
      %3656 = vrot.lane.b32.xlu0 %v1964, 8
      %v3657 = vpop.permute.xlu0 %3656
      %3658 = vrot.lane.b32.xlu0 %v1972, 8
      %v3659 = vpop.permute.xlu0 %3658
      %3660 = vrot.lane.b32.xlu0 %v1980, 8
      %v3661 = vpop.permute.xlu0 %3660
      %3662 = vrot.lane.b32.xlu0 %v1988, 8
      %v3663 = vpop.permute.xlu0 %3662
      %3664 = vrot.lane.b32.xlu0 %v1996, 8
      %v3665 = vpop.permute.xlu0 %3664
      %3666 = vrot.lane.b32.xlu0 %v2004, 8
      %v3667 = vpop.permute.xlu0 %3666
      %3668 = vrot.lane.b32.xlu0 %v2012, 8
      %v3669 = vpop.permute.xlu0 %3668
      %3670 = vrot.lane.b32.xlu0 %v2020, 8
      %v3671 = vpop.permute.xlu0 %3670
      %3672 = vrot.lane.b32.xlu0 %v2028, 8
      %v3673 = vpop.permute.xlu0 %3672
      %3674 = vrot.lane.b32.xlu0 %v2036, 8
      %v3675 = vpop.permute.xlu0 %3674
      %3676 = vrot.lane.b32.xlu0 %v3603, 8
      %v3677 = vpop.permute.xlu0 %3676
      %3678 = vrot.lane.b32.xlu0 %v3611, 8
      %v3679 = vpop.permute.xlu0 %3678
      %3680 = vrot.lane.b32.xlu0 %v3619, 8
      %v3681 = vpop.permute.xlu0 %3680
      %3682 = vrot.lane.b32.xlu0 %v3627, 8
      %v3683 = vpop.permute.xlu0 %3682
      %3684 = vrot.lane.b32.xlu0 %v3628, 8
      %v3685 = vpop.permute.xlu0 %3684
      %v3687 = vsel %vm2744, %v1744, %v3631
      %v3689 = vsel %vm2744, %v1745, %v3633
      %v3691 = vsel %vm2744, %v1746, %v3635
      %v3693 = vsel %vm2744, %v1747, %v3637
      %v3695 = vsel %vm2744, %v1748, %v3639
      %v3697 = vsel %vm2744, %v1749, %v3641
      %v3699 = vsel %vm2744, %v1750, %v3643
      %v3701 = vsel %vm2744, %v1751, %v3645
      %v3703 = vsel %vm2744, %v1752, %v3647
      %v3705 = vsel %vm2744, %v1753, %v3649
      %v3707 = vsel %vm2744, %v1754, %v3651
      %v3709 = vsel %vm2744, %v1755, %v3653
      %v3711 = vsel %vm2744, %v1756, %v3655
      %v3713 = vsel %vm2744, %v1757, %v3657
      %v3715 = vsel %vm2744, %v1758, %v3659
      %v3717 = vsel %vm2744, %v1759, %v3661
      %v3719 = vsel %vm2744, %v1760, %v3663
      %v3721 = vsel %vm2744, %v1761, %v3665
      %v3723 = vsel %vm2744, %v1762, %v3667
      %v3725 = vsel %vm2744, %v1763, %v3669
      %v3727 = vsel %vm2744, %v1764, %v3671
      %v3729 = vsel %vm2744, %v1765, %v3673
      %v3731 = vsel %vm2744, %v1766, %v3675
      %v3733 = vsel %vm2744, %v1767, %v3677
      %v3735 = vsel %vm2744, %v2687, %v3679
      %v3737 = vsel %vm2744, %v2688, %v3681
      %v3739 = vsel %vm2744, %v2689, %v3683
      %v3741 = vsel %vm2744, %v3598, %v3685
      %v3742 = vshrl.u32 %v3687, 16
      %v3744 = vshll.u32 %v3687, 16
      %v3746 = vrot.slane %v3744, 1
      %v3747 = vor.u32 %v3742, %v3746
      %v3748 = vshll.u32 %v3689, 16
      %v3750 = vrot.slane %v3748, 1
      %v3751 = vsel %vm564, %v3747, %v3750
      %v3752 = vshrl.u32 %v3689, 16
      %v3754 = vor.u32 %v3752, %v3750
      %v3755 = vshll.u32 %v3691, 16
      %v3757 = vrot.slane %v3755, 1
      %v3758 = vsel %vm564, %v3754, %v3757
      %v3759 = vshrl.u32 %v3691, 16
      %v3761 = vor.u32 %v3759, %v3757
      %v3762 = vshll.u32 %v3693, 16
      %v3764 = vrot.slane %v3762, 1
      %v3765 = vsel %vm564, %v3761, %v3764
      %v3766 = vshrl.u32 %v3693, 16
      %v3768 = vor.u32 %v3766, %v3764
      %v3769 = vshll.u32 %v3695, 16
      %v3771 = vrot.slane %v3769, 1
      %v3772 = vsel %vm564, %v3768, %v3771
      %v3773 = vshrl.u32 %v3695, 16
      %v3775 = vor.u32 %v3773, %v3771
      %v3776 = vshll.u32 %v3697, 16
      %v3778 = vrot.slane %v3776, 1
      %v3779 = vsel %vm564, %v3775, %v3778
      %v3780 = vshrl.u32 %v3697, 16
      %v3782 = vor.u32 %v3780, %v3778
      %v3783 = vshll.u32 %v3699, 16
      %v3785 = vrot.slane %v3783, 1
      %v3786 = vsel %vm564, %v3782, %v3785
      %v3787 = vshrl.u32 %v3699, 16
      %v3789 = vor.u32 %v3787, %v3785
      %v3790 = vshll.u32 %v3701, 16
      %v3792 = vrot.slane %v3790, 1
      %v3793 = vsel %vm564, %v3789, %v3792
      %v3794 = vshrl.u32 %v3701, 16
      %v3796 = vor.u32 %v3794, %v3792
      %v3797 = vshll.u32 %v3703, 16
      %v3799 = vrot.slane %v3797, 1
      %v3800 = vsel %vm564, %v3796, %v3799
      %v3801 = vshrl.u32 %v3703, 16
      %v3803 = vor.u32 %v3801, %v3799
      %v3804 = vshll.u32 %v3705, 16
      %v3806 = vrot.slane %v3804, 1
      %v3807 = vsel %vm564, %v3803, %v3806
      %v3808 = vshrl.u32 %v3705, 16
      %v3810 = vor.u32 %v3808, %v3806
      %v3811 = vshll.u32 %v3707, 16
      %v3813 = vrot.slane %v3811, 1
      %v3814 = vsel %vm564, %v3810, %v3813
      %v3815 = vshrl.u32 %v3707, 16
      %v3817 = vor.u32 %v3815, %v3813
      %v3818 = vshll.u32 %v3709, 16
      %v3820 = vrot.slane %v3818, 1
      %v3821 = vsel %vm564, %v3817, %v3820
      %v3822 = vshrl.u32 %v3709, 16
      %v3824 = vor.u32 %v3822, %v3820
      %v3825 = vshll.u32 %v3711, 16
      %v3827 = vrot.slane %v3825, 1
      %v3828 = vsel %vm564, %v3824, %v3827
      %v3829 = vshrl.u32 %v3711, 16
      %v3831 = vor.u32 %v3829, %v3827
      %v3832 = vshll.u32 %v3713, 16
      %v3834 = vrot.slane %v3832, 1
      %v3835 = vsel %vm564, %v3831, %v3834
      %v3836 = vshrl.u32 %v3713, 16
      %v3838 = vor.u32 %v3836, %v3834
      %v3839 = vshll.u32 %v3715, 16
      %v3841 = vrot.slane %v3839, 1
      %v3842 = vsel %vm564, %v3838, %v3841
      %v3843 = vshrl.u32 %v3715, 16
      %v3845 = vor.u32 %v3843, %v3841
      %v3846 = vshll.u32 %v3717, 16
      %v3848 = vrot.slane %v3846, 1
      %v3849 = vsel %vm564, %v3845, %v3848
      %v3850 = vshrl.u32 %v3717, 16
      %v3852 = vor.u32 %v3850, %v3848
      %v3853 = vshll.u32 %v3719, 16
      %v3855 = vrot.slane %v3853, 1
      %v3856 = vsel %vm564, %v3852, %v3855
      %v3857 = vshrl.u32 %v3719, 16
      %v3859 = vor.u32 %v3857, %v3855
      %v3860 = vshll.u32 %v3721, 16
      %v3862 = vrot.slane %v3860, 1
      %v3863 = vsel %vm564, %v3859, %v3862
      %v3864 = vshrl.u32 %v3721, 16
      %v3866 = vor.u32 %v3864, %v3862
      %v3867 = vshll.u32 %v3723, 16
      %v3869 = vrot.slane %v3867, 1
      %v3870 = vsel %vm564, %v3866, %v3869
      %v3871 = vshrl.u32 %v3723, 16
      %v3873 = vor.u32 %v3871, %v3869
      %v3874 = vshll.u32 %v3725, 16
      %v3876 = vrot.slane %v3874, 1
      %v3877 = vsel %vm564, %v3873, %v3876
      %v3878 = vshrl.u32 %v3725, 16
      %v3880 = vor.u32 %v3878, %v3876
      %v3881 = vshll.u32 %v3727, 16
      %v3883 = vrot.slane %v3881, 1
      %v3884 = vsel %vm564, %v3880, %v3883
      %v3885 = vshrl.u32 %v3727, 16
      %v3887 = vor.u32 %v3885, %v3883
      %v3888 = vshll.u32 %v3729, 16
      %v3890 = vrot.slane %v3888, 1
      %v3891 = vsel %vm564, %v3887, %v3890
      %v3892 = vshrl.u32 %v3729, 16
      %v3894 = vor.u32 %v3892, %v3890
      %v3895 = vshll.u32 %v3731, 16
      %v3897 = vrot.slane %v3895, 1
      %v3898 = vsel %vm564, %v3894, %v3897
      %v3899 = vshrl.u32 %v3731, 16
      %v3901 = vor.u32 %v3899, %v3897
      %v3902 = vshll.u32 %v3733, 16
      %v3904 = vrot.slane %v3902, 1
      %v3905 = vsel %vm564, %v3901, %v3904
      %v3906 = vshrl.u32 %v3733, 16
      %v3908 = vor.u32 %v3906, %v3904
      %v3909 = vshll.u32 %v3735, 16
      %v3911 = vrot.slane %v3909, 1
      %v3912 = vsel %vm564, %v3908, %v3911
      %v3913 = vshrl.u32 %v3735, 16
      %v3915 = vor.u32 %v3913, %v3911
      %v3916 = vshll.u32 %v3737, 16
      %v3918 = vrot.slane %v3916, 1
      %v3919 = vsel %vm564, %v3915, %v3918
      %v3920 = vshrl.u32 %v3737, 16
      %v3922 = vor.u32 %v3920, %v3918
      %v3923 = vshll.u32 %v3739, 16
      %v3925 = vrot.slane %v3923, 1
      %v3926 = vsel %vm564, %v3922, %v3925
      %v3927 = vshrl.u32 %v3739, 16
      %v3929 = vor.u32 %v3927, %v3925
      %v3930 = vshll.u32 %v3741, 16
      %v3932 = vrot.slane %v3930, 1
      %v3933 = vsel %vm564, %v3929, %v3932
      %v3934 = vld [vmem:[%s2] sm:$0xf]
      %v3935 = vld [vmem:[%s2 + $0x4] sm:$0xf]
      %v3936 = vld [vmem:[%s2 + $0x8] sm:$0xf]
      %v3937 = vld [vmem:[%s2 + $0xc] sm:$0xf]
      %v3938 = vld [vmem:[%s2 + $0x10] sm:$0xf]
      %v3939 = vld [vmem:[%s2 + $0x14] sm:$0xf]
      %v3940 = vld [vmem:[%s2 + $0x18] sm:$0xf]
      %v3941 = vld [vmem:[%s2 + $0x1c] sm:$0xf]
      %v3942 = vld [vmem:[%s2 + $0x20] sm:$0xf]
      %v3943 = vld [vmem:[%s2 + $0x24] sm:$0xf]
      %v3944 = vld [vmem:[%s2 + $0x28] sm:$0xf]
      %v3945 = vld [vmem:[%s2 + $0x2c] sm:$0xf]
      %v3946 = vld [vmem:[%s2 + $0x30] sm:$0xf]
      %v3947 = vld [vmem:[%s2 + $0x34] sm:$0xf]
      %v3948 = vld [vmem:[%s2 + $0x38] sm:$0xf]
      %v3949 = vld [vmem:[%s2 + $0x3c] sm:$0xf]
      %v3950 = vld [vmem:[%s2 + $0x40] sm:$0xf]
      %v3951 = vld [vmem:[%s2 + $0x44] sm:$0xf]
      %v3952 = vld [vmem:[%s3] sm:$0x1]
      %v3954 = vlaneseq
      %v3955 = vshrl.u32 %v3954, 7
      %v3956 = vsub.s32 0, %v3955
      %v3957 = vrot.slane %v3952, %v3956
      %v3977 = vunpack.c.l.b16 %v3934
      %v3978 = vunpack.c.l.b16 %v3935
      %v3979 = vunpack.c.l.b16 %v3936
      %v3980 = vunpack.c.l.b16 %v3937
      %v3981 = vunpack.c.l.b16 %v3938
      %v3982 = vunpack.c.l.b16 %v3939
      %v3983 = vunpack.c.l.b16 %v3940
      %v3984 = vunpack.c.l.b16 %v3941
      %v3985 = vunpack.c.l.b16 %v3942
      %v3986 = vunpack.c.l.b16 %v3943
      %v3987 = vunpack.c.l.b16 %v3944
      %v3988 = vunpack.c.l.b16 %v3945
      %v3989 = vunpack.c.l.b16 %v3946
      %v3990 = vunpack.c.l.b16 %v3947
      %v3991 = vunpack.c.l.b16 %v3948
      %v3992 = vunpack.c.l.b16 %v3949
      %v3993 = vunpack.c.l.b16 %v3950
      %v3994 = vunpack.c.l.b16 %v3951
      %v3995 = vpack.c.b16 %v3978, %v3977
      %v3996 = vpack.c.b16 %v3980, %v3979
      %v3997 = vpack.c.b16 %v3982, %v3981
      %v3998 = vpack.c.b16 %v3984, %v3983
      %v3999 = vpack.c.b16 %v3986, %v3985
      %v4000 = vpack.c.b16 %v3988, %v3987
      %v4001 = vpack.c.b16 %v3990, %v3989
      %v4002 = vpack.c.b16 %v3992, %v3991
      %v4003 = vpack.c.b16 %v3994, %v3993
      %v4014 = vsel %vm2799, %v3751, 0
      %v4017 = vsel %vm2799, %v3758, 0
      %v4020 = vsel %vm2799, %v3765, 0
      %v4023 = vsel %vm2799, %v3772, 0
      %v4026 = vsel %vm2799, %v3779, 0
      %v4029 = vsel %vm2799, %v3786, 0
      %v4032 = vsel %vm2799, %v3793, 0
      %v4035 = vsel %vm2799, %v3800, 0
      %v4038 = vsel %vm2799, %v3807, 0
      %v4041 = vsel %vm2799, %v3814, 0
      %v4044 = vsel %vm2799, %v3821, 0
      %v4047 = vsel %vm2799, %v3828, 0
      %v4050 = vsel %vm2799, %v3835, 0
      %v4053 = vsel %vm2799, %v3842, 0
      %v4056 = vsel %vm2799, %v3849, 0
      %v4059 = vsel %vm2799, %v3856, 0
      %v4062 = vsel %vm2799, %v3863, 0
      %v4065 = vsel %vm2799, %v3870, 0
      %v4068 = vsel %vm2799, %v3877, 0
      %v4071 = vsel %vm2799, %v3884, 0
      %v4074 = vsel %vm2799, %v3891, 0
      %v4077 = vsel %vm2799, %v3898, 0
      %v4080 = vsel %vm2799, %v3905, 0
      %v4083 = vsel %vm2799, %v3912, 0
      %v4086 = vsel %vm2799, %v3919, 0
      %v4089 = vsel %vm2799, %v3926, 0
      %v4092 = vsel %vm2799, %v3933, 0
      %4094 = vmatprep.subr.bf16.mxu0 0
      %4095 = vmatpush1.bf16.msra.mxu0 %v3995
      %4096 = vmatprep.subr.bf16.mxu0 0
      %4097 = vmatpush1.bf16.msra.mxu0 %v3996
      %4098 = vmatprep.subr.bf16.mxu0 0
      %4099 = vmatpush1.bf16.msra.mxu0 %v3997
      %4100 = vmatprep.subr.bf16.mxu0 0
      %4101 = vmatpush1.bf16.msra.mxu0 %v3998
      %4102 = vmatprep.subr.bf16.mxu0 0
      %4103 = vmatpush1.bf16.msra.mxu0 %v3999
      %4104 = vmatprep.subr.bf16.mxu0 0
      %4105 = vmatpush1.bf16.msra.mxu0 %v4000
      %4106 = vmatprep.subr.bf16.mxu0 0
      %4107 = vmatpush1.bf16.msra.mxu0 %v4001
      %4108 = vmatprep.subr.bf16.mxu0 0
      %4109 = vmatpush1.bf16.msra.mxu0 %v4002
      %4110 = vmatprep.subr.bf16.mxu0 0
      %4111 = vmatpush1.bf16.msra.mxu0 %v4003
      %4112 = vmatprep.subr.bf16.mxu0 0
      %4113 = vmatpush1.bf16.msra.mxu0 0
      %4114 = vmatprep.subr.bf16.mxu0 0
      %4115 = vmatpush1.bf16.msra.mxu0 0
      %4116 = vmatprep.subr.bf16.mxu0 0
      %4117 = vmatpush1.bf16.msra.mxu0 0
      %4118 = vmatprep.subr.bf16.mxu0 0
      %4119 = vmatpush1.bf16.msra.mxu0 0
      %4120 = vmatprep.subr.bf16.mxu0 0
      %4121 = vmatpush1.bf16.msra.mxu0 0
      %4122 = vmatprep.subr.bf16.mxu0 0
      %4123 = vmatpush1.bf16.msra.mxu0 0
      %4124 = vmatprep.subr.bf16.mxu0 0
      %4125 = vmatpush1.bf16.msra.mxu0 0
      %4126 = vmatprep.mubr.bf16.mxu0 %v4014
      %4127 = vmatmul.mubr.bf16.gmra.mrb[0].mxu0 %v3516
      %v4128 = vpop.f32.mrb[0].mxu0
      %v4129 = vadd.f32 %v3957, %v4128
      %v4130 = vpop.f32.mrb[0].mxu0
      %v4131 = vpop.f32.mrb[0].mxu0
      %v4132 = vadd.f32 %v3957, %v4131
      %v4133 = vpop.f32.mrb[0].mxu0
      %4134 = vmatprep.mubr.bf16.mxu0 %v4017
      %4135 = vmatmul.mubr.bf16.gmra.mrb[0].mxu0 %v3519
      %v4136 = vpop.f32.mrb[0].mxu0
      %v4137 = vadd.f32 %v3957, %v4136
      %v4138 = vpop.f32.mrb[0].mxu0
      %v4139 = vpop.f32.mrb[0].mxu0
      %v4140 = vadd.f32 %v3957, %v4139
      %v4141 = vpop.f32.mrb[0].mxu0
      %4142 = vmatprep.mubr.bf16.mxu0 %v4020
      %4143 = vmatmul.mubr.bf16.gmra.mrb[0].mxu0 %v3522
      %v4144 = vpop.f32.mrb[0].mxu0
      %v4145 = vadd.f32 %v3957, %v4144
      %v4146 = vpop.f32.mrb[0].mxu0
      %v4147 = vpop.f32.mrb[0].mxu0
      %v4148 = vadd.f32 %v3957, %v4147
      %v4149 = vpop.f32.mrb[0].mxu0
      %4150 = vmatprep.mubr.bf16.mxu0 %v4023
      %4151 = vmatmul.mubr.bf16.gmra.mrb[0].mxu0 %v3525
      %v4152 = vpop.f32.mrb[0].mxu0
      %v4153 = vadd.f32 %v3957, %v4152
      %v4154 = vpop.f32.mrb[0].mxu0
      %v4155 = vpop.f32.mrb[0].mxu0
      %v4156 = vadd.f32 %v3957, %v4155
      %v4157 = vpop.f32.mrb[0].mxu0
      %4158 = vmatprep.mubr.bf16.mxu0 %v4026
      %4159 = vmatmul.mubr.bf16.gmra.mrb[0].mxu0 %v3528
      %v4160 = vpop.f32.mrb[0].mxu0
      %v4161 = vadd.f32 %v3957, %v4160
      %v4162 = vpop.f32.mrb[0].mxu0
      %v4163 = vpop.f32.mrb[0].mxu0
      %v4164 = vadd.f32 %v3957, %v4163
      %v4165 = vpop.f32.mrb[0].mxu0
      %4166 = vmatprep.mubr.bf16.mxu0 %v4029
      %4167 = vmatmul.mubr.bf16.gmra.mrb[0].mxu0 %v3531
      %v4168 = vpop.f32.mrb[0].mxu0
      %v4169 = vadd.f32 %v3957, %v4168
      %v4170 = vpop.f32.mrb[0].mxu0
      %v4171 = vpop.f32.mrb[0].mxu0
      %v4172 = vadd.f32 %v3957, %v4171
      %v4173 = vpop.f32.mrb[0].mxu0
      %4174 = vmatprep.mubr.bf16.mxu0 %v4032
      %4175 = vmatmul.mubr.bf16.gmra.mrb[0].mxu0 %v3534
      %v4176 = vpop.f32.mrb[0].mxu0
      %v4177 = vadd.f32 %v3957, %v4176
      %v4178 = vpop.f32.mrb[0].mxu0
      %v4179 = vpop.f32.mrb[0].mxu0
      %v4180 = vadd.f32 %v3957, %v4179
      %v4181 = vpop.f32.mrb[0].mxu0
      %4182 = vmatprep.mubr.bf16.mxu0 %v4035
      %4183 = vmatmul.mubr.bf16.gmra.mrb[0].mxu0 %v3537
      %v4184 = vpop.f32.mrb[0].mxu0
      %v4185 = vadd.f32 %v3957, %v4184
      %v4186 = vpop.f32.mrb[0].mxu0
      %v4187 = vpop.f32.mrb[0].mxu0
      %v4188 = vadd.f32 %v3957, %v4187
      %v4189 = vpop.f32.mrb[0].mxu0
      %4190 = vmatprep.mubr.bf16.mxu0 %v4038
      %4191 = vmatmul.mubr.bf16.gmra.mrb[0].mxu0 %v3540
      %v4192 = vpop.f32.mrb[0].mxu0
      %v4193 = vadd.f32 %v3957, %v4192
      %v4194 = vpop.f32.mrb[0].mxu0
      %v4195 = vpop.f32.mrb[0].mxu0
      %v4196 = vadd.f32 %v3957, %v4195
      %v4197 = vpop.f32.mrb[0].mxu0
      %4198 = vmatprep.mubr.bf16.mxu0 %v4041
      %4199 = vmatmul.mubr.bf16.gmra.mrb[0].mxu0 %v3543
      %v4200 = vpop.f32.mrb[0].mxu0
      %v4201 = vadd.f32 %v3957, %v4200
      %v4202 = vpop.f32.mrb[0].mxu0
      %v4203 = vpop.f32.mrb[0].mxu0
      %v4204 = vadd.f32 %v3957, %v4203
      %v4205 = vpop.f32.mrb[0].mxu0
      %4206 = vmatprep.mubr.bf16.mxu0 %v4044
      %4207 = vmatmul.mubr.bf16.gmra.mrb[0].mxu0 %v3546
      %v4208 = vpop.f32.mrb[0].mxu0
      %v4209 = vadd.f32 %v3957, %v4208
      %v4210 = vpop.f32.mrb[0].mxu0
      %v4211 = vpop.f32.mrb[0].mxu0
      %v4212 = vadd.f32 %v3957, %v4211
      %v4213 = vpop.f32.mrb[0].mxu0
      %4214 = vmatprep.mubr.bf16.mxu0 %v4047
      %4215 = vmatmul.mubr.bf16.gmra.mrb[0].mxu0 %v3549
      %v4216 = vpop.f32.mrb[0].mxu0
      %v4217 = vadd.f32 %v3957, %v4216
      %v4218 = vpop.f32.mrb[0].mxu0
      %v4219 = vpop.f32.mrb[0].mxu0
      %v4220 = vadd.f32 %v3957, %v4219
      %v4221 = vpop.f32.mrb[0].mxu0
      %4222 = vmatprep.mubr.bf16.mxu0 %v4050
      %4223 = vmatmul.mubr.bf16.gmra.mrb[0].mxu0 %v3552
      %v4224 = vpop.f32.mrb[0].mxu0
      %v4225 = vadd.f32 %v3957, %v4224
      %v4226 = vpop.f32.mrb[0].mxu0
      %v4227 = vpop.f32.mrb[0].mxu0
      %v4228 = vadd.f32 %v3957, %v4227
      %v4229 = vpop.f32.mrb[0].mxu0
      %4230 = vmatprep.mubr.bf16.mxu0 %v4053
      %4231 = vmatmul.mubr.bf16.gmra.mrb[0].mxu0 %v3555
      %v4232 = vpop.f32.mrb[0].mxu0
      %v4233 = vadd.f32 %v3957, %v4232
      %v4234 = vpop.f32.mrb[0].mxu0
      %v4235 = vpop.f32.mrb[0].mxu0
      %v4236 = vadd.f32 %v3957, %v4235
      %v4237 = vpop.f32.mrb[0].mxu0
      %4238 = vmatprep.mubr.bf16.mxu0 %v4056
      %4239 = vmatmul.mubr.bf16.gmra.mrb[0].mxu0 %v3558
      %v4240 = vpop.f32.mrb[0].mxu0
      %v4241 = vadd.f32 %v3957, %v4240
      %v4242 = vpop.f32.mrb[0].mxu0
      %v4243 = vpop.f32.mrb[0].mxu0
      %v4244 = vadd.f32 %v3957, %v4243
      %v4245 = vpop.f32.mrb[0].mxu0
      %4246 = vmatprep.mubr.bf16.mxu0 %v4059
      %4247 = vmatmul.mubr.bf16.gmra.mrb[0].mxu0 %v3561
      %v4248 = vpop.f32.mrb[0].mxu0
      %v4249 = vadd.f32 %v3957, %v4248
      %v4250 = vpop.f32.mrb[0].mxu0
      %v4251 = vpop.f32.mrb[0].mxu0
      %v4252 = vadd.f32 %v3957, %v4251
      %v4253 = vpop.f32.mrb[0].mxu0
      %4254 = vmatprep.mubr.bf16.mxu0 %v4062
      %4255 = vmatmul.mubr.bf16.gmra.mrb[0].mxu0 %v3564
      %v4256 = vpop.f32.mrb[0].mxu0
      %v4257 = vadd.f32 %v3957, %v4256
      %v4258 = vpop.f32.mrb[0].mxu0
      %v4259 = vpop.f32.mrb[0].mxu0
      %v4260 = vadd.f32 %v3957, %v4259
      %v4261 = vpop.f32.mrb[0].mxu0
      %4262 = vmatprep.mubr.bf16.mxu0 %v4065
      %4263 = vmatmul.mubr.bf16.gmra.mrb[0].mxu0 %v3567
      %v4264 = vpop.f32.mrb[0].mxu0
      %v4265 = vadd.f32 %v3957, %v4264
      %v4266 = vpop.f32.mrb[0].mxu0
      %v4267 = vpop.f32.mrb[0].mxu0
      %v4268 = vadd.f32 %v3957, %v4267
      %v4269 = vpop.f32.mrb[0].mxu0
      %4270 = vmatprep.mubr.bf16.mxu0 %v4068
      %4271 = vmatmul.mubr.bf16.gmra.mrb[0].mxu0 %v3570
      %v4272 = vpop.f32.mrb[0].mxu0
      %v4273 = vadd.f32 %v3957, %v4272
      %v4274 = vpop.f32.mrb[0].mxu0
      %v4275 = vpop.f32.mrb[0].mxu0
      %v4276 = vadd.f32 %v3957, %v4275
      %v4277 = vpop.f32.mrb[0].mxu0
      %4278 = vmatprep.mubr.bf16.mxu0 %v4071
      %4279 = vmatmul.mubr.bf16.gmra.mrb[0].mxu0 %v3573
      %v4280 = vpop.f32.mrb[0].mxu0
      %v4281 = vadd.f32 %v3957, %v4280
      %v4282 = vpop.f32.mrb[0].mxu0
      %v4283 = vpop.f32.mrb[0].mxu0
      %v4284 = vadd.f32 %v3957, %v4283
      %v4285 = vpop.f32.mrb[0].mxu0
      %4286 = vmatprep.mubr.bf16.mxu0 %v4074
      %4287 = vmatmul.mubr.bf16.gmra.mrb[0].mxu0 %v3576
      %v4288 = vpop.f32.mrb[0].mxu0
      %v4289 = vadd.f32 %v3957, %v4288
      %v4290 = vpop.f32.mrb[0].mxu0
      %v4291 = vpop.f32.mrb[0].mxu0
      %v4292 = vadd.f32 %v3957, %v4291
      %v4293 = vpop.f32.mrb[0].mxu0
      %4294 = vmatprep.mubr.bf16.mxu0 %v4077
      %4295 = vmatmul.mubr.bf16.gmra.mrb[0].mxu0 %v3579
      %v4296 = vpop.f32.mrb[0].mxu0
      %v4297 = vadd.f32 %v3957, %v4296
      %v4298 = vpop.f32.mrb[0].mxu0
      %v4299 = vpop.f32.mrb[0].mxu0
      %v4300 = vadd.f32 %v3957, %v4299
      %v4301 = vpop.f32.mrb[0].mxu0
      %4302 = vmatprep.mubr.bf16.mxu0 %v4080
      %4303 = vmatmul.mubr.bf16.gmra.mrb[0].mxu0 %v3582
      %v4304 = vpop.f32.mrb[0].mxu0
      %v4305 = vadd.f32 %v3957, %v4304
      %v4306 = vpop.f32.mrb[0].mxu0
      %v4307 = vpop.f32.mrb[0].mxu0
      %v4308 = vadd.f32 %v3957, %v4307
      %v4309 = vpop.f32.mrb[0].mxu0
      %4310 = vmatprep.mubr.bf16.mxu0 %v4083
      %4311 = vmatmul.mubr.bf16.gmra.mrb[0].mxu0 %v3585
      %v4312 = vpop.f32.mrb[0].mxu0
      %v4313 = vadd.f32 %v3957, %v4312
      %v4314 = vpop.f32.mrb[0].mxu0
      %v4315 = vpop.f32.mrb[0].mxu0
      %v4316 = vadd.f32 %v3957, %v4315
      %v4317 = vpop.f32.mrb[0].mxu0
      %4318 = vmatprep.mubr.bf16.mxu0 %v4086
      %4319 = vmatmul.mubr.bf16.gmra.mrb[0].mxu0 %v3588
      %v4320 = vpop.f32.mrb[0].mxu0
      %v4321 = vadd.f32 %v3957, %v4320
      %v4322 = vpop.f32.mrb[0].mxu0
      %v4323 = vpop.f32.mrb[0].mxu0
      %v4324 = vadd.f32 %v3957, %v4323
      %v4325 = vpop.f32.mrb[0].mxu0
      %4326 = vmatprep.mubr.bf16.mxu0 %v4089
      %4327 = vmatmul.mubr.bf16.gmra.mrb[0].mxu0 %v3591
      %v4328 = vpop.f32.mrb[0].mxu0
      %v4329 = vadd.f32 %v3957, %v4328
      %v4330 = vpop.f32.mrb[0].mxu0
      %v4331 = vpop.f32.mrb[0].mxu0
      %v4332 = vadd.f32 %v3957, %v4331
      %v4333 = vpop.f32.mrb[0].mxu0
      %4334 = vmatprep.mubr.bf16.mxu0 %v4092
      %4335 = vmatmul.mubr.bf16.gmra.mrb[0].mxu0 %v3594
      %v4336 = vpop.f32.mrb[0].mxu0
      %v4337 = vadd.f32 %v3957, %v4336
      %v4338 = vpop.f32.mrb[0].mxu0
      %v4339 = vpop.f32.mrb[0].mxu0
      %v4340 = vadd.f32 %v3957, %v4339
      %v4341 = vpop.f32.mrb[0].mxu0
      %4342 = vdwg.mxu0
      %v4343 = vmax.f32 %v4129, 0.0
      %v4344 = vmax.f32 %v4132, 0.0
      %v4345 = vmax.f32 %v4137, 0.0
      %v4346 = vmax.f32 %v4140, 0.0
      %v4347 = vmax.f32 %v4145, 0.0
      %v4348 = vmax.f32 %v4148, 0.0
      %v4349 = vmax.f32 %v4153, 0.0
      %v4350 = vmax.f32 %v4156, 0.0
      %v4351 = vmax.f32 %v4161, 0.0
      %v4352 = vmax.f32 %v4164, 0.0
      %v4353 = vmax.f32 %v4169, 0.0
      %v4354 = vmax.f32 %v4172, 0.0
      %v4355 = vmax.f32 %v4177, 0.0
      %v4356 = vmax.f32 %v4180, 0.0
      %v4357 = vmax.f32 %v4185, 0.0
      %v4358 = vmax.f32 %v4188, 0.0
      %v4359 = vmax.f32 %v4193, 0.0
      %v4360 = vmax.f32 %v4196, 0.0
      %v4361 = vmax.f32 %v4201, 0.0
      %v4362 = vmax.f32 %v4204, 0.0
      %v4363 = vmax.f32 %v4209, 0.0
      %v4364 = vmax.f32 %v4212, 0.0
      %v4365 = vmax.f32 %v4217, 0.0
      %v4366 = vmax.f32 %v4220, 0.0
      %v4367 = vmax.f32 %v4225, 0.0
      %v4368 = vmax.f32 %v4228, 0.0
      %v4369 = vmax.f32 %v4233, 0.0
      %v4370 = vmax.f32 %v4236, 0.0
      %v4371 = vmax.f32 %v4241, 0.0
      %v4372 = vmax.f32 %v4244, 0.0
      %v4373 = vmax.f32 %v4249, 0.0
      %v4374 = vmax.f32 %v4252, 0.0
      %v4375 = vmax.f32 %v4257, 0.0
      %v4376 = vmax.f32 %v4260, 0.0
      %v4377 = vmax.f32 %v4265, 0.0
      %v4378 = vmax.f32 %v4268, 0.0
      %v4379 = vmax.f32 %v4273, 0.0
      %v4380 = vmax.f32 %v4276, 0.0
      %v4381 = vmax.f32 %v4281, 0.0
      %v4382 = vmax.f32 %v4284, 0.0
      %v4383 = vmax.f32 %v4289, 0.0
      %v4384 = vmax.f32 %v4292, 0.0
      %v4385 = vmax.f32 %v4297, 0.0
      %v4386 = vmax.f32 %v4300, 0.0
      %v4387 = vmax.f32 %v4305, 0.0
      %v4388 = vmax.f32 %v4308, 0.0
      %v4389 = vmax.f32 %v4313, 0.0
      %v4390 = vmax.f32 %v4316, 0.0
      %v4391 = vmax.f32 %v4321, 0.0
      %v4392 = vmax.f32 %v4324, 0.0
      %v4393 = vmax.f32 %v4329, 0.0
      %v4394 = vmax.f32 %v4332, 0.0
      %v4395 = vmax.f32 %v4337, 0.0
      %v4396 = vmax.f32 %v4340, 0.0
      %v4397 = vld [vmem:[%s6] sm:$0xff]
      %v4398 = vld [vmem:[%s6 + $0x8] sm:$0xff]
      %v4399 = vld [vmem:[%s6 + $0x10] sm:$0xff]
      %v4400 = vld [vmem:[%s6 + $0x18] sm:$0xff]
      %v4401 = vld [vmem:[%s6 + $0x20] sm:$0xff]
      %v4402 = vld [vmem:[%s6 + $0x28] sm:$0xff]
      %v4403 = vld [vmem:[%s6 + $0x30] sm:$0xff]
      %v4404 = vld [vmem:[%s6 + $0x38] sm:$0xff]
      %v4405 = vld [vmem:[%s6 + $0x40] sm:$0xff]
      %v4406 = vld [vmem:[%s6 + $0x48] sm:$0xff]
      %v4407 = vld [vmem:[%s6 + $0x50] sm:$0xff]
      %v4408 = vld [vmem:[%s6 + $0x58] sm:$0xff]
      %v4409 = vld [vmem:[%s6 + $0x60] sm:$0xff]
      %v4410 = vld [vmem:[%s6 + $0x68] sm:$0xff]
      %v4411 = vld [vmem:[%s6 + $0x70] sm:$0xff]
      %v4412 = vld [vmem:[%s6 + $0x78] sm:$0xff]
      %v4413 = vld [vmem:[%s6 + $0x80] sm:$0xff]
      %v4414 = vld [vmem:[%s6 + $0x88] sm:$0xff]
      %v4415 = vld [vmem:[%s6 + $0x90] sm:$0xff]
      %v4416 = vld [vmem:[%s6 + $0x98] sm:$0xff]
      %v4417 = vld [vmem:[%s6 + $0xa0] sm:$0xff]
      %v4418 = vld [vmem:[%s6 + $0xa8] sm:$0xff]
      %v4419 = vld [vmem:[%s6 + $0xb0] sm:$0xff]
      %v4420 = vld [vmem:[%s6 + $0xb8] sm:$0xff]
      %v4421 = vld [vmem:[%s6 + $0xc0] sm:$0xff]
      %v4422 = vld [vmem:[%s6 + $0xc8] sm:$0xff]
      %v4423 = vld [vmem:[%s6 + $0xd0] sm:$0xff]
      %v4424 = vld [vmem:[%s6 + $0xd8] sm:$0xff]
      %v4425 = vld [vmem:[%s6 + $0xe0] sm:$0xff]
      %v4426 = vld [vmem:[%s6 + $0xe8] sm:$0xff]
      %v4427 = vld [vmem:[%s6 + $0xf0] sm:$0xff]
      %v4428 = vld [vmem:[%s6 + $0xf8] sm:$0xff]
      %v4429 = vld [vmem:[%s6 + $0x100] sm:$0xff]
      %v4430 = vld [vmem:[%s6 + $0x108] sm:$0xff]
      %v4431 = vld [vmem:[%s6 + $0x110] sm:$0xff]
      %v4432 = vld [vmem:[%s6 + $0x118] sm:$0xff]
      %v4433 = vld [vmem:[%s6 + $0x120] sm:$0xff]
      %v4434 = vld [vmem:[%s6 + $0x128] sm:$0xff]
      %v4435 = vld [vmem:[%s6 + $0x130] sm:$0xff]
      %v4436 = vld [vmem:[%s6 + $0x138] sm:$0xff]
      %v4437 = vld [vmem:[%s6 + $0x140] sm:$0xff]
      %v4438 = vld [vmem:[%s6 + $0x148] sm:$0xff]
      %v4439 = vld [vmem:[%s6 + $0x150] sm:$0xff]
      %v4440 = vld [vmem:[%s6 + $0x158] sm:$0xff]
      %v4441 = vld [vmem:[%s6 + $0x160] sm:$0xff]
      %v4442 = vld [vmem:[%s6 + $0x168] sm:$0xff]
      %v4443 = vld [vmem:[%s6 + $0x170] sm:$0xff]
      %v4444 = vld [vmem:[%s6 + $0x178] sm:$0xff]
      %v4445 = vld [vmem:[%s6 + $0x180] sm:$0xff]
      %v4446 = vld [vmem:[%s6 + $0x188] sm:$0xff]
      %v4447 = vld [vmem:[%s6 + $0x190] sm:$0xff]
      %v4448 = vld [vmem:[%s6 + $0x198] sm:$0xff]
      %v4449 = vld [vmem:[%s6 + $0x1a0] sm:$0xff]
      %v4450 = vld [vmem:[%s6 + $0x1a8] sm:$0xff]
      %4452 = vset.pattern.permute.xlu0 0
      %4453 = vperm.xlu0 %4452, %v4397
      %v4454 = vpop.permute.xlu0 %4453
      %4457 = vset.pattern.permute.xlu0 0
      %4458 = vperm.xlu0 %4457, %v4398
      %v4459 = vpop.permute.xlu0 %4458
      %4462 = vset.pattern.permute.xlu0 0
      %4463 = vperm.xlu0 %4462, %v4399
      %v4464 = vpop.permute.xlu0 %4463
      %4467 = vset.pattern.permute.xlu0 0
      %4468 = vperm.xlu0 %4467, %v4400
      %v4469 = vpop.permute.xlu0 %4468
      %4472 = vset.pattern.permute.xlu0 0
      %4473 = vperm.xlu0 %4472, %v4401
      %v4474 = vpop.permute.xlu0 %4473
      %4477 = vset.pattern.permute.xlu0 0
      %4478 = vperm.xlu0 %4477, %v4402
      %v4479 = vpop.permute.xlu0 %4478
      %4482 = vset.pattern.permute.xlu0 0
      %4483 = vperm.xlu0 %4482, %v4403
      %v4484 = vpop.permute.xlu0 %4483
      %4487 = vset.pattern.permute.xlu0 0
      %4488 = vperm.xlu0 %4487, %v4404
      %v4489 = vpop.permute.xlu0 %4488
      %4492 = vset.pattern.permute.xlu0 0
      %4493 = vperm.xlu0 %4492, %v4405
      %v4494 = vpop.permute.xlu0 %4493
      %4497 = vset.pattern.permute.xlu0 0
      %4498 = vperm.xlu0 %4497, %v4406
      %v4499 = vpop.permute.xlu0 %4498
      %4502 = vset.pattern.permute.xlu0 0
      %4503 = vperm.xlu0 %4502, %v4407
      %v4504 = vpop.permute.xlu0 %4503
      %4507 = vset.pattern.permute.xlu0 0
      %4508 = vperm.xlu0 %4507, %v4408
      %v4509 = vpop.permute.xlu0 %4508
      %4512 = vset.pattern.permute.xlu0 0
      %4513 = vperm.xlu0 %4512, %v4409
      %v4514 = vpop.permute.xlu0 %4513
      %4517 = vset.pattern.permute.xlu0 0
      %4518 = vperm.xlu0 %4517, %v4410
      %v4519 = vpop.permute.xlu0 %4518
      %4522 = vset.pattern.permute.xlu0 0
      %4523 = vperm.xlu0 %4522, %v4411
      %v4524 = vpop.permute.xlu0 %4523
      %4527 = vset.pattern.permute.xlu0 0
      %4528 = vperm.xlu0 %4527, %v4412
      %v4529 = vpop.permute.xlu0 %4528
      %4532 = vset.pattern.permute.xlu0 0
      %4533 = vperm.xlu0 %4532, %v4413
      %v4534 = vpop.permute.xlu0 %4533
      %4537 = vset.pattern.permute.xlu0 0
      %4538 = vperm.xlu0 %4537, %v4414
      %v4539 = vpop.permute.xlu0 %4538
      %4542 = vset.pattern.permute.xlu0 0
      %4543 = vperm.xlu0 %4542, %v4415
      %v4544 = vpop.permute.xlu0 %4543
      %4547 = vset.pattern.permute.xlu0 0
      %4548 = vperm.xlu0 %4547, %v4416
      %v4549 = vpop.permute.xlu0 %4548
      %4552 = vset.pattern.permute.xlu0 0
      %4553 = vperm.xlu0 %4552, %v4417
      %v4554 = vpop.permute.xlu0 %4553
      %4557 = vset.pattern.permute.xlu0 0
      %4558 = vperm.xlu0 %4557, %v4418
      %v4559 = vpop.permute.xlu0 %4558
      %4562 = vset.pattern.permute.xlu0 0
      %4563 = vperm.xlu0 %4562, %v4419
      %v4564 = vpop.permute.xlu0 %4563
      %4567 = vset.pattern.permute.xlu0 0
      %4568 = vperm.xlu0 %4567, %v4420
      %v4569 = vpop.permute.xlu0 %4568
      %4572 = vset.pattern.permute.xlu0 0
      %4573 = vperm.xlu0 %4572, %v4421
      %v4574 = vpop.permute.xlu0 %4573
      %4577 = vset.pattern.permute.xlu0 0
      %4578 = vperm.xlu0 %4577, %v4422
      %v4579 = vpop.permute.xlu0 %4578
      %4582 = vset.pattern.permute.xlu0 0
      %4583 = vperm.xlu0 %4582, %v4423
      %v4584 = vpop.permute.xlu0 %4583
      %4587 = vset.pattern.permute.xlu0 0
      %4588 = vperm.xlu0 %4587, %v4424
      %v4589 = vpop.permute.xlu0 %4588
      %4592 = vset.pattern.permute.xlu0 0
      %4593 = vperm.xlu0 %4592, %v4425
      %v4594 = vpop.permute.xlu0 %4593
      %4597 = vset.pattern.permute.xlu0 0
      %4598 = vperm.xlu0 %4597, %v4426
      %v4599 = vpop.permute.xlu0 %4598
      %4602 = vset.pattern.permute.xlu0 0
      %4603 = vperm.xlu0 %4602, %v4427
      %v4604 = vpop.permute.xlu0 %4603
      %4607 = vset.pattern.permute.xlu0 0
      %4608 = vperm.xlu0 %4607, %v4428
      %v4609 = vpop.permute.xlu0 %4608
      %4612 = vset.pattern.permute.xlu0 0
      %4613 = vperm.xlu0 %4612, %v4429
      %v4614 = vpop.permute.xlu0 %4613
      %4617 = vset.pattern.permute.xlu0 0
      %4618 = vperm.xlu0 %4617, %v4430
      %v4619 = vpop.permute.xlu0 %4618
      %4622 = vset.pattern.permute.xlu0 0
      %4623 = vperm.xlu0 %4622, %v4431
      %v4624 = vpop.permute.xlu0 %4623
      %4627 = vset.pattern.permute.xlu0 0
      %4628 = vperm.xlu0 %4627, %v4432
      %v4629 = vpop.permute.xlu0 %4628
      %4632 = vset.pattern.permute.xlu0 0
      %4633 = vperm.xlu0 %4632, %v4433
      %v4634 = vpop.permute.xlu0 %4633
      %4637 = vset.pattern.permute.xlu0 0
      %4638 = vperm.xlu0 %4637, %v4434
      %v4639 = vpop.permute.xlu0 %4638
      %4642 = vset.pattern.permute.xlu0 0
      %4643 = vperm.xlu0 %4642, %v4435
      %v4644 = vpop.permute.xlu0 %4643
      %4647 = vset.pattern.permute.xlu0 0
      %4648 = vperm.xlu0 %4647, %v4436
      %v4649 = vpop.permute.xlu0 %4648
      %4652 = vset.pattern.permute.xlu0 0
      %4653 = vperm.xlu0 %4652, %v4437
      %v4654 = vpop.permute.xlu0 %4653
      %4657 = vset.pattern.permute.xlu0 0
      %4658 = vperm.xlu0 %4657, %v4438
      %v4659 = vpop.permute.xlu0 %4658
      %4662 = vset.pattern.permute.xlu0 0
      %4663 = vperm.xlu0 %4662, %v4439
      %v4664 = vpop.permute.xlu0 %4663
      %4667 = vset.pattern.permute.xlu0 0
      %4668 = vperm.xlu0 %4667, %v4440
      %v4669 = vpop.permute.xlu0 %4668
      %4672 = vset.pattern.permute.xlu0 0
      %4673 = vperm.xlu0 %4672, %v4441
      %v4674 = vpop.permute.xlu0 %4673
      %4677 = vset.pattern.permute.xlu0 0
      %4678 = vperm.xlu0 %4677, %v4442
      %v4679 = vpop.permute.xlu0 %4678
      %4682 = vset.pattern.permute.xlu0 0
      %4683 = vperm.xlu0 %4682, %v4443
      %v4684 = vpop.permute.xlu0 %4683
      %4687 = vset.pattern.permute.xlu0 0
      %4688 = vperm.xlu0 %4687, %v4444
      %v4689 = vpop.permute.xlu0 %4688
      %4692 = vset.pattern.permute.xlu0 0
      %4693 = vperm.xlu0 %4692, %v4445
      %v4694 = vpop.permute.xlu0 %4693
      %4697 = vset.pattern.permute.xlu0 0
      %4698 = vperm.xlu0 %4697, %v4446
      %v4699 = vpop.permute.xlu0 %4698
      %4702 = vset.pattern.permute.xlu0 0
      %4703 = vperm.xlu0 %4702, %v4447
      %v4704 = vpop.permute.xlu0 %4703
      %4707 = vset.pattern.permute.xlu0 0
      %4708 = vperm.xlu0 %4707, %v4448
      %v4709 = vpop.permute.xlu0 %4708
      %4712 = vset.pattern.permute.xlu0 0
      %4713 = vperm.xlu0 %4712, %v4449
      %v4714 = vpop.permute.xlu0 %4713
      %4717 = vset.pattern.permute.xlu0 0
      %4718 = vperm.xlu0 %4717, %v4450
      %v4719 = vpop.permute.xlu0 %4718
      %v4721 = vmul.f32 %v4343, %v4454
      %v4722 = vmul.f32 %v4344, %v4459
      %v4723 = vmul.f32 %v4345, %v4464
      %v4724 = vmul.f32 %v4346, %v4469
      %v4725 = vmul.f32 %v4347, %v4474
      %v4726 = vmul.f32 %v4348, %v4479
      %v4727 = vmul.f32 %v4349, %v4484
      %v4728 = vmul.f32 %v4350, %v4489
      %v4729 = vmul.f32 %v4351, %v4494
      %v4730 = vmul.f32 %v4352, %v4499
      %v4731 = vmul.f32 %v4353, %v4504
      %v4732 = vmul.f32 %v4354, %v4509
      %v4733 = vmul.f32 %v4355, %v4514
      %v4734 = vmul.f32 %v4356, %v4519
      %v4735 = vmul.f32 %v4357, %v4524
      %v4736 = vmul.f32 %v4358, %v4529
      %v4737 = vmul.f32 %v4359, %v4534
      %v4738 = vmul.f32 %v4360, %v4539
      %v4739 = vmul.f32 %v4361, %v4544
      %v4740 = vmul.f32 %v4362, %v4549
      %v4741 = vmul.f32 %v4363, %v4554
      %v4742 = vmul.f32 %v4364, %v4559
      %v4743 = vmul.f32 %v4365, %v4564
      %v4744 = vmul.f32 %v4366, %v4569
      %v4745 = vmul.f32 %v4367, %v4574
      %v4746 = vmul.f32 %v4368, %v4579
      %v4747 = vmul.f32 %v4369, %v4584
      %v4748 = vmul.f32 %v4370, %v4589
      %v4749 = vmul.f32 %v4371, %v4594
      %v4750 = vmul.f32 %v4372, %v4599
      %v4751 = vmul.f32 %v4373, %v4604
      %v4752 = vmul.f32 %v4374, %v4609
      %v4753 = vmul.f32 %v4375, %v4614
      %v4754 = vmul.f32 %v4376, %v4619
      %v4755 = vmul.f32 %v4377, %v4624
      %v4756 = vmul.f32 %v4378, %v4629
      %v4757 = vmul.f32 %v4379, %v4634
      %v4758 = vmul.f32 %v4380, %v4639
      %v4759 = vmul.f32 %v4381, %v4644
      %v4760 = vmul.f32 %v4382, %v4649
      %v4761 = vmul.f32 %v4383, %v4654
      %v4762 = vmul.f32 %v4384, %v4659
      %v4763 = vmul.f32 %v4385, %v4664
      %v4764 = vmul.f32 %v4386, %v4669
      %v4765 = vmul.f32 %v4387, %v4674
      %v4766 = vmul.f32 %v4388, %v4679
      %v4767 = vmul.f32 %v4389, %v4684
      %v4768 = vmul.f32 %v4390, %v4689
      %v4769 = vmul.f32 %v4391, %v4694
      %v4770 = vmul.f32 %v4392, %v4699
      %v4771 = vmul.f32 %v4393, %v4704
      %v4772 = vmul.f32 %v4394, %v4709
      %v4773 = vmul.f32 %v4395, %v4714
      %v4774 = vmul.f32 %v4396, %v4719
      %vm4775 = vcmask 60416
      %4776 = vst.msk [vmem:[#allocation2] sm:$0xf] %vm4775, 0
      %4777 = vst.msk [vmem:[#allocation2 + $0x4] sm:$0xf] %vm4775, 0
      %4778 = vst.msk [vmem:[#allocation2 + $0x8] sm:$0xf] %vm4775, 0
      %vm4779 = vcmask 57344
      %vm4780 = vsmask.f32 256
      %vm4781 = vmand %vm4779, %vm4780
      %v4782 = vld [vmem:[#allocation2 + $0xc] sm:$0x1]
      %v4783 = vsel %vm4781, 0, %v4782
      %4784 = vst [vmem:[#allocation2 + $0xc] sm:$0x1] %v4783
      %v4785 = vpack.c.bf16 %v4722, %v4721
      %v4786 = vpack.c.bf16 %v4724, %v4723
      %v4787 = vpack.c.bf16 %v4726, %v4725
      %v4788 = vpack.c.bf16 %v4728, %v4727
      %v4789 = vpack.c.bf16 %v4730, %v4729
      %v4790 = vpack.c.bf16 %v4732, %v4731
      %v4791 = vpack.c.bf16 %v4734, %v4733
      %v4792 = vpack.c.bf16 %v4736, %v4735
      %v4793 = vpack.c.bf16 %v4738, %v4737
      %v4794 = vpack.c.bf16 %v4740, %v4739
      %v4795 = vpack.c.bf16 %v4742, %v4741
      %v4796 = vpack.c.bf16 %v4744, %v4743
      %v4797 = vpack.c.bf16 %v4746, %v4745
      %v4798 = vpack.c.bf16 %v4748, %v4747
      %v4799 = vpack.c.bf16 %v4750, %v4749
      %v4800 = vpack.c.bf16 %v4752, %v4751
      %v4801 = vpack.c.bf16 %v4754, %v4753
      %v4802 = vpack.c.bf16 %v4756, %v4755
      %v4803 = vpack.c.bf16 %v4758, %v4757
      %v4804 = vpack.c.bf16 %v4760, %v4759
      %v4805 = vpack.c.bf16 %v4762, %v4761
      %v4806 = vpack.c.bf16 %v4764, %v4763
      %v4807 = vpack.c.bf16 %v4766, %v4765
      %v4808 = vpack.c.bf16 %v4768, %v4767
      %v4809 = vpack.c.bf16 %v4770, %v4769
      %v4810 = vpack.c.bf16 %v4772, %v4771
      %v4811 = vpack.c.bf16 %v4774, %v4773
      %v4839 = vunpack.c.l.b16 %v4785
      %v4840 = vunpack.c.h.b16 %v4785
      %v4841 = vunpack.c.l.b16 %v4786
      %v4842 = vunpack.c.h.b16 %v4786
      %v4843 = vunpack.c.l.b16 %v4787
      %v4844 = vunpack.c.h.b16 %v4787
      %v4845 = vunpack.c.l.b16 %v4788
      %v4846 = vunpack.c.h.b16 %v4788
      %v4847 = vunpack.c.l.b16 %v4789
      %v4848 = vunpack.c.h.b16 %v4789
      %v4849 = vunpack.c.l.b16 %v4790
      %v4850 = vunpack.c.h.b16 %v4790
      %v4851 = vunpack.c.l.b16 %v4791
      %v4852 = vunpack.c.h.b16 %v4791
      %v4853 = vunpack.c.l.b16 %v4792
      %v4854 = vunpack.c.h.b16 %v4792
      %v4855 = vunpack.c.l.b16 %v4793
      %v4856 = vunpack.c.h.b16 %v4793
      %v4857 = vunpack.c.l.b16 %v4794
      %v4858 = vunpack.c.h.b16 %v4794
      %v4859 = vunpack.c.l.b16 %v4795
      %v4860 = vunpack.c.h.b16 %v4795
      %v4861 = vunpack.c.l.b16 %v4796
      %v4862 = vunpack.c.h.b16 %v4796
      %v4863 = vunpack.c.l.b16 %v4797
      %v4864 = vunpack.c.h.b16 %v4797
      %v4865 = vunpack.c.l.b16 %v4798
      %v4866 = vunpack.c.h.b16 %v4798
      %v4867 = vunpack.c.l.b16 %v4799
      %v4868 = vunpack.c.h.b16 %v4799
      %v4869 = vunpack.c.l.b16 %v4800
      %v4870 = vunpack.c.h.b16 %v4800
      %v4871 = vunpack.c.l.b16 %v4801
      %v4872 = vunpack.c.h.b16 %v4801
      %v4873 = vunpack.c.l.b16 %v4802
      %v4874 = vunpack.c.h.b16 %v4802
      %v4875 = vunpack.c.l.b16 %v4803
      %v4876 = vunpack.c.h.b16 %v4803
      %v4877 = vunpack.c.l.b16 %v4804
      %v4878 = vunpack.c.h.b16 %v4804
      %v4879 = vunpack.c.l.b16 %v4805
      %v4880 = vunpack.c.h.b16 %v4805
      %v4881 = vunpack.c.l.b16 %v4806
      %v4882 = vunpack.c.h.b16 %v4806
      %v4883 = vunpack.c.l.b16 %v4807
      %v4884 = vunpack.c.h.b16 %v4807
      %v4885 = vunpack.c.l.b16 %v4808
      %v4886 = vunpack.c.h.b16 %v4808
      %v4887 = vunpack.c.l.b16 %v4809
      %v4888 = vunpack.c.h.b16 %v4809
      %v4889 = vunpack.c.l.b16 %v4810
      %v4890 = vunpack.c.h.b16 %v4810
      %v4891 = vunpack.c.l.b16 %v4811
      %v4892 = vunpack.c.h.b16 %v4811
      %v4893 = vpack.c.b16 %v4839, %v4839
      %v4894 = vpack.c.b16 %v4840, %v4840
      %v4895 = vpack.c.b16 %v4841, %v4841
      %v4896 = vpack.c.b16 %v4842, %v4842
      %v4897 = vpack.c.b16 %v4843, %v4843
      %v4898 = vpack.c.b16 %v4844, %v4844
      %v4899 = vpack.c.b16 %v4845, %v4845
      %v4900 = vpack.c.b16 %v4846, %v4846
      %v4901 = vpack.c.b16 %v4847, %v4847
      %v4902 = vpack.c.b16 %v4848, %v4848
      %v4903 = vpack.c.b16 %v4849, %v4849
      %v4904 = vpack.c.b16 %v4850, %v4850
      %v4905 = vpack.c.b16 %v4851, %v4851
      %v4906 = vpack.c.b16 %v4852, %v4852
      %v4907 = vpack.c.b16 %v4853, %v4853
      %v4908 = vpack.c.b16 %v4854, %v4854
      %v4909 = vpack.c.b16 %v4855, %v4855
      %v4910 = vpack.c.b16 %v4856, %v4856
      %v4911 = vpack.c.b16 %v4857, %v4857
      %v4912 = vpack.c.b16 %v4858, %v4858
      %v4913 = vpack.c.b16 %v4859, %v4859
      %v4914 = vpack.c.b16 %v4860, %v4860
      %v4915 = vpack.c.b16 %v4861, %v4861
      %v4916 = vpack.c.b16 %v4862, %v4862
      %v4917 = vpack.c.b16 %v4863, %v4863
      %v4918 = vpack.c.b16 %v4864, %v4864
      %v4919 = vpack.c.b16 %v4865, %v4865
      %v4920 = vpack.c.b16 %v4866, %v4866
      %v4921 = vpack.c.b16 %v4867, %v4867
      %v4922 = vpack.c.b16 %v4868, %v4868
      %v4923 = vpack.c.b16 %v4869, %v4869
      %v4924 = vpack.c.b16 %v4870, %v4870
      %v4925 = vpack.c.b16 %v4871, %v4871
      %v4926 = vpack.c.b16 %v4872, %v4872
      %v4927 = vpack.c.b16 %v4873, %v4873
      %v4928 = vpack.c.b16 %v4874, %v4874
      %v4929 = vpack.c.b16 %v4875, %v4875
      %v4930 = vpack.c.b16 %v4876, %v4876
      %v4931 = vpack.c.b16 %v4877, %v4877
      %v4932 = vpack.c.b16 %v4878, %v4878
      %v4933 = vpack.c.b16 %v4879, %v4879
      %v4934 = vpack.c.b16 %v4880, %v4880
      %v4935 = vpack.c.b16 %v4881, %v4881
      %v4936 = vpack.c.b16 %v4882, %v4882
      %v4937 = vpack.c.b16 %v4883, %v4883
      %v4938 = vpack.c.b16 %v4884, %v4884
      %v4939 = vpack.c.b16 %v4885, %v4885
      %v4940 = vpack.c.b16 %v4886, %v4886
      %v4941 = vpack.c.b16 %v4887, %v4887
      %v4942 = vpack.c.b16 %v4888, %v4888
      %v4943 = vpack.c.b16 %v4889, %v4889
      %v4944 = vpack.c.b16 %v4890, %v4890
      %v4945 = vpack.c.b16 %v4891, %v4891
      %v4946 = vpack.c.b16 %v4892, %v4892
      %vm4947 = vsmask.f32 4368
      %vm4948 = vmor %vm4780, %vm4947
      %v4950 = vshrl.u32 %v4893, 16
      %v4952 = vrot.slane %v4950, 7
      %v4953 = vshll.u32 %v4893, 16
      %v4955 = vor.u32 %v4952, %v4953
      %v4956 = vrot.slane %v4952, 4
      %v4958 = vshrl.u32 %v4894, 16
      %v4960 = vrot.slane %v4958, 7
      %v4961 = vshll.u32 %v4894, 16
      %v4963 = vor.u32 %v4960, %v4961
      %v4964 = vsel %vm4948, %v4956, %v4963
      %v4965 = vrot.slane %v4960, 4
      %v4967 = vshrl.u32 %v4895, 16
      %v4969 = vrot.slane %v4967, 7
      %v4970 = vshll.u32 %v4895, 16
      %v4972 = vor.u32 %v4969, %v4970
      %v4973 = vsel %vm4948, %v4965, %v4972
      %v4974 = vrot.slane %v4969, 4
      %v4976 = vshrl.u32 %v4896, 16
      %v4978 = vrot.slane %v4976, 7
      %v4979 = vshll.u32 %v4896, 16
      %v4981 = vor.u32 %v4978, %v4979
      %v4982 = vsel %vm4948, %v4974, %v4981
      %v4983 = vrot.slane %v4978, 4
      %v4985 = vshrl.u32 %v4897, 16
      %v4987 = vrot.slane %v4985, 7
      %v4988 = vshll.u32 %v4897, 16
      %v4990 = vor.u32 %v4987, %v4988
      %v4991 = vsel %vm4948, %v4983, %v4990
      %v4992 = vrot.slane %v4987, 4
      %v4994 = vshrl.u32 %v4898, 16
      %v4996 = vrot.slane %v4994, 7
      %v4997 = vshll.u32 %v4898, 16
      %v4999 = vor.u32 %v4996, %v4997
      %v5000 = vsel %vm4948, %v4992, %v4999
      %v5001 = vrot.slane %v4996, 4
      %v5003 = vshrl.u32 %v4899, 16
      %v5005 = vrot.slane %v5003, 7
      %v5006 = vshll.u32 %v4899, 16
      %v5008 = vor.u32 %v5005, %v5006
      %v5009 = vsel %vm4948, %v5001, %v5008
      %v5010 = vrot.slane %v5005, 4
      %v5012 = vshrl.u32 %v4900, 16
      %v5014 = vrot.slane %v5012, 7
      %v5015 = vshll.u32 %v4900, 16
      %v5017 = vor.u32 %v5014, %v5015
      %v5018 = vsel %vm4948, %v5010, %v5017
      %v5019 = vrot.slane %v5014, 4
      %v5021 = vshrl.u32 %v4901, 16
      %v5023 = vrot.slane %v5021, 7
      %v5024 = vshll.u32 %v4901, 16
      %v5026 = vor.u32 %v5023, %v5024
      %v5027 = vsel %vm4948, %v5019, %v5026
      %v5028 = vrot.slane %v5023, 4
      %v5030 = vshrl.u32 %v4902, 16
      %v5032 = vrot.slane %v5030, 7
      %v5033 = vshll.u32 %v4902, 16
      %v5035 = vor.u32 %v5032, %v5033
      %v5036 = vsel %vm4948, %v5028, %v5035
      %v5037 = vrot.slane %v5032, 4
      %v5039 = vshrl.u32 %v4903, 16
      %v5041 = vrot.slane %v5039, 7
      %v5042 = vshll.u32 %v4903, 16
      %v5044 = vor.u32 %v5041, %v5042
      %v5045 = vsel %vm4948, %v5037, %v5044
      %v5046 = vrot.slane %v5041, 4
      %v5048 = vshrl.u32 %v4904, 16
      %v5050 = vrot.slane %v5048, 7
      %v5051 = vshll.u32 %v4904, 16
      %v5053 = vor.u32 %v5050, %v5051
      %v5054 = vsel %vm4948, %v5046, %v5053
      %v5055 = vrot.slane %v5050, 4
      %v5057 = vshrl.u32 %v4905, 16
      %v5059 = vrot.slane %v5057, 7
      %v5060 = vshll.u32 %v4905, 16
      %v5062 = vor.u32 %v5059, %v5060
      %v5063 = vsel %vm4948, %v5055, %v5062
      %v5064 = vrot.slane %v5059, 4
      %v5066 = vshrl.u32 %v4906, 16
      %v5068 = vrot.slane %v5066, 7
      %v5069 = vshll.u32 %v4906, 16
      %v5071 = vor.u32 %v5068, %v5069
      %v5072 = vsel %vm4948, %v5064, %v5071
      %v5073 = vrot.slane %v5068, 4
      %v5075 = vshrl.u32 %v4907, 16
      %v5077 = vrot.slane %v5075, 7
      %v5078 = vshll.u32 %v4907, 16
      %v5080 = vor.u32 %v5077, %v5078
      %v5081 = vsel %vm4948, %v5073, %v5080
      %v5082 = vrot.slane %v5077, 4
      %v5084 = vshrl.u32 %v4908, 16
      %v5086 = vrot.slane %v5084, 7
      %v5087 = vshll.u32 %v4908, 16
      %v5089 = vor.u32 %v5086, %v5087
      %v5090 = vsel %vm4948, %v5082, %v5089
      %v5091 = vrot.slane %v5086, 4
      %v5093 = vshrl.u32 %v4909, 16
      %v5095 = vrot.slane %v5093, 7
      %v5096 = vshll.u32 %v4909, 16
      %v5098 = vor.u32 %v5095, %v5096
      %v5099 = vsel %vm4948, %v5091, %v5098
      %v5100 = vrot.slane %v5095, 4
      %v5102 = vshrl.u32 %v4910, 16
      %v5104 = vrot.slane %v5102, 7
      %v5105 = vshll.u32 %v4910, 16
      %v5107 = vor.u32 %v5104, %v5105
      %v5108 = vsel %vm4948, %v5100, %v5107
      %v5109 = vrot.slane %v5104, 4
      %v5111 = vshrl.u32 %v4911, 16
      %v5113 = vrot.slane %v5111, 7
      %v5114 = vshll.u32 %v4911, 16
      %v5116 = vor.u32 %v5113, %v5114
      %v5117 = vsel %vm4948, %v5109, %v5116
      %v5118 = vrot.slane %v5113, 4
      %v5120 = vshrl.u32 %v4912, 16
      %v5122 = vrot.slane %v5120, 7
      %v5123 = vshll.u32 %v4912, 16
      %v5125 = vor.u32 %v5122, %v5123
      %v5126 = vsel %vm4948, %v5118, %v5125
      %v5127 = vrot.slane %v5122, 4
      %v5129 = vshrl.u32 %v4913, 16
      %v5131 = vrot.slane %v5129, 7
      %v5132 = vshll.u32 %v4913, 16
      %v5134 = vor.u32 %v5131, %v5132
      %v5135 = vsel %vm4948, %v5127, %v5134
      %v5136 = vrot.slane %v5131, 4
      %v5138 = vshrl.u32 %v4914, 16
      %v5140 = vrot.slane %v5138, 7
      %v5141 = vshll.u32 %v4914, 16
      %v5143 = vor.u32 %v5140, %v5141
      %v5144 = vsel %vm4948, %v5136, %v5143
      %v5145 = vrot.slane %v5140, 4
      %v5147 = vshrl.u32 %v4915, 16
      %v5149 = vrot.slane %v5147, 7
      %v5150 = vshll.u32 %v4915, 16
      %v5152 = vor.u32 %v5149, %v5150
      %v5153 = vsel %vm4948, %v5145, %v5152
      %v5154 = vrot.slane %v5149, 4
      %v5156 = vshrl.u32 %v4916, 16
      %v5158 = vrot.slane %v5156, 7
      %v5159 = vshll.u32 %v4916, 16
      %v5161 = vor.u32 %v5158, %v5159
      %v5162 = vsel %vm4948, %v5154, %v5161
      %v5163 = vrot.slane %v5158, 4
      %v5165 = vshrl.u32 %v4917, 16
      %v5167 = vrot.slane %v5165, 7
      %v5168 = vshll.u32 %v4917, 16
      %v5170 = vor.u32 %v5167, %v5168
      %v5171 = vsel %vm4948, %v5163, %v5170
      %v5172 = vrot.slane %v5167, 4
      %v5174 = vshrl.u32 %v4918, 16
      %v5176 = vrot.slane %v5174, 7
      %v5177 = vshll.u32 %v4918, 16
      %v5179 = vor.u32 %v5176, %v5177
      %v5180 = vsel %vm4948, %v5172, %v5179
      %v5181 = vrot.slane %v5176, 4
      %v5183 = vshrl.u32 %v4919, 16
      %v5185 = vrot.slane %v5183, 7
      %v5186 = vshll.u32 %v4919, 16
      %v5188 = vor.u32 %v5185, %v5186
      %v5189 = vsel %vm4948, %v5181, %v5188
      %v5190 = vrot.slane %v5185, 4
      %v5192 = vshrl.u32 %v4920, 16
      %v5194 = vrot.slane %v5192, 7
      %v5195 = vshll.u32 %v4920, 16
      %v5197 = vor.u32 %v5194, %v5195
      %v5198 = vsel %vm4948, %v5190, %v5197
      %v5199 = vrot.slane %v5194, 4
      %v5201 = vshrl.u32 %v4921, 16
      %v5203 = vrot.slane %v5201, 7
      %v5204 = vshll.u32 %v4921, 16
      %v5206 = vor.u32 %v5203, %v5204
      %v5207 = vsel %vm4948, %v5199, %v5206
      %v5208 = vrot.slane %v5203, 4
      %v5210 = vshrl.u32 %v4922, 16
      %v5212 = vrot.slane %v5210, 7
      %v5213 = vshll.u32 %v4922, 16
      %v5215 = vor.u32 %v5212, %v5213
      %v5216 = vsel %vm4948, %v5208, %v5215
      %v5217 = vrot.slane %v5212, 4
      %v5219 = vshrl.u32 %v4923, 16
      %v5221 = vrot.slane %v5219, 7
      %v5222 = vshll.u32 %v4923, 16
      %v5224 = vor.u32 %v5221, %v5222
      %v5225 = vsel %vm4948, %v5217, %v5224
      %v5226 = vrot.slane %v5221, 4
      %v5228 = vshrl.u32 %v4924, 16
      %v5230 = vrot.slane %v5228, 7
      %v5231 = vshll.u32 %v4924, 16
      %v5233 = vor.u32 %v5230, %v5231
      %v5234 = vsel %vm4948, %v5226, %v5233
      %v5235 = vrot.slane %v5230, 4
      %v5237 = vshrl.u32 %v4925, 16
      %v5239 = vrot.slane %v5237, 7
      %v5240 = vshll.u32 %v4925, 16
      %v5242 = vor.u32 %v5239, %v5240
      %v5243 = vsel %vm4948, %v5235, %v5242
      %v5244 = vrot.slane %v5239, 4
      %v5246 = vshrl.u32 %v4926, 16
      %v5248 = vrot.slane %v5246, 7
      %v5249 = vshll.u32 %v4926, 16
      %v5251 = vor.u32 %v5248, %v5249
      %v5252 = vsel %vm4948, %v5244, %v5251
      %v5253 = vrot.slane %v5248, 4
      %v5255 = vshrl.u32 %v4927, 16
      %v5257 = vrot.slane %v5255, 7
      %v5258 = vshll.u32 %v4927, 16
      %v5260 = vor.u32 %v5257, %v5258
      %v5261 = vsel %vm4948, %v5253, %v5260
      %v5262 = vrot.slane %v5257, 4
      %v5264 = vshrl.u32 %v4928, 16
      %v5266 = vrot.slane %v5264, 7
      %v5267 = vshll.u32 %v4928, 16
      %v5269 = vor.u32 %v5266, %v5267
      %v5270 = vsel %vm4948, %v5262, %v5269
      %v5271 = vrot.slane %v5266, 4
      %v5273 = vshrl.u32 %v4929, 16
      %v5275 = vrot.slane %v5273, 7
      %v5276 = vshll.u32 %v4929, 16
      %v5278 = vor.u32 %v5275, %v5276
      %v5279 = vsel %vm4948, %v5271, %v5278
      %v5280 = vrot.slane %v5275, 4
      %v5282 = vshrl.u32 %v4930, 16
      %v5284 = vrot.slane %v5282, 7
      %v5285 = vshll.u32 %v4930, 16
      %v5287 = vor.u32 %v5284, %v5285
      %v5288 = vsel %vm4948, %v5280, %v5287
      %v5289 = vrot.slane %v5284, 4
      %v5291 = vshrl.u32 %v4931, 16
      %v5293 = vrot.slane %v5291, 7
      %v5294 = vshll.u32 %v4931, 16
      %v5296 = vor.u32 %v5293, %v5294
      %v5297 = vsel %vm4948, %v5289, %v5296
      %v5298 = vrot.slane %v5293, 4
      %v5300 = vshrl.u32 %v4932, 16
      %v5302 = vrot.slane %v5300, 7
      %v5303 = vshll.u32 %v4932, 16
      %v5305 = vor.u32 %v5302, %v5303
      %v5306 = vsel %vm4948, %v5298, %v5305
      %v5307 = vrot.slane %v5302, 4
      %v5309 = vshrl.u32 %v4933, 16
      %v5311 = vrot.slane %v5309, 7
      %v5312 = vshll.u32 %v4933, 16
      %v5314 = vor.u32 %v5311, %v5312
      %v5315 = vsel %vm4948, %v5307, %v5314
      %v5316 = vrot.slane %v5311, 4
      %v5318 = vshrl.u32 %v4934, 16
      %v5320 = vrot.slane %v5318, 7
      %v5321 = vshll.u32 %v4934, 16
      %v5323 = vor.u32 %v5320, %v5321
      %v5324 = vsel %vm4948, %v5316, %v5323
      %v5325 = vrot.slane %v5320, 4
      %v5327 = vshrl.u32 %v4935, 16
      %v5329 = vrot.slane %v5327, 7
      %v5330 = vshll.u32 %v4935, 16
      %v5332 = vor.u32 %v5329, %v5330
      %v5333 = vsel %vm4948, %v5325, %v5332
      %v5334 = vrot.slane %v5329, 4
      %v5336 = vshrl.u32 %v4936, 16
      %v5338 = vrot.slane %v5336, 7
      %v5339 = vshll.u32 %v4936, 16
      %v5341 = vor.u32 %v5338, %v5339
      %v5342 = vsel %vm4948, %v5334, %v5341
      %v5343 = vrot.slane %v5338, 4
      %v5345 = vshrl.u32 %v4937, 16
      %v5347 = vrot.slane %v5345, 7
      %v5348 = vshll.u32 %v4937, 16
      %v5350 = vor.u32 %v5347, %v5348
      %v5351 = vsel %vm4948, %v5343, %v5350
      %v5352 = vrot.slane %v5347, 4
      %v5354 = vshrl.u32 %v4938, 16
      %v5356 = vrot.slane %v5354, 7
      %v5357 = vshll.u32 %v4938, 16
      %v5359 = vor.u32 %v5356, %v5357
      %v5360 = vsel %vm4948, %v5352, %v5359
      %v5361 = vrot.slane %v5356, 4
      %v5363 = vshrl.u32 %v4939, 16
      %v5365 = vrot.slane %v5363, 7
      %v5366 = vshll.u32 %v4939, 16
      %v5368 = vor.u32 %v5365, %v5366
      %v5369 = vsel %vm4948, %v5361, %v5368
      %v5370 = vrot.slane %v5365, 4
      %v5372 = vshrl.u32 %v4940, 16
      %v5374 = vrot.slane %v5372, 7
      %v5375 = vshll.u32 %v4940, 16
      %v5377 = vor.u32 %v5374, %v5375
      %v5378 = vsel %vm4948, %v5370, %v5377
      %v5379 = vrot.slane %v5374, 4
      %v5381 = vshrl.u32 %v4941, 16
      %v5383 = vrot.slane %v5381, 7
      %v5384 = vshll.u32 %v4941, 16
      %v5386 = vor.u32 %v5383, %v5384
      %v5387 = vsel %vm4948, %v5379, %v5386
      %v5388 = vrot.slane %v5383, 4
      %v5390 = vshrl.u32 %v4942, 16
      %v5392 = vrot.slane %v5390, 7
      %v5393 = vshll.u32 %v4942, 16
      %v5395 = vor.u32 %v5392, %v5393
      %v5396 = vsel %vm4948, %v5388, %v5395
      %v5397 = vrot.slane %v5392, 4
      %v5399 = vshrl.u32 %v4943, 16
      %v5401 = vrot.slane %v5399, 7
      %v5402 = vshll.u32 %v4943, 16
      %v5404 = vor.u32 %v5401, %v5402
      %v5405 = vsel %vm4948, %v5397, %v5404
      %v5406 = vrot.slane %v5401, 4
      %v5408 = vshrl.u32 %v4944, 16
      %v5410 = vrot.slane %v5408, 7
      %v5411 = vshll.u32 %v4944, 16
      %v5413 = vor.u32 %v5410, %v5411
      %v5414 = vsel %vm4948, %v5406, %v5413
      %v5415 = vrot.slane %v5410, 4
      %v5417 = vshrl.u32 %v4945, 16
      %v5419 = vrot.slane %v5417, 7
      %v5420 = vshll.u32 %v4945, 16
      %v5422 = vor.u32 %v5419, %v5420
      %v5423 = vsel %vm4948, %v5415, %v5422
      %v5424 = vrot.slane %v5419, 4
      %v5426 = vshrl.u32 %v4946, 16
      %v5428 = vrot.slane %v5426, 7
      %v5429 = vshll.u32 %v4946, 16
      %v5431 = vor.u32 %v5428, %v5429
      %v5432 = vsel %vm4948, %v5424, %v5431
      %v5433 = vrot.slane %v5428, 4
      %vm5489 = vcmask 60416
      %vm5490 = vsmask.f32 7938
      %vm5491 = vmand %vm5489, %vm5490
      %v5492 = vld [vmem:[#allocation2 + $0xc] sm:$0xf]
      %v5493 = vsel %vm5491, %v4955, %v5492
      %5494 = vst [vmem:[#allocation2 + $0xc] sm:$0xf] %v5493
      %5495 = vst.msk [vmem:[#allocation2 + $0x10] sm:$0xf] %vm4775, %v4964
      %5496 = vst.msk [vmem:[#allocation2 + $0x14] sm:$0xf] %vm4775, %v4973
      %5497 = vst.msk [vmem:[#allocation2 + $0x18] sm:$0xf] %vm4775, %v4982
      %5498 = vst.msk [vmem:[#allocation2 + $0x1c] sm:$0xf] %vm4775, %v4991
      %5499 = vst.msk [vmem:[#allocation2 + $0x20] sm:$0xf] %vm4775, %v5000
      %5500 = vst.msk [vmem:[#allocation2 + $0x24] sm:$0xf] %vm4775, %v5009
      %5501 = vst.msk [vmem:[#allocation2 + $0x28] sm:$0xf] %vm4775, %v5018
      %5502 = vst.msk [vmem:[#allocation2 + $0x2c] sm:$0xf] %vm4775, %v5027
      %5503 = vst.msk [vmem:[#allocation2 + $0x30] sm:$0xf] %vm4775, %v5036
      %5504 = vst.msk [vmem:[#allocation2 + $0x34] sm:$0xf] %vm4775, %v5045
      %5505 = vst.msk [vmem:[#allocation2 + $0x38] sm:$0xf] %vm4775, %v5054
      %5506 = vst.msk [vmem:[#allocation2 + $0x3c] sm:$0xf] %vm4775, %v5063
      %5507 = vst.msk [vmem:[#allocation2 + $0x40] sm:$0xf] %vm4775, %v5072
      %5508 = vst.msk [vmem:[#allocation2 + $0x44] sm:$0xf] %vm4775, %v5081
      %5509 = vst.msk [vmem:[#allocation2 + $0x48] sm:$0xf] %vm4775, %v5090
      %5510 = vst.msk [vmem:[#allocation2 + $0x4c] sm:$0xf] %vm4775, %v5099
      %5511 = vst.msk [vmem:[#allocation2 + $0x50] sm:$0xf] %vm4775, %v5108
      %5512 = vst.msk [vmem:[#allocation2 + $0x54] sm:$0xf] %vm4775, %v5117
      %5513 = vst.msk [vmem:[#allocation2 + $0x58] sm:$0xf] %vm4775, %v5126
      %5514 = vst.msk [vmem:[#allocation2 + $0x5c] sm:$0xf] %vm4775, %v5135
      %5515 = vst.msk [vmem:[#allocation2 + $0x60] sm:$0xf] %vm4775, %v5144
      %5516 = vst.msk [vmem:[#allocation2 + $0x64] sm:$0xf] %vm4775, %v5153
      %5517 = vst.msk [vmem:[#allocation2 + $0x68] sm:$0xf] %vm4775, %v5162
      %5518 = vst.msk [vmem:[#allocation2 + $0x6c] sm:$0xf] %vm4775, %v5171
      %5519 = vst.msk [vmem:[#allocation2 + $0x70] sm:$0xf] %vm4775, %v5180
      %5520 = vst.msk [vmem:[#allocation2 + $0x74] sm:$0xf] %vm4775, %v5189
      %5521 = vst.msk [vmem:[#allocation2 + $0x78] sm:$0xf] %vm4775, %v5198
      %5522 = vst.msk [vmem:[#allocation2 + $0x7c] sm:$0xf] %vm4775, %v5207
      %5523 = vst.msk [vmem:[#allocation2 + $0x80] sm:$0xf] %vm4775, %v5216
      %5524 = vst.msk [vmem:[#allocation2 + $0x84] sm:$0xf] %vm4775, %v5225
      %5525 = vst.msk [vmem:[#allocation2 + $0x88] sm:$0xf] %vm4775, %v5234
      %5526 = vst.msk [vmem:[#allocation2 + $0x8c] sm:$0xf] %vm4775, %v5243
      %5527 = vst.msk [vmem:[#allocation2 + $0x90] sm:$0xf] %vm4775, %v5252
      %5528 = vst.msk [vmem:[#allocation2 + $0x94] sm:$0xf] %vm4775, %v5261
      %5529 = vst.msk [vmem:[#allocation2 + $0x98] sm:$0xf] %vm4775, %v5270
      %5530 = vst.msk [vmem:[#allocation2 + $0x9c] sm:$0xf] %vm4775, %v5279
      %5531 = vst.msk [vmem:[#allocation2 + $0xa0] sm:$0xf] %vm4775, %v5288
      %5532 = vst.msk [vmem:[#allocation2 + $0xa4] sm:$0xf] %vm4775, %v5297
      %5533 = vst.msk [vmem:[#allocation2 + $0xa8] sm:$0xf] %vm4775, %v5306
      %5534 = vst.msk [vmem:[#allocation2 + $0xac] sm:$0xf] %vm4775, %v5315
      %5535 = vst.msk [vmem:[#allocation2 + $0xb0] sm:$0xf] %vm4775, %v5324
      %5536 = vst.msk [vmem:[#allocation2 + $0xb4] sm:$0xf] %vm4775, %v5333
      %5537 = vst.msk [vmem:[#allocation2 + $0xb8] sm:$0xf] %vm4775, %v5342
      %5538 = vst.msk [vmem:[#allocation2 + $0xbc] sm:$0xf] %vm4775, %v5351
      %5539 = vst.msk [vmem:[#allocation2 + $0xc0] sm:$0xf] %vm4775, %v5360
      %5540 = vst.msk [vmem:[#allocation2 + $0xc4] sm:$0xf] %vm4775, %v5369
      %5541 = vst.msk [vmem:[#allocation2 + $0xc8] sm:$0xf] %vm4775, %v5378
      %5542 = vst.msk [vmem:[#allocation2 + $0xcc] sm:$0xf] %vm4775, %v5387
      %5543 = vst.msk [vmem:[#allocation2 + $0xd0] sm:$0xf] %vm4775, %v5396
      %5544 = vst.msk [vmem:[#allocation2 + $0xd4] sm:$0xf] %vm4775, %v5405
      %5545 = vst.msk [vmem:[#allocation2 + $0xd8] sm:$0xf] %vm4775, %v5414
      %5546 = vst.msk [vmem:[#allocation2 + $0xdc] sm:$0xf] %vm4775, %v5423
      %5547 = vst.msk [vmem:[#allocation2 + $0xe0] sm:$0xf] %vm4775, %v5432
      %v5548 = vld [vmem:[#allocation2 + $0xe4] sm:$0x1]
      %v5549 = vsel %vm4781, %v5433, %v5548
      %5550 = vst [vmem:[#allocation2 + $0xe4] sm:$0x1] %v5549
      %v5551 = vld [vmem:[#allocation2 + $0xe4] sm:$0xf]
      %v5552 = vsel %vm5491, 0, %v5551
      %5553 = vst [vmem:[#allocation2 + $0xe4] sm:$0xf] %v5552
      %5554 = vst.msk [vmem:[#allocation2 + $0xe8] sm:$0xf] %vm4775, 0
      %5555 = vst.msk [vmem:[#allocation2 + $0xec] sm:$0xf] %vm4775, 0
      %vm5556 = vcmask 58368
      %vm5557 = vsmask.f32 1280
      %vm5558 = vmand %vm5556, %vm5557
      %v5559 = vld [vmem:[#allocation2 + $0xf0] sm:$0x3]
      %v5560 = vsel %vm5558, 0, %v5559
      %5561 = vst [vmem:[#allocation2 + $0xf0] sm:$0x3] %v5560
      %v5562 = vld [vmem:[#allocation2] sm:$0xf]
      %v5563 = vld [vmem:[#allocation2 + $0x4] sm:$0xf]
      %v5564 = vld [vmem:[#allocation2 + $0x8] sm:$0xf]
      %v5565 = vld [vmem:[#allocation2 + $0xc] sm:$0xf]
      %v5566 = vld [vmem:[#allocation2 + $0x10] sm:$0xf]
      %v5567 = vld [vmem:[#allocation2 + $0x14] sm:$0xf]
      %v5568 = vld [vmem:[#allocation2 + $0x18] sm:$0xf]
      %v5569 = vld [vmem:[#allocation2 + $0x1c] sm:$0xf]
      %v5570 = vld [vmem:[#allocation2 + $0x20] sm:$0xf]
      %v5571 = vld [vmem:[#allocation2 + $0x24] sm:$0xf]
      %v5572 = vld [vmem:[#allocation2 + $0x28] sm:$0xf]
      %v5573 = vld [vmem:[#allocation2 + $0x2c] sm:$0xf]
      %v5574 = vld [vmem:[#allocation2 + $0x30] sm:$0xf]
      %v5575 = vld [vmem:[#allocation2 + $0x34] sm:$0xf]
      %v5576 = vld [vmem:[#allocation2 + $0x38] sm:$0xf]
      %v5577 = vld [vmem:[#allocation2 + $0x3c] sm:$0xf]
      %v5578 = vld [vmem:[#allocation2 + $0x40] sm:$0xf]
      %v5579 = vld [vmem:[#allocation2 + $0x44] sm:$0xf]
      %v5580 = vld [vmem:[#allocation2 + $0x48] sm:$0xf]
      %v5581 = vld [vmem:[#allocation2 + $0x4c] sm:$0xf]
      %v5582 = vld [vmem:[#allocation2 + $0x50] sm:$0xf]
      %v5583 = vld [vmem:[#allocation2 + $0x54] sm:$0xf]
      %v5584 = vld [vmem:[#allocation2 + $0x58] sm:$0xf]
      %v5585 = vld [vmem:[#allocation2 + $0x5c] sm:$0xf]
      %v5586 = vld [vmem:[#allocation2 + $0x60] sm:$0xf]
      %v5587 = vld [vmem:[#allocation2 + $0x64] sm:$0xf]
      %v5588 = vld [vmem:[#allocation2 + $0x68] sm:$0xf]
      %v5589 = vld [vmem:[#allocation2 + $0x6c] sm:$0xf]
      %v5590 = vld [vmem:[#allocation2 + $0x70] sm:$0xf]
      %v5591 = vld [vmem:[#allocation2 + $0x74] sm:$0xf]
      %v5592 = vld [vmem:[#allocation2 + $0x78] sm:$0xf]
      %v5593 = vld [vmem:[#allocation2 + $0x7c] sm:$0xf]
      %v5594 = vld [vmem:[#allocation2 + $0x80] sm:$0xf]
      %v5595 = vld [vmem:[#allocation2 + $0x84] sm:$0xf]
      %v5596 = vld [vmem:[#allocation2 + $0x88] sm:$0xf]
      %v5597 = vld [vmem:[#allocation2 + $0x8c] sm:$0xf]
      %v5598 = vld [vmem:[#allocation2 + $0x90] sm:$0xf]
      %v5599 = vld [vmem:[#allocation2 + $0x94] sm:$0xf]
      %v5600 = vld [vmem:[#allocation2 + $0x98] sm:$0xf]
      %v5601 = vld [vmem:[#allocation2 + $0x9c] sm:$0xf]
      %v5602 = vld [vmem:[#allocation2 + $0xa0] sm:$0xf]
      %v5603 = vld [vmem:[#allocation2 + $0xa4] sm:$0xf]
      %v5604 = vld [vmem:[#allocation2 + $0xa8] sm:$0xf]
      %v5605 = vld [vmem:[#allocation2 + $0xac] sm:$0xf]
      %v5606 = vld [vmem:[#allocation2 + $0xb0] sm:$0xf]
      %v5607 = vld [vmem:[#allocation2 + $0xb4] sm:$0xf]
      %v5608 = vld [vmem:[#allocation2 + $0xb8] sm:$0xf]
      %v5609 = vld [vmem:[#allocation2 + $0xbc] sm:$0xf]
      %v5610 = vld [vmem:[#allocation2 + $0xc0] sm:$0xf]
      %v5611 = vld [vmem:[#allocation2 + $0xc4] sm:$0xf]
      %v5612 = vld [vmem:[#allocation2 + $0xc8] sm:$0xf]
      %v5613 = vld [vmem:[#allocation2 + $0xcc] sm:$0xf]
      %v5614 = vld [vmem:[#allocation2 + $0xd0] sm:$0xf]
      %v5615 = vld [vmem:[#allocation2 + $0xd4] sm:$0xf]
      %v5616 = vld [vmem:[#allocation2 + $0xd8] sm:$0x1]
      %v5617 = vld [vmem:[#allocation2 + $0xd8] sm:$0xf]
      %v5618 = vld [vmem:[#allocation2 + $0xdc] sm:$0xf]
      %v5619 = vld [vmem:[#allocation2 + $0xe0] sm:$0xf]
      %v5620 = vld [vmem:[#allocation2 + $0xe4] sm:$0x1]
      %v5621 = vld [vmem:[#allocation2 + $0xe4] sm:$0xf]
      %v5622 = vld [vmem:[#allocation2 + $0xe8] sm:$0xf]
      %v5623 = vld [vmem:[#allocation2 + $0xec] sm:$0xf]
      %v5624 = vld [vmem:[#allocation2 + $0xf0] sm:$0x1]
      %v5679 = vunpack.c.l.b16 %v5562
      %v5680 = vunpack.c.l.b16 %v5563
      %v5681 = vunpack.c.l.b16 %v5564
      %v5682 = vunpack.c.l.b16 %v5565
      %v5683 = vunpack.c.l.b16 %v5566
      %v5684 = vunpack.c.l.b16 %v5567
      %v5685 = vunpack.c.l.b16 %v5568
      %v5686 = vunpack.c.l.b16 %v5569
      %v5687 = vunpack.c.l.b16 %v5570
      %v5688 = vunpack.c.l.b16 %v5571
      %v5689 = vunpack.c.l.b16 %v5572
      %v5690 = vunpack.c.l.b16 %v5573
      %v5691 = vunpack.c.l.b16 %v5574
      %v5692 = vunpack.c.l.b16 %v5575
      %v5693 = vunpack.c.l.b16 %v5576
      %v5694 = vunpack.c.l.b16 %v5577
      %v5695 = vunpack.c.l.b16 %v5578
      %v5696 = vunpack.c.l.b16 %v5579
      %v5697 = vunpack.c.l.b16 %v5580
      %v5698 = vunpack.c.l.b16 %v5581
      %v5699 = vunpack.c.l.b16 %v5582
      %v5700 = vunpack.c.l.b16 %v5583
      %v5701 = vunpack.c.l.b16 %v5584
      %v5702 = vunpack.c.l.b16 %v5585
      %v5703 = vunpack.c.l.b16 %v5586
      %v5704 = vunpack.c.l.b16 %v5587
      %v5705 = vunpack.c.l.b16 %v5588
      %v5706 = vunpack.c.l.b16 %v5589
      %v5707 = vunpack.c.l.b16 %v5590
      %v5708 = vunpack.c.l.b16 %v5591
      %v5709 = vunpack.c.l.b16 %v5592
      %v5710 = vunpack.c.l.b16 %v5593
      %v5711 = vunpack.c.l.b16 %v5594
      %v5712 = vunpack.c.l.b16 %v5595
      %v5713 = vunpack.c.l.b16 %v5596
      %v5714 = vunpack.c.l.b16 %v5597
      %v5715 = vunpack.c.l.b16 %v5598
      %v5716 = vunpack.c.l.b16 %v5599
      %v5717 = vunpack.c.l.b16 %v5600
      %v5718 = vunpack.c.l.b16 %v5601
      %v5719 = vunpack.c.l.b16 %v5602
      %v5720 = vunpack.c.l.b16 %v5603
      %v5721 = vunpack.c.l.b16 %v5604
      %v5722 = vunpack.c.l.b16 %v5605
      %v5723 = vunpack.c.l.b16 %v5606
      %v5724 = vunpack.c.l.b16 %v5607
      %v5725 = vunpack.c.l.b16 %v5608
      %v5726 = vunpack.c.l.b16 %v5609
      %v5727 = vunpack.c.l.b16 %v5610
      %v5728 = vunpack.c.l.b16 %v5611
      %v5729 = vunpack.c.l.b16 %v5612
      %v5730 = vunpack.c.l.b16 %v5613
      %v5731 = vunpack.c.l.b16 %v5614
      %v5732 = vunpack.c.l.b16 %v5615
      %v5733 = vpack.c.b16 %v5680, %v5679
      %v5734 = vpack.c.b16 %v5682, %v5681
      %v5735 = vpack.c.b16 %v5684, %v5683
      %v5736 = vpack.c.b16 %v5686, %v5685
      %v5737 = vpack.c.b16 %v5688, %v5687
      %v5738 = vpack.c.b16 %v5690, %v5689
      %v5739 = vpack.c.b16 %v5692, %v5691
      %v5740 = vpack.c.b16 %v5694, %v5693
      %v5741 = vpack.c.b16 %v5696, %v5695
      %v5742 = vpack.c.b16 %v5698, %v5697
      %v5743 = vpack.c.b16 %v5700, %v5699
      %v5744 = vpack.c.b16 %v5702, %v5701
      %v5745 = vpack.c.b16 %v5704, %v5703
      %v5746 = vpack.c.b16 %v5706, %v5705
      %v5747 = vpack.c.b16 %v5708, %v5707
      %v5748 = vpack.c.b16 %v5710, %v5709
      %v5749 = vpack.c.b16 %v5712, %v5711
      %v5750 = vpack.c.b16 %v5714, %v5713
      %v5751 = vpack.c.b16 %v5716, %v5715
      %v5752 = vpack.c.b16 %v5718, %v5717
      %v5753 = vpack.c.b16 %v5720, %v5719
      %v5754 = vpack.c.b16 %v5722, %v5721
      %v5755 = vpack.c.b16 %v5724, %v5723
      %v5756 = vpack.c.b16 %v5726, %v5725
      %v5757 = vpack.c.b16 %v5728, %v5727
      %v5758 = vpack.c.b16 %v5730, %v5729
      %v5759 = vpack.c.b16 %v5732, %v5731
      %v5761 = vunpack.c.l.b16 %v5616
      %v5762 = vpack.c.b16 %v5761, %v5761
      %v5764 = vshrl.u32 %v5733, 16
      %v5766 = vshll.u32 %v5733, 16
      %v5768 = vrot.slane %v5766, 1
      %v5769 = vor.u32 %v5764, %v5768
      %v5771 = vshll.u32 %v5734, 16
      %v5773 = vrot.slane %v5771, 1
      %v5774 = vsel %vm564, %v5769, %v5773
      %v5775 = vshrl.u32 %v5734, 16
      %v5777 = vor.u32 %v5775, %v5773
      %v5779 = vshll.u32 %v5735, 16
      %v5781 = vrot.slane %v5779, 1
      %v5782 = vsel %vm564, %v5777, %v5781
      %v5783 = vshrl.u32 %v5735, 16
      %v5785 = vor.u32 %v5783, %v5781
      %v5787 = vshll.u32 %v5736, 16
      %v5789 = vrot.slane %v5787, 1
      %v5790 = vsel %vm564, %v5785, %v5789
      %v5791 = vshrl.u32 %v5736, 16
      %v5793 = vor.u32 %v5791, %v5789
      %v5795 = vshll.u32 %v5737, 16
      %v5797 = vrot.slane %v5795, 1
      %v5798 = vsel %vm564, %v5793, %v5797
      %v5799 = vshrl.u32 %v5737, 16
      %v5801 = vor.u32 %v5799, %v5797
      %v5803 = vshll.u32 %v5738, 16
      %v5805 = vrot.slane %v5803, 1
      %v5806 = vsel %vm564, %v5801, %v5805
      %v5807 = vshrl.u32 %v5738, 16
      %v5809 = vor.u32 %v5807, %v5805
      %v5811 = vshll.u32 %v5739, 16
      %v5813 = vrot.slane %v5811, 1
      %v5814 = vsel %vm564, %v5809, %v5813
      %v5815 = vshrl.u32 %v5739, 16
      %v5817 = vor.u32 %v5815, %v5813
      %v5819 = vshll.u32 %v5740, 16
      %v5821 = vrot.slane %v5819, 1
      %v5822 = vsel %vm564, %v5817, %v5821
      %v5823 = vshrl.u32 %v5740, 16
      %v5825 = vor.u32 %v5823, %v5821
      %v5827 = vshll.u32 %v5741, 16
      %v5829 = vrot.slane %v5827, 1
      %v5830 = vsel %vm564, %v5825, %v5829
      %v5831 = vshrl.u32 %v5741, 16
      %v5833 = vor.u32 %v5831, %v5829
      %v5835 = vshll.u32 %v5742, 16
      %v5837 = vrot.slane %v5835, 1
      %v5838 = vsel %vm564, %v5833, %v5837
      %v5839 = vshrl.u32 %v5742, 16
      %v5841 = vor.u32 %v5839, %v5837
      %v5843 = vshll.u32 %v5743, 16
      %v5845 = vrot.slane %v5843, 1
      %v5846 = vsel %vm564, %v5841, %v5845
      %v5847 = vshrl.u32 %v5743, 16
      %v5849 = vor.u32 %v5847, %v5845
      %v5851 = vshll.u32 %v5744, 16
      %v5853 = vrot.slane %v5851, 1
      %v5854 = vsel %vm564, %v5849, %v5853
      %v5855 = vshrl.u32 %v5744, 16
      %v5857 = vor.u32 %v5855, %v5853
      %v5859 = vshll.u32 %v5745, 16
      %v5861 = vrot.slane %v5859, 1
      %v5862 = vsel %vm564, %v5857, %v5861
      %v5863 = vshrl.u32 %v5745, 16
      %v5865 = vor.u32 %v5863, %v5861
      %v5867 = vshll.u32 %v5746, 16
      %v5869 = vrot.slane %v5867, 1
      %v5870 = vsel %vm564, %v5865, %v5869
      %v5871 = vshrl.u32 %v5746, 16
      %v5873 = vor.u32 %v5871, %v5869
      %v5875 = vshll.u32 %v5747, 16
      %v5877 = vrot.slane %v5875, 1
      %v5878 = vsel %vm564, %v5873, %v5877
      %v5879 = vshrl.u32 %v5747, 16
      %v5881 = vor.u32 %v5879, %v5877
      %v5883 = vshll.u32 %v5748, 16
      %v5885 = vrot.slane %v5883, 1
      %v5886 = vsel %vm564, %v5881, %v5885
      %v5887 = vshrl.u32 %v5748, 16
      %v5889 = vor.u32 %v5887, %v5885
      %v5891 = vshll.u32 %v5749, 16
      %v5893 = vrot.slane %v5891, 1
      %v5894 = vsel %vm564, %v5889, %v5893
      %v5895 = vshrl.u32 %v5749, 16
      %v5897 = vor.u32 %v5895, %v5893
      %v5899 = vshll.u32 %v5750, 16
      %v5901 = vrot.slane %v5899, 1
      %v5902 = vsel %vm564, %v5897, %v5901
      %v5903 = vshrl.u32 %v5750, 16
      %v5905 = vor.u32 %v5903, %v5901
      %v5907 = vshll.u32 %v5751, 16
      %v5909 = vrot.slane %v5907, 1
      %v5910 = vsel %vm564, %v5905, %v5909
      %v5911 = vshrl.u32 %v5751, 16
      %v5913 = vor.u32 %v5911, %v5909
      %v5915 = vshll.u32 %v5752, 16
      %v5917 = vrot.slane %v5915, 1
      %v5918 = vsel %vm564, %v5913, %v5917
      %v5919 = vshrl.u32 %v5752, 16
      %v5921 = vor.u32 %v5919, %v5917
      %v5923 = vshll.u32 %v5753, 16
      %v5925 = vrot.slane %v5923, 1
      %v5926 = vsel %vm564, %v5921, %v5925
      %v5927 = vshrl.u32 %v5753, 16
      %v5929 = vor.u32 %v5927, %v5925
      %v5931 = vshll.u32 %v5754, 16
      %v5933 = vrot.slane %v5931, 1
      %v5934 = vsel %vm564, %v5929, %v5933
      %v5935 = vshrl.u32 %v5754, 16
      %v5937 = vor.u32 %v5935, %v5933
      %v5939 = vshll.u32 %v5755, 16
      %v5941 = vrot.slane %v5939, 1
      %v5942 = vsel %vm564, %v5937, %v5941
      %v5943 = vshrl.u32 %v5755, 16
      %v5945 = vor.u32 %v5943, %v5941
      %v5947 = vshll.u32 %v5756, 16
      %v5949 = vrot.slane %v5947, 1
      %v5950 = vsel %vm564, %v5945, %v5949
      %v5951 = vshrl.u32 %v5756, 16
      %v5953 = vor.u32 %v5951, %v5949
      %v5955 = vshll.u32 %v5757, 16
      %v5957 = vrot.slane %v5955, 1
      %v5958 = vsel %vm564, %v5953, %v5957
      %v5959 = vshrl.u32 %v5757, 16
      %v5961 = vor.u32 %v5959, %v5957
      %v5963 = vshll.u32 %v5758, 16
      %v5965 = vrot.slane %v5963, 1
      %v5966 = vsel %vm564, %v5961, %v5965
      %v5967 = vshrl.u32 %v5758, 16
      %v5969 = vor.u32 %v5967, %v5965
      %v5971 = vshll.u32 %v5759, 16
      %v5973 = vrot.slane %v5971, 1
      %v5974 = vsel %vm564, %v5969, %v5973
      %v5975 = vshrl.u32 %v5759, 16
      %v5977 = vor.u32 %v5975, %v5973
      %v5979 = vshll.u32 %v5762, 16
      %v5981 = vrot.slane %v5979, 1
      %v5982 = vsel %vm564, %v5977, %v5981
      %5983 = vrot.lane.b32.xlu0 %v5774, 8
      %v5984 = vpop.permute.xlu0 %5983
      %5985 = vrot.lane.b32.xlu0 %v5782, 8
      %v5986 = vpop.permute.xlu0 %5985
      %5987 = vrot.lane.b32.xlu0 %v5790, 8
      %v5988 = vpop.permute.xlu0 %5987
      %5989 = vrot.lane.b32.xlu0 %v5798, 8
      %v5990 = vpop.permute.xlu0 %5989
      %5991 = vrot.lane.b32.xlu0 %v5806, 8
      %v5992 = vpop.permute.xlu0 %5991
      %5993 = vrot.lane.b32.xlu0 %v5814, 8
      %v5994 = vpop.permute.xlu0 %5993
      %5995 = vrot.lane.b32.xlu0 %v5822, 8
      %v5996 = vpop.permute.xlu0 %5995
      %5997 = vrot.lane.b32.xlu0 %v5830, 8
      %v5998 = vpop.permute.xlu0 %5997
      %5999 = vrot.lane.b32.xlu0 %v5838, 8
      %v6000 = vpop.permute.xlu0 %5999
      %6001 = vrot.lane.b32.xlu0 %v5846, 8
      %v6002 = vpop.permute.xlu0 %6001
      %6003 = vrot.lane.b32.xlu0 %v5854, 8
      %v6004 = vpop.permute.xlu0 %6003
      %6005 = vrot.lane.b32.xlu0 %v5862, 8
      %v6006 = vpop.permute.xlu0 %6005
      %6007 = vrot.lane.b32.xlu0 %v5870, 8
      %v6008 = vpop.permute.xlu0 %6007
      %6009 = vrot.lane.b32.xlu0 %v5878, 8
      %v6010 = vpop.permute.xlu0 %6009
      %6011 = vrot.lane.b32.xlu0 %v5886, 8
      %v6012 = vpop.permute.xlu0 %6011
      %6013 = vrot.lane.b32.xlu0 %v5894, 8
      %v6014 = vpop.permute.xlu0 %6013
      %6015 = vrot.lane.b32.xlu0 %v5902, 8
      %v6016 = vpop.permute.xlu0 %6015
      %6017 = vrot.lane.b32.xlu0 %v5910, 8
      %v6018 = vpop.permute.xlu0 %6017
      %6019 = vrot.lane.b32.xlu0 %v5918, 8
      %v6020 = vpop.permute.xlu0 %6019
      %6021 = vrot.lane.b32.xlu0 %v5926, 8
      %v6022 = vpop.permute.xlu0 %6021
      %6023 = vrot.lane.b32.xlu0 %v5934, 8
      %v6024 = vpop.permute.xlu0 %6023
      %6025 = vrot.lane.b32.xlu0 %v5942, 8
      %v6026 = vpop.permute.xlu0 %6025
      %6027 = vrot.lane.b32.xlu0 %v5950, 8
      %v6028 = vpop.permute.xlu0 %6027
      %6029 = vrot.lane.b32.xlu0 %v5958, 8
      %v6030 = vpop.permute.xlu0 %6029
      %6031 = vrot.lane.b32.xlu0 %v5966, 8
      %v6032 = vpop.permute.xlu0 %6031
      %6033 = vrot.lane.b32.xlu0 %v5974, 8
      %v6034 = vpop.permute.xlu0 %6033
      %6035 = vrot.lane.b32.xlu0 %v5982, 8
      %v6036 = vpop.permute.xlu0 %6035
      %v6037 = vrot.slane %v5733, 1
      %v6038 = vrot.slane %v5734, 1
      %v6039 = vsel %vm839, %v6037, %v6038
      %v6040 = vrot.slane %v5735, 1
      %v6041 = vsel %vm839, %v6038, %v6040
      %v6042 = vrot.slane %v5736, 1
      %v6043 = vsel %vm839, %v6040, %v6042
      %v6044 = vrot.slane %v5737, 1
      %v6045 = vsel %vm839, %v6042, %v6044
      %v6046 = vrot.slane %v5738, 1
      %v6047 = vsel %vm839, %v6044, %v6046
      %v6048 = vrot.slane %v5739, 1
      %v6049 = vsel %vm839, %v6046, %v6048
      %v6050 = vrot.slane %v5740, 1
      %v6051 = vsel %vm839, %v6048, %v6050
      %v6052 = vrot.slane %v5741, 1
      %v6053 = vsel %vm839, %v6050, %v6052
      %v6054 = vrot.slane %v5742, 1
      %v6055 = vsel %vm839, %v6052, %v6054
      %v6056 = vrot.slane %v5743, 1
      %v6057 = vsel %vm839, %v6054, %v6056
      %v6058 = vrot.slane %v5744, 1
      %v6059 = vsel %vm839, %v6056, %v6058
      %v6060 = vrot.slane %v5745, 1
      %v6061 = vsel %vm839, %v6058, %v6060
      %v6062 = vrot.slane %v5746, 1
      %v6063 = vsel %vm839, %v6060, %v6062
      %v6064 = vrot.slane %v5747, 1
      %v6065 = vsel %vm839, %v6062, %v6064
      %v6066 = vrot.slane %v5748, 1
      %v6067 = vsel %vm839, %v6064, %v6066
      %v6068 = vrot.slane %v5749, 1
      %v6069 = vsel %vm839, %v6066, %v6068
      %v6070 = vrot.slane %v5750, 1
      %v6071 = vsel %vm839, %v6068, %v6070
      %v6072 = vrot.slane %v5751, 1
      %v6073 = vsel %vm839, %v6070, %v6072
      %v6074 = vrot.slane %v5752, 1
      %v6075 = vsel %vm839, %v6072, %v6074
      %v6076 = vrot.slane %v5753, 1
      %v6077 = vsel %vm839, %v6074, %v6076
      %v6078 = vrot.slane %v5754, 1
      %v6079 = vsel %vm839, %v6076, %v6078
      %v6080 = vrot.slane %v5755, 1
      %v6081 = vsel %vm839, %v6078, %v6080
      %v6082 = vrot.slane %v5756, 1
      %v6083 = vsel %vm839, %v6080, %v6082
      %v6084 = vrot.slane %v5757, 1
      %v6085 = vsel %vm839, %v6082, %v6084
      %v6086 = vrot.slane %v5758, 1
      %v6087 = vsel %vm839, %v6084, %v6086
      %v6088 = vrot.slane %v5759, 1
      %v6089 = vsel %vm839, %v6086, %v6088
      %v6090 = vrot.slane %v5762, 1
      %v6091 = vsel %vm839, %v6088, %v6090
      %6092 = vrot.lane.b32.xlu0 %v6039, 16
      %v6093 = vpop.permute.xlu0 %6092
      %6094 = vrot.lane.b32.xlu0 %v6041, 16
      %v6095 = vpop.permute.xlu0 %6094
      %6096 = vrot.lane.b32.xlu0 %v6043, 16
      %v6097 = vpop.permute.xlu0 %6096
      %6098 = vrot.lane.b32.xlu0 %v6045, 16
      %v6099 = vpop.permute.xlu0 %6098
      %6100 = vrot.lane.b32.xlu0 %v6047, 16
      %v6101 = vpop.permute.xlu0 %6100
      %6102 = vrot.lane.b32.xlu0 %v6049, 16
      %v6103 = vpop.permute.xlu0 %6102
      %6104 = vrot.lane.b32.xlu0 %v6051, 16
      %v6105 = vpop.permute.xlu0 %6104
      %6106 = vrot.lane.b32.xlu0 %v6053, 16
      %v6107 = vpop.permute.xlu0 %6106
      %6108 = vrot.lane.b32.xlu0 %v6055, 16
      %v6109 = vpop.permute.xlu0 %6108
      %6110 = vrot.lane.b32.xlu0 %v6057, 16
      %v6111 = vpop.permute.xlu0 %6110
      %6112 = vrot.lane.b32.xlu0 %v6059, 16
      %v6113 = vpop.permute.xlu0 %6112
      %6114 = vrot.lane.b32.xlu0 %v6061, 16
      %v6115 = vpop.permute.xlu0 %6114
      %6116 = vrot.lane.b32.xlu0 %v6063, 16
      %v6117 = vpop.permute.xlu0 %6116
      %6118 = vrot.lane.b32.xlu0 %v6065, 16
      %v6119 = vpop.permute.xlu0 %6118
      %6120 = vrot.lane.b32.xlu0 %v6067, 16
      %v6121 = vpop.permute.xlu0 %6120
      %6122 = vrot.lane.b32.xlu0 %v6069, 16
      %v6123 = vpop.permute.xlu0 %6122
      %6124 = vrot.lane.b32.xlu0 %v6071, 16
      %v6125 = vpop.permute.xlu0 %6124
      %6126 = vrot.lane.b32.xlu0 %v6073, 16
      %v6127 = vpop.permute.xlu0 %6126
      %6128 = vrot.lane.b32.xlu0 %v6075, 16
      %v6129 = vpop.permute.xlu0 %6128
      %6130 = vrot.lane.b32.xlu0 %v6077, 16
      %v6131 = vpop.permute.xlu0 %6130
      %6132 = vrot.lane.b32.xlu0 %v6079, 16
      %v6133 = vpop.permute.xlu0 %6132
      %6134 = vrot.lane.b32.xlu0 %v6081, 16
      %v6135 = vpop.permute.xlu0 %6134
      %6136 = vrot.lane.b32.xlu0 %v6083, 16
      %v6137 = vpop.permute.xlu0 %6136
      %6138 = vrot.lane.b32.xlu0 %v6085, 16
      %v6139 = vpop.permute.xlu0 %6138
      %6140 = vrot.lane.b32.xlu0 %v6087, 16
      %v6141 = vpop.permute.xlu0 %6140
      %6142 = vrot.lane.b32.xlu0 %v6089, 16
      %v6143 = vpop.permute.xlu0 %6142
      %6144 = vrot.lane.b32.xlu0 %v6091, 16
      %v6145 = vpop.permute.xlu0 %6144
      %v6149 = vunpack.c.l.b16 %v5617
      %v6150 = vunpack.c.l.b16 %v5618
      %v6151 = vunpack.c.l.b16 %v5619
      %v6152 = vpack.c.b16 %v5683, %v5682
      %v6153 = vpack.c.b16 %v5685, %v5684
      %v6154 = vpack.c.b16 %v5687, %v5686
      %v6155 = vpack.c.b16 %v5689, %v5688
      %v6156 = vpack.c.b16 %v5691, %v5690
      %v6157 = vpack.c.b16 %v5693, %v5692
      %v6158 = vpack.c.b16 %v5695, %v5694
      %v6159 = vpack.c.b16 %v5697, %v5696
      %v6160 = vpack.c.b16 %v5699, %v5698
      %v6161 = vpack.c.b16 %v5701, %v5700
      %v6162 = vpack.c.b16 %v5703, %v5702
      %v6163 = vpack.c.b16 %v5705, %v5704
      %v6164 = vpack.c.b16 %v5707, %v5706
      %v6165 = vpack.c.b16 %v5709, %v5708
      %v6166 = vpack.c.b16 %v5711, %v5710
      %v6167 = vpack.c.b16 %v5713, %v5712
      %v6168 = vpack.c.b16 %v5715, %v5714
      %v6169 = vpack.c.b16 %v5717, %v5716
      %v6170 = vpack.c.b16 %v5719, %v5718
      %v6171 = vpack.c.b16 %v5721, %v5720
      %v6172 = vpack.c.b16 %v5723, %v5722
      %v6173 = vpack.c.b16 %v5725, %v5724
      %v6174 = vpack.c.b16 %v5727, %v5726
      %v6175 = vpack.c.b16 %v5729, %v5728
      %v6176 = vpack.c.b16 %v5731, %v5730
      %v6177 = vpack.c.b16 %v6149, %v5732
      %v6178 = vpack.c.b16 %v6151, %v6150
      %6179 = vrot.lane.b32.xlu0 %v6152, 24
      %v6180 = vpop.permute.xlu0 %6179
      %6181 = vrot.lane.b32.xlu0 %v6153, 24
      %v6182 = vpop.permute.xlu0 %6181
      %6183 = vrot.lane.b32.xlu0 %v6154, 24
      %v6184 = vpop.permute.xlu0 %6183
      %6185 = vrot.lane.b32.xlu0 %v6155, 24
      %v6186 = vpop.permute.xlu0 %6185
      %6187 = vrot.lane.b32.xlu0 %v6156, 24
      %v6188 = vpop.permute.xlu0 %6187
      %6189 = vrot.lane.b32.xlu0 %v6157, 24
      %v6190 = vpop.permute.xlu0 %6189
      %6191 = vrot.lane.b32.xlu0 %v6158, 24
      %v6192 = vpop.permute.xlu0 %6191
      %6193 = vrot.lane.b32.xlu0 %v6159, 24
      %v6194 = vpop.permute.xlu0 %6193
      %6195 = vrot.lane.b32.xlu0 %v6160, 24
      %v6196 = vpop.permute.xlu0 %6195
      %6197 = vrot.lane.b32.xlu0 %v6161, 24
      %v6198 = vpop.permute.xlu0 %6197
      %6199 = vrot.lane.b32.xlu0 %v6162, 24
      %v6200 = vpop.permute.xlu0 %6199
      %6201 = vrot.lane.b32.xlu0 %v6163, 24
      %v6202 = vpop.permute.xlu0 %6201
      %6203 = vrot.lane.b32.xlu0 %v6164, 24
      %v6204 = vpop.permute.xlu0 %6203
      %6205 = vrot.lane.b32.xlu0 %v6165, 24
      %v6206 = vpop.permute.xlu0 %6205
      %6207 = vrot.lane.b32.xlu0 %v6166, 24
      %v6208 = vpop.permute.xlu0 %6207
      %6209 = vrot.lane.b32.xlu0 %v6167, 24
      %v6210 = vpop.permute.xlu0 %6209
      %6211 = vrot.lane.b32.xlu0 %v6168, 24
      %v6212 = vpop.permute.xlu0 %6211
      %6213 = vrot.lane.b32.xlu0 %v6169, 24
      %v6214 = vpop.permute.xlu0 %6213
      %6215 = vrot.lane.b32.xlu0 %v6170, 24
      %v6216 = vpop.permute.xlu0 %6215
      %6217 = vrot.lane.b32.xlu0 %v6171, 24
      %v6218 = vpop.permute.xlu0 %6217
      %6219 = vrot.lane.b32.xlu0 %v6172, 24
      %v6220 = vpop.permute.xlu0 %6219
      %6221 = vrot.lane.b32.xlu0 %v6173, 24
      %v6222 = vpop.permute.xlu0 %6221
      %6223 = vrot.lane.b32.xlu0 %v6174, 24
      %v6224 = vpop.permute.xlu0 %6223
      %6225 = vrot.lane.b32.xlu0 %v6175, 24
      %v6226 = vpop.permute.xlu0 %6225
      %6227 = vrot.lane.b32.xlu0 %v6176, 24
      %v6228 = vpop.permute.xlu0 %6227
      %6229 = vrot.lane.b32.xlu0 %v6177, 24
      %v6230 = vpop.permute.xlu0 %6229
      %6231 = vrot.lane.b32.xlu0 %v6178, 24
      %v6232 = vpop.permute.xlu0 %6231
      %v6234 = vunpack.c.l.b16 %v5620
      %v6235 = vpack.c.b16 %v6234, %v6234
      %v6237 = vshrl.u32 %v6152, 16
      %v6239 = vshll.u32 %v6152, 16
      %v6241 = vrot.slane %v6239, 1
      %v6242 = vor.u32 %v6237, %v6241
      %v6244 = vshll.u32 %v6153, 16
      %v6246 = vrot.slane %v6244, 1
      %v6247 = vsel %vm564, %v6242, %v6246
      %v6248 = vshrl.u32 %v6153, 16
      %v6250 = vor.u32 %v6248, %v6246
      %v6252 = vshll.u32 %v6154, 16
      %v6254 = vrot.slane %v6252, 1
      %v6255 = vsel %vm564, %v6250, %v6254
      %v6256 = vshrl.u32 %v6154, 16
      %v6258 = vor.u32 %v6256, %v6254
      %v6260 = vshll.u32 %v6155, 16
      %v6262 = vrot.slane %v6260, 1
      %v6263 = vsel %vm564, %v6258, %v6262
      %v6264 = vshrl.u32 %v6155, 16
      %v6266 = vor.u32 %v6264, %v6262
      %v6268 = vshll.u32 %v6156, 16
      %v6270 = vrot.slane %v6268, 1
      %v6271 = vsel %vm564, %v6266, %v6270
      %v6272 = vshrl.u32 %v6156, 16
      %v6274 = vor.u32 %v6272, %v6270
      %v6276 = vshll.u32 %v6157, 16
      %v6278 = vrot.slane %v6276, 1
      %v6279 = vsel %vm564, %v6274, %v6278
      %v6280 = vshrl.u32 %v6157, 16
      %v6282 = vor.u32 %v6280, %v6278
      %v6284 = vshll.u32 %v6158, 16
      %v6286 = vrot.slane %v6284, 1
      %v6287 = vsel %vm564, %v6282, %v6286
      %v6288 = vshrl.u32 %v6158, 16
      %v6290 = vor.u32 %v6288, %v6286
      %v6292 = vshll.u32 %v6159, 16
      %v6294 = vrot.slane %v6292, 1
      %v6295 = vsel %vm564, %v6290, %v6294
      %v6296 = vshrl.u32 %v6159, 16
      %v6298 = vor.u32 %v6296, %v6294
      %v6300 = vshll.u32 %v6160, 16
      %v6302 = vrot.slane %v6300, 1
      %v6303 = vsel %vm564, %v6298, %v6302
      %v6304 = vshrl.u32 %v6160, 16
      %v6306 = vor.u32 %v6304, %v6302
      %v6308 = vshll.u32 %v6161, 16
      %v6310 = vrot.slane %v6308, 1
      %v6311 = vsel %vm564, %v6306, %v6310
      %v6312 = vshrl.u32 %v6161, 16
      %v6314 = vor.u32 %v6312, %v6310
      %v6316 = vshll.u32 %v6162, 16
      %v6318 = vrot.slane %v6316, 1
      %v6319 = vsel %vm564, %v6314, %v6318
      %v6320 = vshrl.u32 %v6162, 16
      %v6322 = vor.u32 %v6320, %v6318
      %v6324 = vshll.u32 %v6163, 16
      %v6326 = vrot.slane %v6324, 1
      %v6327 = vsel %vm564, %v6322, %v6326
      %v6328 = vshrl.u32 %v6163, 16
      %v6330 = vor.u32 %v6328, %v6326
      %v6332 = vshll.u32 %v6164, 16
      %v6334 = vrot.slane %v6332, 1
      %v6335 = vsel %vm564, %v6330, %v6334
      %v6336 = vshrl.u32 %v6164, 16
      %v6338 = vor.u32 %v6336, %v6334
      %v6340 = vshll.u32 %v6165, 16
      %v6342 = vrot.slane %v6340, 1
      %v6343 = vsel %vm564, %v6338, %v6342
      %v6344 = vshrl.u32 %v6165, 16
      %v6346 = vor.u32 %v6344, %v6342
      %v6348 = vshll.u32 %v6166, 16
      %v6350 = vrot.slane %v6348, 1
      %v6351 = vsel %vm564, %v6346, %v6350
      %v6352 = vshrl.u32 %v6166, 16
      %v6354 = vor.u32 %v6352, %v6350
      %v6356 = vshll.u32 %v6167, 16
      %v6358 = vrot.slane %v6356, 1
      %v6359 = vsel %vm564, %v6354, %v6358
      %v6360 = vshrl.u32 %v6167, 16
      %v6362 = vor.u32 %v6360, %v6358
      %v6364 = vshll.u32 %v6168, 16
      %v6366 = vrot.slane %v6364, 1
      %v6367 = vsel %vm564, %v6362, %v6366
      %v6368 = vshrl.u32 %v6168, 16
      %v6370 = vor.u32 %v6368, %v6366
      %v6372 = vshll.u32 %v6169, 16
      %v6374 = vrot.slane %v6372, 1
      %v6375 = vsel %vm564, %v6370, %v6374
      %v6376 = vshrl.u32 %v6169, 16
      %v6378 = vor.u32 %v6376, %v6374
      %v6380 = vshll.u32 %v6170, 16
      %v6382 = vrot.slane %v6380, 1
      %v6383 = vsel %vm564, %v6378, %v6382
      %v6384 = vshrl.u32 %v6170, 16
      %v6386 = vor.u32 %v6384, %v6382
      %v6388 = vshll.u32 %v6171, 16
      %v6390 = vrot.slane %v6388, 1
      %v6391 = vsel %vm564, %v6386, %v6390
      %v6392 = vshrl.u32 %v6171, 16
      %v6394 = vor.u32 %v6392, %v6390
      %v6396 = vshll.u32 %v6172, 16
      %v6398 = vrot.slane %v6396, 1
      %v6399 = vsel %vm564, %v6394, %v6398
      %v6400 = vshrl.u32 %v6172, 16
      %v6402 = vor.u32 %v6400, %v6398
      %v6404 = vshll.u32 %v6173, 16
      %v6406 = vrot.slane %v6404, 1
      %v6407 = vsel %vm564, %v6402, %v6406
      %v6408 = vshrl.u32 %v6173, 16
      %v6410 = vor.u32 %v6408, %v6406
      %v6412 = vshll.u32 %v6174, 16
      %v6414 = vrot.slane %v6412, 1
      %v6415 = vsel %vm564, %v6410, %v6414
      %v6416 = vshrl.u32 %v6174, 16
      %v6418 = vor.u32 %v6416, %v6414
      %v6420 = vshll.u32 %v6175, 16
      %v6422 = vrot.slane %v6420, 1
      %v6423 = vsel %vm564, %v6418, %v6422
      %v6424 = vshrl.u32 %v6175, 16
      %v6426 = vor.u32 %v6424, %v6422
      %v6428 = vshll.u32 %v6176, 16
      %v6430 = vrot.slane %v6428, 1
      %v6431 = vsel %vm564, %v6426, %v6430
      %v6432 = vshrl.u32 %v6176, 16
      %v6434 = vor.u32 %v6432, %v6430
      %v6436 = vshll.u32 %v6177, 16
      %v6438 = vrot.slane %v6436, 1
      %v6439 = vsel %vm564, %v6434, %v6438
      %v6440 = vshrl.u32 %v6177, 16
      %v6442 = vor.u32 %v6440, %v6438
      %v6444 = vshll.u32 %v6178, 16
      %v6446 = vrot.slane %v6444, 1
      %v6447 = vsel %vm564, %v6442, %v6446
      %v6448 = vshrl.u32 %v6178, 16
      %v6450 = vor.u32 %v6448, %v6446
      %v6452 = vshll.u32 %v6235, 16
      %v6454 = vrot.slane %v6452, 1
      %v6455 = vsel %vm564, %v6450, %v6454
      %6456 = vrot.lane.b32.xlu0 %v6247, 32
      %v6457 = vpop.permute.xlu0 %6456
      %6458 = vrot.lane.b32.xlu0 %v6255, 32
      %v6459 = vpop.permute.xlu0 %6458
      %6460 = vrot.lane.b32.xlu0 %v6263, 32
      %v6461 = vpop.permute.xlu0 %6460
      %6462 = vrot.lane.b32.xlu0 %v6271, 32
      %v6463 = vpop.permute.xlu0 %6462
      %6464 = vrot.lane.b32.xlu0 %v6279, 32
      %v6465 = vpop.permute.xlu0 %6464
      %6466 = vrot.lane.b32.xlu0 %v6287, 32
      %v6467 = vpop.permute.xlu0 %6466
      %6468 = vrot.lane.b32.xlu0 %v6295, 32
      %v6469 = vpop.permute.xlu0 %6468
      %6470 = vrot.lane.b32.xlu0 %v6303, 32
      %v6471 = vpop.permute.xlu0 %6470
      %6472 = vrot.lane.b32.xlu0 %v6311, 32
      %v6473 = vpop.permute.xlu0 %6472
      %6474 = vrot.lane.b32.xlu0 %v6319, 32
      %v6475 = vpop.permute.xlu0 %6474
      %6476 = vrot.lane.b32.xlu0 %v6327, 32
      %v6477 = vpop.permute.xlu0 %6476
      %6478 = vrot.lane.b32.xlu0 %v6335, 32
      %v6479 = vpop.permute.xlu0 %6478
      %6480 = vrot.lane.b32.xlu0 %v6343, 32
      %v6481 = vpop.permute.xlu0 %6480
      %6482 = vrot.lane.b32.xlu0 %v6351, 32
      %v6483 = vpop.permute.xlu0 %6482
      %6484 = vrot.lane.b32.xlu0 %v6359, 32
      %v6485 = vpop.permute.xlu0 %6484
      %6486 = vrot.lane.b32.xlu0 %v6367, 32
      %v6487 = vpop.permute.xlu0 %6486
      %6488 = vrot.lane.b32.xlu0 %v6375, 32
      %v6489 = vpop.permute.xlu0 %6488
      %6490 = vrot.lane.b32.xlu0 %v6383, 32
      %v6491 = vpop.permute.xlu0 %6490
      %6492 = vrot.lane.b32.xlu0 %v6391, 32
      %v6493 = vpop.permute.xlu0 %6492
      %6494 = vrot.lane.b32.xlu0 %v6399, 32
      %v6495 = vpop.permute.xlu0 %6494
      %6496 = vrot.lane.b32.xlu0 %v6407, 32
      %v6497 = vpop.permute.xlu0 %6496
      %6498 = vrot.lane.b32.xlu0 %v6415, 32
      %v6499 = vpop.permute.xlu0 %6498
      %6500 = vrot.lane.b32.xlu0 %v6423, 32
      %v6501 = vpop.permute.xlu0 %6500
      %6502 = vrot.lane.b32.xlu0 %v6431, 32
      %v6503 = vpop.permute.xlu0 %6502
      %6504 = vrot.lane.b32.xlu0 %v6439, 32
      %v6505 = vpop.permute.xlu0 %6504
      %6506 = vrot.lane.b32.xlu0 %v6447, 32
      %v6507 = vpop.permute.xlu0 %6506
      %6508 = vrot.lane.b32.xlu0 %v6455, 32
      %v6509 = vpop.permute.xlu0 %6508
      %v6510 = vrot.slane %v6152, 1
      %v6511 = vrot.slane %v6153, 1
      %v6512 = vsel %vm839, %v6510, %v6511
      %v6513 = vrot.slane %v6154, 1
      %v6514 = vsel %vm839, %v6511, %v6513
      %v6515 = vrot.slane %v6155, 1
      %v6516 = vsel %vm839, %v6513, %v6515
      %v6517 = vrot.slane %v6156, 1
      %v6518 = vsel %vm839, %v6515, %v6517
      %v6519 = vrot.slane %v6157, 1
      %v6520 = vsel %vm839, %v6517, %v6519
      %v6521 = vrot.slane %v6158, 1
      %v6522 = vsel %vm839, %v6519, %v6521
      %v6523 = vrot.slane %v6159, 1
      %v6524 = vsel %vm839, %v6521, %v6523
      %v6525 = vrot.slane %v6160, 1
      %v6526 = vsel %vm839, %v6523, %v6525
      %v6527 = vrot.slane %v6161, 1
      %v6528 = vsel %vm839, %v6525, %v6527
      %v6529 = vrot.slane %v6162, 1
      %v6530 = vsel %vm839, %v6527, %v6529
      %v6531 = vrot.slane %v6163, 1
      %v6532 = vsel %vm839, %v6529, %v6531
      %v6533 = vrot.slane %v6164, 1
      %v6534 = vsel %vm839, %v6531, %v6533
      %v6535 = vrot.slane %v6165, 1
      %v6536 = vsel %vm839, %v6533, %v6535
      %v6537 = vrot.slane %v6166, 1
      %v6538 = vsel %vm839, %v6535, %v6537
      %v6539 = vrot.slane %v6167, 1
      %v6540 = vsel %vm839, %v6537, %v6539
      %v6541 = vrot.slane %v6168, 1
      %v6542 = vsel %vm839, %v6539, %v6541
      %v6543 = vrot.slane %v6169, 1
      %v6544 = vsel %vm839, %v6541, %v6543
      %v6545 = vrot.slane %v6170, 1
      %v6546 = vsel %vm839, %v6543, %v6545
      %v6547 = vrot.slane %v6171, 1
      %v6548 = vsel %vm839, %v6545, %v6547
      %v6549 = vrot.slane %v6172, 1
      %v6550 = vsel %vm839, %v6547, %v6549
      %v6551 = vrot.slane %v6173, 1
      %v6552 = vsel %vm839, %v6549, %v6551
      %v6553 = vrot.slane %v6174, 1
      %v6554 = vsel %vm839, %v6551, %v6553
      %v6555 = vrot.slane %v6175, 1
      %v6556 = vsel %vm839, %v6553, %v6555
      %v6557 = vrot.slane %v6176, 1
      %v6558 = vsel %vm839, %v6555, %v6557
      %v6559 = vrot.slane %v6177, 1
      %v6560 = vsel %vm839, %v6557, %v6559
      %v6561 = vrot.slane %v6178, 1
      %v6562 = vsel %vm839, %v6559, %v6561
      %v6563 = vrot.slane %v6235, 1
      %v6564 = vsel %vm839, %v6561, %v6563
      %6565 = vrot.lane.b32.xlu0 %v6512, 40
      %v6566 = vpop.permute.xlu0 %6565
      %6567 = vrot.lane.b32.xlu0 %v6514, 40
      %v6568 = vpop.permute.xlu0 %6567
      %6569 = vrot.lane.b32.xlu0 %v6516, 40
      %v6570 = vpop.permute.xlu0 %6569
      %6571 = vrot.lane.b32.xlu0 %v6518, 40
      %v6572 = vpop.permute.xlu0 %6571
      %6573 = vrot.lane.b32.xlu0 %v6520, 40
      %v6574 = vpop.permute.xlu0 %6573
      %6575 = vrot.lane.b32.xlu0 %v6522, 40
      %v6576 = vpop.permute.xlu0 %6575
      %6577 = vrot.lane.b32.xlu0 %v6524, 40
      %v6578 = vpop.permute.xlu0 %6577
      %6579 = vrot.lane.b32.xlu0 %v6526, 40
      %v6580 = vpop.permute.xlu0 %6579
      %6581 = vrot.lane.b32.xlu0 %v6528, 40
      %v6582 = vpop.permute.xlu0 %6581
      %6583 = vrot.lane.b32.xlu0 %v6530, 40
      %v6584 = vpop.permute.xlu0 %6583
      %6585 = vrot.lane.b32.xlu0 %v6532, 40
      %v6586 = vpop.permute.xlu0 %6585
      %6587 = vrot.lane.b32.xlu0 %v6534, 40
      %v6588 = vpop.permute.xlu0 %6587
      %6589 = vrot.lane.b32.xlu0 %v6536, 40
      %v6590 = vpop.permute.xlu0 %6589
      %6591 = vrot.lane.b32.xlu0 %v6538, 40
      %v6592 = vpop.permute.xlu0 %6591
      %6593 = vrot.lane.b32.xlu0 %v6540, 40
      %v6594 = vpop.permute.xlu0 %6593
      %6595 = vrot.lane.b32.xlu0 %v6542, 40
      %v6596 = vpop.permute.xlu0 %6595
      %6597 = vrot.lane.b32.xlu0 %v6544, 40
      %v6598 = vpop.permute.xlu0 %6597
      %6599 = vrot.lane.b32.xlu0 %v6546, 40
      %v6600 = vpop.permute.xlu0 %6599
      %6601 = vrot.lane.b32.xlu0 %v6548, 40
      %v6602 = vpop.permute.xlu0 %6601
      %6603 = vrot.lane.b32.xlu0 %v6550, 40
      %v6604 = vpop.permute.xlu0 %6603
      %6605 = vrot.lane.b32.xlu0 %v6552, 40
      %v6606 = vpop.permute.xlu0 %6605
      %6607 = vrot.lane.b32.xlu0 %v6554, 40
      %v6608 = vpop.permute.xlu0 %6607
      %6609 = vrot.lane.b32.xlu0 %v6556, 40
      %v6610 = vpop.permute.xlu0 %6609
      %6611 = vrot.lane.b32.xlu0 %v6558, 40
      %v6612 = vpop.permute.xlu0 %6611
      %6613 = vrot.lane.b32.xlu0 %v6560, 40
      %v6614 = vpop.permute.xlu0 %6613
      %6615 = vrot.lane.b32.xlu0 %v6562, 40
      %v6616 = vpop.permute.xlu0 %6615
      %6617 = vrot.lane.b32.xlu0 %v6564, 40
      %v6618 = vpop.permute.xlu0 %6617
      %v6622 = vunpack.c.l.b16 %v5621
      %v6623 = vunpack.c.l.b16 %v5622
      %v6624 = vunpack.c.l.b16 %v5623
      %v6625 = vpack.c.b16 %v6150, %v6149
      %v6626 = vpack.c.b16 %v6622, %v6151
      %v6627 = vpack.c.b16 %v6624, %v6623
      %6628 = vrot.lane.b32.xlu0 %v5736, 48
      %v6629 = vpop.permute.xlu0 %6628
      %6630 = vrot.lane.b32.xlu0 %v5737, 48
      %v6631 = vpop.permute.xlu0 %6630
      %6632 = vrot.lane.b32.xlu0 %v5738, 48
      %v6633 = vpop.permute.xlu0 %6632
      %6634 = vrot.lane.b32.xlu0 %v5739, 48
      %v6635 = vpop.permute.xlu0 %6634
      %6636 = vrot.lane.b32.xlu0 %v5740, 48
      %v6637 = vpop.permute.xlu0 %6636
      %6638 = vrot.lane.b32.xlu0 %v5741, 48
      %v6639 = vpop.permute.xlu0 %6638
      %6640 = vrot.lane.b32.xlu0 %v5742, 48
      %v6641 = vpop.permute.xlu0 %6640
      %6642 = vrot.lane.b32.xlu0 %v5743, 48
      %v6643 = vpop.permute.xlu0 %6642
      %6644 = vrot.lane.b32.xlu0 %v5744, 48
      %v6645 = vpop.permute.xlu0 %6644
      %6646 = vrot.lane.b32.xlu0 %v5745, 48
      %v6647 = vpop.permute.xlu0 %6646
      %6648 = vrot.lane.b32.xlu0 %v5746, 48
      %v6649 = vpop.permute.xlu0 %6648
      %6650 = vrot.lane.b32.xlu0 %v5747, 48
      %v6651 = vpop.permute.xlu0 %6650
      %6652 = vrot.lane.b32.xlu0 %v5748, 48
      %v6653 = vpop.permute.xlu0 %6652
      %6654 = vrot.lane.b32.xlu0 %v5749, 48
      %v6655 = vpop.permute.xlu0 %6654
      %6656 = vrot.lane.b32.xlu0 %v5750, 48
      %v6657 = vpop.permute.xlu0 %6656
      %6658 = vrot.lane.b32.xlu0 %v5751, 48
      %v6659 = vpop.permute.xlu0 %6658
      %6660 = vrot.lane.b32.xlu0 %v5752, 48
      %v6661 = vpop.permute.xlu0 %6660
      %6662 = vrot.lane.b32.xlu0 %v5753, 48
      %v6663 = vpop.permute.xlu0 %6662
      %6664 = vrot.lane.b32.xlu0 %v5754, 48
      %v6665 = vpop.permute.xlu0 %6664
      %6666 = vrot.lane.b32.xlu0 %v5755, 48
      %v6667 = vpop.permute.xlu0 %6666
      %6668 = vrot.lane.b32.xlu0 %v5756, 48
      %v6669 = vpop.permute.xlu0 %6668
      %6670 = vrot.lane.b32.xlu0 %v5757, 48
      %v6671 = vpop.permute.xlu0 %6670
      %6672 = vrot.lane.b32.xlu0 %v5758, 48
      %v6673 = vpop.permute.xlu0 %6672
      %6674 = vrot.lane.b32.xlu0 %v5759, 48
      %v6675 = vpop.permute.xlu0 %6674
      %6676 = vrot.lane.b32.xlu0 %v6625, 48
      %v6677 = vpop.permute.xlu0 %6676
      %6678 = vrot.lane.b32.xlu0 %v6626, 48
      %v6679 = vpop.permute.xlu0 %6678
      %6680 = vrot.lane.b32.xlu0 %v6627, 48
      %v6681 = vpop.permute.xlu0 %6680
      %v6683 = vunpack.c.l.b16 %v5624
      %v6684 = vpack.c.b16 %v6683, %v6683
      %v6686 = vshll.u32 %v6625, 16
      %v6688 = vrot.slane %v6686, 1
      %v6689 = vsel %vm564, %v5977, %v6688
      %v6690 = vshrl.u32 %v6625, 16
      %v6692 = vor.u32 %v6690, %v6688
      %v6694 = vshll.u32 %v6626, 16
      %v6696 = vrot.slane %v6694, 1
      %v6697 = vsel %vm564, %v6692, %v6696
      %v6698 = vshrl.u32 %v6626, 16
      %v6700 = vor.u32 %v6698, %v6696
      %v6702 = vshll.u32 %v6627, 16
      %v6704 = vrot.slane %v6702, 1
      %v6705 = vsel %vm564, %v6700, %v6704
      %v6706 = vshrl.u32 %v6627, 16
      %v6708 = vor.u32 %v6706, %v6704
      %v6710 = vshll.u32 %v6684, 16
      %v6712 = vrot.slane %v6710, 1
      %v6713 = vsel %vm564, %v6708, %v6712
      %6714 = vrot.lane.b32.xlu0 %v5798, 56
      %v6715 = vpop.permute.xlu0 %6714
      %6716 = vrot.lane.b32.xlu0 %v5806, 56
      %v6717 = vpop.permute.xlu0 %6716
      %6718 = vrot.lane.b32.xlu0 %v5814, 56
      %v6719 = vpop.permute.xlu0 %6718
      %6720 = vrot.lane.b32.xlu0 %v5822, 56
      %v6721 = vpop.permute.xlu0 %6720
      %6722 = vrot.lane.b32.xlu0 %v5830, 56
      %v6723 = vpop.permute.xlu0 %6722
      %6724 = vrot.lane.b32.xlu0 %v5838, 56
      %v6725 = vpop.permute.xlu0 %6724
      %6726 = vrot.lane.b32.xlu0 %v5846, 56
      %v6727 = vpop.permute.xlu0 %6726
      %6728 = vrot.lane.b32.xlu0 %v5854, 56
      %v6729 = vpop.permute.xlu0 %6728
      %6730 = vrot.lane.b32.xlu0 %v5862, 56
      %v6731 = vpop.permute.xlu0 %6730
      %6732 = vrot.lane.b32.xlu0 %v5870, 56
      %v6733 = vpop.permute.xlu0 %6732
      %6734 = vrot.lane.b32.xlu0 %v5878, 56
      %v6735 = vpop.permute.xlu0 %6734
      %6736 = vrot.lane.b32.xlu0 %v5886, 56
      %v6737 = vpop.permute.xlu0 %6736
      %6738 = vrot.lane.b32.xlu0 %v5894, 56
      %v6739 = vpop.permute.xlu0 %6738
      %6740 = vrot.lane.b32.xlu0 %v5902, 56
      %v6741 = vpop.permute.xlu0 %6740
      %6742 = vrot.lane.b32.xlu0 %v5910, 56
      %v6743 = vpop.permute.xlu0 %6742
      %6744 = vrot.lane.b32.xlu0 %v5918, 56
      %v6745 = vpop.permute.xlu0 %6744
      %6746 = vrot.lane.b32.xlu0 %v5926, 56
      %v6747 = vpop.permute.xlu0 %6746
      %6748 = vrot.lane.b32.xlu0 %v5934, 56
      %v6749 = vpop.permute.xlu0 %6748
      %6750 = vrot.lane.b32.xlu0 %v5942, 56
      %v6751 = vpop.permute.xlu0 %6750
      %6752 = vrot.lane.b32.xlu0 %v5950, 56
      %v6753 = vpop.permute.xlu0 %6752
      %6754 = vrot.lane.b32.xlu0 %v5958, 56
      %v6755 = vpop.permute.xlu0 %6754
      %6756 = vrot.lane.b32.xlu0 %v5966, 56
      %v6757 = vpop.permute.xlu0 %6756
      %6758 = vrot.lane.b32.xlu0 %v5974, 56
      %v6759 = vpop.permute.xlu0 %6758
      %6760 = vrot.lane.b32.xlu0 %v6689, 56
      %v6761 = vpop.permute.xlu0 %6760
      %6762 = vrot.lane.b32.xlu0 %v6697, 56
      %v6763 = vpop.permute.xlu0 %6762
      %6764 = vrot.lane.b32.xlu0 %v6705, 56
      %v6765 = vpop.permute.xlu0 %6764
      %6766 = vrot.lane.b32.xlu0 %v6713, 56
      %v6767 = vpop.permute.xlu0 %6766
      %v6768 = vrot.slane %v6625, 1
      %v6769 = vsel %vm839, %v6088, %v6768
      %v6770 = vrot.slane %v6626, 1
      %v6771 = vsel %vm839, %v6768, %v6770
      %v6772 = vrot.slane %v6627, 1
      %v6773 = vsel %vm839, %v6770, %v6772
      %v6774 = vrot.slane %v6684, 1
      %v6775 = vsel %vm839, %v6772, %v6774
      %6776 = vrot.lane.b32.xlu0 %v6045, 64
      %v6777 = vpop.permute.xlu0 %6776
      %6778 = vrot.lane.b32.xlu0 %v6047, 64
      %v6779 = vpop.permute.xlu0 %6778
      %6780 = vrot.lane.b32.xlu0 %v6049, 64
      %v6781 = vpop.permute.xlu0 %6780
      %6782 = vrot.lane.b32.xlu0 %v6051, 64
      %v6783 = vpop.permute.xlu0 %6782
      %6784 = vrot.lane.b32.xlu0 %v6053, 64
      %v6785 = vpop.permute.xlu0 %6784
      %6786 = vrot.lane.b32.xlu0 %v6055, 64
      %v6787 = vpop.permute.xlu0 %6786
      %6788 = vrot.lane.b32.xlu0 %v6057, 64
      %v6789 = vpop.permute.xlu0 %6788
      %6790 = vrot.lane.b32.xlu0 %v6059, 64
      %v6791 = vpop.permute.xlu0 %6790
      %6792 = vrot.lane.b32.xlu0 %v6061, 64
      %v6793 = vpop.permute.xlu0 %6792
      %6794 = vrot.lane.b32.xlu0 %v6063, 64
      %v6795 = vpop.permute.xlu0 %6794
      %6796 = vrot.lane.b32.xlu0 %v6065, 64
      %v6797 = vpop.permute.xlu0 %6796
      %6798 = vrot.lane.b32.xlu0 %v6067, 64
      %v6799 = vpop.permute.xlu0 %6798
      %6800 = vrot.lane.b32.xlu0 %v6069, 64
      %v6801 = vpop.permute.xlu0 %6800
      %6802 = vrot.lane.b32.xlu0 %v6071, 64
      %v6803 = vpop.permute.xlu0 %6802
      %6804 = vrot.lane.b32.xlu0 %v6073, 64
      %v6805 = vpop.permute.xlu0 %6804
      %6806 = vrot.lane.b32.xlu0 %v6075, 64
      %v6807 = vpop.permute.xlu0 %6806
      %6808 = vrot.lane.b32.xlu0 %v6077, 64
      %v6809 = vpop.permute.xlu0 %6808
      %6810 = vrot.lane.b32.xlu0 %v6079, 64
      %v6811 = vpop.permute.xlu0 %6810
      %6812 = vrot.lane.b32.xlu0 %v6081, 64
      %v6813 = vpop.permute.xlu0 %6812
      %6814 = vrot.lane.b32.xlu0 %v6083, 64
      %v6815 = vpop.permute.xlu0 %6814
      %6816 = vrot.lane.b32.xlu0 %v6085, 64
      %v6817 = vpop.permute.xlu0 %6816
      %6818 = vrot.lane.b32.xlu0 %v6087, 64
      %v6819 = vpop.permute.xlu0 %6818
      %6820 = vrot.lane.b32.xlu0 %v6089, 64
      %v6821 = vpop.permute.xlu0 %6820
      %6822 = vrot.lane.b32.xlu0 %v6769, 64
      %v6823 = vpop.permute.xlu0 %6822
      %6824 = vrot.lane.b32.xlu0 %v6771, 64
      %v6825 = vpop.permute.xlu0 %6824
      %6826 = vrot.lane.b32.xlu0 %v6773, 64
      %v6827 = vpop.permute.xlu0 %6826
      %6828 = vrot.lane.b32.xlu0 %v6775, 64
      %v6829 = vpop.permute.xlu0 %6828
      %v6831 = vsel %vm2744, %v5733, %v5984
      %v6833 = vsel %vm2744, %v5734, %v5986
      %v6835 = vsel %vm2744, %v5735, %v5988
      %v6837 = vsel %vm2744, %v5736, %v5990
      %v6839 = vsel %vm2744, %v5737, %v5992
      %v6841 = vsel %vm2744, %v5738, %v5994
      %v6843 = vsel %vm2744, %v5739, %v5996
      %v6845 = vsel %vm2744, %v5740, %v5998
      %v6847 = vsel %vm2744, %v5741, %v6000
      %v6849 = vsel %vm2744, %v5742, %v6002
      %v6851 = vsel %vm2744, %v5743, %v6004
      %v6853 = vsel %vm2744, %v5744, %v6006
      %v6855 = vsel %vm2744, %v5745, %v6008
      %v6857 = vsel %vm2744, %v5746, %v6010
      %v6859 = vsel %vm2744, %v5747, %v6012
      %v6861 = vsel %vm2744, %v5748, %v6014
      %v6863 = vsel %vm2744, %v5749, %v6016
      %v6865 = vsel %vm2744, %v5750, %v6018
      %v6867 = vsel %vm2744, %v5751, %v6020
      %v6869 = vsel %vm2744, %v5752, %v6022
      %v6871 = vsel %vm2744, %v5753, %v6024
      %v6873 = vsel %vm2744, %v5754, %v6026
      %v6875 = vsel %vm2744, %v5755, %v6028
      %v6877 = vsel %vm2744, %v5756, %v6030
      %v6879 = vsel %vm2744, %v5757, %v6032
      %v6881 = vsel %vm2744, %v5758, %v6034
      %v6883 = vsel %vm2744, %v5759, %v6036
      %v6885 = vsel %vm2799, %v6831, %v6093
      %v6887 = vsel %vm2799, %v6833, %v6095
      %v6889 = vsel %vm2799, %v6835, %v6097
      %v6891 = vsel %vm2799, %v6837, %v6099
      %v6893 = vsel %vm2799, %v6839, %v6101
      %v6895 = vsel %vm2799, %v6841, %v6103
      %v6897 = vsel %vm2799, %v6843, %v6105
      %v6899 = vsel %vm2799, %v6845, %v6107
      %v6901 = vsel %vm2799, %v6847, %v6109
      %v6903 = vsel %vm2799, %v6849, %v6111
      %v6905 = vsel %vm2799, %v6851, %v6113
      %v6907 = vsel %vm2799, %v6853, %v6115
      %v6909 = vsel %vm2799, %v6855, %v6117
      %v6911 = vsel %vm2799, %v6857, %v6119
      %v6913 = vsel %vm2799, %v6859, %v6121
      %v6915 = vsel %vm2799, %v6861, %v6123
      %v6917 = vsel %vm2799, %v6863, %v6125
      %v6919 = vsel %vm2799, %v6865, %v6127
      %v6921 = vsel %vm2799, %v6867, %v6129
      %v6923 = vsel %vm2799, %v6869, %v6131
      %v6925 = vsel %vm2799, %v6871, %v6133
      %v6927 = vsel %vm2799, %v6873, %v6135
      %v6929 = vsel %vm2799, %v6875, %v6137
      %v6931 = vsel %vm2799, %v6877, %v6139
      %v6933 = vsel %vm2799, %v6879, %v6141
      %v6935 = vsel %vm2799, %v6881, %v6143
      %v6937 = vsel %vm2799, %v6883, %v6145
      %v6939 = vsel %vm2854, %v6885, %v6180
      %v6941 = vsel %vm2854, %v6887, %v6182
      %v6943 = vsel %vm2854, %v6889, %v6184
      %v6945 = vsel %vm2854, %v6891, %v6186
      %v6947 = vsel %vm2854, %v6893, %v6188
      %v6949 = vsel %vm2854, %v6895, %v6190
      %v6951 = vsel %vm2854, %v6897, %v6192
      %v6953 = vsel %vm2854, %v6899, %v6194
      %v6955 = vsel %vm2854, %v6901, %v6196
      %v6957 = vsel %vm2854, %v6903, %v6198
      %v6959 = vsel %vm2854, %v6905, %v6200
      %v6961 = vsel %vm2854, %v6907, %v6202
      %v6963 = vsel %vm2854, %v6909, %v6204
      %v6965 = vsel %vm2854, %v6911, %v6206
      %v6967 = vsel %vm2854, %v6913, %v6208
      %v6969 = vsel %vm2854, %v6915, %v6210
      %v6971 = vsel %vm2854, %v6917, %v6212
      %v6973 = vsel %vm2854, %v6919, %v6214
      %v6975 = vsel %vm2854, %v6921, %v6216
      %v6977 = vsel %vm2854, %v6923, %v6218
      %v6979 = vsel %vm2854, %v6925, %v6220
      %v6981 = vsel %vm2854, %v6927, %v6222
      %v6983 = vsel %vm2854, %v6929, %v6224
      %v6985 = vsel %vm2854, %v6931, %v6226
      %v6987 = vsel %vm2854, %v6933, %v6228
      %v6989 = vsel %vm2854, %v6935, %v6230
      %v6991 = vsel %vm2854, %v6937, %v6232
      %v6993 = vsel %vm2909, %v6939, %v6457
      %v6995 = vsel %vm2909, %v6941, %v6459
      %v6997 = vsel %vm2909, %v6943, %v6461
      %v6999 = vsel %vm2909, %v6945, %v6463
      %v7001 = vsel %vm2909, %v6947, %v6465
      %v7003 = vsel %vm2909, %v6949, %v6467
      %v7005 = vsel %vm2909, %v6951, %v6469
      %v7007 = vsel %vm2909, %v6953, %v6471
      %v7009 = vsel %vm2909, %v6955, %v6473
      %v7011 = vsel %vm2909, %v6957, %v6475
      %v7013 = vsel %vm2909, %v6959, %v6477
      %v7015 = vsel %vm2909, %v6961, %v6479
      %v7017 = vsel %vm2909, %v6963, %v6481
      %v7019 = vsel %vm2909, %v6965, %v6483
      %v7021 = vsel %vm2909, %v6967, %v6485
      %v7023 = vsel %vm2909, %v6969, %v6487
      %v7025 = vsel %vm2909, %v6971, %v6489
      %v7027 = vsel %vm2909, %v6973, %v6491
      %v7029 = vsel %vm2909, %v6975, %v6493
      %v7031 = vsel %vm2909, %v6977, %v6495
      %v7033 = vsel %vm2909, %v6979, %v6497
      %v7035 = vsel %vm2909, %v6981, %v6499
      %v7037 = vsel %vm2909, %v6983, %v6501
      %v7039 = vsel %vm2909, %v6985, %v6503
      %v7041 = vsel %vm2909, %v6987, %v6505
      %v7043 = vsel %vm2909, %v6989, %v6507
      %v7045 = vsel %vm2909, %v6991, %v6509
      %v7047 = vsel %vm2964, %v6993, %v6566
      %v7049 = vsel %vm2964, %v6995, %v6568
      %v7051 = vsel %vm2964, %v6997, %v6570
      %v7053 = vsel %vm2964, %v6999, %v6572
      %v7055 = vsel %vm2964, %v7001, %v6574
      %v7057 = vsel %vm2964, %v7003, %v6576
      %v7059 = vsel %vm2964, %v7005, %v6578
      %v7061 = vsel %vm2964, %v7007, %v6580
      %v7063 = vsel %vm2964, %v7009, %v6582
      %v7065 = vsel %vm2964, %v7011, %v6584
      %v7067 = vsel %vm2964, %v7013, %v6586
      %v7069 = vsel %vm2964, %v7015, %v6588
      %v7071 = vsel %vm2964, %v7017, %v6590
      %v7073 = vsel %vm2964, %v7019, %v6592
      %v7075 = vsel %vm2964, %v7021, %v6594
      %v7077 = vsel %vm2964, %v7023, %v6596
      %v7079 = vsel %vm2964, %v7025, %v6598
      %v7081 = vsel %vm2964, %v7027, %v6600
      %v7083 = vsel %vm2964, %v7029, %v6602
      %v7085 = vsel %vm2964, %v7031, %v6604
      %v7087 = vsel %vm2964, %v7033, %v6606
      %v7089 = vsel %vm2964, %v7035, %v6608
      %v7091 = vsel %vm2964, %v7037, %v6610
      %v7093 = vsel %vm2964, %v7039, %v6612
      %v7095 = vsel %vm2964, %v7041, %v6614
      %v7097 = vsel %vm2964, %v7043, %v6616
      %v7099 = vsel %vm2964, %v7045, %v6618
      %v7101 = vsel %vm3019, %v7047, %v6629
      %v7103 = vsel %vm3019, %v7049, %v6631
      %v7105 = vsel %vm3019, %v7051, %v6633
      %v7107 = vsel %vm3019, %v7053, %v6635
      %v7109 = vsel %vm3019, %v7055, %v6637
      %v7111 = vsel %vm3019, %v7057, %v6639
      %v7113 = vsel %vm3019, %v7059, %v6641
      %v7115 = vsel %vm3019, %v7061, %v6643
      %v7117 = vsel %vm3019, %v7063, %v6645
      %v7119 = vsel %vm3019, %v7065, %v6647
      %v7121 = vsel %vm3019, %v7067, %v6649
      %v7123 = vsel %vm3019, %v7069, %v6651
      %v7125 = vsel %vm3019, %v7071, %v6653
      %v7127 = vsel %vm3019, %v7073, %v6655
      %v7129 = vsel %vm3019, %v7075, %v6657
      %v7131 = vsel %vm3019, %v7077, %v6659
      %v7133 = vsel %vm3019, %v7079, %v6661
      %v7135 = vsel %vm3019, %v7081, %v6663
      %v7137 = vsel %vm3019, %v7083, %v6665
      %v7139 = vsel %vm3019, %v7085, %v6667
      %v7141 = vsel %vm3019, %v7087, %v6669
      %v7143 = vsel %vm3019, %v7089, %v6671
      %v7145 = vsel %vm3019, %v7091, %v6673
      %v7147 = vsel %vm3019, %v7093, %v6675
      %v7149 = vsel %vm3019, %v7095, %v6677
      %v7151 = vsel %vm3019, %v7097, %v6679
      %v7153 = vsel %vm3019, %v7099, %v6681
      %v7155 = vsel %vm3074, %v7101, %v6715
      %v7157 = vsel %vm3074, %v7103, %v6717
      %v7159 = vsel %vm3074, %v7105, %v6719
      %v7161 = vsel %vm3074, %v7107, %v6721
      %v7163 = vsel %vm3074, %v7109, %v6723
      %v7165 = vsel %vm3074, %v7111, %v6725
      %v7167 = vsel %vm3074, %v7113, %v6727
      %v7169 = vsel %vm3074, %v7115, %v6729
      %v7171 = vsel %vm3074, %v7117, %v6731
      %v7173 = vsel %vm3074, %v7119, %v6733
      %v7175 = vsel %vm3074, %v7121, %v6735
      %v7177 = vsel %vm3074, %v7123, %v6737
      %v7179 = vsel %vm3074, %v7125, %v6739
      %v7181 = vsel %vm3074, %v7127, %v6741
      %v7183 = vsel %vm3074, %v7129, %v6743
      %v7185 = vsel %vm3074, %v7131, %v6745
      %v7187 = vsel %vm3074, %v7133, %v6747
      %v7189 = vsel %vm3074, %v7135, %v6749
      %v7191 = vsel %vm3074, %v7137, %v6751
      %v7193 = vsel %vm3074, %v7139, %v6753
      %v7195 = vsel %vm3074, %v7141, %v6755
      %v7197 = vsel %vm3074, %v7143, %v6757
      %v7199 = vsel %vm3074, %v7145, %v6759
      %v7201 = vsel %vm3074, %v7147, %v6761
      %v7203 = vsel %vm3074, %v7149, %v6763
      %v7205 = vsel %vm3074, %v7151, %v6765
      %v7207 = vsel %vm3074, %v7153, %v6767
      %v7209 = vsel %vm3129, %v7155, %v6777
      %v7211 = vsel %vm3129, %v7157, %v6779
      %v7213 = vsel %vm3129, %v7159, %v6781
      %v7215 = vsel %vm3129, %v7161, %v6783
      %v7217 = vsel %vm3129, %v7163, %v6785
      %v7219 = vsel %vm3129, %v7165, %v6787
      %v7221 = vsel %vm3129, %v7167, %v6789
      %v7223 = vsel %vm3129, %v7169, %v6791
      %v7225 = vsel %vm3129, %v7171, %v6793
      %v7227 = vsel %vm3129, %v7173, %v6795
      %v7229 = vsel %vm3129, %v7175, %v6797
      %v7231 = vsel %vm3129, %v7177, %v6799
      %v7233 = vsel %vm3129, %v7179, %v6801
      %v7235 = vsel %vm3129, %v7181, %v6803
      %v7237 = vsel %vm3129, %v7183, %v6805
      %v7239 = vsel %vm3129, %v7185, %v6807
      %v7241 = vsel %vm3129, %v7187, %v6809
      %v7243 = vsel %vm3129, %v7189, %v6811
      %v7245 = vsel %vm3129, %v7191, %v6813
      %v7247 = vsel %vm3129, %v7193, %v6815
      %v7249 = vsel %vm3129, %v7195, %v6817
      %v7251 = vsel %vm3129, %v7197, %v6819
      %v7253 = vsel %vm3129, %v7199, %v6821
      %v7255 = vsel %vm3129, %v7201, %v6823
      %v7257 = vsel %vm3129, %v7203, %v6825
      %v7259 = vsel %vm3129, %v7205, %v6827
      %v7261 = vsel %vm3129, %v7207, %v6829
      %v7262 = vld [vmem:[%s4] sm:$0xf]
      %v7263 = vld [vmem:[%s4 + $0x4] sm:$0xf]
      %v7264 = vld [vmem:[%s4 + $0x8] sm:$0xf]
      %v7265 = vld [vmem:[%s4 + $0xc] sm:$0xf]
      %v7266 = vld [vmem:[%s4 + $0x10] sm:$0xf]
      %v7267 = vld [vmem:[%s4 + $0x14] sm:$0xf]
      %v7268 = vld [vmem:[%s4 + $0x18] sm:$0xf]
      %v7269 = vld [vmem:[%s4 + $0x1c] sm:$0xf]
      %v7270 = vld [vmem:[%s4 + $0x20] sm:$0xf]
      %v7271 = vld [vmem:[%s5] sm:$0x1]
      %v7273 = vlaneseq
      %v7274 = vshrl.u32 %v7273, 7
      %v7275 = vsub.s32 0, %v7274
      %v7276 = vrot.slane %v7271, %v7275
      %v7287 = vunpack.c.l.b16 %v7262
      %v7288 = vunpack.c.l.b16 %v7263
      %v7289 = vunpack.c.l.b16 %v7264
      %v7290 = vunpack.c.l.b16 %v7265
      %v7291 = vunpack.c.l.b16 %v7266
      %v7292 = vunpack.c.l.b16 %v7267
      %v7293 = vunpack.c.l.b16 %v7268
      %v7294 = vunpack.c.l.b16 %v7269
      %v7295 = vunpack.c.l.b16 %v7270
      %v7296 = vpack.c.b16 %v7288, %v7287
      %v7297 = vpack.c.b16 %v7290, %v7289
      %v7298 = vpack.c.b16 %v7292, %v7291
      %v7299 = vpack.c.b16 %v7294, %v7293
      %v7300 = vpack.c.b16 %v7295, %v7295
      %v7305 = vsel %vm3184, %v7209, 0
      %v7307 = vsel %vm3184, %v7211, 0
      %v7309 = vsel %vm3184, %v7213, 0
      %v7311 = vsel %vm3184, %v7215, 0
      %v7313 = vsel %vm3184, %v7217, 0
      %v7315 = vsel %vm3184, %v7219, 0
      %v7317 = vsel %vm3184, %v7221, 0
      %v7319 = vsel %vm3184, %v7223, 0
      %v7321 = vsel %vm3184, %v7225, 0
      %v7323 = vsel %vm3184, %v7227, 0
      %v7325 = vsel %vm3184, %v7229, 0
      %v7327 = vsel %vm3184, %v7231, 0
      %v7329 = vsel %vm3184, %v7233, 0
      %v7331 = vsel %vm3184, %v7235, 0
      %v7333 = vsel %vm3184, %v7237, 0
      %v7335 = vsel %vm3184, %v7239, 0
      %v7337 = vsel %vm3184, %v7241, 0
      %v7339 = vsel %vm3184, %v7243, 0
      %v7341 = vsel %vm3184, %v7245, 0
      %v7343 = vsel %vm3184, %v7247, 0
      %v7345 = vsel %vm3184, %v7249, 0
      %v7347 = vsel %vm3184, %v7251, 0
      %v7349 = vsel %vm3184, %v7253, 0
      %v7351 = vsel %vm3184, %v7255, 0
      %v7353 = vsel %vm3184, %v7257, 0
      %v7355 = vsel %vm3184, %v7259, 0
      %v7357 = vsel %vm3184, %v7261, 0
      %vm7359 = vcmask 1043456
      %v7361 = vsel %vm7359, %v7300, 0
      %7363 = vmatprep.subr.bf16.mxu0 0
      %7364 = vmatpush1.bf16.msra.mxu0 %v7296
      %7365 = vmatprep.subr.bf16.mxu0 0
      %7366 = vmatpush1.bf16.msra.mxu0 %v7297
      %7367 = vmatprep.subr.bf16.mxu0 0
      %7368 = vmatpush1.bf16.msra.mxu0 %v7298
      %7369 = vmatprep.subr.bf16.mxu0 0
      %7370 = vmatpush1.bf16.msra.mxu0 %v7299
      %7371 = vmatprep.subr.bf16.mxu0 0
      %7372 = vmatpush1.bf16.msra.mxu0 %v7361
      %7373 = vmatprep.subr.bf16.mxu0 0
      %7374 = vmatpush1.bf16.msra.mxu0 0
      %7375 = vmatprep.subr.bf16.mxu0 0
      %7376 = vmatpush1.bf16.msra.mxu0 0
      %7377 = vmatprep.subr.bf16.mxu0 0
      %7378 = vmatpush1.bf16.msra.mxu0 0
      %7379 = vmatprep.subr.bf16.mxu0 0
      %7380 = vmatpush1.bf16.msra.mxu0 0
      %7381 = vmatprep.subr.bf16.mxu0 0
      %7382 = vmatpush1.bf16.msra.mxu0 0
      %7383 = vmatprep.subr.bf16.mxu0 0
      %7384 = vmatpush1.bf16.msra.mxu0 0
      %7385 = vmatprep.subr.bf16.mxu0 0
      %7386 = vmatpush1.bf16.msra.mxu0 0
      %7387 = vmatprep.subr.bf16.mxu0 0
      %7388 = vmatpush1.bf16.msra.mxu0 0
      %7389 = vmatprep.subr.bf16.mxu0 0
      %7390 = vmatpush1.bf16.msra.mxu0 0
      %7391 = vmatprep.subr.bf16.mxu0 0
      %7392 = vmatpush1.bf16.msra.mxu0 0
      %7393 = vmatprep.subr.bf16.mxu0 0
      %7394 = vmatpush1.bf16.msra.mxu0 0
      %7395 = vmatprep.mubr.bf16.mxu0 0
      %7396 = vmatmul.mubr.bf16.gmra.mrb[0].mxu0 %v7305
      %v7397 = vpop.f32.mrb[0].mxu0
      %v7398 = vadd.f32 %v7276, %v7397
      %v7399 = vpop.f32.mrb[0].mxu0
      %v7400 = vpop.f32.mrb[0].mxu0
      %v7401 = vadd.f32 %v7276, %v7400
      %v7402 = vpop.f32.mrb[0].mxu0
      %7403 = vmatprep.mubr.bf16.mxu0 0
      %7404 = vmatmul.mubr.bf16.gmra.mrb[0].mxu0 %v7307
      %v7405 = vpop.f32.mrb[0].mxu0
      %v7406 = vadd.f32 %v7276, %v7405
      %v7407 = vpop.f32.mrb[0].mxu0
      %v7408 = vpop.f32.mrb[0].mxu0
      %v7409 = vadd.f32 %v7276, %v7408
      %v7410 = vpop.f32.mrb[0].mxu0
      %7411 = vmatprep.mubr.bf16.mxu0 0
      %7412 = vmatmul.mubr.bf16.gmra.mrb[0].mxu0 %v7309
      %v7413 = vpop.f32.mrb[0].mxu0
      %v7414 = vadd.f32 %v7276, %v7413
      %v7415 = vpop.f32.mrb[0].mxu0
      %v7416 = vpop.f32.mrb[0].mxu0
      %v7417 = vadd.f32 %v7276, %v7416
      %v7418 = vpop.f32.mrb[0].mxu0
      %7419 = vmatprep.mubr.bf16.mxu0 0
      %7420 = vmatmul.mubr.bf16.gmra.mrb[0].mxu0 %v7311
      %v7421 = vpop.f32.mrb[0].mxu0
      %v7422 = vadd.f32 %v7276, %v7421
      %v7423 = vpop.f32.mrb[0].mxu0
      %v7424 = vpop.f32.mrb[0].mxu0
      %v7425 = vadd.f32 %v7276, %v7424
      %v7426 = vpop.f32.mrb[0].mxu0
      %7427 = vmatprep.mubr.bf16.mxu0 0
      %7428 = vmatmul.mubr.bf16.gmra.mrb[0].mxu0 %v7313
      %v7429 = vpop.f32.mrb[0].mxu0
      %v7430 = vadd.f32 %v7276, %v7429
      %v7431 = vpop.f32.mrb[0].mxu0
      %v7432 = vpop.f32.mrb[0].mxu0
      %v7433 = vadd.f32 %v7276, %v7432
      %v7434 = vpop.f32.mrb[0].mxu0
      %7435 = vmatprep.mubr.bf16.mxu0 0
      %7436 = vmatmul.mubr.bf16.gmra.mrb[0].mxu0 %v7315
      %v7437 = vpop.f32.mrb[0].mxu0
      %v7438 = vadd.f32 %v7276, %v7437
      %v7439 = vpop.f32.mrb[0].mxu0
      %v7440 = vpop.f32.mrb[0].mxu0
      %v7441 = vadd.f32 %v7276, %v7440
      %v7442 = vpop.f32.mrb[0].mxu0
      %7443 = vmatprep.mubr.bf16.mxu0 0
      %7444 = vmatmul.mubr.bf16.gmra.mrb[0].mxu0 %v7317
      %v7445 = vpop.f32.mrb[0].mxu0
      %v7446 = vadd.f32 %v7276, %v7445
      %v7447 = vpop.f32.mrb[0].mxu0
      %v7448 = vpop.f32.mrb[0].mxu0
      %v7449 = vadd.f32 %v7276, %v7448
      %v7450 = vpop.f32.mrb[0].mxu0
      %7451 = vmatprep.mubr.bf16.mxu0 0
      %7452 = vmatmul.mubr.bf16.gmra.mrb[0].mxu0 %v7319
      %v7453 = vpop.f32.mrb[0].mxu0
      %v7454 = vadd.f32 %v7276, %v7453
      %v7455 = vpop.f32.mrb[0].mxu0
      %v7456 = vpop.f32.mrb[0].mxu0
      %v7457 = vadd.f32 %v7276, %v7456
      %v7458 = vpop.f32.mrb[0].mxu0
      %7459 = vmatprep.mubr.bf16.mxu0 0
      %7460 = vmatmul.mubr.bf16.gmra.mrb[0].mxu0 %v7321
      %v7461 = vpop.f32.mrb[0].mxu0
      %v7462 = vadd.f32 %v7276, %v7461
      %v7463 = vpop.f32.mrb[0].mxu0
      %v7464 = vpop.f32.mrb[0].mxu0
      %v7465 = vadd.f32 %v7276, %v7464
      %v7466 = vpop.f32.mrb[0].mxu0
      %7467 = vmatprep.mubr.bf16.mxu0 0
      %7468 = vmatmul.mubr.bf16.gmra.mrb[0].mxu0 %v7323
      %v7469 = vpop.f32.mrb[0].mxu0
      %v7470 = vadd.f32 %v7276, %v7469
      %v7471 = vpop.f32.mrb[0].mxu0
      %v7472 = vpop.f32.mrb[0].mxu0
      %v7473 = vadd.f32 %v7276, %v7472
      %v7474 = vpop.f32.mrb[0].mxu0
      %7475 = vmatprep.mubr.bf16.mxu0 0
      %7476 = vmatmul.mubr.bf16.gmra.mrb[0].mxu0 %v7325
      %v7477 = vpop.f32.mrb[0].mxu0
      %v7478 = vadd.f32 %v7276, %v7477
      %v7479 = vpop.f32.mrb[0].mxu0
      %v7480 = vpop.f32.mrb[0].mxu0
      %v7481 = vadd.f32 %v7276, %v7480
      %v7482 = vpop.f32.mrb[0].mxu0
      %7483 = vmatprep.mubr.bf16.mxu0 0
      %7484 = vmatmul.mubr.bf16.gmra.mrb[0].mxu0 %v7327
      %v7485 = vpop.f32.mrb[0].mxu0
      %v7486 = vadd.f32 %v7276, %v7485
      %v7487 = vpop.f32.mrb[0].mxu0
      %v7488 = vpop.f32.mrb[0].mxu0
      %v7489 = vadd.f32 %v7276, %v7488
      %v7490 = vpop.f32.mrb[0].mxu0
      %7491 = vmatprep.mubr.bf16.mxu0 0
      %7492 = vmatmul.mubr.bf16.gmra.mrb[0].mxu0 %v7329
      %v7493 = vpop.f32.mrb[0].mxu0
      %v7494 = vadd.f32 %v7276, %v7493
      %v7495 = vpop.f32.mrb[0].mxu0
      %v7496 = vpop.f32.mrb[0].mxu0
      %v7497 = vadd.f32 %v7276, %v7496
      %v7498 = vpop.f32.mrb[0].mxu0
      %7499 = vmatprep.mubr.bf16.mxu0 0
      %7500 = vmatmul.mubr.bf16.gmra.mrb[0].mxu0 %v7331
      %v7501 = vpop.f32.mrb[0].mxu0
      %v7502 = vadd.f32 %v7276, %v7501
      %v7503 = vpop.f32.mrb[0].mxu0
      %v7504 = vpop.f32.mrb[0].mxu0
      %v7505 = vadd.f32 %v7276, %v7504
      %v7506 = vpop.f32.mrb[0].mxu0
      %7507 = vmatprep.mubr.bf16.mxu0 0
      %7508 = vmatmul.mubr.bf16.gmra.mrb[0].mxu0 %v7333
      %v7509 = vpop.f32.mrb[0].mxu0
      %v7510 = vadd.f32 %v7276, %v7509
      %v7511 = vpop.f32.mrb[0].mxu0
      %v7512 = vpop.f32.mrb[0].mxu0
      %v7513 = vadd.f32 %v7276, %v7512
      %v7514 = vpop.f32.mrb[0].mxu0
      %7515 = vmatprep.mubr.bf16.mxu0 0
      %7516 = vmatmul.mubr.bf16.gmra.mrb[0].mxu0 %v7335
      %v7517 = vpop.f32.mrb[0].mxu0
      %v7518 = vadd.f32 %v7276, %v7517
      %v7519 = vpop.f32.mrb[0].mxu0
      %v7520 = vpop.f32.mrb[0].mxu0
      %v7521 = vadd.f32 %v7276, %v7520
      %v7522 = vpop.f32.mrb[0].mxu0
      %7523 = vmatprep.mubr.bf16.mxu0 0
      %7524 = vmatmul.mubr.bf16.gmra.mrb[0].mxu0 %v7337
      %v7525 = vpop.f32.mrb[0].mxu0
      %v7526 = vadd.f32 %v7276, %v7525
      %v7527 = vpop.f32.mrb[0].mxu0
      %v7528 = vpop.f32.mrb[0].mxu0
      %v7529 = vadd.f32 %v7276, %v7528
      %v7530 = vpop.f32.mrb[0].mxu0
      %7531 = vmatprep.mubr.bf16.mxu0 0
      %7532 = vmatmul.mubr.bf16.gmra.mrb[0].mxu0 %v7339
      %v7533 = vpop.f32.mrb[0].mxu0
      %v7534 = vadd.f32 %v7276, %v7533
      %v7535 = vpop.f32.mrb[0].mxu0
      %v7536 = vpop.f32.mrb[0].mxu0
      %v7537 = vadd.f32 %v7276, %v7536
      %v7538 = vpop.f32.mrb[0].mxu0
      %7539 = vmatprep.mubr.bf16.mxu0 0
      %7540 = vmatmul.mubr.bf16.gmra.mrb[0].mxu0 %v7341
      %v7541 = vpop.f32.mrb[0].mxu0
      %v7542 = vadd.f32 %v7276, %v7541
      %v7543 = vpop.f32.mrb[0].mxu0
      %v7544 = vpop.f32.mrb[0].mxu0
      %v7545 = vadd.f32 %v7276, %v7544
      %v7546 = vpop.f32.mrb[0].mxu0
      %7547 = vmatprep.mubr.bf16.mxu0 0
      %7548 = vmatmul.mubr.bf16.gmra.mrb[0].mxu0 %v7343
      %v7549 = vpop.f32.mrb[0].mxu0
      %v7550 = vadd.f32 %v7276, %v7549
      %v7551 = vpop.f32.mrb[0].mxu0
      %v7552 = vpop.f32.mrb[0].mxu0
      %v7553 = vadd.f32 %v7276, %v7552
      %v7554 = vpop.f32.mrb[0].mxu0
      %7555 = vmatprep.mubr.bf16.mxu0 0
      %7556 = vmatmul.mubr.bf16.gmra.mrb[0].mxu0 %v7345
      %v7557 = vpop.f32.mrb[0].mxu0
      %v7558 = vadd.f32 %v7276, %v7557
      %v7559 = vpop.f32.mrb[0].mxu0
      %v7560 = vpop.f32.mrb[0].mxu0
      %v7561 = vadd.f32 %v7276, %v7560
      %v7562 = vpop.f32.mrb[0].mxu0
      %7563 = vmatprep.mubr.bf16.mxu0 0
      %7564 = vmatmul.mubr.bf16.gmra.mrb[0].mxu0 %v7347
      %v7565 = vpop.f32.mrb[0].mxu0
      %v7566 = vadd.f32 %v7276, %v7565
      %v7567 = vpop.f32.mrb[0].mxu0
      %v7568 = vpop.f32.mrb[0].mxu0
      %v7569 = vadd.f32 %v7276, %v7568
      %v7570 = vpop.f32.mrb[0].mxu0
      %7571 = vmatprep.mubr.bf16.mxu0 0
      %7572 = vmatmul.mubr.bf16.gmra.mrb[0].mxu0 %v7349
      %v7573 = vpop.f32.mrb[0].mxu0
      %v7574 = vadd.f32 %v7276, %v7573
      %v7575 = vpop.f32.mrb[0].mxu0
      %v7576 = vpop.f32.mrb[0].mxu0
      %v7577 = vadd.f32 %v7276, %v7576
      %v7578 = vpop.f32.mrb[0].mxu0
      %7579 = vmatprep.mubr.bf16.mxu0 0
      %7580 = vmatmul.mubr.bf16.gmra.mrb[0].mxu0 %v7351
      %v7581 = vpop.f32.mrb[0].mxu0
      %v7582 = vadd.f32 %v7276, %v7581
      %v7583 = vpop.f32.mrb[0].mxu0
      %v7584 = vpop.f32.mrb[0].mxu0
      %v7585 = vadd.f32 %v7276, %v7584
      %v7586 = vpop.f32.mrb[0].mxu0
      %7587 = vmatprep.mubr.bf16.mxu0 0
      %7588 = vmatmul.mubr.bf16.gmra.mrb[0].mxu0 %v7353
      %v7589 = vpop.f32.mrb[0].mxu0
      %v7590 = vadd.f32 %v7276, %v7589
      %v7591 = vpop.f32.mrb[0].mxu0
      %v7592 = vpop.f32.mrb[0].mxu0
      %v7593 = vadd.f32 %v7276, %v7592
      %v7594 = vpop.f32.mrb[0].mxu0
      %7595 = vmatprep.mubr.bf16.mxu0 0
      %7596 = vmatmul.mubr.bf16.gmra.mrb[0].mxu0 %v7355
      %v7597 = vpop.f32.mrb[0].mxu0
      %v7598 = vadd.f32 %v7276, %v7597
      %v7599 = vpop.f32.mrb[0].mxu0
      %v7600 = vpop.f32.mrb[0].mxu0
      %v7601 = vadd.f32 %v7276, %v7600
      %v7602 = vpop.f32.mrb[0].mxu0
      %7603 = vmatprep.mubr.bf16.mxu0 0
      %7604 = vmatmul.mubr.bf16.gmra.mrb[0].mxu0 %v7357
      %v7605 = vpop.f32.mrb[0].mxu0
      %v7606 = vadd.f32 %v7276, %v7605
      %v7607 = vpop.f32.mrb[0].mxu0
      %v7608 = vpop.f32.mrb[0].mxu0
      %v7609 = vadd.f32 %v7276, %v7608
      %v7610 = vpop.f32.mrb[0].mxu0
      %7611 = vdwg.mxu0
      %v7612 = vmax.f32 %v7398, 0.0
      %v7613 = vmax.f32 %v7401, 0.0
      %v7614 = vmax.f32 %v7406, 0.0
      %v7615 = vmax.f32 %v7409, 0.0
      %v7616 = vmax.f32 %v7414, 0.0
      %v7617 = vmax.f32 %v7417, 0.0
      %v7618 = vmax.f32 %v7422, 0.0
      %v7619 = vmax.f32 %v7425, 0.0
      %v7620 = vmax.f32 %v7430, 0.0
      %v7621 = vmax.f32 %v7433, 0.0
      %v7622 = vmax.f32 %v7438, 0.0
      %v7623 = vmax.f32 %v7441, 0.0
      %v7624 = vmax.f32 %v7446, 0.0
      %v7625 = vmax.f32 %v7449, 0.0
      %v7626 = vmax.f32 %v7454, 0.0
      %v7627 = vmax.f32 %v7457, 0.0
      %v7628 = vmax.f32 %v7462, 0.0
      %v7629 = vmax.f32 %v7465, 0.0
      %v7630 = vmax.f32 %v7470, 0.0
      %v7631 = vmax.f32 %v7473, 0.0
      %v7632 = vmax.f32 %v7478, 0.0
      %v7633 = vmax.f32 %v7481, 0.0
      %v7634 = vmax.f32 %v7486, 0.0
      %v7635 = vmax.f32 %v7489, 0.0
      %v7636 = vmax.f32 %v7494, 0.0
      %v7637 = vmax.f32 %v7497, 0.0
      %v7638 = vmax.f32 %v7502, 0.0
      %v7639 = vmax.f32 %v7505, 0.0
      %v7640 = vmax.f32 %v7510, 0.0
      %v7641 = vmax.f32 %v7513, 0.0
      %v7642 = vmax.f32 %v7518, 0.0
      %v7643 = vmax.f32 %v7521, 0.0
      %v7644 = vmax.f32 %v7526, 0.0
      %v7645 = vmax.f32 %v7529, 0.0
      %v7646 = vmax.f32 %v7534, 0.0
      %v7647 = vmax.f32 %v7537, 0.0
      %v7648 = vmax.f32 %v7542, 0.0
      %v7649 = vmax.f32 %v7545, 0.0
      %v7650 = vmax.f32 %v7550, 0.0
      %v7651 = vmax.f32 %v7553, 0.0
      %v7652 = vmax.f32 %v7558, 0.0
      %v7653 = vmax.f32 %v7561, 0.0
      %v7654 = vmax.f32 %v7566, 0.0
      %v7655 = vmax.f32 %v7569, 0.0
      %v7656 = vmax.f32 %v7574, 0.0
      %v7657 = vmax.f32 %v7577, 0.0
      %v7658 = vmax.f32 %v7582, 0.0
      %v7659 = vmax.f32 %v7585, 0.0
      %v7660 = vmax.f32 %v7590, 0.0
      %v7661 = vmax.f32 %v7593, 0.0
      %v7662 = vmax.f32 %v7598, 0.0
      %v7663 = vmax.f32 %v7601, 0.0
      %v7664 = vmax.f32 %v7606, 0.0
      %v7665 = vmax.f32 %v7609, 0.0
      %7666 = vst.msk [vmem:[%s298] sm:$0xff] %vm2744, %v7612
      %7667 = vst.msk [vmem:[%s298 + $0x8] sm:$0xff] %vm2744, %v7613
      %7668 = vst.msk [vmem:[%s298 + $0x10] sm:$0xff] %vm2744, %v7614
      %7669 = vst.msk [vmem:[%s298 + $0x18] sm:$0xff] %vm2744, %v7615
      %7670 = vst.msk [vmem:[%s298 + $0x20] sm:$0xff] %vm2744, %v7616
      %7671 = vst.msk [vmem:[%s298 + $0x28] sm:$0xff] %vm2744, %v7617
      %7672 = vst.msk [vmem:[%s298 + $0x30] sm:$0xff] %vm2744, %v7618
      %7673 = vst.msk [vmem:[%s298 + $0x38] sm:$0xff] %vm2744, %v7619
      %7674 = vst.msk [vmem:[%s298 + $0x40] sm:$0xff] %vm2744, %v7620
      %7675 = vst.msk [vmem:[%s298 + $0x48] sm:$0xff] %vm2744, %v7621
      %7676 = vst.msk [vmem:[%s298 + $0x50] sm:$0xff] %vm2744, %v7622
      %7677 = vst.msk [vmem:[%s298 + $0x58] sm:$0xff] %vm2744, %v7623
      %7678 = vst.msk [vmem:[%s298 + $0x60] sm:$0xff] %vm2744, %v7624
      %7679 = vst.msk [vmem:[%s298 + $0x68] sm:$0xff] %vm2744, %v7625
      %7680 = vst.msk [vmem:[%s298 + $0x70] sm:$0xff] %vm2744, %v7626
      %7681 = vst.msk [vmem:[%s298 + $0x78] sm:$0xff] %vm2744, %v7627
      %7682 = vst.msk [vmem:[%s298 + $0x80] sm:$0xff] %vm2744, %v7628
      %7683 = vst.msk [vmem:[%s298 + $0x88] sm:$0xff] %vm2744, %v7629
      %7684 = vst.msk [vmem:[%s298 + $0x90] sm:$0xff] %vm2744, %v7630
      %7685 = vst.msk [vmem:[%s298 + $0x98] sm:$0xff] %vm2744, %v7631
      %7686 = vst.msk [vmem:[%s298 + $0xa0] sm:$0xff] %vm2744, %v7632
      %7687 = vst.msk [vmem:[%s298 + $0xa8] sm:$0xff] %vm2744, %v7633
      %7688 = vst.msk [vmem:[%s298 + $0xb0] sm:$0xff] %vm2744, %v7634
      %7689 = vst.msk [vmem:[%s298 + $0xb8] sm:$0xff] %vm2744, %v7635
      %7690 = vst.msk [vmem:[%s298 + $0xc0] sm:$0xff] %vm2744, %v7636
      %7691 = vst.msk [vmem:[%s298 + $0xc8] sm:$0xff] %vm2744, %v7637
      %7692 = vst.msk [vmem:[%s298 + $0xd0] sm:$0xff] %vm2744, %v7638
      %7693 = vst.msk [vmem:[%s298 + $0xd8] sm:$0xff] %vm2744, %v7639
      %7694 = vst.msk [vmem:[%s298 + $0xe0] sm:$0xff] %vm2744, %v7640
      %7695 = vst.msk [vmem:[%s298 + $0xe8] sm:$0xff] %vm2744, %v7641
      %7696 = vst.msk [vmem:[%s298 + $0xf0] sm:$0xff] %vm2744, %v7642
      %7697 = vst.msk [vmem:[%s298 + $0xf8] sm:$0xff] %vm2744, %v7643
      %7698 = vst.msk [vmem:[%s298 + $0x100] sm:$0xff] %vm2744, %v7644
      %7699 = vst.msk [vmem:[%s298 + $0x108] sm:$0xff] %vm2744, %v7645
      %7700 = vst.msk [vmem:[%s298 + $0x110] sm:$0xff] %vm2744, %v7646
      %7701 = vst.msk [vmem:[%s298 + $0x118] sm:$0xff] %vm2744, %v7647
      %7702 = vst.msk [vmem:[%s298 + $0x120] sm:$0xff] %vm2744, %v7648
      %7703 = vst.msk [vmem:[%s298 + $0x128] sm:$0xff] %vm2744, %v7649
      %7704 = vst.msk [vmem:[%s298 + $0x130] sm:$0xff] %vm2744, %v7650
      %7705 = vst.msk [vmem:[%s298 + $0x138] sm:$0xff] %vm2744, %v7651
      %7706 = vst.msk [vmem:[%s298 + $0x140] sm:$0xff] %vm2744, %v7652
      %7707 = vst.msk [vmem:[%s298 + $0x148] sm:$0xff] %vm2744, %v7653
      %7708 = vst.msk [vmem:[%s298 + $0x150] sm:$0xff] %vm2744, %v7654
      %7709 = vst.msk [vmem:[%s298 + $0x158] sm:$0xff] %vm2744, %v7655
      %7710 = vst.msk [vmem:[%s298 + $0x160] sm:$0xff] %vm2744, %v7656
      %7711 = vst.msk [vmem:[%s298 + $0x168] sm:$0xff] %vm2744, %v7657
      %7712 = vst.msk [vmem:[%s298 + $0x170] sm:$0xff] %vm2744, %v7658
      %7713 = vst.msk [vmem:[%s298 + $0x178] sm:$0xff] %vm2744, %v7659
      %7714 = vst.msk [vmem:[%s298 + $0x180] sm:$0xff] %vm2744, %v7660
      %7715 = vst.msk [vmem:[%s298 + $0x188] sm:$0xff] %vm2744, %v7661
      %7716 = vst.msk [vmem:[%s298 + $0x190] sm:$0xff] %vm2744, %v7662
      %7717 = vst.msk [vmem:[%s298 + $0x198] sm:$0xff] %vm2744, %v7663
      %7718 = vst.msk [vmem:[%s298 + $0x1a0] sm:$0xff] %vm2744, %v7664
      %7719 = vst.msk [vmem:[%s298 + $0x1a8] sm:$0xff] %vm2744, %v7665
      %p7720 = scmp.lt.s32.totalorder %s18, 1
      %s7721 = scalar_select %p7720, %s18, 1
      %s7722 = smul.addr %s7721, 54
      %s7723 = smul.addr %s7722, 8
      %s7724 = scalar_lea.vmem %s7, %s7723
      // Predicated region
      $region49: #{upsam_forward.3} parent=47 // pred_check
        %p7725 = pneg %p193
      $region50: #{upsam_forward.3} parent=47 // pred_check_branch
        %7727 = sbr.rel (%p7725) target = $region52
      $region51: #{upsam_forward.3} parent=47 // pred_region
        _
      $region52: #{upsam_forward.3} parent=47 // pred_fallthru
        _
    $region48: #{upsam_forward.3} parent=5 // pred_fallthru
      _
    %p7728 = scmp.le.s32.totalorder 2, %s13
    // Predicated region
    $region53: #{upsam_forward.3} parent=5 // pred_check
      %p7729 = pneg %p7728
    $region54: #{upsam_forward.3} parent=5 // pred_check_branch
      %7731 = sbr.rel (%p7729) target = $region56
    $region55: #{upsam_forward.3} parent=5 // pred_region
      %s7732 = ssub.s32 %s13, 2
      // Predicated region
      $region57: #{upsam_forward.3} parent=55 // pred_check
        %p7733 = pneg %p199
      $region58: #{upsam_forward.3} parent=55 // pred_check_branch
        %7735 = sbr.rel (%p7733) target = $region60
      $region59: #{upsam_forward.3} parent=55 // pred_region
        %p7736 = scmp.lt.s32.totalorder %s19, 1
        %s7737 = scalar_select %p7736, %s19, 1
        %s7738 = smul.addr %s7737, 54
        %s7739 = smul.addr %s7738, 8
        %s7740 = scalar_lea.vmem %s7, %s7739
      $region60: #{upsam_forward.3} parent=55 // pred_fallthru
        _
    $region56: #{upsam_forward.3} parent=5 // pred_fallthru
      _
  $region6: #{upsam_forward.3} parent=0 // loop_footer
    %s17 = sadd.s32 1, %s13
  $region7: #{upsam_forward.3} parent=0 // loop_footer_branch
    %12 = sbr.rel target = $region3
  $region8: #{upsam_forward.3} parent=0 // loop_exit
    _

</llo_original>
